<compile_context>
chip_gen: v7x
topology: tpu7x:2x2x1
jax: 0.10.0
libtpu: 0.0.40
codegen_flags: <defaults>
</compile_context>

<pallas_src>
import functools

import jax
import jax.numpy as jnp
from jax import lax
from jax.experimental import pallas as pl
from jax.experimental.pallas import tpu as pltpu

LANE = 128
_GRID_PAD = 3          # zero border carried by every layer (7x7 conv needs 3)


def _round_up(x, m):
    return (x + m - 1) // m * m


# ---------------------------------------------------------------------------
# Fused Pallas kernel (one grid step == batch_per_step full image forwards)
# ---------------------------------------------------------------------------
def _make_fused_kernel(W, NP, Bt, nres, margin):
    Wp = W + 2 * _GRID_PAD     # padded grid width (flat row stride)
    Nb = Bt * NP               # lane extent handled per grid step

    def _im2col(buf):
        # buf: (C, margin + Nb + margin) bf16 scratch ref; the zero-bordered
        # activation sits at lane offset `margin`.  Tap (kh, kw) of a "same"
        # conv is a shifted copy of the flat activation -> one static lane
        # slice per tap, stacked along sublanes: (k*k*C, Nb) bf16 patches.
        # (Shift leakage across image / margin boundaries only ever feeds
        # border outputs, which are masked to zero below.)
        k = _im2col.k
        half = k // 2
        slabs = []
        for kh in range(k):
            for kw in range(k):
                off = (kh - half) * Wp + (kw - half)
                slabs.append(buf[:, margin + off: margin + off + Nb])
        return jnp.concatenate(slabs, axis=0)

    def kernel(x_ref, mask_ref, w0_ref, b0_ref, wr_ref, br_ref,
               wf_ref, bf_ref, out_ref, x_buf, h_buf):
        mask = mask_ref[...]                                   # (1, Nb) f32

        # Persistent pre-zeroed scratch: margins + border stay zero so the
        # static lane slices implement zero padding with no pad/concat work.
        x_buf[...] = jnp.zeros_like(x_buf)
        h_buf[...] = jnp.zeros_like(h_buf)
        x_buf[:, margin:margin + Nb] = x_ref[...]              # bf16 input

        # Layer 0: 7x7 masked-A conv == one (Chid, 49*Cinp) x (49*Cinp, Nb).
        _im2col.k = 7
        p0 = _im2col(x_buf)
        h = jnp.dot(w0_ref[...], p0, preferred_element_type=jnp.float32)
        h = (h + b0_ref[...]) * mask                           # border -> 0
        h_buf[:, margin:margin + Nb] = h.astype(h_buf.dtype)

        # Residual blocks: h += conv2(relu(conv1(h))), 3x3 masked-B convs.
        _im2col.k = 3

        def block(r, h):
            p1 = _im2col(h_buf)                                # (9*Chid, Nb)
            h1 = jnp.dot(wr_ref[2 * r], p1,
                         preferred_element_type=jnp.float32)
            h1 = jnp.maximum(h1 + br_ref[2 * r], 0.0) * mask   # ReLU, f32
            h_buf[:, margin:margin + Nb] = h1.astype(h_buf.dtype)
            p2 = _im2col(h_buf)
            h2 = jnp.dot(wr_ref[2 * r + 1], p2,
                         preferred_element_type=jnp.float32)
            h = h + (h2 + br_ref[2 * r + 1]) * mask            # residual, f32
            h_buf[:, margin:margin + Nb] = h.astype(h_buf.dtype)
            return h

        h = lax.fori_loop(0, nres, block, h, unroll=nres <= 4)

        # 1x1 head == per-pixel matmul; lane-dense (Cfin_pad, Nb) store.
        y = jnp.dot(wf_ref[...], h.astype(jnp.bfloat16),
                    preferred_element_type=jnp.float32) + bf_ref[...]
        out_ref[...] = y.astype(out_ref.dtype)

    return kernel


# ---------------------------------------------------------------------------
# Masks, parameter init and one-time weight preparation
# ---------------------------------------------------------------------------
def _pixelcnn_mask(kH, kW, cin, cout, mask_type):
    # Same mask as the PyTorch (Cout, Cin, kH, kW) buffer, in (kH,kW,Cin,Cout).
    mask = jnp.ones((kH, kW, cin, cout), jnp.float32)
    off = 1 if mask_type == "B" else 0
    mask = mask.at[kH // 2, kW // 2 + off:, :, :].set(0.0)
    mask = mask.at[kH // 2 + 1:, :, :, :].set(0.0)
    return mask


def _init_conv(key, kH, kW, cin, cout):
    kw_key, kb_key = jax.random.split(key)
    fan_in = cin * kH * kW
    w = jax.random.normal(kw_key, (kH, kW, cin, cout), jnp.float32)
    w = w * (1.0 / jnp.sqrt(jnp.float32(fan_in)))
    b = 0.01 * jax.random.normal(kb_key, (cout,), jnp.float32)
    return w, b


def init_pixelcnnpp_params(key, in_channels, hidden_channels, num_layers):
    params = {}
    keys = jax.random.split(key, 2 * (num_layers - 2) + 2)
    params["l0"] = _init_conv(keys[0], 7, 7, in_channels, hidden_channels)
    for i in range(num_layers - 2):
        params[f"res{i}_c1"] = _init_conv(
            keys[1 + 2 * i], 3, 3, hidden_channels, hidden_channels)
        params[f"res{i}_c2"] = _init_conv(
            keys[2 + 2 * i], 3, 3, hidden_channels, hidden_channels)
    params["final"] = _init_conv(keys[-1], 1, 1, hidden_channels,
                                 10 * in_channels)
    return params


def prepare_params(params, in_channels, hidden_channels, num_layers,
                   mxu_dtype=jnp.bfloat16):
    """Fold the PixelCNN masks into the weights ONCE, pad channel dims to
    layout-friendly sizes, and transpose to the channel-major (Cout, K)
    im2col layout expected by the fused kernel.

    NOTE: PyTorch's MaskedConv2d does `weight.data *= mask` in-place on every
    forward; the mask is idempotent, so folding it in once is equivalent.
    """
    assert num_layers >= 3, "need at least one residual block"
    nres = num_layers - 2
    cin_pad = _round_up(in_channels, 16)        # bf16 sublane pack = 16
    cfin = 10 * in_channels
    cfin_pad = _round_up(cfin, 8)

    w0, b0 = params["l0"]                                      # (7,7,Cin,Chid)
    w0 = w0 * _pixelcnn_mask(7, 7, in_channels, hidden_channels, "A")
    w0 = jnp.pad(w0, ((0, 0), (0, 0), (0, cin_pad - in_channels), (0, 0)))
    w0m = w0.reshape(49 * cin_pad, hidden_channels).T.astype(mxu_dtype)
    b0r = b0.reshape(hidden_channels, 1).astype(jnp.float32)

    mask_b = _pixelcnn_mask(3, 3, hidden_channels, hidden_channels, "B")
    wr, br = [], []
    for i in range(nres):
        for name in ("c1", "c2"):
            w, b = params[f"res{i}_{name}"]
            wr.append((w * mask_b).reshape(9 * hidden_channels,
                                           hidden_channels).T)
            br.append(b.reshape(hidden_channels, 1))
    wr = jnp.stack(wr).astype(mxu_dtype)          # (2*nres, Chid, 9*Chid)
    br = jnp.stack(br).astype(jnp.float32)        # (2*nres, Chid, 1)

    wf, bf = params["final"]                      # (1,1,Chid,cfin)
    wf = jnp.pad(wf.reshape(hidden_channels, cfin),
                 ((0, 0), (0, cfin_pad - cfin)))
    wfm = wf.T.astype(mxu_dtype)                  # (cfin_pad, Chid)
    bfr = jnp.pad(bf, (0, cfin_pad - cfin)).reshape(cfin_pad, 1)
    bfr = bfr.astype(jnp.float32)
    return (w0m, b0r, wr, br, wfm, bfr)


# ---------------------------------------------------------------------------
# Forward pass (wrapper around the single pallas_call)
# ---------------------------------------------------------------------------
@functools.partial(jax.jit, static_argnums=(2, 3, 4, 5))
def pixelcnnpp_forward(prep, x_nchw, in_channels, hidden_channels, num_layers,
                       batch_per_step=1):
    nres = num_layers - 2
    B, _, H, W = x_nchw.shape
    Bt = batch_per_step
    assert B % Bt == 0, "batch must be divisible by batch_per_step"
    cin_pad = _round_up(in_channels, 16)
    cfin = 10 * in_channels
    cfin_pad = _round_up(cfin, 8)
    Hp, Wp = H + 2 * _GRID_PAD, W + 2 * _GRID_PAD
    NP = _round_up(Hp * Wp, LANE)                 # per-image flat lane extent
    Nb = Bt * NP
    margin = _round_up(_GRID_PAD * Wp + _GRID_PAD, LANE)   # >= max tap offset
    K0, K3 = 49 * cin_pad, 9 * hidden_channels
    w0m, b0r, wr, br, wfm, bfr = prep

    # ---- one-time layout plumbing (tiny, stays in XLA) ---------------------
    # Channel-major, spatially zero-bordered, flattened so HW sits on lanes.
    xp = jnp.pad(x_nchw, ((0, 0), (0, cin_pad - in_channels),
                          (_GRID_PAD, _GRID_PAD), (_GRID_PAD, _GRID_PAD)))
    xf = jnp.pad(xp.reshape(B, cin_pad, Hp * Wp),
                 ((0, 0), (0, 0), (0, NP - Hp * Wp)))
    xf = jnp.transpose(xf, (1, 0, 2)).reshape(cin_pad, B * NP)
    xf = xf.astype(jnp.bfloat16)                               # feeds the MXU

    # Interior mask over one grid step's lane extent: 1 on the HxW interior of
    # each padded image, 0 on the 3-wide border and the flat-alignment tail.
    p = jnp.arange(NP)
    row, col = p // Wp, p % Wp
    interior = ((p < Hp * Wp)
                & (row >= _GRID_PAD) & (row < _GRID_PAD + H)
                & (col >= _GRID_PAD) & (col < _GRID_PAD + W))
    mask = jnp.tile(interior.astype(jnp.float32)[None, :], (1, Bt))

    kernel = _make_fused_kernel(W, NP, Bt, nres, margin)
    out_flat = pl.pallas_call(
        kernel,
        out_shape=jax.ShapeDtypeStruct((cfin_pad, B * NP), jnp.float32),
        grid=(B // Bt,),
        in_specs=[
            pl.BlockSpec((cin_pad, Nb), lambda i: (0, i)),
            pl.BlockSpec((1, Nb), lambda i: (0, 0)),
            pl.BlockSpec((hidden_channels, K0), lambda i: (0, 0)),
            pl.BlockSpec((hidden_channels, 1), lambda i: (0, 0)),
            pl.BlockSpec((2 * nres, hidden_channels, K3), lambda i: (0, 0, 0)),
            pl.BlockSpec((2 * nres, hidden_channels, 1), lambda i: (0, 0, 0)),
            pl.BlockSpec((cfin_pad, hidden_channels), lambda i: (0, 0)),
            pl.BlockSpec((cfin_pad, 1), lambda i: (0, 0)),
        ],
        out_specs=pl.BlockSpec((cfin_pad, Nb), lambda i: (0, i)),
        scratch_shapes=[
            pltpu.VMEM((cin_pad, Nb + 2 * margin), jnp.bfloat16),
            pltpu.VMEM((hidden_channels, Nb + 2 * margin), jnp.bfloat16),
        ],
        compiler_params=pltpu.CompilerParams(
            dimension_semantics=("parallel",)),
    )(xf, mask, w0m, b0r, wr, br, wfm, bfr)

    # ---- back to the PyTorch output layout (tiny, stays in XLA) ------------
    out = out_flat[:cfin].reshape(cfin, B, NP)[:, :, :Hp * Wp]
    out = out.reshape(cfin, B, Hp, Wp)[:, :, _GRID_PAD:_GRID_PAD + H,
                                       _GRID_PAD:_GRID_PAD + W]
    out = jnp.transpose(out, (1, 2, 3, 0))         # (B, H, W, 10*Cin)
    return out.reshape(B, H, W, 10, in_channels)


# ---------------------------------------------------------------------------
# Pure-JAX reference (numerical cross-check in __main__)
# ---------------------------------------------------------------------------
def _conv_ref(h, w, b, pad):
    out = jax.lax.conv_general_dilated(
        h, w, window_strides=(1, 1), padding=[(pad, pad), (pad, pad)],
        dimension_numbers=("NHWC", "HWIO", "NHWC"),
        precision=jax.lax.Precision.HIGHEST)
    return out + b.reshape(1, 1, 1, -1)


def _reference_forward(params, x_nchw, in_channels, hidden_channels,
                       num_layers):
    x = jnp.transpose(x_nchw, (0, 2, 3, 1))
    w0, b0 = params["l0"]
    h = _conv_ref(x, w0 * _pixelcnn_mask(7, 7, in_channels, hidden_channels,
                                         "A"), b0, 3)
    mb = _pixelcnn_mask(3, 3, hidden_channels, hidden_channels, "B")
    for i in range(num_layers - 2):
        w1, b1 = params[f"res{i}_c1"]
        w2, b2 = params[f"res{i}_c2"]
        h = h + _conv_ref(jax.nn.relu(_conv_ref(h, w1 * mb, b1, 1)),
                          w2 * mb, b2, 1)
    wf, bf = params["final"]
    out = _conv_ref(h, wf, bf, 0)
    B, H, W, _ = out.shape
    return out.reshape(B, H, W, 10, in_channels)


if __name__ == "__main__":
    key = jax.random.PRNGKey(0)
    k_param, k_x = jax.random.split(key)

    B, C_IN, H, W = 2, 3, 16, 16
    HIDDEN, NUM_LAYERS = 32, 4   # 1 masked-A conv, 2 residual blocks, 1x1 head

    params = init_pixelcnnpp_params(k_param, C_IN, HIDDEN, NUM_LAYERS)
    prep = prepare_params(params, C_IN, HIDDEN, NUM_LAYERS)   # once per model
    x = jax.random.normal(k_x, (B, C_IN, H, W), jnp.float32)

    # batch_per_step=1 keeps grid=(2,) so both v7x TensorCores get work; raise
    # it for larger batches to fatten N and amortize per-step fixed cost.
    out = pixelcnnpp_forward(prep, x, C_IN, HIDDEN, NUM_LAYERS, 1)
    out = jax.block_until_ready(out)

    assert out.shape == (B, H, W, 10, C_IN), out.shape
    assert out.dtype == jnp.float32
    assert bool(jnp.all(jnp.isfinite(out)))

    # Cross-check: relative tolerance (kernel matmuls use bf16 weights and
    # activations with f32 accumulation) plus a loose absolute guard.
    ref = _reference_forward(params, x, C_IN, HIDDEN, NUM_LAYERS)
    max_err = float(jnp.max(jnp.abs(out - ref)))
    scale = float(jnp.max(jnp.abs(ref)))
    assert max_err < 0.5, (max_err, scale)
    assert max_err < 0.05 * max(scale, 1.0), (max_err, scale)

    print("KERNEL_OK")
</pallas_src>

<mosaic_0001>
module attributes {stable_mosaic.version = 11 : i64} {
  func.func @kernel(%arg0: i32, %arg1: memref<16x512xbf16, #tpu.memory_space<vmem>>, %arg2: memref<1x512xf32, #tpu.memory_space<vmem>>, %arg3: memref<32x784xbf16, #tpu.memory_space<vmem>>, %arg4: memref<32x1xf32, #tpu.memory_space<vmem>>, %arg5: memref<4x32x288xbf16, #tpu.memory_space<vmem>>, %arg6: memref<4x32x1xf32, #tpu.memory_space<vmem>>, %arg7: memref<32x32xbf16, #tpu.memory_space<vmem>>, %arg8: memref<32x1xf32, #tpu.memory_space<vmem>>, %arg9: memref<32x512xf32, #tpu.memory_space<vmem>>, %arg10: memref<16x768xbf16, #tpu.memory_space<vmem>>, %arg11: memref<32x768xbf16, #tpu.memory_space<vmem>>) attributes {dimension_semantics = [#tpu.dimension_semantics<parallel>], iteration_bounds = array<i64: 2>, scalar_prefetch = 0 : i64, scratch_operands = 2 : i64, tpu.core_type = #tpu.core_type<tc>, window_params = [{transform_indices = @transform_0, window_bounds = array<i64: 16, 512>}, {pipeline_mode = #tpu.pipeline_mode<synchronous>, transform_indices = @transform_1, window_bounds = array<i64: 1, 512>}, {pipeline_mode = #tpu.pipeline_mode<synchronous>, transform_indices = @transform_2, window_bounds = array<i64: 32, 784>}, {pipeline_mode = #tpu.pipeline_mode<synchronous>, transform_indices = @transform_3, window_bounds = array<i64: 32, 1>}, {pipeline_mode = #tpu.pipeline_mode<synchronous>, transform_indices = @transform_4, window_bounds = array<i64: 4, 32, 288>}, {pipeline_mode = #tpu.pipeline_mode<synchronous>, transform_indices = @transform_5, window_bounds = array<i64: 4, 32, 1>}, {pipeline_mode = #tpu.pipeline_mode<synchronous>, transform_indices = @transform_6, window_bounds = array<i64: 32, 32>}, {pipeline_mode = #tpu.pipeline_mode<synchronous>, transform_indices = @transform_7, window_bounds = array<i64: 32, 1>}, {transform_indices = @transform_8, window_bounds = array<i64: 32, 512>}]} {
    %c0 = arith.constant 0 : index
    %c0_0 = arith.constant 0 : index
    %0 = vector.load %arg2[%c0, %c0_0] : memref<1x512xf32, #tpu.memory_space<vmem>>, vector<1x512xf32>
    %cst = arith.constant 0.000000e+00 : bf16
    %1 = vector.broadcast %cst : bf16 to vector<16x768xbf16>
    %c0_1 = arith.constant 0 : index
    %c0_2 = arith.constant 0 : index
    %2 = vector.load %arg10[%c0_1, %c0_2] : memref<16x768xbf16, #tpu.memory_space<vmem>>, vector<16x768xbf16>
    tpu.vector_store %arg10[%c0_1, %c0_2], %1 {strides = array<i32>} : memref<16x768xbf16, #tpu.memory_space<vmem>>, vector<16x768xbf16>,
    %cst_3 = arith.constant 0.000000e+00 : bf16
    %3 = vector.broadcast %cst_3 : bf16 to vector<32x768xbf16>
    %c0_4 = arith.constant 0 : index
    %c0_5 = arith.constant 0 : index
    %4 = vector.load %arg11[%c0_4, %c0_5] : memref<32x768xbf16, #tpu.memory_space<vmem>>, vector<32x768xbf16>
    tpu.vector_store %arg11[%c0_4, %c0_5], %3 {strides = array<i32>} : memref<32x768xbf16, #tpu.memory_space<vmem>>, vector<32x768xbf16>,
    %c0_6 = arith.constant 0 : index
    %c0_7 = arith.constant 0 : index
    %5 = vector.load %arg1[%c0_6, %c0_7] : memref<16x512xbf16, #tpu.memory_space<vmem>>, vector<16x512xbf16>
    %c0_8 = arith.constant 0 : index
    %c128 = arith.constant 128 : index
    %6 = vector.load %arg10[%c0_8, %c128] : memref<16x768xbf16, #tpu.memory_space<vmem>>, vector<16x512xbf16>
    tpu.vector_store %arg10[%c0_8, %c128], %5 {strides = array<i32>} : memref<16x768xbf16, #tpu.memory_space<vmem>>, vector<16x512xbf16>,
    %c0_9 = arith.constant 0 : index
    %c59 = arith.constant 59 : index
    %7 = vector.load %arg10[%c0_9, %c59] : memref<16x768xbf16, #tpu.memory_space<vmem>>, vector<16x512xbf16>
    %c0_10 = arith.constant 0 : index
    %c60 = arith.constant 60 : index
    %8 = vector.load %arg10[%c0_10, %c60] : memref<16x768xbf16, #tpu.memory_space<vmem>>, vector<16x512xbf16>
    %c0_11 = arith.constant 0 : index
    %c61 = arith.constant 61 : index
    %9 = vector.load %arg10[%c0_11, %c61] : memref<16x768xbf16, #tpu.memory_space<vmem>>, vector<16x512xbf16>
    %c0_12 = arith.constant 0 : index
    %c62 = arith.constant 62 : index
    %10 = vector.load %arg10[%c0_12, %c62] : memref<16x768xbf16, #tpu.memory_space<vmem>>, vector<16x512xbf16>
    %c0_13 = arith.constant 0 : index
    %c63 = arith.constant 63 : index
    %11 = vector.load %arg10[%c0_13, %c63] : memref<16x768xbf16, #tpu.memory_space<vmem>>, vector<16x512xbf16>
    %c0_14 = arith.constant 0 : index
    %c64 = arith.constant 64 : index
    %12 = vector.load %arg10[%c0_14, %c64] : memref<16x768xbf16, #tpu.memory_space<vmem>>, vector<16x512xbf16>
    %c0_15 = arith.constant 0 : index
    %c65 = arith.constant 65 : index
    %13 = vector.load %arg10[%c0_15, %c65] : memref<16x768xbf16, #tpu.memory_space<vmem>>, vector<16x512xbf16>
    %c0_16 = arith.constant 0 : index
    %c81 = arith.constant 81 : index
    %14 = vector.load %arg10[%c0_16, %c81] : memref<16x768xbf16, #tpu.memory_space<vmem>>, vector<16x512xbf16>
    %c0_17 = arith.constant 0 : index
    %c82 = arith.constant 82 : index
    %15 = vector.load %arg10[%c0_17, %c82] : memref<16x768xbf16, #tpu.memory_space<vmem>>, vector<16x512xbf16>
    %c0_18 = arith.constant 0 : index
    %c83 = arith.constant 83 : index
    %16 = vector.load %arg10[%c0_18, %c83] : memref<16x768xbf16, #tpu.memory_space<vmem>>, vector<16x512xbf16>
    %c0_19 = arith.constant 0 : index
    %c84 = arith.constant 84 : index
    %17 = vector.load %arg10[%c0_19, %c84] : memref<16x768xbf16, #tpu.memory_space<vmem>>, vector<16x512xbf16>
    %c0_20 = arith.constant 0 : index
    %c85 = arith.constant 85 : index
    %18 = vector.load %arg10[%c0_20, %c85] : memref<16x768xbf16, #tpu.memory_space<vmem>>, vector<16x512xbf16>
    %c0_21 = arith.constant 0 : index
    %c86 = arith.constant 86 : index
    %19 = vector.load %arg10[%c0_21, %c86] : memref<16x768xbf16, #tpu.memory_space<vmem>>, vector<16x512xbf16>
    %c0_22 = arith.constant 0 : index
    %c87 = arith.constant 87 : index
    %20 = vector.load %arg10[%c0_22, %c87] : memref<16x768xbf16, #tpu.memory_space<vmem>>, vector<16x512xbf16>
    %c0_23 = arith.constant 0 : index
    %c103 = arith.constant 103 : index
    %21 = vector.load %arg10[%c0_23, %c103] : memref<16x768xbf16, #tpu.memory_space<vmem>>, vector<16x512xbf16>
    %c0_24 = arith.constant 0 : index
    %c104 = arith.constant 104 : index
    %22 = vector.load %arg10[%c0_24, %c104] : memref<16x768xbf16, #tpu.memory_space<vmem>>, vector<16x512xbf16>
    %c0_25 = arith.constant 0 : index
    %c105 = arith.constant 105 : index
    %23 = vector.load %arg10[%c0_25, %c105] : memref<16x768xbf16, #tpu.memory_space<vmem>>, vector<16x512xbf16>
    %c0_26 = arith.constant 0 : index
    %c106 = arith.constant 106 : index
    %24 = vector.load %arg10[%c0_26, %c106] : memref<16x768xbf16, #tpu.memory_space<vmem>>, vector<16x512xbf16>
    %c0_27 = arith.constant 0 : index
    %c107 = arith.constant 107 : index
    %25 = vector.load %arg10[%c0_27, %c107] : memref<16x768xbf16, #tpu.memory_space<vmem>>, vector<16x512xbf16>
    %c0_28 = arith.constant 0 : index
    %c108 = arith.constant 108 : index
    %26 = vector.load %arg10[%c0_28, %c108] : memref<16x768xbf16, #tpu.memory_space<vmem>>, vector<16x512xbf16>
    %c0_29 = arith.constant 0 : index
    %c109 = arith.constant 109 : index
    %27 = vector.load %arg10[%c0_29, %c109] : memref<16x768xbf16, #tpu.memory_space<vmem>>, vector<16x512xbf16>
    %c0_30 = arith.constant 0 : index
    %c125 = arith.constant 125 : index
    %28 = vector.load %arg10[%c0_30, %c125] : memref<16x768xbf16, #tpu.memory_space<vmem>>, vector<16x512xbf16>
    %c0_31 = arith.constant 0 : index
    %c126 = arith.constant 126 : index
    %29 = vector.load %arg10[%c0_31, %c126] : memref<16x768xbf16, #tpu.memory_space<vmem>>, vector<16x512xbf16>
    %c0_32 = arith.constant 0 : index
    %c127 = arith.constant 127 : index
    %30 = vector.load %arg10[%c0_32, %c127] : memref<16x768xbf16, #tpu.memory_space<vmem>>, vector<16x512xbf16>
    %c0_33 = arith.constant 0 : index
    %c128_34 = arith.constant 128 : index
    %31 = vector.load %arg10[%c0_33, %c128_34] : memref<16x768xbf16, #tpu.memory_space<vmem>>, vector<16x512xbf16>
    %c0_35 = arith.constant 0 : index
    %c129 = arith.constant 129 : index
    %32 = vector.load %arg10[%c0_35, %c129] : memref<16x768xbf16, #tpu.memory_space<vmem>>, vector<16x512xbf16>
    %c0_36 = arith.constant 0 : index
    %c130 = arith.constant 130 : index
    %33 = vector.load %arg10[%c0_36, %c130] : memref<16x768xbf16, #tpu.memory_space<vmem>>, vector<16x512xbf16>
    %c0_37 = arith.constant 0 : index
    %c131 = arith.constant 131 : index
    %34 = vector.load %arg10[%c0_37, %c131] : memref<16x768xbf16, #tpu.memory_space<vmem>>, vector<16x512xbf16>
    %c0_38 = arith.constant 0 : index
    %c147 = arith.constant 147 : index
    %35 = vector.load %arg10[%c0_38, %c147] : memref<16x768xbf16, #tpu.memory_space<vmem>>, vector<16x512xbf16>
    %c0_39 = arith.constant 0 : index
    %c148 = arith.constant 148 : index
    %36 = vector.load %arg10[%c0_39, %c148] : memref<16x768xbf16, #tpu.memory_space<vmem>>, vector<16x512xbf16>
    %c0_40 = arith.constant 0 : index
    %c149 = arith.constant 149 : index
    %37 = vector.load %arg10[%c0_40, %c149] : memref<16x768xbf16, #tpu.memory_space<vmem>>, vector<16x512xbf16>
    %c0_41 = arith.constant 0 : index
    %c150 = arith.constant 150 : index
    %38 = vector.load %arg10[%c0_41, %c150] : memref<16x768xbf16, #tpu.memory_space<vmem>>, vector<16x512xbf16>
    %c0_42 = arith.constant 0 : index
    %c151 = arith.constant 151 : index
    %39 = vector.load %arg10[%c0_42, %c151] : memref<16x768xbf16, #tpu.memory_space<vmem>>, vector<16x512xbf16>
    %c0_43 = arith.constant 0 : index
    %c152 = arith.constant 152 : index
    %40 = vector.load %arg10[%c0_43, %c152] : memref<16x768xbf16, #tpu.memory_space<vmem>>, vector<16x512xbf16>
    %c0_44 = arith.constant 0 : index
    %c153 = arith.constant 153 : index
    %41 = vector.load %arg10[%c0_44, %c153] : memref<16x768xbf16, #tpu.memory_space<vmem>>, vector<16x512xbf16>
    %c0_45 = arith.constant 0 : index
    %c169 = arith.constant 169 : index
    %42 = vector.load %arg10[%c0_45, %c169] : memref<16x768xbf16, #tpu.memory_space<vmem>>, vector<16x512xbf16>
    %c0_46 = arith.constant 0 : index
    %c170 = arith.constant 170 : index
    %43 = vector.load %arg10[%c0_46, %c170] : memref<16x768xbf16, #tpu.memory_space<vmem>>, vector<16x512xbf16>
    %c0_47 = arith.constant 0 : index
    %c171 = arith.constant 171 : index
    %44 = vector.load %arg10[%c0_47, %c171] : memref<16x768xbf16, #tpu.memory_space<vmem>>, vector<16x512xbf16>
    %c0_48 = arith.constant 0 : index
    %c172 = arith.constant 172 : index
    %45 = vector.load %arg10[%c0_48, %c172] : memref<16x768xbf16, #tpu.memory_space<vmem>>, vector<16x512xbf16>
    %c0_49 = arith.constant 0 : index
    %c173 = arith.constant 173 : index
    %46 = vector.load %arg10[%c0_49, %c173] : memref<16x768xbf16, #tpu.memory_space<vmem>>, vector<16x512xbf16>
    %c0_50 = arith.constant 0 : index
    %c174 = arith.constant 174 : index
    %47 = vector.load %arg10[%c0_50, %c174] : memref<16x768xbf16, #tpu.memory_space<vmem>>, vector<16x512xbf16>
    %c0_51 = arith.constant 0 : index
    %c175 = arith.constant 175 : index
    %48 = vector.load %arg10[%c0_51, %c175] : memref<16x768xbf16, #tpu.memory_space<vmem>>, vector<16x512xbf16>
    %c0_52 = arith.constant 0 : index
    %c191 = arith.constant 191 : index
    %49 = vector.load %arg10[%c0_52, %c191] : memref<16x768xbf16, #tpu.memory_space<vmem>>, vector<16x512xbf16>
    %c0_53 = arith.constant 0 : index
    %c192 = arith.constant 192 : index
    %50 = vector.load %arg10[%c0_53, %c192] : memref<16x768xbf16, #tpu.memory_space<vmem>>, vector<16x512xbf16>
    %c0_54 = arith.constant 0 : index
    %c193 = arith.constant 193 : index
    %51 = vector.load %arg10[%c0_54, %c193] : memref<16x768xbf16, #tpu.memory_space<vmem>>, vector<16x512xbf16>
    %c0_55 = arith.constant 0 : index
    %c194 = arith.constant 194 : index
    %52 = vector.load %arg10[%c0_55, %c194] : memref<16x768xbf16, #tpu.memory_space<vmem>>, vector<16x512xbf16>
    %c0_56 = arith.constant 0 : index
    %c195 = arith.constant 195 : index
    %53 = vector.load %arg10[%c0_56, %c195] : memref<16x768xbf16, #tpu.memory_space<vmem>>, vector<16x512xbf16>
    %c0_57 = arith.constant 0 : index
    %c196 = arith.constant 196 : index
    %54 = vector.load %arg10[%c0_57, %c196] : memref<16x768xbf16, #tpu.memory_space<vmem>>, vector<16x512xbf16>
    %c0_58 = arith.constant 0 : index
    %c197 = arith.constant 197 : index
    %55 = vector.load %arg10[%c0_58, %c197] : memref<16x768xbf16, #tpu.memory_space<vmem>>, vector<16x512xbf16>
    %56 = tpu.concatenate %7, %8, %9, %10, %11, %12, %13, %14, %15, %16, %17, %18, %19, %20, %21, %22 in 0 : vector<16x512xbf16>, vector<16x512xbf16>, vector<16x512xbf16>, vector<16x512xbf16>, vector<16x512xbf16>, vector<16x512xbf16>, vector<16x512xbf16>, vector<16x512xbf16>, vector<16x512xbf16>, vector<16x512xbf16>, vector<16x512xbf16>, vector<16x512xbf16>, vector<16x512xbf16>, vector<16x512xbf16>, vector<16x512xbf16>, vector<16x512xbf16> -> vector<256x512xbf16>
    %57 = tpu.concatenate %23, %24, %25, %26, %27, %28, %29, %30, %31, %32, %33, %34, %35, %36, %37, %38 in 0 : vector<16x512xbf16>, vector<16x512xbf16>, vector<16x512xbf16>, vector<16x512xbf16>, vector<16x512xbf16>, vector<16x512xbf16>, vector<16x512xbf16>, vector<16x512xbf16>, vector<16x512xbf16>, vector<16x512xbf16>, vector<16x512xbf16>, vector<16x512xbf16>, vector<16x512xbf16>, vector<16x512xbf16>, vector<16x512xbf16>, vector<16x512xbf16> -> vector<256x512xbf16>
    %58 = tpu.concatenate %39, %40, %41, %42, %43, %44, %45, %46, %47, %48, %49, %50, %51, %52, %53, %54 in 0 : vector<16x512xbf16>, vector<16x512xbf16>, vector<16x512xbf16>, vector<16x512xbf16>, vector<16x512xbf16>, vector<16x512xbf16>, vector<16x512xbf16>, vector<16x512xbf16>, vector<16x512xbf16>, vector<16x512xbf16>, vector<16x512xbf16>, vector<16x512xbf16>, vector<16x512xbf16>, vector<16x512xbf16>, vector<16x512xbf16>, vector<16x512xbf16> -> vector<256x512xbf16>
    %59 = tpu.concatenate %56, %57, %58, %55 in 0 : vector<256x512xbf16>, vector<256x512xbf16>, vector<256x512xbf16>, vector<16x512xbf16> -> vector<784x512xbf16>
    %c0_59 = arith.constant 0 : index
    %c0_60 = arith.constant 0 : index
    %60 = vector.load %arg3[%c0_59, %c0_60] : memref<32x784xbf16, #tpu.memory_space<vmem>>, vector<32x784xbf16>
    %cst_61 = arith.constant dense<0.000000e+00> : vector<32x512xf32>
    %61 = tpu.matmul %60, %59, %cst_61 {dimension_numbers = #tpu.dot_dimension_numbers<[1], [0], [0], [1], [0, 0, 1, 1], [], []>} : vector<32x784xbf16>, vector<784x512xbf16>, vector<32x512xf32> -> vector<32x512xf32>
    %c0_62 = arith.constant 0 : index
    %c0_63 = arith.constant 0 : index
    %62 = vector.load %arg4[%c0_62, %c0_63] : memref<32x1xf32, #tpu.memory_space<vmem>>, vector<32x1xf32>
    %63 = vector.broadcast %62 : vector<32x1xf32> to vector<32x512xf32>
    %64 = arith.addf %61, %63 : vector<32x512xf32>
    %65 = vector.broadcast %0 : vector<1x512xf32> to vector<32x512xf32>
    %66 = arith.mulf %64, %65 : vector<32x512xf32>
    %67 = arith.truncf %66 : vector<32x512xf32> to vector<32x512xbf16>
    %c0_64 = arith.constant 0 : index
    %c128_65 = arith.constant 128 : index
    %68 = vector.load %arg11[%c0_64, %c128_65] : memref<32x768xbf16, #tpu.memory_space<vmem>>, vector<32x512xbf16>
    tpu.vector_store %arg11[%c0_64, %c128_65], %67 {strides = array<i32>} : memref<32x768xbf16, #tpu.memory_space<vmem>>, vector<32x512xbf16>,
    %c0_i32 = arith.constant 0 : i32
    %c0_66 = arith.constant 0 : index
    %c105_67 = arith.constant 105 : index
    %69 = vector.load %arg11[%c0_66, %c105_67] : memref<32x768xbf16, #tpu.memory_space<vmem>>, vector<32x512xbf16>
    %c0_68 = arith.constant 0 : index
    %c106_69 = arith.constant 106 : index
    %70 = vector.load %arg11[%c0_68, %c106_69] : memref<32x768xbf16, #tpu.memory_space<vmem>>, vector<32x512xbf16>
    %c0_70 = arith.constant 0 : index
    %c107_71 = arith.constant 107 : index
    %71 = vector.load %arg11[%c0_70, %c107_71] : memref<32x768xbf16, #tpu.memory_space<vmem>>, vector<32x512xbf16>
    %c0_72 = arith.constant 0 : index
    %c127_73 = arith.constant 127 : index
    %72 = vector.load %arg11[%c0_72, %c127_73] : memref<32x768xbf16, #tpu.memory_space<vmem>>, vector<32x512xbf16>
    %c0_74 = arith.constant 0 : index
    %c128_75 = arith.constant 128 : index
    %73 = vector.load %arg11[%c0_74, %c128_75] : memref<32x768xbf16, #tpu.memory_space<vmem>>, vector<32x512xbf16>
    %c0_76 = arith.constant 0 : index
    %c129_77 = arith.constant 129 : index
    %74 = vector.load %arg11[%c0_76, %c129_77] : memref<32x768xbf16, #tpu.memory_space<vmem>>, vector<32x512xbf16>
    %c0_78 = arith.constant 0 : index
    %c149_79 = arith.constant 149 : index
    %75 = vector.load %arg11[%c0_78, %c149_79] : memref<32x768xbf16, #tpu.memory_space<vmem>>, vector<32x512xbf16>
    %c0_80 = arith.constant 0 : index
    %c150_81 = arith.constant 150 : index
    %76 = vector.load %arg11[%c0_80, %c150_81] : memref<32x768xbf16, #tpu.memory_space<vmem>>, vector<32x512xbf16>
    %c0_82 = arith.constant 0 : index
    %c151_83 = arith.constant 151 : index
    %77 = vector.load %arg11[%c0_82, %c151_83] : memref<32x768xbf16, #tpu.memory_space<vmem>>, vector<32x512xbf16>
    %78 = tpu.concatenate %69, %70, %71, %72, %73, %74, %75, %76, %77 in 0 : vector<32x512xbf16>, vector<32x512xbf16>, vector<32x512xbf16>, vector<32x512xbf16>, vector<32x512xbf16>, vector<32x512xbf16>, vector<32x512xbf16>, vector<32x512xbf16>, vector<32x512xbf16> -> vector<288x512xbf16>
    %c2_i32 = arith.constant 2 : i32
    %79 = arith.muli %c2_i32, %c0_i32 : i32
    %80 = arith.index_cast %79 : i32 to index
    %c0_84 = arith.constant 0 : index
    %c0_85 = arith.constant 0 : index
    %81 = vector.load %arg5[%80, %c0_84, %c0_85] : memref<4x32x288xbf16, #tpu.memory_space<vmem>>, vector<1x32x288xbf16>
    %82 = vector.shape_cast %81 : vector<1x32x288xbf16> to vector<32x288xbf16>
    %cst_86 = arith.constant dense<0.000000e+00> : vector<32x512xf32>
    %83 = tpu.matmul %82, %78, %cst_86 {dimension_numbers = #tpu.dot_dimension_numbers<[1], [0], [0], [1], [0, 0, 1, 1], [], []>} : vector<32x288xbf16>, vector<288x512xbf16>, vector<32x512xf32> -> vector<32x512xf32>
    %c2_i32_87 = arith.constant 2 : i32
    %84 = arith.muli %c2_i32_87, %c0_i32 : i32
    %85 = arith.index_cast %84 : i32 to index
    %c0_88 = arith.constant 0 : index
    %c0_89 = arith.constant 0 : index
    %86 = vector.load %arg6[%85, %c0_88, %c0_89] : memref<4x32x1xf32, #tpu.memory_space<vmem>>, vector<1x32x1xf32>
    %87 = vector.shape_cast %86 : vector<1x32x1xf32> to vector<32x1xf32>
    %88 = vector.broadcast %87 : vector<32x1xf32> to vector<32x512xf32>
    %89 = arith.addf %83, %88 : vector<32x512xf32>
    %cst_90 = arith.constant 0.000000e+00 : f32
    %90 = vector.broadcast %cst_90 : f32 to vector<32x512xf32>
    %91 = arith.maximumf %89, %90 : vector<32x512xf32>
    %92 = vector.broadcast %0 : vector<1x512xf32> to vector<32x512xf32>
    %93 = arith.mulf %91, %92 : vector<32x512xf32>
    %94 = arith.truncf %93 : vector<32x512xf32> to vector<32x512xbf16>
    %c0_91 = arith.constant 0 : index
    %c128_92 = arith.constant 128 : index
    %95 = vector.load %arg11[%c0_91, %c128_92] : memref<32x768xbf16, #tpu.memory_space<vmem>>, vector<32x512xbf16>
    tpu.vector_store %arg11[%c0_91, %c128_92], %94 {strides = array<i32>} : memref<32x768xbf16, #tpu.memory_space<vmem>>, vector<32x512xbf16>,
    %c0_93 = arith.constant 0 : index
    %c105_94 = arith.constant 105 : index
    %96 = vector.load %arg11[%c0_93, %c105_94] : memref<32x768xbf16, #tpu.memory_space<vmem>>, vector<32x512xbf16>
    %c0_95 = arith.constant 0 : index
    %c106_96 = arith.constant 106 : index
    %97 = vector.load %arg11[%c0_95, %c106_96] : memref<32x768xbf16, #tpu.memory_space<vmem>>, vector<32x512xbf16>
    %c0_97 = arith.constant 0 : index
    %c107_98 = arith.constant 107 : index
    %98 = vector.load %arg11[%c0_97, %c107_98] : memref<32x768xbf16, #tpu.memory_space<vmem>>, vector<32x512xbf16>
    %c0_99 = arith.constant 0 : index
    %c127_100 = arith.constant 127 : index
    %99 = vector.load %arg11[%c0_99, %c127_100] : memref<32x768xbf16, #tpu.memory_space<vmem>>, vector<32x512xbf16>
    %c0_101 = arith.constant 0 : index
    %c128_102 = arith.constant 128 : index
    %100 = vector.load %arg11[%c0_101, %c128_102] : memref<32x768xbf16, #tpu.memory_space<vmem>>, vector<32x512xbf16>
    %c0_103 = arith.constant 0 : index
    %c129_104 = arith.constant 129 : index
    %101 = vector.load %arg11[%c0_103, %c129_104] : memref<32x768xbf16, #tpu.memory_space<vmem>>, vector<32x512xbf16>
    %c0_105 = arith.constant 0 : index
    %c149_106 = arith.constant 149 : index
    %102 = vector.load %arg11[%c0_105, %c149_106] : memref<32x768xbf16, #tpu.memory_space<vmem>>, vector<32x512xbf16>
    %c0_107 = arith.constant 0 : index
    %c150_108 = arith.constant 150 : index
    %103 = vector.load %arg11[%c0_107, %c150_108] : memref<32x768xbf16, #tpu.memory_space<vmem>>, vector<32x512xbf16>
    %c0_109 = arith.constant 0 : index
    %c151_110 = arith.constant 151 : index
    %104 = vector.load %arg11[%c0_109, %c151_110] : memref<32x768xbf16, #tpu.memory_space<vmem>>, vector<32x512xbf16>
    %105 = tpu.concatenate %96, %97, %98, %99, %100, %101, %102, %103, %104 in 0 : vector<32x512xbf16>, vector<32x512xbf16>, vector<32x512xbf16>, vector<32x512xbf16>, vector<32x512xbf16>, vector<32x512xbf16>, vector<32x512xbf16>, vector<32x512xbf16>, vector<32x512xbf16> -> vector<288x512xbf16>
    %c2_i32_111 = arith.constant 2 : i32
    %106 = arith.muli %c2_i32_111, %c0_i32 : i32
    %c1_i32 = arith.constant 1 : i32
    %107 = arith.addi %106, %c1_i32 : i32
    %108 = arith.index_cast %107 : i32 to index
    %c0_112 = arith.constant 0 : index
    %c0_113 = arith.constant 0 : index
    %109 = vector.load %arg5[%108, %c0_112, %c0_113] : memref<4x32x288xbf16, #tpu.memory_space<vmem>>, vector<1x32x288xbf16>
    %110 = vector.shape_cast %109 : vector<1x32x288xbf16> to vector<32x288xbf16>
    %cst_114 = arith.constant dense<0.000000e+00> : vector<32x512xf32>
    %111 = tpu.matmul %110, %105, %cst_114 {dimension_numbers = #tpu.dot_dimension_numbers<[1], [0], [0], [1], [0, 0, 1, 1], [], []>} : vector<32x288xbf16>, vector<288x512xbf16>, vector<32x512xf32> -> vector<32x512xf32>
    %c2_i32_115 = arith.constant 2 : i32
    %112 = arith.muli %c2_i32_115, %c0_i32 : i32
    %c1_i32_116 = arith.constant 1 : i32
    %113 = arith.addi %112, %c1_i32_116 : i32
    %114 = arith.index_cast %113 : i32 to index
    %c0_117 = arith.constant 0 : index
    %c0_118 = arith.constant 0 : index
    %115 = vector.load %arg6[%114, %c0_117, %c0_118] : memref<4x32x1xf32, #tpu.memory_space<vmem>>, vector<1x32x1xf32>
    %116 = vector.shape_cast %115 : vector<1x32x1xf32> to vector<32x1xf32>
    %117 = vector.broadcast %116 : vector<32x1xf32> to vector<32x512xf32>
    %118 = arith.addf %111, %117 : vector<32x512xf32>
    %119 = vector.broadcast %0 : vector<1x512xf32> to vector<32x512xf32>
    %120 = arith.mulf %118, %119 : vector<32x512xf32>
    %121 = arith.addf %66, %120 : vector<32x512xf32>
    %122 = arith.truncf %121 : vector<32x512xf32> to vector<32x512xbf16>
    %c0_119 = arith.constant 0 : index
    %c128_120 = arith.constant 128 : index
    %123 = vector.load %arg11[%c0_119, %c128_120] : memref<32x768xbf16, #tpu.memory_space<vmem>>, vector<32x512xbf16>
    tpu.vector_store %arg11[%c0_119, %c128_120], %122 {strides = array<i32>} : memref<32x768xbf16, #tpu.memory_space<vmem>>, vector<32x512xbf16>,
    %c1_i32_121 = arith.constant 1 : i32
    %c0_122 = arith.constant 0 : index
    %c105_123 = arith.constant 105 : index
    %124 = vector.load %arg11[%c0_122, %c105_123] : memref<32x768xbf16, #tpu.memory_space<vmem>>, vector<32x512xbf16>
    %c0_124 = arith.constant 0 : index
    %c106_125 = arith.constant 106 : index
    %125 = vector.load %arg11[%c0_124, %c106_125] : memref<32x768xbf16, #tpu.memory_space<vmem>>, vector<32x512xbf16>
    %c0_126 = arith.constant 0 : index
    %c107_127 = arith.constant 107 : index
    %126 = vector.load %arg11[%c0_126, %c107_127] : memref<32x768xbf16, #tpu.memory_space<vmem>>, vector<32x512xbf16>
    %c0_128 = arith.constant 0 : index
    %c127_129 = arith.constant 127 : index
    %127 = vector.load %arg11[%c0_128, %c127_129] : memref<32x768xbf16, #tpu.memory_space<vmem>>, vector<32x512xbf16>
    %c0_130 = arith.constant 0 : index
    %c128_131 = arith.constant 128 : index
    %128 = vector.load %arg11[%c0_130, %c128_131] : memref<32x768xbf16, #tpu.memory_space<vmem>>, vector<32x512xbf16>
    %c0_132 = arith.constant 0 : index
    %c129_133 = arith.constant 129 : index
    %129 = vector.load %arg11[%c0_132, %c129_133] : memref<32x768xbf16, #tpu.memory_space<vmem>>, vector<32x512xbf16>
    %c0_134 = arith.constant 0 : index
    %c149_135 = arith.constant 149 : index
    %130 = vector.load %arg11[%c0_134, %c149_135] : memref<32x768xbf16, #tpu.memory_space<vmem>>, vector<32x512xbf16>
    %c0_136 = arith.constant 0 : index
    %c150_137 = arith.constant 150 : index
    %131 = vector.load %arg11[%c0_136, %c150_137] : memref<32x768xbf16, #tpu.memory_space<vmem>>, vector<32x512xbf16>
    %c0_138 = arith.constant 0 : index
    %c151_139 = arith.constant 151 : index
    %132 = vector.load %arg11[%c0_138, %c151_139] : memref<32x768xbf16, #tpu.memory_space<vmem>>, vector<32x512xbf16>
    %133 = tpu.concatenate %124, %125, %126, %127, %128, %129, %130, %131, %132 in 0 : vector<32x512xbf16>, vector<32x512xbf16>, vector<32x512xbf16>, vector<32x512xbf16>, vector<32x512xbf16>, vector<32x512xbf16>, vector<32x512xbf16>, vector<32x512xbf16>, vector<32x512xbf16> -> vector<288x512xbf16>
    %c2_i32_140 = arith.constant 2 : i32
    %134 = arith.muli %c2_i32_140, %c1_i32_121 : i32
    %135 = arith.index_cast %134 : i32 to index
    %c0_141 = arith.constant 0 : index
    %c0_142 = arith.constant 0 : index
    %136 = vector.load %arg5[%135, %c0_141, %c0_142] : memref<4x32x288xbf16, #tpu.memory_space<vmem>>, vector<1x32x288xbf16>
    %137 = vector.shape_cast %136 : vector<1x32x288xbf16> to vector<32x288xbf16>
    %cst_143 = arith.constant dense<0.000000e+00> : vector<32x512xf32>
    %138 = tpu.matmul %137, %133, %cst_143 {dimension_numbers = #tpu.dot_dimension_numbers<[1], [0], [0], [1], [0, 0, 1, 1], [], []>} : vector<32x288xbf16>, vector<288x512xbf16>, vector<32x512xf32> -> vector<32x512xf32>
    %c2_i32_144 = arith.constant 2 : i32
    %139 = arith.muli %c2_i32_144, %c1_i32_121 : i32
    %140 = arith.index_cast %139 : i32 to index
    %c0_145 = arith.constant 0 : index
    %c0_146 = arith.constant 0 : index
    %141 = vector.load %arg6[%140, %c0_145, %c0_146] : memref<4x32x1xf32, #tpu.memory_space<vmem>>, vector<1x32x1xf32>
    %142 = vector.shape_cast %141 : vector<1x32x1xf32> to vector<32x1xf32>
    %143 = vector.broadcast %142 : vector<32x1xf32> to vector<32x512xf32>
    %144 = arith.addf %138, %143 : vector<32x512xf32>
    %cst_147 = arith.constant 0.000000e+00 : f32
    %145 = vector.broadcast %cst_147 : f32 to vector<32x512xf32>
    %146 = arith.maximumf %144, %145 : vector<32x512xf32>
    %147 = vector.broadcast %0 : vector<1x512xf32> to vector<32x512xf32>
    %148 = arith.mulf %146, %147 : vector<32x512xf32>
    %149 = arith.truncf %148 : vector<32x512xf32> to vector<32x512xbf16>
    %c0_148 = arith.constant 0 : index
    %c128_149 = arith.constant 128 : index
    %150 = vector.load %arg11[%c0_148, %c128_149] : memref<32x768xbf16, #tpu.memory_space<vmem>>, vector<32x512xbf16>
    tpu.vector_store %arg11[%c0_148, %c128_149], %149 {strides = array<i32>} : memref<32x768xbf16, #tpu.memory_space<vmem>>, vector<32x512xbf16>,
    %c0_150 = arith.constant 0 : index
    %c105_151 = arith.constant 105 : index
    %151 = vector.load %arg11[%c0_150, %c105_151] : memref<32x768xbf16, #tpu.memory_space<vmem>>, vector<32x512xbf16>
    %c0_152 = arith.constant 0 : index
    %c106_153 = arith.constant 106 : index
    %152 = vector.load %arg11[%c0_152, %c106_153] : memref<32x768xbf16, #tpu.memory_space<vmem>>, vector<32x512xbf16>
    %c0_154 = arith.constant 0 : index
    %c107_155 = arith.constant 107 : index
    %153 = vector.load %arg11[%c0_154, %c107_155] : memref<32x768xbf16, #tpu.memory_space<vmem>>, vector<32x512xbf16>
    %c0_156 = arith.constant 0 : index
    %c127_157 = arith.constant 127 : index
    %154 = vector.load %arg11[%c0_156, %c127_157] : memref<32x768xbf16, #tpu.memory_space<vmem>>, vector<32x512xbf16>
    %c0_158 = arith.constant 0 : index
    %c128_159 = arith.constant 128 : index
    %155 = vector.load %arg11[%c0_158, %c128_159] : memref<32x768xbf16, #tpu.memory_space<vmem>>, vector<32x512xbf16>
    %c0_160 = arith.constant 0 : index
    %c129_161 = arith.constant 129 : index
    %156 = vector.load %arg11[%c0_160, %c129_161] : memref<32x768xbf16, #tpu.memory_space<vmem>>, vector<32x512xbf16>
    %c0_162 = arith.constant 0 : index
    %c149_163 = arith.constant 149 : index
    %157 = vector.load %arg11[%c0_162, %c149_163] : memref<32x768xbf16, #tpu.memory_space<vmem>>, vector<32x512xbf16>
    %c0_164 = arith.constant 0 : index
    %c150_165 = arith.constant 150 : index
    %158 = vector.load %arg11[%c0_164, %c150_165] : memref<32x768xbf16, #tpu.memory_space<vmem>>, vector<32x512xbf16>
    %c0_166 = arith.constant 0 : index
    %c151_167 = arith.constant 151 : index
    %159 = vector.load %arg11[%c0_166, %c151_167] : memref<32x768xbf16, #tpu.memory_space<vmem>>, vector<32x512xbf16>
    %160 = tpu.concatenate %151, %152, %153, %154, %155, %156, %157, %158, %159 in 0 : vector<32x512xbf16>, vector<32x512xbf16>, vector<32x512xbf16>, vector<32x512xbf16>, vector<32x512xbf16>, vector<32x512xbf16>, vector<32x512xbf16>, vector<32x512xbf16>, vector<32x512xbf16> -> vector<288x512xbf16>
    %c2_i32_168 = arith.constant 2 : i32
    %161 = arith.muli %c2_i32_168, %c1_i32_121 : i32
    %c1_i32_169 = arith.constant 1 : i32
    %162 = arith.addi %161, %c1_i32_169 : i32
    %163 = arith.index_cast %162 : i32 to index
    %c0_170 = arith.constant 0 : index
    %c0_171 = arith.constant 0 : index
    %164 = vector.load %arg5[%163, %c0_170, %c0_171] : memref<4x32x288xbf16, #tpu.memory_space<vmem>>, vector<1x32x288xbf16>
    %165 = vector.shape_cast %164 : vector<1x32x288xbf16> to vector<32x288xbf16>
    %cst_172 = arith.constant dense<0.000000e+00> : vector<32x512xf32>
    %166 = tpu.matmul %165, %160, %cst_172 {dimension_numbers = #tpu.dot_dimension_numbers<[1], [0], [0], [1], [0, 0, 1, 1], [], []>} : vector<32x288xbf16>, vector<288x512xbf16>, vector<32x512xf32> -> vector<32x512xf32>
    %c2_i32_173 = arith.constant 2 : i32
    %167 = arith.muli %c2_i32_173, %c1_i32_121 : i32
    %c1_i32_174 = arith.constant 1 : i32
    %168 = arith.addi %167, %c1_i32_174 : i32
    %169 = arith.index_cast %168 : i32 to index
    %c0_175 = arith.constant 0 : index
    %c0_176 = arith.constant 0 : index
    %170 = vector.load %arg6[%169, %c0_175, %c0_176] : memref<4x32x1xf32, #tpu.memory_space<vmem>>, vector<1x32x1xf32>
    %171 = vector.shape_cast %170 : vector<1x32x1xf32> to vector<32x1xf32>
    %172 = vector.broadcast %171 : vector<32x1xf32> to vector<32x512xf32>
    %173 = arith.addf %166, %172 : vector<32x512xf32>
    %174 = vector.broadcast %0 : vector<1x512xf32> to vector<32x512xf32>
    %175 = arith.mulf %173, %174 : vector<32x512xf32>
    %176 = arith.addf %121, %175 : vector<32x512xf32>
    %177 = arith.truncf %176 : vector<32x512xf32> to vector<32x512xbf16>
    %c0_177 = arith.constant 0 : index
    %c128_178 = arith.constant 128 : index
    %178 = vector.load %arg11[%c0_177, %c128_178] : memref<32x768xbf16, #tpu.memory_space<vmem>>, vector<32x512xbf16>
    tpu.vector_store %arg11[%c0_177, %c128_178], %177 {strides = array<i32>} : memref<32x768xbf16, #tpu.memory_space<vmem>>, vector<32x512xbf16>,
    %c2_i32_179 = arith.constant 2 : i32
    %c0_180 = arith.constant 0 : index
    %c0_181 = arith.constant 0 : index
    %179 = vector.load %arg7[%c0_180, %c0_181] : memref<32x32xbf16, #tpu.memory_space<vmem>>, vector<32x32xbf16>
    %180 = arith.truncf %176 : vector<32x512xf32> to vector<32x512xbf16>
    %cst_182 = arith.constant dense<0.000000e+00> : vector<32x512xf32>
    %181 = tpu.matmul %179, %180, %cst_182 {dimension_numbers = #tpu.dot_dimension_numbers<[1], [0], [0], [1], [0, 0, 1, 1], [], []>} : vector<32x32xbf16>, vector<32x512xbf16>, vector<32x512xf32> -> vector<32x512xf32>
    %c0_183 = arith.constant 0 : index
    %c0_184 = arith.constant 0 : index
    %182 = vector.load %arg8[%c0_183, %c0_184] : memref<32x1xf32, #tpu.memory_space<vmem>>, vector<32x1xf32>
    %183 = vector.broadcast %182 : vector<32x1xf32> to vector<32x512xf32>
    %184 = arith.addf %181, %183 : vector<32x512xf32>
    %c0_185 = arith.constant 0 : index
    %c0_186 = arith.constant 0 : index
    %185 = vector.load %arg9[%c0_185, %c0_186] : memref<32x512xf32, #tpu.memory_space<vmem>>, vector<32x512xf32>
    tpu.vector_store %arg9[%c0_185, %c0_186], %184 {strides = array<i32>} : memref<32x512xf32, #tpu.memory_space<vmem>>, vector<32x512xf32>,
    return
  }
  func.func @transform_0(%arg0: i32) -> (i32, i32) {
    %c0_i32 = arith.constant 0 : i32
    %c0_i32_0 = arith.constant 0 : i32
    return %c0_i32, %arg0 : i32, i32
  }
  func.func @transform_1(%arg0: i32) -> (i32, i32) {
    %c0_i32 = arith.constant 0 : i32
    %c0_i32_0 = arith.constant 0 : i32
    %c0_i32_1 = arith.constant 0 : i32
    return %c0_i32, %c0_i32_0 : i32, i32
  }
  func.func @transform_2(%arg0: i32) -> (i32, i32) {
    %c0_i32 = arith.constant 0 : i32
    %c0_i32_0 = arith.constant 0 : i32
    %c0_i32_1 = arith.constant 0 : i32
    return %c0_i32, %c0_i32_0 : i32, i32
  }
  func.func @transform_3(%arg0: i32) -> (i32, i32) {
    %c0_i32 = arith.constant 0 : i32
    %c0_i32_0 = arith.constant 0 : i32
    %c0_i32_1 = arith.constant 0 : i32
    return %c0_i32, %c0_i32_0 : i32, i32
  }
  func.func @transform_4(%arg0: i32) -> (i32, i32, i32) {
    %c0_i32 = arith.constant 0 : i32
    %c0_i32_0 = arith.constant 0 : i32
    %c0_i32_1 = arith.constant 0 : i32
    %c0_i32_2 = arith.constant 0 : i32
    return %c0_i32, %c0_i32_0, %c0_i32_1 : i32, i32, i32
  }
  func.func @transform_5(%arg0: i32) -> (i32, i32, i32) {
    %c0_i32 = arith.constant 0 : i32
    %c0_i32_0 = arith.constant 0 : i32
    %c0_i32_1 = arith.constant 0 : i32
    %c0_i32_2 = arith.constant 0 : i32
    return %c0_i32, %c0_i32_0, %c0_i32_1 : i32, i32, i32
  }
  func.func @transform_6(%arg0: i32) -> (i32, i32) {
    %c0_i32 = arith.constant 0 : i32
    %c0_i32_0 = arith.constant 0 : i32
    %c0_i32_1 = arith.constant 0 : i32
    return %c0_i32, %c0_i32_0 : i32, i32
  }
  func.func @transform_7(%arg0: i32) -> (i32, i32) {
    %c0_i32 = arith.constant 0 : i32
    %c0_i32_0 = arith.constant 0 : i32
    %c0_i32_1 = arith.constant 0 : i32
    return %c0_i32, %c0_i32_0 : i32, i32
  }
  func.func @transform_8(%arg0: i32) -> (i32, i32) {
    %c0_i32 = arith.constant 0 : i32
    %c0_i32_0 = arith.constant 0 : i32
    return %c0_i32, %arg0 : i32, i32
  }
}

</mosaic_0001>

<llo_original>
// kernel: pixelcnnpp_forward.1
$region0: #{pixelcnnpp_forward.1}
  #allocation0 [shape = 'u32[]', space=smem, size = 0x4, offset = 0x4, fixed_abs, tag = 'smem constant byte address 0x4 - core index']
  #allocation1 [shape = 'u32[144,128]{1,0:T(1,128)}', space=vmem, size = 0x12000, scoped, tag = 'internal scratch']
  #allocation2 [shape = 'bf16[16,768]{1,0:T(16,128)(2,1)}', space=vmem, size = 0x6000, scoped, tag = 'scratch operand']
  #allocation3 [shape = 'bf16[32,768]{1,0:T(16,128)(2,1)}', space=vmem, size = 0xc000, scoped, tag = 'scratch operand']
  %s0 = inlined_call_operand.vmem [shape: bf16[16,1024], index: 0, kind: input, shape index: {}]
  %s1 = inlined_call_operand.vmem [shape: f32[1,512], index: 1, kind: input, shape index: {}]
  %s2 = inlined_call_operand.vmem [shape: bf16[32,784], index: 2, kind: input, shape index: {}]
  %s3 = inlined_call_operand.vmem [shape: f32[32,1], index: 3, kind: input, shape index: {}]
  %s4 = inlined_call_operand.vmem [shape: bf16[4,32,288], index: 4, kind: input, shape index: {}]
  %s5 = inlined_call_operand.vmem [shape: f32[4,32,1], index: 5, kind: input, shape index: {}]
  %s6 = inlined_call_operand.vmem [shape: bf16[32,32], index: 6, kind: input, shape index: {}]
  %s7 = inlined_call_operand.vmem [shape: f32[32,1], index: 7, kind: input, shape index: {}]
  %s8 = inlined_call_operand.vmem [shape: f32[32,1024], index: 8, kind: output, shape index: {}]
  %s9 = sld [smem:[#allocation0]]
  $region107: #{pixelcnnpp_forward.1} parent=0
    _
  %s11 = ssub.s32 1, %s9
  %s12 = scalar_select 0, %s11, %s9
  $region1: #{pixelcnnpp_forward.1} parent=0
    #allocation4 [shape = 'u8[32768]{0}', space=vmem, size = 0x8000, scoped, tag = 'input window, operand 0']
    #allocation5 [shape = 'u8[131072]{0}', space=vmem, size = 0x20000, scoped, tag = 'output window, operand 0']
    loop: start=0, step=1, limit=4
    $region2: #{pixelcnnpp_forward.1} parent=1 // loop_pre_header
      _
    $region3: #{pixelcnnpp_forward.1} parent=1 // loop_header
      %s14 = sphi 0, %s18
      %p15 = scmp.ge.s32.totalorder %s14, 4
      %s24 = sphi 0, %s26
      %s27 = sphi 0, %s24
      %s28 = sphi 0, %s27
      %s44 = sphi 0, %s28
      %s48 = sphi 0, %s48
      %s50 = sphi 0, %s48
      %s51 = sphi 0, %s50
      %s65 = sphi 0, %s51
      %s69 = sphi 0, %s69
      %s71 = sphi 0, %s69
      %s72 = sphi 0, %s71
      %s86 = sphi 0, %s72
      %s90 = sphi 0, %s90
      %s92 = sphi 0, %s90
      %s93 = sphi 0, %s92
      %s107 = sphi 0, %s93
      %s111 = sphi 0, %s111
      %s113 = sphi 0, %s111
      %s114 = sphi 0, %s113
      %s128 = sphi 0, %s114
      %s132 = sphi 0, %s132
      %s134 = sphi 0, %s132
      %s135 = sphi 0, %s134
      %s149 = sphi 0, %s135
      %s153 = sphi 0, %s153
      %s155 = sphi 0, %s153
      %s156 = sphi 0, %s155
      %s170 = sphi 0, %s156
      %s174 = sphi 0, %s174
      %s176 = sphi 0, %s174
      %s177 = sphi 0, %s176
      %s191 = sphi 0, %s177
      %s197 = sphi 0, %s199
      %s200 = sphi 0, %s197
      %s201 = sphi 0, %s200
      %s217 = sphi 0, %s201
    $region4: #{pixelcnnpp_forward.1} parent=1 // loop_header_branch
      %17 = sbr.rel (%p15) target = $region8
    $region5: #{pixelcnnpp_forward.1} parent=1 // loop_body
      %s19 = ssub.s32 %s14, 1
      %s20 = ssub.s32 %s14, 2
      %s21 = sadd.s32 %s14, 1
      %s22 = ssub.s32 %s14, %s21
      %p23 = scmp.eq.s32.totalorder %s22, 0
      %s25 = sadd.s32 %s24, 1
      %s26 = scalar_select %p23, %s24, %s25
      %p29 = pneg %p23
      %p30 = scmp.eq.s32.totalorder %s14, 1
      %p31 = por %p29, %p30
      %p32 = scmp.ne.s32.totalorder %s24, %s27
      %p33 = scmp.eq.s32.totalorder %s14, 0
      %p34 = por %p32, %p33
      %p35 = scmp.ne.s32.totalorder %s24, %s27
      %p36 = scmp.eq.s32.totalorder %s19, 1
      %p37 = por %p35, %p36
      %p38 = scmp.ne.s32.totalorder %s27, %s28
      %p39 = scmp.eq.s32.totalorder %s19, 0
      %p40 = por %p38, %p39
      %p41 = scmp.ne.s32.totalorder %s27, %s28
      %p42 = scmp.eq.s32.totalorder %s20, 1
      %p43 = por %p41, %p42
      %p45 = scmp.ne.s32.totalorder %s28, %s44
      %p46 = scmp.eq.s32.totalorder %s20, 0
      %p47 = por %p45, %p46
      %s49 = sadd.s32 %s48, 1
      %p52 = scmp.eq.s32.totalorder %s14, 1
      %p53 = scmp.ne.s32.totalorder %s48, %s50
      %p54 = scmp.eq.s32.totalorder %s14, 0
      %p55 = por %p53, %p54
      %p56 = scmp.ne.s32.totalorder %s48, %s50
      %p57 = scmp.eq.s32.totalorder %s19, 1
      %p58 = por %p56, %p57
      %p59 = scmp.ne.s32.totalorder %s50, %s51
      %p60 = scmp.eq.s32.totalorder %s19, 0
      %p61 = por %p59, %p60
      %p62 = scmp.ne.s32.totalorder %s50, %s51
      %p63 = scmp.eq.s32.totalorder %s20, 1
      %p64 = por %p62, %p63
      %p66 = scmp.ne.s32.totalorder %s51, %s65
      %p67 = scmp.eq.s32.totalorder %s20, 0
      %p68 = por %p66, %p67
      %s70 = sadd.s32 %s69, 1
      %p73 = scmp.eq.s32.totalorder %s14, 1
      %p74 = scmp.ne.s32.totalorder %s69, %s71
      %p75 = scmp.eq.s32.totalorder %s14, 0
      %p76 = por %p74, %p75
      %p77 = scmp.ne.s32.totalorder %s69, %s71
      %p78 = scmp.eq.s32.totalorder %s19, 1
      %p79 = por %p77, %p78
      %p80 = scmp.ne.s32.totalorder %s71, %s72
      %p81 = scmp.eq.s32.totalorder %s19, 0
      %p82 = por %p80, %p81
      %p83 = scmp.ne.s32.totalorder %s71, %s72
      %p84 = scmp.eq.s32.totalorder %s20, 1
      %p85 = por %p83, %p84
      %p87 = scmp.ne.s32.totalorder %s72, %s86
      %p88 = scmp.eq.s32.totalorder %s20, 0
      %p89 = por %p87, %p88
      %s91 = sadd.s32 %s90, 1
      %p94 = scmp.eq.s32.totalorder %s14, 1
      %p95 = scmp.ne.s32.totalorder %s90, %s92
      %p96 = scmp.eq.s32.totalorder %s14, 0
      %p97 = por %p95, %p96
      %p98 = scmp.ne.s32.totalorder %s90, %s92
      %p99 = scmp.eq.s32.totalorder %s19, 1
      %p100 = por %p98, %p99
      %p101 = scmp.ne.s32.totalorder %s92, %s93
      %p102 = scmp.eq.s32.totalorder %s19, 0
      %p103 = por %p101, %p102
      %p104 = scmp.ne.s32.totalorder %s92, %s93
      %p105 = scmp.eq.s32.totalorder %s20, 1
      %p106 = por %p104, %p105
      %p108 = scmp.ne.s32.totalorder %s93, %s107
      %p109 = scmp.eq.s32.totalorder %s20, 0
      %p110 = por %p108, %p109
      %s112 = sadd.s32 %s111, 1
      %p115 = scmp.eq.s32.totalorder %s14, 1
      %p116 = scmp.ne.s32.totalorder %s111, %s113
      %p117 = scmp.eq.s32.totalorder %s14, 0
      %p118 = por %p116, %p117
      %p119 = scmp.ne.s32.totalorder %s111, %s113
      %p120 = scmp.eq.s32.totalorder %s19, 1
      %p121 = por %p119, %p120
      %p122 = scmp.ne.s32.totalorder %s113, %s114
      %p123 = scmp.eq.s32.totalorder %s19, 0
      %p124 = por %p122, %p123
      %p125 = scmp.ne.s32.totalorder %s113, %s114
      %p126 = scmp.eq.s32.totalorder %s20, 1
      %p127 = por %p125, %p126
      %p129 = scmp.ne.s32.totalorder %s114, %s128
      %p130 = scmp.eq.s32.totalorder %s20, 0
      %p131 = por %p129, %p130
      %s133 = sadd.s32 %s132, 1
      %p136 = scmp.eq.s32.totalorder %s14, 1
      %p137 = scmp.ne.s32.totalorder %s132, %s134
      %p138 = scmp.eq.s32.totalorder %s14, 0
      %p139 = por %p137, %p138
      %p140 = scmp.ne.s32.totalorder %s132, %s134
      %p141 = scmp.eq.s32.totalorder %s19, 1
      %p142 = por %p140, %p141
      %p143 = scmp.ne.s32.totalorder %s134, %s135
      %p144 = scmp.eq.s32.totalorder %s19, 0
      %p145 = por %p143, %p144
      %p146 = scmp.ne.s32.totalorder %s134, %s135
      %p147 = scmp.eq.s32.totalorder %s20, 1
      %p148 = por %p146, %p147
      %p150 = scmp.ne.s32.totalorder %s135, %s149
      %p151 = scmp.eq.s32.totalorder %s20, 0
      %p152 = por %p150, %p151
      %s154 = sadd.s32 %s153, 1
      %p157 = scmp.eq.s32.totalorder %s14, 1
      %p158 = scmp.ne.s32.totalorder %s153, %s155
      %p159 = scmp.eq.s32.totalorder %s14, 0
      %p160 = por %p158, %p159
      %p161 = scmp.ne.s32.totalorder %s153, %s155
      %p162 = scmp.eq.s32.totalorder %s19, 1
      %p163 = por %p161, %p162
      %p164 = scmp.ne.s32.totalorder %s155, %s156
      %p165 = scmp.eq.s32.totalorder %s19, 0
      %p166 = por %p164, %p165
      %p167 = scmp.ne.s32.totalorder %s155, %s156
      %p168 = scmp.eq.s32.totalorder %s20, 1
      %p169 = por %p167, %p168
      %p171 = scmp.ne.s32.totalorder %s156, %s170
      %p172 = scmp.eq.s32.totalorder %s20, 0
      %p173 = por %p171, %p172
      %s175 = sadd.s32 %s174, 1
      %p178 = scmp.eq.s32.totalorder %s14, 1
      %p179 = scmp.ne.s32.totalorder %s174, %s176
      %p180 = scmp.eq.s32.totalorder %s14, 0
      %p181 = por %p179, %p180
      %p182 = scmp.ne.s32.totalorder %s174, %s176
      %p183 = scmp.eq.s32.totalorder %s19, 1
      %p184 = por %p182, %p183
      %p185 = scmp.ne.s32.totalorder %s176, %s177
      %p186 = scmp.eq.s32.totalorder %s19, 0
      %p187 = por %p185, %p186
      %p188 = scmp.ne.s32.totalorder %s176, %s177
      %p189 = scmp.eq.s32.totalorder %s20, 1
      %p190 = por %p188, %p189
      %p192 = scmp.ne.s32.totalorder %s177, %s191
      %p193 = scmp.eq.s32.totalorder %s20, 0
      %p194 = por %p192, %p193
      %s195 = ssub.s32 %s14, %s21
      %p196 = scmp.eq.s32.totalorder %s195, 0
      %s198 = sadd.s32 %s197, 1
      %s199 = scalar_select %p196, %s197, %s198
      %p202 = pneg %p196
      %p203 = scmp.eq.s32.totalorder %s14, 1
      %p204 = por %p202, %p203
      %p205 = scmp.ne.s32.totalorder %s197, %s200
      %p206 = scmp.eq.s32.totalorder %s14, 0
      %p207 = por %p205, %p206
      %p208 = scmp.ne.s32.totalorder %s197, %s200
      %p209 = scmp.eq.s32.totalorder %s19, 1
      %p210 = por %p208, %p209
      %p211 = scmp.ne.s32.totalorder %s200, %s201
      %p212 = scmp.eq.s32.totalorder %s19, 0
      %p213 = por %p211, %p212
      %p214 = scmp.ne.s32.totalorder %s200, %s201
      %p215 = scmp.eq.s32.totalorder %s20, 1
      %p216 = por %p214, %p215
      %p218 = scmp.ne.s32.totalorder %s201, %s217
      %p219 = scmp.eq.s32.totalorder %s20, 0
      %p220 = por %p218, %p219
      %p221 = scmp.le.s32.totalorder 1, %s14
      %p222 = scmp.lt.s32.totalorder %s14, 3
      %p223 = pnand %p221, %p222
      %p224 = pneg %p223
      // Predicated region
      $region9: #{pixelcnnpp_forward.1} parent=5 // pred_check
        _
      $region10: #{pixelcnnpp_forward.1} parent=5 // pred_check_branch
        %226 = sbr.rel (%p223) target = $region12
      $region11: #{pixelcnnpp_forward.1} parent=5 // pred_region
        %s227 = ssub.s32 %s14, 1
        // Predicated region
        $region13: #{pixelcnnpp_forward.1} parent=11 // pred_check
          %p228 = pneg %p61
        $region14: #{pixelcnnpp_forward.1} parent=11 // pred_check_branch
          %230 = sbr.rel (%p228) target = $region16
        $region15: #{pixelcnnpp_forward.1} parent=11 // pred_region
          _
        $region16: #{pixelcnnpp_forward.1} parent=11 // pred_fallthru
          _
        // Predicated region
        $region17: #{pixelcnnpp_forward.1} parent=11 // pred_check
          %p231 = pneg %p82
        $region18: #{pixelcnnpp_forward.1} parent=11 // pred_check_branch
          %233 = sbr.rel (%p231) target = $region20
        $region19: #{pixelcnnpp_forward.1} parent=11 // pred_region
          _
        $region20: #{pixelcnnpp_forward.1} parent=11 // pred_fallthru
          _
        // Predicated region
        $region21: #{pixelcnnpp_forward.1} parent=11 // pred_check
          %p234 = pneg %p103
        $region22: #{pixelcnnpp_forward.1} parent=11 // pred_check_branch
          %236 = sbr.rel (%p234) target = $region24
        $region23: #{pixelcnnpp_forward.1} parent=11 // pred_region
          _
        $region24: #{pixelcnnpp_forward.1} parent=11 // pred_fallthru
          _
        // Predicated region
        $region25: #{pixelcnnpp_forward.1} parent=11 // pred_check
          %p237 = pneg %p124
        $region26: #{pixelcnnpp_forward.1} parent=11 // pred_check_branch
          %239 = sbr.rel (%p237) target = $region28
        $region27: #{pixelcnnpp_forward.1} parent=11 // pred_region
          _
        $region28: #{pixelcnnpp_forward.1} parent=11 // pred_fallthru
          _
        // Predicated region
        $region29: #{pixelcnnpp_forward.1} parent=11 // pred_check
          %p240 = pneg %p145
        $region30: #{pixelcnnpp_forward.1} parent=11 // pred_check_branch
          %242 = sbr.rel (%p240) target = $region32
        $region31: #{pixelcnnpp_forward.1} parent=11 // pred_region
          _
        $region32: #{pixelcnnpp_forward.1} parent=11 // pred_fallthru
          _
        // Predicated region
        $region33: #{pixelcnnpp_forward.1} parent=11 // pred_check
          %p243 = pneg %p166
        $region34: #{pixelcnnpp_forward.1} parent=11 // pred_check_branch
          %245 = sbr.rel (%p243) target = $region36
        $region35: #{pixelcnnpp_forward.1} parent=11 // pred_region
          _
        $region36: #{pixelcnnpp_forward.1} parent=11 // pred_fallthru
          _
        // Predicated region
        $region37: #{pixelcnnpp_forward.1} parent=11 // pred_check
          %p246 = pneg %p187
        $region38: #{pixelcnnpp_forward.1} parent=11 // pred_check_branch
          %248 = sbr.rel (%p246) target = $region40
        $region39: #{pixelcnnpp_forward.1} parent=11 // pred_region
          _
        $region40: #{pixelcnnpp_forward.1} parent=11 // pred_fallthru
          _
      $region12: #{pixelcnnpp_forward.1} parent=5 // pred_fallthru
        _
      %p249 = scmp.lt.s32.totalorder %s14, 2
      // Predicated region
      $region41: #{pixelcnnpp_forward.1} parent=5 // pred_check
        %p250 = pneg %p249
      $region42: #{pixelcnnpp_forward.1} parent=5 // pred_check_branch
        %252 = sbr.rel (%p250) target = $region44
      $region43: #{pixelcnnpp_forward.1} parent=5 // pred_region
        // Predicated region
        $region45: #{pixelcnnpp_forward.1} parent=43 // pred_check
          %p253 = pneg %p34
        $region46: #{pixelcnnpp_forward.1} parent=43 // pred_check_branch
          %255 = sbr.rel (%p253) target = $region48
        $region47: #{pixelcnnpp_forward.1} parent=43 // pred_region
          %s256 = sand.u32 %s24, 1
          %s257 = sand.u32 %s24, 1
          %s258 = smul.addr %s257, 32
          %s259 = scalar_lea.vmem [#allocation4], %s258
          %s260 = smul.u32 4, %s14
          %s261 = smul.addr %s260, 4
          %s262 = scalar_lea.vmem %s0, %s261
          // Predicated region
          $region49: #{pixelcnnpp_forward.1} parent=47 // pred_check
            _
          $region50: #{pixelcnnpp_forward.1} parent=47 // pred_check_branch
            %264 = sbr.rel (0) target = $region52
          $region51: #{pixelcnnpp_forward.1} parent=47 // pred_region
            // Predicated region
            $region53: #{pixelcnnpp_forward.1} parent=51 // pred_check
              _
            $region54: #{pixelcnnpp_forward.1} parent=51 // pred_check_branch
              %266 = sbr.rel (0) target = $region56
            $region55: #{pixelcnnpp_forward.1} parent=51 // pred_region
              loop: start=0, step=1, limit=1
              $region57: #{pixelcnnpp_forward.1} parent=55 // loop_pre_header
                _
              $region58: #{pixelcnnpp_forward.1} parent=55 // loop_header
                %s268 = sphi 0, %s272
                %p269 = scmp.ge.s32.totalorder %s268, 1
                %s273 = sphi %s262, %s262
                %s274 = sphi %s259, %s259
              $region59: #{pixelcnnpp_forward.1} parent=55 // loop_header_branch
                %271 = sbr.rel (%p269) target = $region63
              $region60: #{pixelcnnpp_forward.1} parent=55 // loop_body
                %v275 = vld [vmem:[%s273] sm:$0xff]
                %276 = vst [vmem:[%s274] sm:$0xff] %v275
                %v277 = vld [vmem:[%s273 + $0x8] sm:$0xff]
                %278 = vst [vmem:[%s274 + $0x8] sm:$0xff] %v277
                %v279 = vld [vmem:[%s273 + $0x20] sm:$0xff]
                %280 = vst [vmem:[%s274 + $0x10] sm:$0xff] %v279
                %v281 = vld [vmem:[%s273 + $0x28] sm:$0xff]
                %282 = vst [vmem:[%s274 + $0x18] sm:$0xff] %v281
              $region61: #{pixelcnnpp_forward.1} parent=55 // loop_footer
                %s272 = sadd.s32 1, %s268
              $region62: #{pixelcnnpp_forward.1} parent=55 // loop_footer_branch
                %267 = sbr.rel target = $region58
              $region63: #{pixelcnnpp_forward.1} parent=55 // loop_exit
                _
            $region56: #{pixelcnnpp_forward.1} parent=51 // pred_fallthru
              _
            // Predicated region
            $region64: #{pixelcnnpp_forward.1} parent=51 // pred_check
              _
            $region65: #{pixelcnnpp_forward.1} parent=51 // pred_check_branch
              %284 = sbr.rel target = $region67
            $region66: #{pixelcnnpp_forward.1} parent=51 // pred_region
              _
            $region67: #{pixelcnnpp_forward.1} parent=51 // pred_fallthru
              _
          $region52: #{pixelcnnpp_forward.1} parent=47 // pred_fallthru
            _
          %285 = vnop
        $region48: #{pixelcnnpp_forward.1} parent=43 // pred_fallthru
          _
      $region44: #{pixelcnnpp_forward.1} parent=5 // pred_fallthru
        _
      %p286 = scmp.le.s32.totalorder 1, %s14
      %p287 = scmp.lt.s32.totalorder %s14, 3
      %p288 = pnand %p286, %p287
      %p289 = pneg %p288
      // Predicated region
      $region68: #{pixelcnnpp_forward.1} parent=5 // pred_check
        _
      $region69: #{pixelcnnpp_forward.1} parent=5 // pred_check_branch
        %291 = sbr.rel (%p288) target = $region71
      $region70: #{pixelcnnpp_forward.1} parent=5 // pred_region
        %s292 = ssub.s32 %s14, 1
        %s293 = sand.u32 %s27, 1
        %s294 = sand.u32 %s27, 1
        %s295 = smul.addr %s294, 32
        %s296 = scalar_lea.vmem [#allocation4], %s295
        // Predicated region
        $region72: #{pixelcnnpp_forward.1} parent=70 // pred_check
          %p297 = pneg %p40
        $region73: #{pixelcnnpp_forward.1} parent=70 // pred_check_branch
          %299 = sbr.rel (%p297) target = $region75
        $region74: #{pixelcnnpp_forward.1} parent=70 // pred_region
          _
        $region75: #{pixelcnnpp_forward.1} parent=70 // pred_fallthru
          _
        %s300 = sand.u32 %s27, 1
        %s301 = sand.u32 %s27, 1
        %s302 = smul.addr %s301, 32
        %s303 = scalar_lea.vmem [#allocation4], %s302
        %p304 = pneg %p40
        %p305 = pneg %p37
        %p306 = pneg %p61
        %p307 = pneg %p58
        %p308 = pneg %p82
        %p309 = pneg %p79
        %p310 = pneg %p103
        %p311 = pneg %p100
        %p312 = pneg %p124
        %p313 = pneg %p121
        %p314 = pneg %p145
        %p315 = pneg %p142
        %p316 = pneg %p166
        %p317 = pneg %p163
        %p318 = pneg %p187
        %p319 = pneg %p184
        %p320 = pneg %p213
        %p321 = pneg %p210
        %s322 = sand.u32 %s200, 1
        %s323 = sand.u32 %s200, 1
        %s324 = smul.addr %s323, 128
        %s325 = scalar_lea.vmem [#allocation5], %s324
        %s326 = smul.u32 4, %s19
        %s327 = smul.u32 4, %s19
        %v329 = vld [vmem:[%s1] sm:$0xf]
        %330 = vst [vmem:[#allocation2] sm:$0xff] 0
        %331 = vst [vmem:[#allocation2 + $0x8] sm:$0xff] 0
        %332 = vst [vmem:[#allocation2 + $0x10] sm:$0xff] 0
        %333 = vst [vmem:[#allocation2 + $0x18] sm:$0xff] 0
        %334 = vst [vmem:[#allocation2 + $0x20] sm:$0xff] 0
        %335 = vst [vmem:[#allocation2 + $0x28] sm:$0xff] 0
        %336 = vst [vmem:[#allocation3] sm:$0xff] 0
        %337 = vst [vmem:[#allocation3 + $0x8] sm:$0xff] 0
        %338 = vst [vmem:[#allocation3 + $0x10] sm:$0xff] 0
        %339 = vst [vmem:[#allocation3 + $0x18] sm:$0xff] 0
        %340 = vst [vmem:[#allocation3 + $0x20] sm:$0xff] 0
        %341 = vst [vmem:[#allocation3 + $0x28] sm:$0xff] 0
        %342 = vst [vmem:[#allocation3 + $0x30] sm:$0xff] 0
        %343 = vst [vmem:[#allocation3 + $0x38] sm:$0xff] 0
        %344 = vst [vmem:[#allocation3 + $0x40] sm:$0xff] 0
        %345 = vst [vmem:[#allocation3 + $0x48] sm:$0xff] 0
        %346 = vst [vmem:[#allocation3 + $0x50] sm:$0xff] 0
        %347 = vst [vmem:[#allocation3 + $0x58] sm:$0xff] 0
        %v348 = vld [vmem:[%s296] sm:$0xff]
        %v349 = vld [vmem:[%s296 + $0x8] sm:$0xff]
        %v350 = vld [vmem:[%s296 + $0x10] sm:$0xff]
        %v351 = vld [vmem:[%s296 + $0x18] sm:$0xff]
        %v356 = vunpack.c.l.b16 %v348
        %v357 = vunpack.c.h.b16 %v348
        %v358 = vunpack.c.l.b16 %v349
        %v359 = vunpack.c.h.b16 %v349
        %v360 = vunpack.c.l.b16 %v350
        %v361 = vunpack.c.h.b16 %v350
        %v362 = vunpack.c.l.b16 %v351
        %v363 = vunpack.c.h.b16 %v351
        %v364 = vpack.c.b16 %v360, %v356
        %v365 = vpack.c.b16 %v361, %v357
        %v366 = vpack.c.b16 %v362, %v358
        %v367 = vpack.c.b16 %v363, %v359
        %372 = vst [vmem:[#allocation2 + $0x8] sm:$0xff] %v364
        %373 = vst [vmem:[#allocation2 + $0x10] sm:$0xff] %v365
        %374 = vst [vmem:[#allocation2 + $0x18] sm:$0xff] %v366
        %375 = vst [vmem:[#allocation2 + $0x20] sm:$0xff] %v367
        %v376 = vld [vmem:[#allocation2] sm:$0xff]
        %v377 = vld [vmem:[#allocation2 + $0x8] sm:$0xff]
        %v378 = vld [vmem:[#allocation2 + $0x10] sm:$0xff]
        %v379 = vld [vmem:[#allocation2 + $0x18] sm:$0xff]
        %v380 = vld [vmem:[#allocation2 + $0x20] sm:$0xff]
        %v381 = vld [vmem:[#allocation2 + $0x8] sm:$0xff]
        %v382 = vld [vmem:[#allocation2 + $0x10] sm:$0xff]
        %v383 = vld [vmem:[#allocation2 + $0x18] sm:$0xff]
        %v384 = vld [vmem:[#allocation2 + $0x20] sm:$0xff]
        %v385 = vld [vmem:[#allocation2 + $0x28] sm:$0xff]
        %391 = vrot.lane.b32.xlu0 %v376, 127
        %v392 = vpop.permute.xlu0 %391
        %393 = vrot.lane.b32.xlu0 %v377, 127
        %v394 = vpop.permute.xlu0 %393
        %395 = vrot.lane.b32.xlu0 %v378, 127
        %v396 = vpop.permute.xlu0 %395
        %397 = vrot.lane.b32.xlu0 %v379, 127
        %v398 = vpop.permute.xlu0 %397
        %399 = vrot.lane.b32.xlu0 %v380, 127
        %v400 = vpop.permute.xlu0 %399
        %vm401 = vcmask 1039360
        %v402 = vsel %vm401, %v392, %v394
        %v403 = vsel %vm401, %v394, %v396
        %v404 = vsel %vm401, %v396, %v398
        %v405 = vsel %vm401, %v398, %v400
        %406 = vrot.lane.b32.xlu0 %v376, 126
        %v407 = vpop.permute.xlu0 %406
        %408 = vrot.lane.b32.xlu0 %v377, 126
        %v409 = vpop.permute.xlu0 %408
        %410 = vrot.lane.b32.xlu0 %v378, 126
        %v411 = vpop.permute.xlu0 %410
        %412 = vrot.lane.b32.xlu0 %v379, 126
        %v413 = vpop.permute.xlu0 %412
        %414 = vrot.lane.b32.xlu0 %v380, 126
        %v415 = vpop.permute.xlu0 %414
        %vm416 = vcmask 1031168
        %v417 = vsel %vm416, %v407, %v409
        %v418 = vsel %vm416, %v409, %v411
        %v419 = vsel %vm416, %v411, %v413
        %v420 = vsel %vm416, %v413, %v415
        %421 = vrot.lane.b32.xlu0 %v376, 125
        %v422 = vpop.permute.xlu0 %421
        %423 = vrot.lane.b32.xlu0 %v377, 125
        %v424 = vpop.permute.xlu0 %423
        %425 = vrot.lane.b32.xlu0 %v378, 125
        %v426 = vpop.permute.xlu0 %425
        %427 = vrot.lane.b32.xlu0 %v379, 125
        %v428 = vpop.permute.xlu0 %427
        %429 = vrot.lane.b32.xlu0 %v380, 125
        %v430 = vpop.permute.xlu0 %429
        %vm431 = vcmask 1022976
        %v432 = vsel %vm431, %v422, %v424
        %v433 = vsel %vm431, %v424, %v426
        %v434 = vsel %vm431, %v426, %v428
        %v435 = vsel %vm431, %v428, %v430
        %436 = vrot.lane.b32.xlu0 %v376, 124
        %v437 = vpop.permute.xlu0 %436
        %438 = vrot.lane.b32.xlu0 %v377, 124
        %v439 = vpop.permute.xlu0 %438
        %440 = vrot.lane.b32.xlu0 %v378, 124
        %v441 = vpop.permute.xlu0 %440
        %442 = vrot.lane.b32.xlu0 %v379, 124
        %v443 = vpop.permute.xlu0 %442
        %444 = vrot.lane.b32.xlu0 %v380, 124
        %v445 = vpop.permute.xlu0 %444
        %vm446 = vcmask 1014784
        %v447 = vsel %vm446, %v437, %v439
        %v448 = vsel %vm446, %v439, %v441
        %v449 = vsel %vm446, %v441, %v443
        %v450 = vsel %vm446, %v443, %v445
        %451 = vrot.lane.b32.xlu0 %v376, 123
        %v452 = vpop.permute.xlu0 %451
        %453 = vrot.lane.b32.xlu0 %v377, 123
        %v454 = vpop.permute.xlu0 %453
        %455 = vrot.lane.b32.xlu0 %v378, 123
        %v456 = vpop.permute.xlu0 %455
        %457 = vrot.lane.b32.xlu0 %v379, 123
        %v458 = vpop.permute.xlu0 %457
        %459 = vrot.lane.b32.xlu0 %v380, 123
        %v460 = vpop.permute.xlu0 %459
        %vm461 = vcmask 1006592
        %v462 = vsel %vm461, %v452, %v454
        %v463 = vsel %vm461, %v454, %v456
        %v464 = vsel %vm461, %v456, %v458
        %v465 = vsel %vm461, %v458, %v460
        %466 = vrot.lane.b32.xlu0 %v376, 122
        %v467 = vpop.permute.xlu0 %466
        %468 = vrot.lane.b32.xlu0 %v377, 122
        %v469 = vpop.permute.xlu0 %468
        %470 = vrot.lane.b32.xlu0 %v378, 122
        %v471 = vpop.permute.xlu0 %470
        %472 = vrot.lane.b32.xlu0 %v379, 122
        %v473 = vpop.permute.xlu0 %472
        %474 = vrot.lane.b32.xlu0 %v380, 122
        %v475 = vpop.permute.xlu0 %474
        %vm476 = vcmask 998400
        %v477 = vsel %vm476, %v467, %v469
        %v478 = vsel %vm476, %v469, %v471
        %v479 = vsel %vm476, %v471, %v473
        %v480 = vsel %vm476, %v473, %v475
        %481 = vrot.lane.b32.xlu0 %v376, 106
        %v482 = vpop.permute.xlu0 %481
        %483 = vrot.lane.b32.xlu0 %v377, 106
        %v484 = vpop.permute.xlu0 %483
        %485 = vrot.lane.b32.xlu0 %v378, 106
        %v486 = vpop.permute.xlu0 %485
        %487 = vrot.lane.b32.xlu0 %v379, 106
        %v488 = vpop.permute.xlu0 %487
        %489 = vrot.lane.b32.xlu0 %v380, 106
        %v490 = vpop.permute.xlu0 %489
        %vm491 = vcmask 867328
        %v492 = vsel %vm491, %v482, %v484
        %v493 = vsel %vm491, %v484, %v486
        %v494 = vsel %vm491, %v486, %v488
        %v495 = vsel %vm491, %v488, %v490
        %496 = vrot.lane.b32.xlu0 %v376, 105
        %v497 = vpop.permute.xlu0 %496
        %498 = vrot.lane.b32.xlu0 %v377, 105
        %v499 = vpop.permute.xlu0 %498
        %500 = vrot.lane.b32.xlu0 %v378, 105
        %v501 = vpop.permute.xlu0 %500
        %502 = vrot.lane.b32.xlu0 %v379, 105
        %v503 = vpop.permute.xlu0 %502
        %504 = vrot.lane.b32.xlu0 %v380, 105
        %v505 = vpop.permute.xlu0 %504
        %vm506 = vcmask 859136
        %v507 = vsel %vm506, %v497, %v499
        %v508 = vsel %vm506, %v499, %v501
        %v509 = vsel %vm506, %v501, %v503
        %v510 = vsel %vm506, %v503, %v505
        %511 = vrot.lane.b32.xlu0 %v376, 104
        %v512 = vpop.permute.xlu0 %511
        %513 = vrot.lane.b32.xlu0 %v377, 104
        %v514 = vpop.permute.xlu0 %513
        %515 = vrot.lane.b32.xlu0 %v378, 104
        %v516 = vpop.permute.xlu0 %515
        %517 = vrot.lane.b32.xlu0 %v379, 104
        %v518 = vpop.permute.xlu0 %517
        %519 = vrot.lane.b32.xlu0 %v380, 104
        %v520 = vpop.permute.xlu0 %519
        %vm521 = vcmask 850944
        %v522 = vsel %vm521, %v512, %v514
        %v523 = vsel %vm521, %v514, %v516
        %v524 = vsel %vm521, %v516, %v518
        %v525 = vsel %vm521, %v518, %v520
        %526 = vrot.lane.b32.xlu0 %v376, 103
        %v527 = vpop.permute.xlu0 %526
        %528 = vrot.lane.b32.xlu0 %v377, 103
        %v529 = vpop.permute.xlu0 %528
        %530 = vrot.lane.b32.xlu0 %v378, 103
        %v531 = vpop.permute.xlu0 %530
        %532 = vrot.lane.b32.xlu0 %v379, 103
        %v533 = vpop.permute.xlu0 %532
        %534 = vrot.lane.b32.xlu0 %v380, 103
        %v535 = vpop.permute.xlu0 %534
        %vm536 = vcmask 842752
        %v537 = vsel %vm536, %v527, %v529
        %v538 = vsel %vm536, %v529, %v531
        %v539 = vsel %vm536, %v531, %v533
        %v540 = vsel %vm536, %v533, %v535
        %541 = vrot.lane.b32.xlu0 %v376, 102
        %v542 = vpop.permute.xlu0 %541
        %543 = vrot.lane.b32.xlu0 %v377, 102
        %v544 = vpop.permute.xlu0 %543
        %545 = vrot.lane.b32.xlu0 %v378, 102
        %v546 = vpop.permute.xlu0 %545
        %547 = vrot.lane.b32.xlu0 %v379, 102
        %v548 = vpop.permute.xlu0 %547
        %549 = vrot.lane.b32.xlu0 %v380, 102
        %v550 = vpop.permute.xlu0 %549
        %vm551 = vcmask 834560
        %v552 = vsel %vm551, %v542, %v544
        %v553 = vsel %vm551, %v544, %v546
        %v554 = vsel %vm551, %v546, %v548
        %v555 = vsel %vm551, %v548, %v550
        %556 = vrot.lane.b32.xlu0 %v376, 101
        %v557 = vpop.permute.xlu0 %556
        %558 = vrot.lane.b32.xlu0 %v377, 101
        %v559 = vpop.permute.xlu0 %558
        %560 = vrot.lane.b32.xlu0 %v378, 101
        %v561 = vpop.permute.xlu0 %560
        %562 = vrot.lane.b32.xlu0 %v379, 101
        %v563 = vpop.permute.xlu0 %562
        %564 = vrot.lane.b32.xlu0 %v380, 101
        %v565 = vpop.permute.xlu0 %564
        %vm566 = vcmask 826368
        %v567 = vsel %vm566, %v557, %v559
        %v568 = vsel %vm566, %v559, %v561
        %v569 = vsel %vm566, %v561, %v563
        %v570 = vsel %vm566, %v563, %v565
        %571 = vrot.lane.b32.xlu0 %v376, 100
        %v572 = vpop.permute.xlu0 %571
        %573 = vrot.lane.b32.xlu0 %v377, 100
        %v574 = vpop.permute.xlu0 %573
        %575 = vrot.lane.b32.xlu0 %v378, 100
        %v576 = vpop.permute.xlu0 %575
        %577 = vrot.lane.b32.xlu0 %v379, 100
        %v578 = vpop.permute.xlu0 %577
        %579 = vrot.lane.b32.xlu0 %v380, 100
        %v580 = vpop.permute.xlu0 %579
        %vm581 = vcmask 818176
        %v582 = vsel %vm581, %v572, %v574
        %v583 = vsel %vm581, %v574, %v576
        %v584 = vsel %vm581, %v576, %v578
        %v585 = vsel %vm581, %v578, %v580
        %586 = vrot.lane.b32.xlu0 %v376, 84
        %v587 = vpop.permute.xlu0 %586
        %588 = vrot.lane.b32.xlu0 %v377, 84
        %v589 = vpop.permute.xlu0 %588
        %590 = vrot.lane.b32.xlu0 %v378, 84
        %v591 = vpop.permute.xlu0 %590
        %592 = vrot.lane.b32.xlu0 %v379, 84
        %v593 = vpop.permute.xlu0 %592
        %594 = vrot.lane.b32.xlu0 %v380, 84
        %v595 = vpop.permute.xlu0 %594
        %vm596 = vcmask 687104
        %v597 = vsel %vm596, %v587, %v589
        %v598 = vsel %vm596, %v589, %v591
        %v599 = vsel %vm596, %v591, %v593
        %v600 = vsel %vm596, %v593, %v595
        %601 = vrot.lane.b32.xlu0 %v376, 83
        %v602 = vpop.permute.xlu0 %601
        %603 = vrot.lane.b32.xlu0 %v377, 83
        %v604 = vpop.permute.xlu0 %603
        %605 = vrot.lane.b32.xlu0 %v378, 83
        %v606 = vpop.permute.xlu0 %605
        %607 = vrot.lane.b32.xlu0 %v379, 83
        %v608 = vpop.permute.xlu0 %607
        %609 = vrot.lane.b32.xlu0 %v380, 83
        %v610 = vpop.permute.xlu0 %609
        %vm611 = vcmask 678912
        %v612 = vsel %vm611, %v602, %v604
        %v613 = vsel %vm611, %v604, %v606
        %v614 = vsel %vm611, %v606, %v608
        %v615 = vsel %vm611, %v608, %v610
        %616 = vrot.lane.b32.xlu0 %v376, 108
        %v617 = vpop.permute.xlu0 %616
        %618 = vrot.lane.b32.xlu0 %v377, 108
        %v619 = vpop.permute.xlu0 %618
        %620 = vrot.lane.b32.xlu0 %v378, 108
        %v621 = vpop.permute.xlu0 %620
        %622 = vrot.lane.b32.xlu0 %v379, 108
        %v623 = vpop.permute.xlu0 %622
        %624 = vrot.lane.b32.xlu0 %v380, 108
        %v625 = vpop.permute.xlu0 %624
        %vm626 = vcmask 883712
        %v627 = vsel %vm626, %v617, %v619
        %v628 = vsel %vm626, %v619, %v621
        %v629 = vsel %vm626, %v621, %v623
        %v630 = vsel %vm626, %v623, %v625
        %631 = vrot.lane.b32.xlu0 %v376, 107
        %v632 = vpop.permute.xlu0 %631
        %633 = vrot.lane.b32.xlu0 %v377, 107
        %v634 = vpop.permute.xlu0 %633
        %635 = vrot.lane.b32.xlu0 %v378, 107
        %v636 = vpop.permute.xlu0 %635
        %637 = vrot.lane.b32.xlu0 %v379, 107
        %v638 = vpop.permute.xlu0 %637
        %639 = vrot.lane.b32.xlu0 %v380, 107
        %v640 = vpop.permute.xlu0 %639
        %vm641 = vcmask 875520
        %v642 = vsel %vm641, %v632, %v634
        %v643 = vsel %vm641, %v634, %v636
        %v644 = vsel %vm641, %v636, %v638
        %v645 = vsel %vm641, %v638, %v640
        %651 = vrot.lane.b32.xlu0 %v381, 104
        %v652 = vpop.permute.xlu0 %651
        %653 = vrot.lane.b32.xlu0 %v382, 104
        %v654 = vpop.permute.xlu0 %653
        %655 = vrot.lane.b32.xlu0 %v383, 104
        %v656 = vpop.permute.xlu0 %655
        %657 = vrot.lane.b32.xlu0 %v384, 104
        %v658 = vpop.permute.xlu0 %657
        %659 = vrot.lane.b32.xlu0 %v385, 104
        %v660 = vpop.permute.xlu0 %659
        %v661 = vsel %vm521, %v652, %v654
        %v662 = vsel %vm521, %v654, %v656
        %v663 = vsel %vm521, %v656, %v658
        %v664 = vsel %vm521, %v658, %v660
        %665 = vrot.lane.b32.xlu0 %v381, 103
        %v666 = vpop.permute.xlu0 %665
        %667 = vrot.lane.b32.xlu0 %v382, 103
        %v668 = vpop.permute.xlu0 %667
        %669 = vrot.lane.b32.xlu0 %v383, 103
        %v670 = vpop.permute.xlu0 %669
        %671 = vrot.lane.b32.xlu0 %v384, 103
        %v672 = vpop.permute.xlu0 %671
        %673 = vrot.lane.b32.xlu0 %v385, 103
        %v674 = vpop.permute.xlu0 %673
        %v675 = vsel %vm536, %v666, %v668
        %v676 = vsel %vm536, %v668, %v670
        %v677 = vsel %vm536, %v670, %v672
        %v678 = vsel %vm536, %v672, %v674
        %679 = vrot.lane.b32.xlu0 %v381, 102
        %v680 = vpop.permute.xlu0 %679
        %681 = vrot.lane.b32.xlu0 %v382, 102
        %v682 = vpop.permute.xlu0 %681
        %683 = vrot.lane.b32.xlu0 %v383, 102
        %v684 = vpop.permute.xlu0 %683
        %685 = vrot.lane.b32.xlu0 %v384, 102
        %v686 = vpop.permute.xlu0 %685
        %687 = vrot.lane.b32.xlu0 %v385, 102
        %v688 = vpop.permute.xlu0 %687
        %v689 = vsel %vm551, %v680, %v682
        %v690 = vsel %vm551, %v682, %v684
        %v691 = vsel %vm551, %v684, %v686
        %v692 = vsel %vm551, %v686, %v688
        %693 = vrot.lane.b32.xlu0 %v381, 86
        %v694 = vpop.permute.xlu0 %693
        %695 = vrot.lane.b32.xlu0 %v382, 86
        %v696 = vpop.permute.xlu0 %695
        %697 = vrot.lane.b32.xlu0 %v383, 86
        %v698 = vpop.permute.xlu0 %697
        %699 = vrot.lane.b32.xlu0 %v384, 86
        %v700 = vpop.permute.xlu0 %699
        %701 = vrot.lane.b32.xlu0 %v385, 86
        %v702 = vpop.permute.xlu0 %701
        %vm703 = vcmask 703488
        %v704 = vsel %vm703, %v694, %v696
        %v705 = vsel %vm703, %v696, %v698
        %v706 = vsel %vm703, %v698, %v700
        %v707 = vsel %vm703, %v700, %v702
        %708 = vrot.lane.b32.xlu0 %v381, 85
        %v709 = vpop.permute.xlu0 %708
        %710 = vrot.lane.b32.xlu0 %v382, 85
        %v711 = vpop.permute.xlu0 %710
        %712 = vrot.lane.b32.xlu0 %v383, 85
        %v713 = vpop.permute.xlu0 %712
        %714 = vrot.lane.b32.xlu0 %v384, 85
        %v715 = vpop.permute.xlu0 %714
        %716 = vrot.lane.b32.xlu0 %v385, 85
        %v717 = vpop.permute.xlu0 %716
        %vm718 = vcmask 695296
        %v719 = vsel %vm718, %v709, %v711
        %v720 = vsel %vm718, %v711, %v713
        %v721 = vsel %vm718, %v713, %v715
        %v722 = vsel %vm718, %v715, %v717
        %723 = vrot.lane.b32.xlu0 %v381, 84
        %v724 = vpop.permute.xlu0 %723
        %725 = vrot.lane.b32.xlu0 %v382, 84
        %v726 = vpop.permute.xlu0 %725
        %727 = vrot.lane.b32.xlu0 %v383, 84
        %v728 = vpop.permute.xlu0 %727
        %729 = vrot.lane.b32.xlu0 %v384, 84
        %v730 = vpop.permute.xlu0 %729
        %731 = vrot.lane.b32.xlu0 %v385, 84
        %v732 = vpop.permute.xlu0 %731
        %v733 = vsel %vm596, %v724, %v726
        %v734 = vsel %vm596, %v726, %v728
        %v735 = vsel %vm596, %v728, %v730
        %v736 = vsel %vm596, %v730, %v732
        %737 = vrot.lane.b32.xlu0 %v381, 83
        %v738 = vpop.permute.xlu0 %737
        %739 = vrot.lane.b32.xlu0 %v382, 83
        %v740 = vpop.permute.xlu0 %739
        %741 = vrot.lane.b32.xlu0 %v383, 83
        %v742 = vpop.permute.xlu0 %741
        %743 = vrot.lane.b32.xlu0 %v384, 83
        %v744 = vpop.permute.xlu0 %743
        %745 = vrot.lane.b32.xlu0 %v385, 83
        %v746 = vpop.permute.xlu0 %745
        %v747 = vsel %vm611, %v738, %v740
        %v748 = vsel %vm611, %v740, %v742
        %v749 = vsel %vm611, %v742, %v744
        %v750 = vsel %vm611, %v744, %v746
        %751 = vrot.lane.b32.xlu0 %v381, 127
        %v752 = vpop.permute.xlu0 %751
        %753 = vrot.lane.b32.xlu0 %v382, 127
        %v754 = vpop.permute.xlu0 %753
        %755 = vrot.lane.b32.xlu0 %v383, 127
        %v756 = vpop.permute.xlu0 %755
        %757 = vrot.lane.b32.xlu0 %v384, 127
        %v758 = vpop.permute.xlu0 %757
        %759 = vrot.lane.b32.xlu0 %v385, 127
        %v760 = vpop.permute.xlu0 %759
        %v761 = vsel %vm401, %v752, %v754
        %v762 = vsel %vm401, %v754, %v756
        %v763 = vsel %vm401, %v756, %v758
        %v764 = vsel %vm401, %v758, %v760
        %765 = vrot.lane.b32.xlu0 %v381, 126
        %v766 = vpop.permute.xlu0 %765
        %767 = vrot.lane.b32.xlu0 %v382, 126
        %v768 = vpop.permute.xlu0 %767
        %769 = vrot.lane.b32.xlu0 %v383, 126
        %v770 = vpop.permute.xlu0 %769
        %771 = vrot.lane.b32.xlu0 %v384, 126
        %v772 = vpop.permute.xlu0 %771
        %773 = vrot.lane.b32.xlu0 %v385, 126
        %v774 = vpop.permute.xlu0 %773
        %v775 = vsel %vm416, %v766, %v768
        %v776 = vsel %vm416, %v768, %v770
        %v777 = vsel %vm416, %v770, %v772
        %v778 = vsel %vm416, %v772, %v774
        %779 = vrot.lane.b32.xlu0 %v381, 110
        %v780 = vpop.permute.xlu0 %779
        %781 = vrot.lane.b32.xlu0 %v382, 110
        %v782 = vpop.permute.xlu0 %781
        %783 = vrot.lane.b32.xlu0 %v383, 110
        %v784 = vpop.permute.xlu0 %783
        %785 = vrot.lane.b32.xlu0 %v384, 110
        %v786 = vpop.permute.xlu0 %785
        %787 = vrot.lane.b32.xlu0 %v385, 110
        %v788 = vpop.permute.xlu0 %787
        %vm789 = vcmask 900096
        %v790 = vsel %vm789, %v780, %v782
        %v791 = vsel %vm789, %v782, %v784
        %v792 = vsel %vm789, %v784, %v786
        %v793 = vsel %vm789, %v786, %v788
        %794 = vrot.lane.b32.xlu0 %v381, 109
        %v795 = vpop.permute.xlu0 %794
        %796 = vrot.lane.b32.xlu0 %v382, 109
        %v797 = vpop.permute.xlu0 %796
        %798 = vrot.lane.b32.xlu0 %v383, 109
        %v799 = vpop.permute.xlu0 %798
        %800 = vrot.lane.b32.xlu0 %v384, 109
        %v801 = vpop.permute.xlu0 %800
        %802 = vrot.lane.b32.xlu0 %v385, 109
        %v803 = vpop.permute.xlu0 %802
        %vm804 = vcmask 891904
        %v805 = vsel %vm804, %v795, %v797
        %v806 = vsel %vm804, %v797, %v799
        %v807 = vsel %vm804, %v799, %v801
        %v808 = vsel %vm804, %v801, %v803
        %809 = vrot.lane.b32.xlu0 %v381, 108
        %v810 = vpop.permute.xlu0 %809
        %811 = vrot.lane.b32.xlu0 %v382, 108
        %v812 = vpop.permute.xlu0 %811
        %813 = vrot.lane.b32.xlu0 %v383, 108
        %v814 = vpop.permute.xlu0 %813
        %815 = vrot.lane.b32.xlu0 %v384, 108
        %v816 = vpop.permute.xlu0 %815
        %817 = vrot.lane.b32.xlu0 %v385, 108
        %v818 = vpop.permute.xlu0 %817
        %v819 = vsel %vm626, %v810, %v812
        %v820 = vsel %vm626, %v812, %v814
        %v821 = vsel %vm626, %v814, %v816
        %v822 = vsel %vm626, %v816, %v818
        %823 = vrot.lane.b32.xlu0 %v381, 107
        %v824 = vpop.permute.xlu0 %823
        %825 = vrot.lane.b32.xlu0 %v382, 107
        %v826 = vpop.permute.xlu0 %825
        %827 = vrot.lane.b32.xlu0 %v383, 107
        %v828 = vpop.permute.xlu0 %827
        %829 = vrot.lane.b32.xlu0 %v384, 107
        %v830 = vpop.permute.xlu0 %829
        %831 = vrot.lane.b32.xlu0 %v385, 107
        %v832 = vpop.permute.xlu0 %831
        %v833 = vsel %vm641, %v824, %v826
        %v834 = vsel %vm641, %v826, %v828
        %v835 = vsel %vm641, %v828, %v830
        %v836 = vsel %vm641, %v830, %v832
        %837 = vrot.lane.b32.xlu0 %v381, 106
        %v838 = vpop.permute.xlu0 %837
        %839 = vrot.lane.b32.xlu0 %v382, 106
        %v840 = vpop.permute.xlu0 %839
        %841 = vrot.lane.b32.xlu0 %v383, 106
        %v842 = vpop.permute.xlu0 %841
        %843 = vrot.lane.b32.xlu0 %v384, 106
        %v844 = vpop.permute.xlu0 %843
        %845 = vrot.lane.b32.xlu0 %v385, 106
        %v846 = vpop.permute.xlu0 %845
        %v847 = vsel %vm491, %v838, %v840
        %v848 = vsel %vm491, %v840, %v842
        %v849 = vsel %vm491, %v842, %v844
        %v850 = vsel %vm491, %v844, %v846
        %851 = vrot.lane.b32.xlu0 %v381, 105
        %v852 = vpop.permute.xlu0 %851
        %853 = vrot.lane.b32.xlu0 %v382, 105
        %v854 = vpop.permute.xlu0 %853
        %855 = vrot.lane.b32.xlu0 %v383, 105
        %v856 = vpop.permute.xlu0 %855
        %857 = vrot.lane.b32.xlu0 %v384, 105
        %v858 = vpop.permute.xlu0 %857
        %859 = vrot.lane.b32.xlu0 %v385, 105
        %v860 = vpop.permute.xlu0 %859
        %v861 = vsel %vm506, %v852, %v854
        %v862 = vsel %vm506, %v854, %v856
        %v863 = vsel %vm506, %v856, %v858
        %v864 = vsel %vm506, %v858, %v860
        %865 = vrot.lane.b32.xlu0 %v381, 88
        %v866 = vpop.permute.xlu0 %865
        %867 = vrot.lane.b32.xlu0 %v382, 88
        %v868 = vpop.permute.xlu0 %867
        %869 = vrot.lane.b32.xlu0 %v383, 88
        %v870 = vpop.permute.xlu0 %869
        %871 = vrot.lane.b32.xlu0 %v384, 88
        %v872 = vpop.permute.xlu0 %871
        %873 = vrot.lane.b32.xlu0 %v385, 88
        %v874 = vpop.permute.xlu0 %873
        %vm875 = vcmask 719872
        %v876 = vsel %vm875, %v866, %v868
        %v877 = vsel %vm875, %v868, %v870
        %v878 = vsel %vm875, %v870, %v872
        %v879 = vsel %vm875, %v872, %v874
        %880 = vrot.lane.b32.xlu0 %v381, 87
        %v881 = vpop.permute.xlu0 %880
        %882 = vrot.lane.b32.xlu0 %v382, 87
        %v883 = vpop.permute.xlu0 %882
        %884 = vrot.lane.b32.xlu0 %v383, 87
        %v885 = vpop.permute.xlu0 %884
        %886 = vrot.lane.b32.xlu0 %v384, 87
        %v887 = vpop.permute.xlu0 %886
        %888 = vrot.lane.b32.xlu0 %v385, 87
        %v889 = vpop.permute.xlu0 %888
        %vm890 = vcmask 711680
        %v891 = vsel %vm890, %v881, %v883
        %v892 = vsel %vm890, %v883, %v885
        %v893 = vsel %vm890, %v885, %v887
        %v894 = vsel %vm890, %v887, %v889
        %895 = vrot.lane.b32.xlu0 %v376, 82
        %v896 = vpop.permute.xlu0 %895
        %897 = vrot.lane.b32.xlu0 %v377, 82
        %v898 = vpop.permute.xlu0 %897
        %899 = vrot.lane.b32.xlu0 %v378, 82
        %v900 = vpop.permute.xlu0 %899
        %901 = vrot.lane.b32.xlu0 %v379, 82
        %v902 = vpop.permute.xlu0 %901
        %903 = vrot.lane.b32.xlu0 %v380, 82
        %v904 = vpop.permute.xlu0 %903
        %905 = vrot.lane.b32.xlu0 %v402, 82
        %v906 = vpop.permute.xlu0 %905
        %907 = vrot.lane.b32.xlu0 %v403, 82
        %v908 = vpop.permute.xlu0 %907
        %909 = vrot.lane.b32.xlu0 %v404, 82
        %v910 = vpop.permute.xlu0 %909
        %911 = vrot.lane.b32.xlu0 %v405, 82
        %v912 = vpop.permute.xlu0 %911
        %913 = vrot.lane.b32.xlu0 %v400, 82
        %v914 = vpop.permute.xlu0 %913
        %915 = vrot.lane.b32.xlu0 %v417, 82
        %v916 = vpop.permute.xlu0 %915
        %917 = vrot.lane.b32.xlu0 %v418, 82
        %v918 = vpop.permute.xlu0 %917
        %919 = vrot.lane.b32.xlu0 %v419, 82
        %v920 = vpop.permute.xlu0 %919
        %921 = vrot.lane.b32.xlu0 %v420, 82
        %v922 = vpop.permute.xlu0 %921
        %923 = vrot.lane.b32.xlu0 %v415, 82
        %v924 = vpop.permute.xlu0 %923
        %925 = vrot.lane.b32.xlu0 %v432, 82
        %v926 = vpop.permute.xlu0 %925
        %927 = vrot.lane.b32.xlu0 %v433, 82
        %v928 = vpop.permute.xlu0 %927
        %929 = vrot.lane.b32.xlu0 %v434, 82
        %v930 = vpop.permute.xlu0 %929
        %931 = vrot.lane.b32.xlu0 %v435, 82
        %v932 = vpop.permute.xlu0 %931
        %933 = vrot.lane.b32.xlu0 %v430, 82
        %v934 = vpop.permute.xlu0 %933
        %935 = vrot.lane.b32.xlu0 %v447, 82
        %v936 = vpop.permute.xlu0 %935
        %937 = vrot.lane.b32.xlu0 %v448, 82
        %v938 = vpop.permute.xlu0 %937
        %939 = vrot.lane.b32.xlu0 %v449, 82
        %v940 = vpop.permute.xlu0 %939
        %941 = vrot.lane.b32.xlu0 %v450, 82
        %v942 = vpop.permute.xlu0 %941
        %943 = vrot.lane.b32.xlu0 %v445, 82
        %v944 = vpop.permute.xlu0 %943
        %945 = vrot.lane.b32.xlu0 %v627, 82
        %v946 = vpop.permute.xlu0 %945
        %947 = vrot.lane.b32.xlu0 %v628, 82
        %v948 = vpop.permute.xlu0 %947
        %949 = vrot.lane.b32.xlu0 %v629, 82
        %v950 = vpop.permute.xlu0 %949
        %951 = vrot.lane.b32.xlu0 %v630, 82
        %v952 = vpop.permute.xlu0 %951
        %953 = vrot.lane.b32.xlu0 %v625, 82
        %v954 = vpop.permute.xlu0 %953
        %955 = vrot.lane.b32.xlu0 %v642, 82
        %v956 = vpop.permute.xlu0 %955
        %957 = vrot.lane.b32.xlu0 %v643, 82
        %v958 = vpop.permute.xlu0 %957
        %959 = vrot.lane.b32.xlu0 %v644, 82
        %v960 = vpop.permute.xlu0 %959
        %961 = vrot.lane.b32.xlu0 %v645, 82
        %v962 = vpop.permute.xlu0 %961
        %963 = vrot.lane.b32.xlu0 %v640, 82
        %v964 = vpop.permute.xlu0 %963
        %965 = vrot.lane.b32.xlu0 %v492, 82
        %v966 = vpop.permute.xlu0 %965
        %967 = vrot.lane.b32.xlu0 %v493, 82
        %v968 = vpop.permute.xlu0 %967
        %969 = vrot.lane.b32.xlu0 %v494, 82
        %v970 = vpop.permute.xlu0 %969
        %971 = vrot.lane.b32.xlu0 %v495, 82
        %v972 = vpop.permute.xlu0 %971
        %973 = vrot.lane.b32.xlu0 %v490, 82
        %v974 = vpop.permute.xlu0 %973
        %975 = vrot.lane.b32.xlu0 %v499, 82
        %v976 = vpop.permute.xlu0 %975
        %977 = vrot.lane.b32.xlu0 %v508, 82
        %v978 = vpop.permute.xlu0 %977
        %979 = vrot.lane.b32.xlu0 %v509, 82
        %v980 = vpop.permute.xlu0 %979
        %981 = vrot.lane.b32.xlu0 %v510, 82
        %v982 = vpop.permute.xlu0 %981
        %983 = vrot.lane.b32.xlu0 %v505, 82
        %v984 = vpop.permute.xlu0 %983
        %985 = vrot.lane.b32.xlu0 %v652, 82
        %v986 = vpop.permute.xlu0 %985
        %987 = vrot.lane.b32.xlu0 %v661, 82
        %v988 = vpop.permute.xlu0 %987
        %989 = vrot.lane.b32.xlu0 %v662, 82
        %v990 = vpop.permute.xlu0 %989
        %991 = vrot.lane.b32.xlu0 %v663, 82
        %v992 = vpop.permute.xlu0 %991
        %993 = vrot.lane.b32.xlu0 %v664, 82
        %v994 = vpop.permute.xlu0 %993
        %995 = vrot.lane.b32.xlu0 %v666, 82
        %v996 = vpop.permute.xlu0 %995
        %997 = vrot.lane.b32.xlu0 %v675, 82
        %v998 = vpop.permute.xlu0 %997
        %999 = vrot.lane.b32.xlu0 %v676, 82
        %v1000 = vpop.permute.xlu0 %999
        %1001 = vrot.lane.b32.xlu0 %v677, 82
        %v1002 = vpop.permute.xlu0 %1001
        %1003 = vrot.lane.b32.xlu0 %v678, 82
        %v1004 = vpop.permute.xlu0 %1003
        %1005 = vrot.lane.b32.xlu0 %v680, 82
        %v1006 = vpop.permute.xlu0 %1005
        %1007 = vrot.lane.b32.xlu0 %v689, 82
        %v1008 = vpop.permute.xlu0 %1007
        %1009 = vrot.lane.b32.xlu0 %v690, 82
        %v1010 = vpop.permute.xlu0 %1009
        %1011 = vrot.lane.b32.xlu0 %v691, 82
        %v1012 = vpop.permute.xlu0 %1011
        %1013 = vrot.lane.b32.xlu0 %v692, 82
        %v1014 = vpop.permute.xlu0 %1013
        %1015 = vrot.lane.b32.xlu0 %v694, 82
        %v1016 = vpop.permute.xlu0 %1015
        %1017 = vrot.lane.b32.xlu0 %v704, 82
        %v1018 = vpop.permute.xlu0 %1017
        %1019 = vrot.lane.b32.xlu0 %v705, 82
        %v1020 = vpop.permute.xlu0 %1019
        %1021 = vrot.lane.b32.xlu0 %v706, 82
        %v1022 = vpop.permute.xlu0 %1021
        %1023 = vrot.lane.b32.xlu0 %v707, 82
        %v1024 = vpop.permute.xlu0 %1023
        %1025 = vrot.lane.b32.xlu0 %v709, 82
        %v1026 = vpop.permute.xlu0 %1025
        %1027 = vrot.lane.b32.xlu0 %v719, 82
        %v1028 = vpop.permute.xlu0 %1027
        %1029 = vrot.lane.b32.xlu0 %v720, 82
        %v1030 = vpop.permute.xlu0 %1029
        %1031 = vrot.lane.b32.xlu0 %v721, 82
        %v1032 = vpop.permute.xlu0 %1031
        %1033 = vrot.lane.b32.xlu0 %v722, 82
        %v1034 = vpop.permute.xlu0 %1033
        %1035 = vrot.lane.b32.xlu0 %v724, 82
        %v1036 = vpop.permute.xlu0 %1035
        %1037 = vrot.lane.b32.xlu0 %v733, 82
        %v1038 = vpop.permute.xlu0 %1037
        %1039 = vrot.lane.b32.xlu0 %v734, 82
        %v1040 = vpop.permute.xlu0 %1039
        %1041 = vrot.lane.b32.xlu0 %v735, 82
        %v1042 = vpop.permute.xlu0 %1041
        %1043 = vrot.lane.b32.xlu0 %v736, 82
        %v1044 = vpop.permute.xlu0 %1043
        %1045 = vrot.lane.b32.xlu0 %v738, 82
        %v1046 = vpop.permute.xlu0 %1045
        %1047 = vrot.lane.b32.xlu0 %v747, 82
        %v1048 = vpop.permute.xlu0 %1047
        %1049 = vrot.lane.b32.xlu0 %v748, 82
        %v1050 = vpop.permute.xlu0 %1049
        %1051 = vrot.lane.b32.xlu0 %v749, 82
        %v1052 = vpop.permute.xlu0 %1051
        %1053 = vrot.lane.b32.xlu0 %v750, 82
        %v1054 = vpop.permute.xlu0 %1053
        %vm1055 = vcmask 670720
        %v1056 = vsel %vm1055, %v896, %v898
        %v1057 = vsel %vm1055, %v898, %v900
        %v1058 = vsel %vm1055, %v900, %v902
        %v1059 = vsel %vm1055, %v902, %v904
        %v1060 = vsel %vm1055, %v906, %v908
        %v1061 = vsel %vm1055, %v908, %v910
        %v1062 = vsel %vm1055, %v910, %v912
        %v1063 = vsel %vm1055, %v912, %v914
        %v1064 = vsel %vm1055, %v916, %v918
        %v1065 = vsel %vm1055, %v918, %v920
        %v1066 = vsel %vm1055, %v920, %v922
        %v1067 = vsel %vm1055, %v922, %v924
        %v1068 = vsel %vm1055, %v926, %v928
        %v1069 = vsel %vm1055, %v928, %v930
        %v1070 = vsel %vm1055, %v930, %v932
        %v1071 = vsel %vm1055, %v932, %v934
        %v1072 = vsel %vm1055, %v936, %v938
        %v1073 = vsel %vm1055, %v938, %v940
        %v1074 = vsel %vm1055, %v940, %v942
        %v1075 = vsel %vm1055, %v942, %v944
        %v1076 = vsel %vm1055, %v946, %v948
        %v1077 = vsel %vm1055, %v948, %v950
        %v1078 = vsel %vm1055, %v950, %v952
        %v1079 = vsel %vm1055, %v952, %v954
        %v1080 = vsel %vm1055, %v956, %v958
        %v1081 = vsel %vm1055, %v958, %v960
        %v1082 = vsel %vm1055, %v960, %v962
        %v1083 = vsel %vm1055, %v962, %v964
        %v1084 = vsel %vm1055, %v966, %v968
        %v1085 = vsel %vm1055, %v968, %v970
        %v1086 = vsel %vm1055, %v970, %v972
        %v1087 = vsel %vm1055, %v972, %v974
        %v1088 = vsel %vm1055, %v976, %v978
        %v1089 = vsel %vm1055, %v978, %v980
        %v1090 = vsel %vm1055, %v980, %v982
        %v1091 = vsel %vm1055, %v982, %v984
        %v1092 = vsel %vm1055, %v986, %v988
        %v1093 = vsel %vm1055, %v988, %v990
        %v1094 = vsel %vm1055, %v990, %v992
        %v1095 = vsel %vm1055, %v992, %v994
        %v1096 = vsel %vm1055, %v996, %v998
        %v1097 = vsel %vm1055, %v998, %v1000
        %v1098 = vsel %vm1055, %v1000, %v1002
        %v1099 = vsel %vm1055, %v1002, %v1004
        %v1100 = vsel %vm1055, %v1006, %v1008
        %v1101 = vsel %vm1055, %v1008, %v1010
        %v1102 = vsel %vm1055, %v1010, %v1012
        %v1103 = vsel %vm1055, %v1012, %v1014
        %v1104 = vsel %vm1055, %v1016, %v1018
        %v1105 = vsel %vm1055, %v1018, %v1020
        %v1106 = vsel %vm1055, %v1020, %v1022
        %v1107 = vsel %vm1055, %v1022, %v1024
        %v1108 = vsel %vm1055, %v1026, %v1028
        %v1109 = vsel %vm1055, %v1028, %v1030
        %v1110 = vsel %vm1055, %v1030, %v1032
        %v1111 = vsel %vm1055, %v1032, %v1034
        %v1112 = vsel %vm1055, %v1036, %v1038
        %v1113 = vsel %vm1055, %v1038, %v1040
        %v1114 = vsel %vm1055, %v1040, %v1042
        %v1115 = vsel %vm1055, %v1042, %v1044
        %v1116 = vsel %vm1055, %v1046, %v1048
        %v1117 = vsel %vm1055, %v1048, %v1050
        %v1118 = vsel %vm1055, %v1050, %v1052
        %v1119 = vsel %vm1055, %v1052, %v1054
        %1120 = vrot.lane.b32.xlu0 %v381, 36
        %v1121 = vpop.permute.xlu0 %1120
        %1122 = vrot.lane.b32.xlu0 %v382, 36
        %v1123 = vpop.permute.xlu0 %1122
        %1124 = vrot.lane.b32.xlu0 %v383, 36
        %v1125 = vpop.permute.xlu0 %1124
        %1126 = vrot.lane.b32.xlu0 %v384, 36
        %v1127 = vpop.permute.xlu0 %1126
        %1128 = vrot.lane.b32.xlu0 %v385, 36
        %v1129 = vpop.permute.xlu0 %1128
        %1130 = vrot.lane.b32.xlu0 %v761, 36
        %v1131 = vpop.permute.xlu0 %1130
        %1132 = vrot.lane.b32.xlu0 %v762, 36
        %v1133 = vpop.permute.xlu0 %1132
        %1134 = vrot.lane.b32.xlu0 %v763, 36
        %v1135 = vpop.permute.xlu0 %1134
        %1136 = vrot.lane.b32.xlu0 %v764, 36
        %v1137 = vpop.permute.xlu0 %1136
        %1138 = vrot.lane.b32.xlu0 %v760, 36
        %v1139 = vpop.permute.xlu0 %1138
        %1140 = vrot.lane.b32.xlu0 %v775, 36
        %v1141 = vpop.permute.xlu0 %1140
        %1142 = vrot.lane.b32.xlu0 %v776, 36
        %v1143 = vpop.permute.xlu0 %1142
        %1144 = vrot.lane.b32.xlu0 %v777, 36
        %v1145 = vpop.permute.xlu0 %1144
        %1146 = vrot.lane.b32.xlu0 %v778, 36
        %v1147 = vpop.permute.xlu0 %1146
        %1148 = vrot.lane.b32.xlu0 %v774, 36
        %v1149 = vpop.permute.xlu0 %1148
        %1150 = vrot.lane.b32.xlu0 %v790, 36
        %v1151 = vpop.permute.xlu0 %1150
        %1152 = vrot.lane.b32.xlu0 %v791, 36
        %v1153 = vpop.permute.xlu0 %1152
        %1154 = vrot.lane.b32.xlu0 %v792, 36
        %v1155 = vpop.permute.xlu0 %1154
        %1156 = vrot.lane.b32.xlu0 %v793, 36
        %v1157 = vpop.permute.xlu0 %1156
        %1158 = vrot.lane.b32.xlu0 %v788, 36
        %v1159 = vpop.permute.xlu0 %1158
        %1160 = vrot.lane.b32.xlu0 %v805, 36
        %v1161 = vpop.permute.xlu0 %1160
        %1162 = vrot.lane.b32.xlu0 %v806, 36
        %v1163 = vpop.permute.xlu0 %1162
        %1164 = vrot.lane.b32.xlu0 %v807, 36
        %v1165 = vpop.permute.xlu0 %1164
        %1166 = vrot.lane.b32.xlu0 %v808, 36
        %v1167 = vpop.permute.xlu0 %1166
        %1168 = vrot.lane.b32.xlu0 %v803, 36
        %v1169 = vpop.permute.xlu0 %1168
        %1170 = vrot.lane.b32.xlu0 %v819, 36
        %v1171 = vpop.permute.xlu0 %1170
        %1172 = vrot.lane.b32.xlu0 %v820, 36
        %v1173 = vpop.permute.xlu0 %1172
        %1174 = vrot.lane.b32.xlu0 %v821, 36
        %v1175 = vpop.permute.xlu0 %1174
        %1176 = vrot.lane.b32.xlu0 %v822, 36
        %v1177 = vpop.permute.xlu0 %1176
        %1178 = vrot.lane.b32.xlu0 %v818, 36
        %v1179 = vpop.permute.xlu0 %1178
        %1180 = vrot.lane.b32.xlu0 %v833, 36
        %v1181 = vpop.permute.xlu0 %1180
        %1182 = vrot.lane.b32.xlu0 %v834, 36
        %v1183 = vpop.permute.xlu0 %1182
        %1184 = vrot.lane.b32.xlu0 %v835, 36
        %v1185 = vpop.permute.xlu0 %1184
        %1186 = vrot.lane.b32.xlu0 %v836, 36
        %v1187 = vpop.permute.xlu0 %1186
        %1188 = vrot.lane.b32.xlu0 %v832, 36
        %v1189 = vpop.permute.xlu0 %1188
        %1190 = vrot.lane.b32.xlu0 %v847, 36
        %v1191 = vpop.permute.xlu0 %1190
        %1192 = vrot.lane.b32.xlu0 %v848, 36
        %v1193 = vpop.permute.xlu0 %1192
        %1194 = vrot.lane.b32.xlu0 %v849, 36
        %v1195 = vpop.permute.xlu0 %1194
        %1196 = vrot.lane.b32.xlu0 %v850, 36
        %v1197 = vpop.permute.xlu0 %1196
        %1198 = vrot.lane.b32.xlu0 %v846, 36
        %v1199 = vpop.permute.xlu0 %1198
        %1200 = vrot.lane.b32.xlu0 %v861, 36
        %v1201 = vpop.permute.xlu0 %1200
        %1202 = vrot.lane.b32.xlu0 %v862, 36
        %v1203 = vpop.permute.xlu0 %1202
        %1204 = vrot.lane.b32.xlu0 %v863, 36
        %v1205 = vpop.permute.xlu0 %1204
        %1206 = vrot.lane.b32.xlu0 %v864, 36
        %v1207 = vpop.permute.xlu0 %1206
        %1208 = vrot.lane.b32.xlu0 %v860, 36
        %v1209 = vpop.permute.xlu0 %1208
        %1210 = vrot.lane.b32.xlu0 %v661, 36
        %v1211 = vpop.permute.xlu0 %1210
        %1212 = vrot.lane.b32.xlu0 %v662, 36
        %v1213 = vpop.permute.xlu0 %1212
        %1214 = vrot.lane.b32.xlu0 %v663, 36
        %v1215 = vpop.permute.xlu0 %1214
        %1216 = vrot.lane.b32.xlu0 %v664, 36
        %v1217 = vpop.permute.xlu0 %1216
        %1218 = vrot.lane.b32.xlu0 %v660, 36
        %v1219 = vpop.permute.xlu0 %1218
        %1220 = vrot.lane.b32.xlu0 %v876, 36
        %v1221 = vpop.permute.xlu0 %1220
        %1222 = vrot.lane.b32.xlu0 %v877, 36
        %v1223 = vpop.permute.xlu0 %1222
        %1224 = vrot.lane.b32.xlu0 %v878, 36
        %v1225 = vpop.permute.xlu0 %1224
        %1226 = vrot.lane.b32.xlu0 %v879, 36
        %v1227 = vpop.permute.xlu0 %1226
        %1228 = vrot.lane.b32.xlu0 %v874, 36
        %v1229 = vpop.permute.xlu0 %1228
        %1230 = vrot.lane.b32.xlu0 %v891, 36
        %v1231 = vpop.permute.xlu0 %1230
        %1232 = vrot.lane.b32.xlu0 %v892, 36
        %v1233 = vpop.permute.xlu0 %1232
        %1234 = vrot.lane.b32.xlu0 %v893, 36
        %v1235 = vpop.permute.xlu0 %1234
        %1236 = vrot.lane.b32.xlu0 %v894, 36
        %v1237 = vpop.permute.xlu0 %1236
        %1238 = vrot.lane.b32.xlu0 %v889, 36
        %v1239 = vpop.permute.xlu0 %1238
        %1240 = vrot.lane.b32.xlu0 %v704, 36
        %v1241 = vpop.permute.xlu0 %1240
        %1242 = vrot.lane.b32.xlu0 %v705, 36
        %v1243 = vpop.permute.xlu0 %1242
        %1244 = vrot.lane.b32.xlu0 %v706, 36
        %v1245 = vpop.permute.xlu0 %1244
        %1246 = vrot.lane.b32.xlu0 %v707, 36
        %v1247 = vpop.permute.xlu0 %1246
        %1248 = vrot.lane.b32.xlu0 %v702, 36
        %v1249 = vpop.permute.xlu0 %1248
        %1250 = vrot.lane.b32.xlu0 %v719, 36
        %v1251 = vpop.permute.xlu0 %1250
        %1252 = vrot.lane.b32.xlu0 %v720, 36
        %v1253 = vpop.permute.xlu0 %1252
        %1254 = vrot.lane.b32.xlu0 %v721, 36
        %v1255 = vpop.permute.xlu0 %1254
        %1256 = vrot.lane.b32.xlu0 %v722, 36
        %v1257 = vpop.permute.xlu0 %1256
        %1258 = vrot.lane.b32.xlu0 %v717, 36
        %v1259 = vpop.permute.xlu0 %1258
        %1260 = vrot.lane.b32.xlu0 %v733, 36
        %v1261 = vpop.permute.xlu0 %1260
        %1262 = vrot.lane.b32.xlu0 %v734, 36
        %v1263 = vpop.permute.xlu0 %1262
        %1264 = vrot.lane.b32.xlu0 %v735, 36
        %v1265 = vpop.permute.xlu0 %1264
        %1266 = vrot.lane.b32.xlu0 %v736, 36
        %v1267 = vpop.permute.xlu0 %1266
        %1268 = vrot.lane.b32.xlu0 %v732, 36
        %v1269 = vpop.permute.xlu0 %1268
        %1270 = vrot.lane.b32.xlu0 %v747, 36
        %v1271 = vpop.permute.xlu0 %1270
        %1272 = vrot.lane.b32.xlu0 %v748, 36
        %v1273 = vpop.permute.xlu0 %1272
        %1274 = vrot.lane.b32.xlu0 %v749, 36
        %v1275 = vpop.permute.xlu0 %1274
        %1276 = vrot.lane.b32.xlu0 %v750, 36
        %v1277 = vpop.permute.xlu0 %1276
        %1278 = vrot.lane.b32.xlu0 %v746, 36
        %v1279 = vpop.permute.xlu0 %1278
        %vm1280 = vcmask 293888
        %v1281 = vsel %vm1280, %v1121, %v1123
        %v1282 = vsel %vm1280, %v1123, %v1125
        %v1283 = vsel %vm1280, %v1125, %v1127
        %v1284 = vsel %vm1280, %v1127, %v1129
        %v1285 = vsel %vm1280, %v1131, %v1133
        %v1286 = vsel %vm1280, %v1133, %v1135
        %v1287 = vsel %vm1280, %v1135, %v1137
        %v1288 = vsel %vm1280, %v1137, %v1139
        %v1289 = vsel %vm1280, %v1141, %v1143
        %v1290 = vsel %vm1280, %v1143, %v1145
        %v1291 = vsel %vm1280, %v1145, %v1147
        %v1292 = vsel %vm1280, %v1147, %v1149
        %v1293 = vsel %vm1280, %v1151, %v1153
        %v1294 = vsel %vm1280, %v1153, %v1155
        %v1295 = vsel %vm1280, %v1155, %v1157
        %v1296 = vsel %vm1280, %v1157, %v1159
        %v1297 = vsel %vm1280, %v1161, %v1163
        %v1298 = vsel %vm1280, %v1163, %v1165
        %v1299 = vsel %vm1280, %v1165, %v1167
        %v1300 = vsel %vm1280, %v1167, %v1169
        %v1301 = vsel %vm1280, %v1171, %v1173
        %v1302 = vsel %vm1280, %v1173, %v1175
        %v1303 = vsel %vm1280, %v1175, %v1177
        %v1304 = vsel %vm1280, %v1177, %v1179
        %v1305 = vsel %vm1280, %v1181, %v1183
        %v1306 = vsel %vm1280, %v1183, %v1185
        %v1307 = vsel %vm1280, %v1185, %v1187
        %v1308 = vsel %vm1280, %v1187, %v1189
        %v1309 = vsel %vm1280, %v1191, %v1193
        %v1310 = vsel %vm1280, %v1193, %v1195
        %v1311 = vsel %vm1280, %v1195, %v1197
        %v1312 = vsel %vm1280, %v1197, %v1199
        %v1313 = vsel %vm1280, %v1201, %v1203
        %v1314 = vsel %vm1280, %v1203, %v1205
        %v1315 = vsel %vm1280, %v1205, %v1207
        %v1316 = vsel %vm1280, %v1207, %v1209
        %v1317 = vsel %vm1280, %v1211, %v1213
        %v1318 = vsel %vm1280, %v1213, %v1215
        %v1319 = vsel %vm1280, %v1215, %v1217
        %v1320 = vsel %vm1280, %v1217, %v1219
        %v1321 = vsel %vm1280, %v1221, %v1223
        %v1322 = vsel %vm1280, %v1223, %v1225
        %v1323 = vsel %vm1280, %v1225, %v1227
        %v1324 = vsel %vm1280, %v1227, %v1229
        %v1325 = vsel %vm1280, %v1231, %v1233
        %v1326 = vsel %vm1280, %v1233, %v1235
        %v1327 = vsel %vm1280, %v1235, %v1237
        %v1328 = vsel %vm1280, %v1237, %v1239
        %v1329 = vsel %vm1280, %v1241, %v1243
        %v1330 = vsel %vm1280, %v1243, %v1245
        %v1331 = vsel %vm1280, %v1245, %v1247
        %v1332 = vsel %vm1280, %v1247, %v1249
        %v1333 = vsel %vm1280, %v1251, %v1253
        %v1334 = vsel %vm1280, %v1253, %v1255
        %v1335 = vsel %vm1280, %v1255, %v1257
        %v1336 = vsel %vm1280, %v1257, %v1259
        %v1337 = vsel %vm1280, %v1261, %v1263
        %v1338 = vsel %vm1280, %v1263, %v1265
        %v1339 = vsel %vm1280, %v1265, %v1267
        %v1340 = vsel %vm1280, %v1267, %v1269
        %v1341 = vsel %vm1280, %v1271, %v1273
        %v1342 = vsel %vm1280, %v1273, %v1275
        %v1343 = vsel %vm1280, %v1275, %v1277
        %v1344 = vsel %vm1280, %v1277, %v1279
        %1345 = vrot.lane.b32.xlu0 %v381, 118
        %v1346 = vpop.permute.xlu0 %1345
        %1347 = vrot.lane.b32.xlu0 %v382, 118
        %v1348 = vpop.permute.xlu0 %1347
        %1349 = vrot.lane.b32.xlu0 %v383, 118
        %v1350 = vpop.permute.xlu0 %1349
        %1351 = vrot.lane.b32.xlu0 %v384, 118
        %v1352 = vpop.permute.xlu0 %1351
        %1353 = vrot.lane.b32.xlu0 %v385, 118
        %v1354 = vpop.permute.xlu0 %1353
        %vm1355 = vcmask 965632
        %v1356 = vsel %vm1355, %v1346, %v1348
        %v1357 = vsel %vm1355, %v1348, %v1350
        %v1358 = vsel %vm1355, %v1350, %v1352
        %v1359 = vsel %vm1355, %v1352, %v1354
        %v1360 = vld [vmem:[%s2] sm:$0xff]
        %v1361 = vld [vmem:[%s2 + $0x8] sm:$0xff]
        %v1362 = vld [vmem:[%s2 + $0x10] sm:$0xff]
        %v1363 = vld [vmem:[%s2 + $0x18] sm:$0xf]
        %v1364 = vld [vmem:[%s2 + $0x1c] sm:$0xff]
        %v1365 = vld [vmem:[%s2 + $0x24] sm:$0xff]
        %v1366 = vld [vmem:[%s2 + $0x2c] sm:$0xff]
        %v1367 = vld [vmem:[%s2 + $0x34] sm:$0xf]
        %v1368 = vld [vmem:[%s2 + $0x38] sm:$0xff]
        %v1369 = vld [vmem:[%s2 + $0x40] sm:$0xff]
        %v1370 = vld [vmem:[%s2 + $0x48] sm:$0xff]
        %v1371 = vld [vmem:[%s2 + $0x50] sm:$0xf]
        %v1372 = vld [vmem:[%s2 + $0x54] sm:$0xff]
        %v1373 = vld [vmem:[%s2 + $0x5c] sm:$0xff]
        %v1374 = vld [vmem:[%s2 + $0x64] sm:$0xff]
        %v1375 = vld [vmem:[%s2 + $0x6c] sm:$0xf]
        %v1376 = vld [vmem:[%s3] sm:$0xff]
        %v1377 = vld [vmem:[%s3 + $0x8] sm:$0xff]
        %v1378 = vld [vmem:[%s3 + $0x10] sm:$0xff]
        %v1379 = vld [vmem:[%s3 + $0x18] sm:$0xff]
        %1381 = vset.pattern.permute.xlu0 0
        %1382 = vperm.xlu0 %1381, %v1376
        %v1383 = vpop.permute.xlu0 %1382
        %1386 = vset.pattern.permute.xlu0 0
        %1387 = vperm.xlu0 %1386, %v1377
        %v1388 = vpop.permute.xlu0 %1387
        %1391 = vset.pattern.permute.xlu0 0
        %1392 = vperm.xlu0 %1391, %v1378
        %v1393 = vpop.permute.xlu0 %1392
        %1396 = vset.pattern.permute.xlu0 0
        %1397 = vperm.xlu0 %1396, %v1379
        %v1398 = vpop.permute.xlu0 %1397
        %v1416 = vunpack.c.l.b16 %v1360
        %v1417 = vunpack.c.h.b16 %v1360
        %v1418 = vunpack.c.l.b16 %v1361
        %v1419 = vunpack.c.h.b16 %v1361
        %v1420 = vunpack.c.l.b16 %v1362
        %v1421 = vunpack.c.h.b16 %v1362
        %v1422 = vunpack.c.l.b16 %v1363
        %v1423 = vunpack.c.l.b16 %v1364
        %v1424 = vunpack.c.h.b16 %v1364
        %v1425 = vunpack.c.l.b16 %v1365
        %v1426 = vunpack.c.h.b16 %v1365
        %v1427 = vunpack.c.l.b16 %v1366
        %v1428 = vunpack.c.h.b16 %v1366
        %v1429 = vunpack.c.l.b16 %v1367
        %v1430 = vunpack.c.l.b16 %v1368
        %v1431 = vunpack.c.h.b16 %v1368
        %v1432 = vunpack.c.l.b16 %v1369
        %v1433 = vunpack.c.h.b16 %v1369
        %v1434 = vunpack.c.l.b16 %v1370
        %v1435 = vunpack.c.h.b16 %v1370
        %v1436 = vunpack.c.l.b16 %v1371
        %v1437 = vunpack.c.l.b16 %v1372
        %v1438 = vunpack.c.h.b16 %v1372
        %v1439 = vunpack.c.l.b16 %v1373
        %v1440 = vunpack.c.h.b16 %v1373
        %v1441 = vunpack.c.l.b16 %v1374
        %v1442 = vunpack.c.h.b16 %v1374
        %v1443 = vunpack.c.l.b16 %v1375
        %v1444 = vpack.c.b16 %v1423, %v1416
        %v1445 = vpack.c.b16 %v1424, %v1417
        %v1446 = vpack.c.b16 %v1425, %v1418
        %v1447 = vpack.c.b16 %v1426, %v1419
        %v1448 = vpack.c.b16 %v1427, %v1420
        %v1449 = vpack.c.b16 %v1428, %v1421
        %v1450 = vpack.c.b16 %v1429, %v1422
        %v1451 = vpack.c.b16 %v1437, %v1430
        %v1452 = vpack.c.b16 %v1438, %v1431
        %v1453 = vpack.c.b16 %v1439, %v1432
        %v1454 = vpack.c.b16 %v1440, %v1433
        %v1455 = vpack.c.b16 %v1441, %v1434
        %v1456 = vpack.c.b16 %v1442, %v1435
        %v1457 = vpack.c.b16 %v1443, %v1436
        %1470 = vrot.lane.b32.xlu0 %v376, 69
        %v1471 = vpop.permute.xlu0 %1470
        %1472 = vrot.lane.b32.xlu0 %v377, 69
        %v1473 = vpop.permute.xlu0 %1472
        %1474 = vrot.lane.b32.xlu0 %v378, 69
        %v1475 = vpop.permute.xlu0 %1474
        %1476 = vrot.lane.b32.xlu0 %v379, 69
        %v1477 = vpop.permute.xlu0 %1476
        %1478 = vrot.lane.b32.xlu0 %v380, 69
        %v1479 = vpop.permute.xlu0 %1478
        %1480 = vrot.lane.b32.xlu0 %v402, 69
        %v1481 = vpop.permute.xlu0 %1480
        %1482 = vrot.lane.b32.xlu0 %v403, 69
        %v1483 = vpop.permute.xlu0 %1482
        %1484 = vrot.lane.b32.xlu0 %v404, 69
        %v1485 = vpop.permute.xlu0 %1484
        %1486 = vrot.lane.b32.xlu0 %v405, 69
        %v1487 = vpop.permute.xlu0 %1486
        %1488 = vrot.lane.b32.xlu0 %v400, 69
        %v1489 = vpop.permute.xlu0 %1488
        %1490 = vrot.lane.b32.xlu0 %v417, 69
        %v1491 = vpop.permute.xlu0 %1490
        %1492 = vrot.lane.b32.xlu0 %v418, 69
        %v1493 = vpop.permute.xlu0 %1492
        %1494 = vrot.lane.b32.xlu0 %v419, 69
        %v1495 = vpop.permute.xlu0 %1494
        %1496 = vrot.lane.b32.xlu0 %v420, 69
        %v1497 = vpop.permute.xlu0 %1496
        %1498 = vrot.lane.b32.xlu0 %v415, 69
        %v1499 = vpop.permute.xlu0 %1498
        %1500 = vrot.lane.b32.xlu0 %v432, 69
        %v1501 = vpop.permute.xlu0 %1500
        %1502 = vrot.lane.b32.xlu0 %v433, 69
        %v1503 = vpop.permute.xlu0 %1502
        %1504 = vrot.lane.b32.xlu0 %v434, 69
        %v1505 = vpop.permute.xlu0 %1504
        %1506 = vrot.lane.b32.xlu0 %v435, 69
        %v1507 = vpop.permute.xlu0 %1506
        %1508 = vrot.lane.b32.xlu0 %v430, 69
        %v1509 = vpop.permute.xlu0 %1508
        %1510 = vrot.lane.b32.xlu0 %v447, 69
        %v1511 = vpop.permute.xlu0 %1510
        %1512 = vrot.lane.b32.xlu0 %v448, 69
        %v1513 = vpop.permute.xlu0 %1512
        %1514 = vrot.lane.b32.xlu0 %v449, 69
        %v1515 = vpop.permute.xlu0 %1514
        %1516 = vrot.lane.b32.xlu0 %v450, 69
        %v1517 = vpop.permute.xlu0 %1516
        %1518 = vrot.lane.b32.xlu0 %v445, 69
        %v1519 = vpop.permute.xlu0 %1518
        %1520 = vrot.lane.b32.xlu0 %v462, 69
        %v1521 = vpop.permute.xlu0 %1520
        %1522 = vrot.lane.b32.xlu0 %v463, 69
        %v1523 = vpop.permute.xlu0 %1522
        %1524 = vrot.lane.b32.xlu0 %v464, 69
        %v1525 = vpop.permute.xlu0 %1524
        %1526 = vrot.lane.b32.xlu0 %v465, 69
        %v1527 = vpop.permute.xlu0 %1526
        %1528 = vrot.lane.b32.xlu0 %v460, 69
        %v1529 = vpop.permute.xlu0 %1528
        %1530 = vrot.lane.b32.xlu0 %v477, 69
        %v1531 = vpop.permute.xlu0 %1530
        %1532 = vrot.lane.b32.xlu0 %v478, 69
        %v1533 = vpop.permute.xlu0 %1532
        %1534 = vrot.lane.b32.xlu0 %v479, 69
        %v1535 = vpop.permute.xlu0 %1534
        %1536 = vrot.lane.b32.xlu0 %v480, 69
        %v1537 = vpop.permute.xlu0 %1536
        %1538 = vrot.lane.b32.xlu0 %v475, 69
        %v1539 = vpop.permute.xlu0 %1538
        %1540 = vrot.lane.b32.xlu0 %v492, 69
        %v1541 = vpop.permute.xlu0 %1540
        %1542 = vrot.lane.b32.xlu0 %v493, 69
        %v1543 = vpop.permute.xlu0 %1542
        %1544 = vrot.lane.b32.xlu0 %v494, 69
        %v1545 = vpop.permute.xlu0 %1544
        %1546 = vrot.lane.b32.xlu0 %v495, 69
        %v1547 = vpop.permute.xlu0 %1546
        %1548 = vrot.lane.b32.xlu0 %v490, 69
        %v1549 = vpop.permute.xlu0 %1548
        %1550 = vrot.lane.b32.xlu0 %v507, 69
        %v1551 = vpop.permute.xlu0 %1550
        %1552 = vrot.lane.b32.xlu0 %v508, 69
        %v1553 = vpop.permute.xlu0 %1552
        %1554 = vrot.lane.b32.xlu0 %v509, 69
        %v1555 = vpop.permute.xlu0 %1554
        %1556 = vrot.lane.b32.xlu0 %v510, 69
        %v1557 = vpop.permute.xlu0 %1556
        %1558 = vrot.lane.b32.xlu0 %v505, 69
        %v1559 = vpop.permute.xlu0 %1558
        %1560 = vrot.lane.b32.xlu0 %v522, 69
        %v1561 = vpop.permute.xlu0 %1560
        %1562 = vrot.lane.b32.xlu0 %v523, 69
        %v1563 = vpop.permute.xlu0 %1562
        %1564 = vrot.lane.b32.xlu0 %v524, 69
        %v1565 = vpop.permute.xlu0 %1564
        %1566 = vrot.lane.b32.xlu0 %v525, 69
        %v1567 = vpop.permute.xlu0 %1566
        %1568 = vrot.lane.b32.xlu0 %v520, 69
        %v1569 = vpop.permute.xlu0 %1568
        %1570 = vrot.lane.b32.xlu0 %v537, 69
        %v1571 = vpop.permute.xlu0 %1570
        %1572 = vrot.lane.b32.xlu0 %v538, 69
        %v1573 = vpop.permute.xlu0 %1572
        %1574 = vrot.lane.b32.xlu0 %v539, 69
        %v1575 = vpop.permute.xlu0 %1574
        %1576 = vrot.lane.b32.xlu0 %v540, 69
        %v1577 = vpop.permute.xlu0 %1576
        %1578 = vrot.lane.b32.xlu0 %v535, 69
        %v1579 = vpop.permute.xlu0 %1578
        %1580 = vrot.lane.b32.xlu0 %v552, 69
        %v1581 = vpop.permute.xlu0 %1580
        %1582 = vrot.lane.b32.xlu0 %v553, 69
        %v1583 = vpop.permute.xlu0 %1582
        %1584 = vrot.lane.b32.xlu0 %v554, 69
        %v1585 = vpop.permute.xlu0 %1584
        %1586 = vrot.lane.b32.xlu0 %v555, 69
        %v1587 = vpop.permute.xlu0 %1586
        %1588 = vrot.lane.b32.xlu0 %v550, 69
        %v1589 = vpop.permute.xlu0 %1588
        %1590 = vrot.lane.b32.xlu0 %v567, 69
        %v1591 = vpop.permute.xlu0 %1590
        %1592 = vrot.lane.b32.xlu0 %v568, 69
        %v1593 = vpop.permute.xlu0 %1592
        %1594 = vrot.lane.b32.xlu0 %v569, 69
        %v1595 = vpop.permute.xlu0 %1594
        %1596 = vrot.lane.b32.xlu0 %v570, 69
        %v1597 = vpop.permute.xlu0 %1596
        %1598 = vrot.lane.b32.xlu0 %v565, 69
        %v1599 = vpop.permute.xlu0 %1598
        %1600 = vrot.lane.b32.xlu0 %v582, 69
        %v1601 = vpop.permute.xlu0 %1600
        %1602 = vrot.lane.b32.xlu0 %v583, 69
        %v1603 = vpop.permute.xlu0 %1602
        %1604 = vrot.lane.b32.xlu0 %v584, 69
        %v1605 = vpop.permute.xlu0 %1604
        %1606 = vrot.lane.b32.xlu0 %v585, 69
        %v1607 = vpop.permute.xlu0 %1606
        %1608 = vrot.lane.b32.xlu0 %v580, 69
        %v1609 = vpop.permute.xlu0 %1608
        %1610 = vrot.lane.b32.xlu0 %v597, 69
        %v1611 = vpop.permute.xlu0 %1610
        %1612 = vrot.lane.b32.xlu0 %v598, 69
        %v1613 = vpop.permute.xlu0 %1612
        %1614 = vrot.lane.b32.xlu0 %v599, 69
        %v1615 = vpop.permute.xlu0 %1614
        %1616 = vrot.lane.b32.xlu0 %v600, 69
        %v1617 = vpop.permute.xlu0 %1616
        %1618 = vrot.lane.b32.xlu0 %v595, 69
        %v1619 = vpop.permute.xlu0 %1618
        %1620 = vrot.lane.b32.xlu0 %v612, 69
        %v1621 = vpop.permute.xlu0 %1620
        %1622 = vrot.lane.b32.xlu0 %v613, 69
        %v1623 = vpop.permute.xlu0 %1622
        %1624 = vrot.lane.b32.xlu0 %v614, 69
        %v1625 = vpop.permute.xlu0 %1624
        %1626 = vrot.lane.b32.xlu0 %v615, 69
        %v1627 = vpop.permute.xlu0 %1626
        %1628 = vrot.lane.b32.xlu0 %v610, 69
        %v1629 = vpop.permute.xlu0 %1628
        %1630 = vrot.lane.b32.xlu0 %v1056, 69
        %v1631 = vpop.permute.xlu0 %1630
        %1632 = vrot.lane.b32.xlu0 %v1057, 69
        %v1633 = vpop.permute.xlu0 %1632
        %1634 = vrot.lane.b32.xlu0 %v1058, 69
        %v1635 = vpop.permute.xlu0 %1634
        %1636 = vrot.lane.b32.xlu0 %v1059, 69
        %v1637 = vpop.permute.xlu0 %1636
        %1638 = vrot.lane.b32.xlu0 %v904, 69
        %v1639 = vpop.permute.xlu0 %1638
        %1640 = vrot.lane.b32.xlu0 %v1060, 69
        %v1641 = vpop.permute.xlu0 %1640
        %1642 = vrot.lane.b32.xlu0 %v1061, 69
        %v1643 = vpop.permute.xlu0 %1642
        %1644 = vrot.lane.b32.xlu0 %v1062, 69
        %v1645 = vpop.permute.xlu0 %1644
        %1646 = vrot.lane.b32.xlu0 %v1063, 69
        %v1647 = vpop.permute.xlu0 %1646
        %1648 = vrot.lane.b32.xlu0 %v914, 69
        %v1649 = vpop.permute.xlu0 %1648
        %1650 = vrot.lane.b32.xlu0 %v1064, 69
        %v1651 = vpop.permute.xlu0 %1650
        %1652 = vrot.lane.b32.xlu0 %v1065, 69
        %v1653 = vpop.permute.xlu0 %1652
        %1654 = vrot.lane.b32.xlu0 %v1066, 69
        %v1655 = vpop.permute.xlu0 %1654
        %1656 = vrot.lane.b32.xlu0 %v1067, 69
        %v1657 = vpop.permute.xlu0 %1656
        %1658 = vrot.lane.b32.xlu0 %v924, 69
        %v1659 = vpop.permute.xlu0 %1658
        %1660 = vrot.lane.b32.xlu0 %v1068, 69
        %v1661 = vpop.permute.xlu0 %1660
        %1662 = vrot.lane.b32.xlu0 %v1069, 69
        %v1663 = vpop.permute.xlu0 %1662
        %1664 = vrot.lane.b32.xlu0 %v1070, 69
        %v1665 = vpop.permute.xlu0 %1664
        %1666 = vrot.lane.b32.xlu0 %v1071, 69
        %v1667 = vpop.permute.xlu0 %1666
        %1668 = vrot.lane.b32.xlu0 %v934, 69
        %v1669 = vpop.permute.xlu0 %1668
        %1670 = vrot.lane.b32.xlu0 %v1072, 69
        %v1671 = vpop.permute.xlu0 %1670
        %1672 = vrot.lane.b32.xlu0 %v1073, 69
        %v1673 = vpop.permute.xlu0 %1672
        %1674 = vrot.lane.b32.xlu0 %v1074, 69
        %v1675 = vpop.permute.xlu0 %1674
        %1676 = vrot.lane.b32.xlu0 %v1075, 69
        %v1677 = vpop.permute.xlu0 %1676
        %1678 = vrot.lane.b32.xlu0 %v944, 69
        %v1679 = vpop.permute.xlu0 %1678
        %1680 = vrot.lane.b32.xlu0 %v1076, 69
        %v1681 = vpop.permute.xlu0 %1680
        %1682 = vrot.lane.b32.xlu0 %v1077, 69
        %v1683 = vpop.permute.xlu0 %1682
        %1684 = vrot.lane.b32.xlu0 %v1078, 69
        %v1685 = vpop.permute.xlu0 %1684
        %1686 = vrot.lane.b32.xlu0 %v1079, 69
        %v1687 = vpop.permute.xlu0 %1686
        %1688 = vrot.lane.b32.xlu0 %v954, 69
        %v1689 = vpop.permute.xlu0 %1688
        %1690 = vrot.lane.b32.xlu0 %v1080, 69
        %v1691 = vpop.permute.xlu0 %1690
        %1692 = vrot.lane.b32.xlu0 %v1081, 69
        %v1693 = vpop.permute.xlu0 %1692
        %1694 = vrot.lane.b32.xlu0 %v1082, 69
        %v1695 = vpop.permute.xlu0 %1694
        %1696 = vrot.lane.b32.xlu0 %v1083, 69
        %v1697 = vpop.permute.xlu0 %1696
        %1698 = vrot.lane.b32.xlu0 %v964, 69
        %v1699 = vpop.permute.xlu0 %1698
        %1700 = vrot.lane.b32.xlu0 %v1084, 69
        %v1701 = vpop.permute.xlu0 %1700
        %1702 = vrot.lane.b32.xlu0 %v1085, 69
        %v1703 = vpop.permute.xlu0 %1702
        %1704 = vrot.lane.b32.xlu0 %v1086, 69
        %v1705 = vpop.permute.xlu0 %1704
        %1706 = vrot.lane.b32.xlu0 %v1087, 69
        %v1707 = vpop.permute.xlu0 %1706
        %1708 = vrot.lane.b32.xlu0 %v974, 69
        %v1709 = vpop.permute.xlu0 %1708
        %1710 = vrot.lane.b32.xlu0 %v1088, 69
        %v1711 = vpop.permute.xlu0 %1710
        %1712 = vrot.lane.b32.xlu0 %v1089, 69
        %v1713 = vpop.permute.xlu0 %1712
        %1714 = vrot.lane.b32.xlu0 %v1090, 69
        %v1715 = vpop.permute.xlu0 %1714
        %1716 = vrot.lane.b32.xlu0 %v1091, 69
        %v1717 = vpop.permute.xlu0 %1716
        %1718 = vrot.lane.b32.xlu0 %v984, 69
        %v1719 = vpop.permute.xlu0 %1718
        %1720 = vrot.lane.b32.xlu0 %v1092, 69
        %v1721 = vpop.permute.xlu0 %1720
        %1722 = vrot.lane.b32.xlu0 %v1093, 69
        %v1723 = vpop.permute.xlu0 %1722
        %1724 = vrot.lane.b32.xlu0 %v1094, 69
        %v1725 = vpop.permute.xlu0 %1724
        %1726 = vrot.lane.b32.xlu0 %v1095, 69
        %v1727 = vpop.permute.xlu0 %1726
        %1728 = vrot.lane.b32.xlu0 %v994, 69
        %v1729 = vpop.permute.xlu0 %1728
        %1730 = vrot.lane.b32.xlu0 %v1096, 69
        %v1731 = vpop.permute.xlu0 %1730
        %1732 = vrot.lane.b32.xlu0 %v1097, 69
        %v1733 = vpop.permute.xlu0 %1732
        %1734 = vrot.lane.b32.xlu0 %v1098, 69
        %v1735 = vpop.permute.xlu0 %1734
        %1736 = vrot.lane.b32.xlu0 %v1099, 69
        %v1737 = vpop.permute.xlu0 %1736
        %1738 = vrot.lane.b32.xlu0 %v1004, 69
        %v1739 = vpop.permute.xlu0 %1738
        %1740 = vrot.lane.b32.xlu0 %v1100, 69
        %v1741 = vpop.permute.xlu0 %1740
        %1742 = vrot.lane.b32.xlu0 %v1101, 69
        %v1743 = vpop.permute.xlu0 %1742
        %1744 = vrot.lane.b32.xlu0 %v1102, 69
        %v1745 = vpop.permute.xlu0 %1744
        %1746 = vrot.lane.b32.xlu0 %v1103, 69
        %v1747 = vpop.permute.xlu0 %1746
        %1748 = vrot.lane.b32.xlu0 %v1014, 69
        %v1749 = vpop.permute.xlu0 %1748
        %1750 = vrot.lane.b32.xlu0 %v1104, 69
        %v1751 = vpop.permute.xlu0 %1750
        %1752 = vrot.lane.b32.xlu0 %v1105, 69
        %v1753 = vpop.permute.xlu0 %1752
        %1754 = vrot.lane.b32.xlu0 %v1106, 69
        %v1755 = vpop.permute.xlu0 %1754
        %1756 = vrot.lane.b32.xlu0 %v1107, 69
        %v1757 = vpop.permute.xlu0 %1756
        %1758 = vrot.lane.b32.xlu0 %v1024, 69
        %v1759 = vpop.permute.xlu0 %1758
        %1760 = vrot.lane.b32.xlu0 %v1108, 69
        %v1761 = vpop.permute.xlu0 %1760
        %1762 = vrot.lane.b32.xlu0 %v1109, 69
        %v1763 = vpop.permute.xlu0 %1762
        %1764 = vrot.lane.b32.xlu0 %v1110, 69
        %v1765 = vpop.permute.xlu0 %1764
        %1766 = vrot.lane.b32.xlu0 %v1111, 69
        %v1767 = vpop.permute.xlu0 %1766
        %1768 = vrot.lane.b32.xlu0 %v1034, 69
        %v1769 = vpop.permute.xlu0 %1768
        %1770 = vrot.lane.b32.xlu0 %v1112, 69
        %v1771 = vpop.permute.xlu0 %1770
        %1772 = vrot.lane.b32.xlu0 %v1113, 69
        %v1773 = vpop.permute.xlu0 %1772
        %1774 = vrot.lane.b32.xlu0 %v1114, 69
        %v1775 = vpop.permute.xlu0 %1774
        %1776 = vrot.lane.b32.xlu0 %v1115, 69
        %v1777 = vpop.permute.xlu0 %1776
        %1778 = vrot.lane.b32.xlu0 %v1044, 69
        %v1779 = vpop.permute.xlu0 %1778
        %1780 = vrot.lane.b32.xlu0 %v1116, 69
        %v1781 = vpop.permute.xlu0 %1780
        %1782 = vrot.lane.b32.xlu0 %v1117, 69
        %v1783 = vpop.permute.xlu0 %1782
        %1784 = vrot.lane.b32.xlu0 %v1118, 69
        %v1785 = vpop.permute.xlu0 %1784
        %1786 = vrot.lane.b32.xlu0 %v1119, 69
        %v1787 = vpop.permute.xlu0 %1786
        %1788 = vrot.lane.b32.xlu0 %v1054, 69
        %v1789 = vpop.permute.xlu0 %1788
        %1790 = vrot.lane.b32.xlu0 %v1121, 69
        %v1791 = vpop.permute.xlu0 %1790
        %1792 = vrot.lane.b32.xlu0 %v1281, 69
        %v1793 = vpop.permute.xlu0 %1792
        %1794 = vrot.lane.b32.xlu0 %v1282, 69
        %v1795 = vpop.permute.xlu0 %1794
        %1796 = vrot.lane.b32.xlu0 %v1283, 69
        %v1797 = vpop.permute.xlu0 %1796
        %1798 = vrot.lane.b32.xlu0 %v1284, 69
        %v1799 = vpop.permute.xlu0 %1798
        %1800 = vrot.lane.b32.xlu0 %v1131, 69
        %v1801 = vpop.permute.xlu0 %1800
        %1802 = vrot.lane.b32.xlu0 %v1285, 69
        %v1803 = vpop.permute.xlu0 %1802
        %1804 = vrot.lane.b32.xlu0 %v1286, 69
        %v1805 = vpop.permute.xlu0 %1804
        %1806 = vrot.lane.b32.xlu0 %v1287, 69
        %v1807 = vpop.permute.xlu0 %1806
        %1808 = vrot.lane.b32.xlu0 %v1288, 69
        %v1809 = vpop.permute.xlu0 %1808
        %1810 = vrot.lane.b32.xlu0 %v1141, 69
        %v1811 = vpop.permute.xlu0 %1810
        %1812 = vrot.lane.b32.xlu0 %v1289, 69
        %v1813 = vpop.permute.xlu0 %1812
        %1814 = vrot.lane.b32.xlu0 %v1290, 69
        %v1815 = vpop.permute.xlu0 %1814
        %1816 = vrot.lane.b32.xlu0 %v1291, 69
        %v1817 = vpop.permute.xlu0 %1816
        %1818 = vrot.lane.b32.xlu0 %v1292, 69
        %v1819 = vpop.permute.xlu0 %1818
        %1820 = vrot.lane.b32.xlu0 %v1151, 69
        %v1821 = vpop.permute.xlu0 %1820
        %1822 = vrot.lane.b32.xlu0 %v1293, 69
        %v1823 = vpop.permute.xlu0 %1822
        %1824 = vrot.lane.b32.xlu0 %v1294, 69
        %v1825 = vpop.permute.xlu0 %1824
        %1826 = vrot.lane.b32.xlu0 %v1295, 69
        %v1827 = vpop.permute.xlu0 %1826
        %1828 = vrot.lane.b32.xlu0 %v1296, 69
        %v1829 = vpop.permute.xlu0 %1828
        %1830 = vrot.lane.b32.xlu0 %v1161, 69
        %v1831 = vpop.permute.xlu0 %1830
        %1832 = vrot.lane.b32.xlu0 %v1297, 69
        %v1833 = vpop.permute.xlu0 %1832
        %1834 = vrot.lane.b32.xlu0 %v1298, 69
        %v1835 = vpop.permute.xlu0 %1834
        %1836 = vrot.lane.b32.xlu0 %v1299, 69
        %v1837 = vpop.permute.xlu0 %1836
        %1838 = vrot.lane.b32.xlu0 %v1300, 69
        %v1839 = vpop.permute.xlu0 %1838
        %1840 = vrot.lane.b32.xlu0 %v1171, 69
        %v1841 = vpop.permute.xlu0 %1840
        %1842 = vrot.lane.b32.xlu0 %v1301, 69
        %v1843 = vpop.permute.xlu0 %1842
        %1844 = vrot.lane.b32.xlu0 %v1302, 69
        %v1845 = vpop.permute.xlu0 %1844
        %1846 = vrot.lane.b32.xlu0 %v1303, 69
        %v1847 = vpop.permute.xlu0 %1846
        %1848 = vrot.lane.b32.xlu0 %v1304, 69
        %v1849 = vpop.permute.xlu0 %1848
        %1850 = vrot.lane.b32.xlu0 %v1181, 69
        %v1851 = vpop.permute.xlu0 %1850
        %1852 = vrot.lane.b32.xlu0 %v1305, 69
        %v1853 = vpop.permute.xlu0 %1852
        %1854 = vrot.lane.b32.xlu0 %v1306, 69
        %v1855 = vpop.permute.xlu0 %1854
        %1856 = vrot.lane.b32.xlu0 %v1307, 69
        %v1857 = vpop.permute.xlu0 %1856
        %1858 = vrot.lane.b32.xlu0 %v1308, 69
        %v1859 = vpop.permute.xlu0 %1858
        %1860 = vrot.lane.b32.xlu0 %v1191, 69
        %v1861 = vpop.permute.xlu0 %1860
        %1862 = vrot.lane.b32.xlu0 %v1309, 69
        %v1863 = vpop.permute.xlu0 %1862
        %1864 = vrot.lane.b32.xlu0 %v1310, 69
        %v1865 = vpop.permute.xlu0 %1864
        %1866 = vrot.lane.b32.xlu0 %v1311, 69
        %v1867 = vpop.permute.xlu0 %1866
        %1868 = vrot.lane.b32.xlu0 %v1312, 69
        %v1869 = vpop.permute.xlu0 %1868
        %1870 = vrot.lane.b32.xlu0 %v1201, 69
        %v1871 = vpop.permute.xlu0 %1870
        %1872 = vrot.lane.b32.xlu0 %v1313, 69
        %v1873 = vpop.permute.xlu0 %1872
        %1874 = vrot.lane.b32.xlu0 %v1314, 69
        %v1875 = vpop.permute.xlu0 %1874
        %1876 = vrot.lane.b32.xlu0 %v1315, 69
        %v1877 = vpop.permute.xlu0 %1876
        %1878 = vrot.lane.b32.xlu0 %v1316, 69
        %v1879 = vpop.permute.xlu0 %1878
        %1880 = vrot.lane.b32.xlu0 %v1211, 69
        %v1881 = vpop.permute.xlu0 %1880
        %1882 = vrot.lane.b32.xlu0 %v1317, 69
        %v1883 = vpop.permute.xlu0 %1882
        %1884 = vrot.lane.b32.xlu0 %v1318, 69
        %v1885 = vpop.permute.xlu0 %1884
        %1886 = vrot.lane.b32.xlu0 %v1319, 69
        %v1887 = vpop.permute.xlu0 %1886
        %1888 = vrot.lane.b32.xlu0 %v1320, 69
        %v1889 = vpop.permute.xlu0 %1888
        %1890 = vrot.lane.b32.xlu0 %v1221, 69
        %v1891 = vpop.permute.xlu0 %1890
        %1892 = vrot.lane.b32.xlu0 %v1321, 69
        %v1893 = vpop.permute.xlu0 %1892
        %1894 = vrot.lane.b32.xlu0 %v1322, 69
        %v1895 = vpop.permute.xlu0 %1894
        %1896 = vrot.lane.b32.xlu0 %v1323, 69
        %v1897 = vpop.permute.xlu0 %1896
        %1898 = vrot.lane.b32.xlu0 %v1324, 69
        %v1899 = vpop.permute.xlu0 %1898
        %1900 = vrot.lane.b32.xlu0 %v1231, 69
        %v1901 = vpop.permute.xlu0 %1900
        %1902 = vrot.lane.b32.xlu0 %v1325, 69
        %v1903 = vpop.permute.xlu0 %1902
        %1904 = vrot.lane.b32.xlu0 %v1326, 69
        %v1905 = vpop.permute.xlu0 %1904
        %1906 = vrot.lane.b32.xlu0 %v1327, 69
        %v1907 = vpop.permute.xlu0 %1906
        %1908 = vrot.lane.b32.xlu0 %v1328, 69
        %v1909 = vpop.permute.xlu0 %1908
        %1910 = vrot.lane.b32.xlu0 %v1241, 69
        %v1911 = vpop.permute.xlu0 %1910
        %1912 = vrot.lane.b32.xlu0 %v1329, 69
        %v1913 = vpop.permute.xlu0 %1912
        %1914 = vrot.lane.b32.xlu0 %v1330, 69
        %v1915 = vpop.permute.xlu0 %1914
        %1916 = vrot.lane.b32.xlu0 %v1331, 69
        %v1917 = vpop.permute.xlu0 %1916
        %1918 = vrot.lane.b32.xlu0 %v1332, 69
        %v1919 = vpop.permute.xlu0 %1918
        %1920 = vrot.lane.b32.xlu0 %v1251, 69
        %v1921 = vpop.permute.xlu0 %1920
        %1922 = vrot.lane.b32.xlu0 %v1333, 69
        %v1923 = vpop.permute.xlu0 %1922
        %1924 = vrot.lane.b32.xlu0 %v1334, 69
        %v1925 = vpop.permute.xlu0 %1924
        %1926 = vrot.lane.b32.xlu0 %v1335, 69
        %v1927 = vpop.permute.xlu0 %1926
        %1928 = vrot.lane.b32.xlu0 %v1336, 69
        %v1929 = vpop.permute.xlu0 %1928
        %1930 = vrot.lane.b32.xlu0 %v1261, 69
        %v1931 = vpop.permute.xlu0 %1930
        %1932 = vrot.lane.b32.xlu0 %v1337, 69
        %v1933 = vpop.permute.xlu0 %1932
        %1934 = vrot.lane.b32.xlu0 %v1338, 69
        %v1935 = vpop.permute.xlu0 %1934
        %1936 = vrot.lane.b32.xlu0 %v1339, 69
        %v1937 = vpop.permute.xlu0 %1936
        %1938 = vrot.lane.b32.xlu0 %v1340, 69
        %v1939 = vpop.permute.xlu0 %1938
        %1940 = vrot.lane.b32.xlu0 %v1271, 69
        %v1941 = vpop.permute.xlu0 %1940
        %1942 = vrot.lane.b32.xlu0 %v1341, 69
        %v1943 = vpop.permute.xlu0 %1942
        %1944 = vrot.lane.b32.xlu0 %v1342, 69
        %v1945 = vpop.permute.xlu0 %1944
        %1946 = vrot.lane.b32.xlu0 %v1343, 69
        %v1947 = vpop.permute.xlu0 %1946
        %1948 = vrot.lane.b32.xlu0 %v1344, 69
        %v1949 = vpop.permute.xlu0 %1948
        %1950 = vrot.lane.b32.xlu0 %v1356, 69
        %v1951 = vpop.permute.xlu0 %1950
        %1952 = vrot.lane.b32.xlu0 %v1357, 69
        %v1953 = vpop.permute.xlu0 %1952
        %1954 = vrot.lane.b32.xlu0 %v1358, 69
        %v1955 = vpop.permute.xlu0 %1954
        %1956 = vrot.lane.b32.xlu0 %v1359, 69
        %v1957 = vpop.permute.xlu0 %1956
        %1958 = vrot.lane.b32.xlu0 %v1354, 69
        %v1959 = vpop.permute.xlu0 %1958
        %vm1960 = vcmask 564224
        %v1961 = vsel %vm1960, %v1471, %v1473
        %v1962 = vsel %vm1960, %v1473, %v1475
        %v1963 = vsel %vm1960, %v1475, %v1477
        %v1964 = vsel %vm1960, %v1477, %v1479
        %v1965 = vsel %vm1960, %v1481, %v1483
        %v1966 = vsel %vm1960, %v1483, %v1485
        %v1967 = vsel %vm1960, %v1485, %v1487
        %v1968 = vsel %vm1960, %v1487, %v1489
        %v1969 = vsel %vm1960, %v1491, %v1493
        %v1970 = vsel %vm1960, %v1493, %v1495
        %v1971 = vsel %vm1960, %v1495, %v1497
        %v1972 = vsel %vm1960, %v1497, %v1499
        %v1973 = vsel %vm1960, %v1501, %v1503
        %v1974 = vsel %vm1960, %v1503, %v1505
        %v1975 = vsel %vm1960, %v1505, %v1507
        %v1976 = vsel %vm1960, %v1507, %v1509
        %v1977 = vsel %vm1960, %v1511, %v1513
        %v1978 = vsel %vm1960, %v1513, %v1515
        %v1979 = vsel %vm1960, %v1515, %v1517
        %v1980 = vsel %vm1960, %v1517, %v1519
        %v1981 = vsel %vm1960, %v1521, %v1523
        %v1982 = vsel %vm1960, %v1523, %v1525
        %v1983 = vsel %vm1960, %v1525, %v1527
        %v1984 = vsel %vm1960, %v1527, %v1529
        %v1985 = vsel %vm1960, %v1531, %v1533
        %v1986 = vsel %vm1960, %v1533, %v1535
        %v1987 = vsel %vm1960, %v1535, %v1537
        %v1988 = vsel %vm1960, %v1537, %v1539
        %v1989 = vsel %vm1960, %v1541, %v1543
        %v1990 = vsel %vm1960, %v1543, %v1545
        %v1991 = vsel %vm1960, %v1545, %v1547
        %v1992 = vsel %vm1960, %v1547, %v1549
        %v1993 = vsel %vm1960, %v1551, %v1553
        %v1994 = vsel %vm1960, %v1553, %v1555
        %v1995 = vsel %vm1960, %v1555, %v1557
        %v1996 = vsel %vm1960, %v1557, %v1559
        %v1997 = vsel %vm1960, %v1561, %v1563
        %v1998 = vsel %vm1960, %v1563, %v1565
        %v1999 = vsel %vm1960, %v1565, %v1567
        %v2000 = vsel %vm1960, %v1567, %v1569
        %v2001 = vsel %vm1960, %v1571, %v1573
        %v2002 = vsel %vm1960, %v1573, %v1575
        %v2003 = vsel %vm1960, %v1575, %v1577
        %v2004 = vsel %vm1960, %v1577, %v1579
        %v2005 = vsel %vm1960, %v1581, %v1583
        %v2006 = vsel %vm1960, %v1583, %v1585
        %v2007 = vsel %vm1960, %v1585, %v1587
        %v2008 = vsel %vm1960, %v1587, %v1589
        %v2009 = vsel %vm1960, %v1591, %v1593
        %v2010 = vsel %vm1960, %v1593, %v1595
        %v2011 = vsel %vm1960, %v1595, %v1597
        %v2012 = vsel %vm1960, %v1597, %v1599
        %v2013 = vsel %vm1960, %v1601, %v1603
        %v2014 = vsel %vm1960, %v1603, %v1605
        %v2015 = vsel %vm1960, %v1605, %v1607
        %v2016 = vsel %vm1960, %v1607, %v1609
        %v2017 = vsel %vm1960, %v1611, %v1613
        %v2018 = vsel %vm1960, %v1613, %v1615
        %v2019 = vsel %vm1960, %v1615, %v1617
        %v2020 = vsel %vm1960, %v1617, %v1619
        %v2021 = vsel %vm1960, %v1621, %v1623
        %v2022 = vsel %vm1960, %v1623, %v1625
        %v2023 = vsel %vm1960, %v1625, %v1627
        %v2024 = vsel %vm1960, %v1627, %v1629
        %v2025 = vsel %vm1960, %v1631, %v1633
        %v2026 = vsel %vm1960, %v1633, %v1635
        %v2027 = vsel %vm1960, %v1635, %v1637
        %v2028 = vsel %vm1960, %v1637, %v1639
        %v2029 = vsel %vm1960, %v1641, %v1643
        %v2030 = vsel %vm1960, %v1643, %v1645
        %v2031 = vsel %vm1960, %v1645, %v1647
        %v2032 = vsel %vm1960, %v1647, %v1649
        %v2033 = vsel %vm1960, %v1651, %v1653
        %v2034 = vsel %vm1960, %v1653, %v1655
        %v2035 = vsel %vm1960, %v1655, %v1657
        %v2036 = vsel %vm1960, %v1657, %v1659
        %v2037 = vsel %vm1960, %v1661, %v1663
        %v2038 = vsel %vm1960, %v1663, %v1665
        %v2039 = vsel %vm1960, %v1665, %v1667
        %v2040 = vsel %vm1960, %v1667, %v1669
        %v2041 = vsel %vm1960, %v1671, %v1673
        %v2042 = vsel %vm1960, %v1673, %v1675
        %v2043 = vsel %vm1960, %v1675, %v1677
        %v2044 = vsel %vm1960, %v1677, %v1679
        %v2045 = vsel %vm1960, %v1681, %v1683
        %v2046 = vsel %vm1960, %v1683, %v1685
        %v2047 = vsel %vm1960, %v1685, %v1687
        %v2048 = vsel %vm1960, %v1687, %v1689
        %v2049 = vsel %vm1960, %v1691, %v1693
        %v2050 = vsel %vm1960, %v1693, %v1695
        %v2051 = vsel %vm1960, %v1695, %v1697
        %v2052 = vsel %vm1960, %v1697, %v1699
        %v2053 = vsel %vm1960, %v1701, %v1703
        %v2054 = vsel %vm1960, %v1703, %v1705
        %v2055 = vsel %vm1960, %v1705, %v1707
        %v2056 = vsel %vm1960, %v1707, %v1709
        %v2057 = vsel %vm1960, %v1711, %v1713
        %v2058 = vsel %vm1960, %v1713, %v1715
        %v2059 = vsel %vm1960, %v1715, %v1717
        %v2060 = vsel %vm1960, %v1717, %v1719
        %v2061 = vsel %vm1960, %v1721, %v1723
        %v2062 = vsel %vm1960, %v1723, %v1725
        %v2063 = vsel %vm1960, %v1725, %v1727
        %v2064 = vsel %vm1960, %v1727, %v1729
        %v2065 = vsel %vm1960, %v1731, %v1733
        %v2066 = vsel %vm1960, %v1733, %v1735
        %v2067 = vsel %vm1960, %v1735, %v1737
        %v2068 = vsel %vm1960, %v1737, %v1739
        %v2069 = vsel %vm1960, %v1741, %v1743
        %v2070 = vsel %vm1960, %v1743, %v1745
        %v2071 = vsel %vm1960, %v1745, %v1747
        %v2072 = vsel %vm1960, %v1747, %v1749
        %v2073 = vsel %vm1960, %v1751, %v1753
        %v2074 = vsel %vm1960, %v1753, %v1755
        %v2075 = vsel %vm1960, %v1755, %v1757
        %v2076 = vsel %vm1960, %v1757, %v1759
        %v2077 = vsel %vm1960, %v1761, %v1763
        %v2078 = vsel %vm1960, %v1763, %v1765
        %v2079 = vsel %vm1960, %v1765, %v1767
        %v2080 = vsel %vm1960, %v1767, %v1769
        %v2081 = vsel %vm1960, %v1771, %v1773
        %v2082 = vsel %vm1960, %v1773, %v1775
        %v2083 = vsel %vm1960, %v1775, %v1777
        %v2084 = vsel %vm1960, %v1777, %v1779
        %v2085 = vsel %vm1960, %v1781, %v1783
        %v2086 = vsel %vm1960, %v1783, %v1785
        %v2087 = vsel %vm1960, %v1785, %v1787
        %v2088 = vsel %vm1960, %v1787, %v1789
        %v2089 = vsel %vm1960, %v1791, %v1793
        %v2090 = vsel %vm1960, %v1793, %v1795
        %v2091 = vsel %vm1960, %v1795, %v1797
        %v2092 = vsel %vm1960, %v1797, %v1799
        %v2093 = vsel %vm1960, %v1801, %v1803
        %v2094 = vsel %vm1960, %v1803, %v1805
        %v2095 = vsel %vm1960, %v1805, %v1807
        %v2096 = vsel %vm1960, %v1807, %v1809
        %v2097 = vsel %vm1960, %v1811, %v1813
        %v2098 = vsel %vm1960, %v1813, %v1815
        %v2099 = vsel %vm1960, %v1815, %v1817
        %v2100 = vsel %vm1960, %v1817, %v1819
        %v2101 = vsel %vm1960, %v1821, %v1823
        %v2102 = vsel %vm1960, %v1823, %v1825
        %v2103 = vsel %vm1960, %v1825, %v1827
        %v2104 = vsel %vm1960, %v1827, %v1829
        %v2105 = vsel %vm1960, %v1831, %v1833
        %v2106 = vsel %vm1960, %v1833, %v1835
        %v2107 = vsel %vm1960, %v1835, %v1837
        %v2108 = vsel %vm1960, %v1837, %v1839
        %v2109 = vsel %vm1960, %v1841, %v1843
        %v2110 = vsel %vm1960, %v1843, %v1845
        %v2111 = vsel %vm1960, %v1845, %v1847
        %v2112 = vsel %vm1960, %v1847, %v1849
        %v2113 = vsel %vm1960, %v1851, %v1853
        %v2114 = vsel %vm1960, %v1853, %v1855
        %v2115 = vsel %vm1960, %v1855, %v1857
        %v2116 = vsel %vm1960, %v1857, %v1859
        %v2117 = vsel %vm1960, %v1861, %v1863
        %v2118 = vsel %vm1960, %v1863, %v1865
        %v2119 = vsel %vm1960, %v1865, %v1867
        %v2120 = vsel %vm1960, %v1867, %v1869
        %v2121 = vsel %vm1960, %v1871, %v1873
        %v2122 = vsel %vm1960, %v1873, %v1875
        %v2123 = vsel %vm1960, %v1875, %v1877
        %v2124 = vsel %vm1960, %v1877, %v1879
        %v2125 = vsel %vm1960, %v1881, %v1883
        %v2126 = vsel %vm1960, %v1883, %v1885
        %v2127 = vsel %vm1960, %v1885, %v1887
        %v2128 = vsel %vm1960, %v1887, %v1889
        %v2129 = vsel %vm1960, %v1891, %v1893
        %v2130 = vsel %vm1960, %v1893, %v1895
        %v2131 = vsel %vm1960, %v1895, %v1897
        %v2132 = vsel %vm1960, %v1897, %v1899
        %v2133 = vsel %vm1960, %v1901, %v1903
        %v2134 = vsel %vm1960, %v1903, %v1905
        %v2135 = vsel %vm1960, %v1905, %v1907
        %v2136 = vsel %vm1960, %v1907, %v1909
        %v2137 = vsel %vm1960, %v1911, %v1913
        %v2138 = vsel %vm1960, %v1913, %v1915
        %v2139 = vsel %vm1960, %v1915, %v1917
        %v2140 = vsel %vm1960, %v1917, %v1919
        %v2141 = vsel %vm1960, %v1921, %v1923
        %v2142 = vsel %vm1960, %v1923, %v1925
        %v2143 = vsel %vm1960, %v1925, %v1927
        %v2144 = vsel %vm1960, %v1927, %v1929
        %v2145 = vsel %vm1960, %v1931, %v1933
        %v2146 = vsel %vm1960, %v1933, %v1935
        %v2147 = vsel %vm1960, %v1935, %v1937
        %v2148 = vsel %vm1960, %v1937, %v1939
        %v2149 = vsel %vm1960, %v1941, %v1943
        %v2150 = vsel %vm1960, %v1943, %v1945
        %v2151 = vsel %vm1960, %v1945, %v1947
        %v2152 = vsel %vm1960, %v1947, %v1949
        %v2153 = vsel %vm1960, %v1951, %v1953
        %v2154 = vsel %vm1960, %v1953, %v1955
        %v2155 = vsel %vm1960, %v1955, %v1957
        %v2156 = vsel %vm1960, %v1957, %v1959
        %vm2353 = vcmask 130048
        %v2355 = vsel %vm2353, %v1450, 0
        %v2358 = vsel %vm2353, %v1457, 0
        %2360 = vmatprep.subr.bf16.mxu0 %v1962
        %2361 = vmatpush1.bf16.msra.mxu0 %v1961
        %2362 = vmatprep.subr.bf16.mxu0 %v1966
        %2363 = vmatpush1.bf16.msra.mxu0 %v1965
        %2364 = vmatprep.subr.bf16.mxu0 %v1970
        %2365 = vmatpush1.bf16.msra.mxu0 %v1969
        %2366 = vmatprep.subr.bf16.mxu0 %v1974
        %2367 = vmatpush1.bf16.msra.mxu0 %v1973
        %2368 = vmatprep.subr.bf16.mxu0 %v1978
        %2369 = vmatpush1.bf16.msra.mxu0 %v1977
        %2370 = vmatprep.subr.bf16.mxu0 %v1982
        %2371 = vmatpush1.bf16.msra.mxu0 %v1981
        %2372 = vmatprep.subr.bf16.mxu0 %v1986
        %2373 = vmatpush1.bf16.msra.mxu0 %v1985
        %2374 = vmatprep.subr.bf16.mxu0 %v1990
        %2375 = vmatpush1.bf16.msra.mxu0 %v1989
        %2376 = vmatprep.subr.bf16.mxu0 %v1994
        %2377 = vmatpush1.bf16.msra.mxu0 %v1993
        %2378 = vmatprep.subr.bf16.mxu0 %v1998
        %2379 = vmatpush1.bf16.msra.mxu0 %v1997
        %2380 = vmatprep.subr.bf16.mxu0 %v2002
        %2381 = vmatpush1.bf16.msra.mxu0 %v2001
        %2382 = vmatprep.subr.bf16.mxu0 %v2006
        %2383 = vmatpush1.bf16.msra.mxu0 %v2005
        %2384 = vmatprep.subr.bf16.mxu0 %v2010
        %2385 = vmatpush1.bf16.msra.mxu0 %v2009
        %2386 = vmatprep.subr.bf16.mxu0 %v2014
        %2387 = vmatpush1.bf16.msra.mxu0 %v2013
        %2388 = vmatprep.subr.bf16.mxu0 %v2018
        %2389 = vmatpush1.bf16.msra.mxu0 %v2017
        %2390 = vmatprep.subr.bf16.mxu0 %v2022
        %2391 = vmatpush1.bf16.msra.mxu0 %v2021
        %2392 = vmatprep.mubr.bf16.mxu0 %v1445
        %2393 = vmatmul.mubr.bf16.gmra.mrb[0].mxu0 %v1444
        %v2394 = vpop.f32.mrb[0].mxu0
        %v2395 = vadd.f32 %v1383, %v2394
        %v2396 = vpop.f32.mrb[0].mxu0
        %v2397 = vadd.f32 %v1383, %v2396
        %v2398 = vpop.f32.mrb[0].mxu0
        %v2399 = vadd.f32 %v1388, %v2398
        %v2400 = vpop.f32.mrb[0].mxu0
        %v2401 = vadd.f32 %v1388, %v2400
        %2402 = vmatprep.mubr.bf16.mxu0 %v1452
        %2403 = vmatmul.mubr.bf16.gmra.mrb[0].mxu0 %v1451
        %v2404 = vpop.f32.mrb[0].mxu0
        %v2405 = vadd.f32 %v1393, %v2404
        %v2406 = vpop.f32.mrb[0].mxu0
        %v2407 = vadd.f32 %v1393, %v2406
        %v2408 = vpop.f32.mrb[0].mxu0
        %v2409 = vadd.f32 %v1398, %v2408
        %v2410 = vpop.f32.mrb[0].mxu0
        %v2411 = vadd.f32 %v1398, %v2410
        %2412 = vdwg.mxu0
        %2413 = vmatprep.subr.bf16.mxu0 %v2026
        %2414 = vmatpush1.bf16.msra.mxu0 %v2025
        %2415 = vmatprep.subr.bf16.mxu0 %v2030
        %2416 = vmatpush1.bf16.msra.mxu0 %v2029
        %2417 = vmatprep.subr.bf16.mxu0 %v2034
        %2418 = vmatpush1.bf16.msra.mxu0 %v2033
        %2419 = vmatprep.subr.bf16.mxu0 %v2038
        %2420 = vmatpush1.bf16.msra.mxu0 %v2037
        %2421 = vmatprep.subr.bf16.mxu0 %v2042
        %2422 = vmatpush1.bf16.msra.mxu0 %v2041
        %2423 = vmatprep.subr.bf16.mxu0 %v2046
        %2424 = vmatpush1.bf16.msra.mxu0 %v2045
        %2425 = vmatprep.subr.bf16.mxu0 %v2050
        %2426 = vmatpush1.bf16.msra.mxu0 %v2049
        %2427 = vmatprep.subr.bf16.mxu0 %v2054
        %2428 = vmatpush1.bf16.msra.mxu0 %v2053
        %2429 = vmatprep.subr.bf16.mxu0 %v2058
        %2430 = vmatpush1.bf16.msra.mxu0 %v2057
        %2431 = vmatprep.subr.bf16.mxu0 %v2062
        %2432 = vmatpush1.bf16.msra.mxu0 %v2061
        %2433 = vmatprep.subr.bf16.mxu0 %v2066
        %2434 = vmatpush1.bf16.msra.mxu0 %v2065
        %2435 = vmatprep.subr.bf16.mxu0 %v2070
        %2436 = vmatpush1.bf16.msra.mxu0 %v2069
        %2437 = vmatprep.subr.bf16.mxu0 %v2074
        %2438 = vmatpush1.bf16.msra.mxu0 %v2073
        %2439 = vmatprep.subr.bf16.mxu0 %v2078
        %2440 = vmatpush1.bf16.msra.mxu0 %v2077
        %2441 = vmatprep.subr.bf16.mxu0 %v2082
        %2442 = vmatpush1.bf16.msra.mxu0 %v2081
        %2443 = vmatprep.subr.bf16.mxu0 %v2086
        %2444 = vmatpush1.bf16.msra.mxu0 %v2085
        %2445 = vmatprep.mubr.bf16.mxu0 %v1447
        %2446 = vmatmul.mubr.bf16.gmra.mrb[0].mxu0 %v1446
        %v2447 = vpop.f32.mrb[0].mxu0
        %v2448 = vadd.f32 %v2395, %v2447
        %v2449 = vpop.f32.mrb[0].mxu0
        %v2450 = vadd.f32 %v2397, %v2449
        %v2451 = vpop.f32.mrb[0].mxu0
        %v2452 = vadd.f32 %v2399, %v2451
        %v2453 = vpop.f32.mrb[0].mxu0
        %v2454 = vadd.f32 %v2401, %v2453
        %2455 = vmatprep.mubr.bf16.mxu0 %v1454
        %2456 = vmatmul.mubr.bf16.gmra.mrb[0].mxu0 %v1453
        %v2457 = vpop.f32.mrb[0].mxu0
        %v2458 = vadd.f32 %v2405, %v2457
        %v2459 = vpop.f32.mrb[0].mxu0
        %v2460 = vadd.f32 %v2407, %v2459
        %v2461 = vpop.f32.mrb[0].mxu0
        %v2462 = vadd.f32 %v2409, %v2461
        %v2463 = vpop.f32.mrb[0].mxu0
        %v2464 = vadd.f32 %v2411, %v2463
        %2465 = vdwg.mxu0
        %2466 = vmatprep.subr.bf16.mxu0 %v2090
        %2467 = vmatpush1.bf16.msra.mxu0 %v2089
        %2468 = vmatprep.subr.bf16.mxu0 %v2094
        %2469 = vmatpush1.bf16.msra.mxu0 %v2093
        %2470 = vmatprep.subr.bf16.mxu0 %v2098
        %2471 = vmatpush1.bf16.msra.mxu0 %v2097
        %2472 = vmatprep.subr.bf16.mxu0 %v2102
        %2473 = vmatpush1.bf16.msra.mxu0 %v2101
        %2474 = vmatprep.subr.bf16.mxu0 %v2106
        %2475 = vmatpush1.bf16.msra.mxu0 %v2105
        %2476 = vmatprep.subr.bf16.mxu0 %v2110
        %2477 = vmatpush1.bf16.msra.mxu0 %v2109
        %2478 = vmatprep.subr.bf16.mxu0 %v2114
        %2479 = vmatpush1.bf16.msra.mxu0 %v2113
        %2480 = vmatprep.subr.bf16.mxu0 %v2118
        %2481 = vmatpush1.bf16.msra.mxu0 %v2117
        %2482 = vmatprep.subr.bf16.mxu0 %v2122
        %2483 = vmatpush1.bf16.msra.mxu0 %v2121
        %2484 = vmatprep.subr.bf16.mxu0 %v2126
        %2485 = vmatpush1.bf16.msra.mxu0 %v2125
        %2486 = vmatprep.subr.bf16.mxu0 %v2130
        %2487 = vmatpush1.bf16.msra.mxu0 %v2129
        %2488 = vmatprep.subr.bf16.mxu0 %v2134
        %2489 = vmatpush1.bf16.msra.mxu0 %v2133
        %2490 = vmatprep.subr.bf16.mxu0 %v2138
        %2491 = vmatpush1.bf16.msra.mxu0 %v2137
        %2492 = vmatprep.subr.bf16.mxu0 %v2142
        %2493 = vmatpush1.bf16.msra.mxu0 %v2141
        %2494 = vmatprep.subr.bf16.mxu0 %v2146
        %2495 = vmatpush1.bf16.msra.mxu0 %v2145
        %2496 = vmatprep.subr.bf16.mxu0 %v2150
        %2497 = vmatpush1.bf16.msra.mxu0 %v2149
        %2498 = vmatprep.mubr.bf16.mxu0 %v1449
        %2499 = vmatmul.mubr.bf16.gmra.mrb[0].mxu0 %v1448
        %v2500 = vpop.f32.mrb[0].mxu0
        %v2501 = vadd.f32 %v2448, %v2500
        %v2502 = vpop.f32.mrb[0].mxu0
        %v2503 = vadd.f32 %v2450, %v2502
        %v2504 = vpop.f32.mrb[0].mxu0
        %v2505 = vadd.f32 %v2452, %v2504
        %v2506 = vpop.f32.mrb[0].mxu0
        %v2507 = vadd.f32 %v2454, %v2506
        %2508 = vmatprep.mubr.bf16.mxu0 %v1456
        %2509 = vmatmul.mubr.bf16.gmra.mrb[0].mxu0 %v1455
        %v2510 = vpop.f32.mrb[0].mxu0
        %v2511 = vadd.f32 %v2458, %v2510
        %v2512 = vpop.f32.mrb[0].mxu0
        %v2513 = vadd.f32 %v2460, %v2512
        %v2514 = vpop.f32.mrb[0].mxu0
        %v2515 = vadd.f32 %v2462, %v2514
        %v2516 = vpop.f32.mrb[0].mxu0
        %v2517 = vadd.f32 %v2464, %v2516
        %2518 = vdwg.mxu0
        %2519 = vmatprep.subr.bf16.mxu0 %v2154
        %2520 = vmatpush1.bf16.msra.mxu0 %v2153
        %2521 = vmatprep.subr.bf16.mxu0 0
        %2522 = vmatpush1.bf16.msra.mxu0 0
        %2523 = vmatprep.subr.bf16.mxu0 0
        %2524 = vmatpush1.bf16.msra.mxu0 0
        %2525 = vmatprep.subr.bf16.mxu0 0
        %2526 = vmatpush1.bf16.msra.mxu0 0
        %2527 = vmatprep.subr.bf16.mxu0 0
        %2528 = vmatpush1.bf16.msra.mxu0 0
        %2529 = vmatprep.subr.bf16.mxu0 0
        %2530 = vmatpush1.bf16.msra.mxu0 0
        %2531 = vmatprep.subr.bf16.mxu0 0
        %2532 = vmatpush1.bf16.msra.mxu0 0
        %2533 = vmatprep.subr.bf16.mxu0 0
        %2534 = vmatpush1.bf16.msra.mxu0 0
        %2535 = vmatprep.subr.bf16.mxu0 0
        %2536 = vmatpush1.bf16.msra.mxu0 0
        %2537 = vmatprep.subr.bf16.mxu0 0
        %2538 = vmatpush1.bf16.msra.mxu0 0
        %2539 = vmatprep.subr.bf16.mxu0 0
        %2540 = vmatpush1.bf16.msra.mxu0 0
        %2541 = vmatprep.subr.bf16.mxu0 0
        %2542 = vmatpush1.bf16.msra.mxu0 0
        %2543 = vmatprep.subr.bf16.mxu0 0
        %2544 = vmatpush1.bf16.msra.mxu0 0
        %2545 = vmatprep.subr.bf16.mxu0 0
        %2546 = vmatpush1.bf16.msra.mxu0 0
        %2547 = vmatprep.subr.bf16.mxu0 0
        %2548 = vmatpush1.bf16.msra.mxu0 0
        %2549 = vmatprep.subr.bf16.mxu0 0
        %2550 = vmatpush1.bf16.msra.mxu0 0
        %2551 = vmatprep.mubr.bf16.mxu0 0
        %2552 = vmatmul.mubr.bf16.gmra.mrb[0].mxu0 %v2355
        %v2553 = vpop.f32.mrb[0].mxu0
        %v2554 = vadd.f32 %v2501, %v2553
        %v2555 = vpop.f32.mrb[0].mxu0
        %v2556 = vadd.f32 %v2503, %v2555
        %v2557 = vpop.f32.mrb[0].mxu0
        %v2558 = vadd.f32 %v2505, %v2557
        %v2559 = vpop.f32.mrb[0].mxu0
        %v2560 = vadd.f32 %v2507, %v2559
        %2561 = vmatprep.mubr.bf16.mxu0 0
        %2562 = vmatmul.mubr.bf16.gmra.mrb[0].mxu0 %v2358
        %v2563 = vpop.f32.mrb[0].mxu0
        %v2564 = vadd.f32 %v2511, %v2563
        %v2565 = vpop.f32.mrb[0].mxu0
        %v2566 = vadd.f32 %v2513, %v2565
        %v2567 = vpop.f32.mrb[0].mxu0
        %v2568 = vadd.f32 %v2515, %v2567
        %v2569 = vpop.f32.mrb[0].mxu0
        %v2570 = vadd.f32 %v2517, %v2569
        %2571 = vdwg.mxu0
        %2572 = vmatprep.subr.bf16.mxu0 %v1964
        %2573 = vmatpush1.bf16.msra.mxu0 %v1963
        %2574 = vmatprep.subr.bf16.mxu0 %v1968
        %2575 = vmatpush1.bf16.msra.mxu0 %v1967
        %2576 = vmatprep.subr.bf16.mxu0 %v1972
        %2577 = vmatpush1.bf16.msra.mxu0 %v1971
        %2578 = vmatprep.subr.bf16.mxu0 %v1976
        %2579 = vmatpush1.bf16.msra.mxu0 %v1975
        %2580 = vmatprep.subr.bf16.mxu0 %v1980
        %2581 = vmatpush1.bf16.msra.mxu0 %v1979
        %2582 = vmatprep.subr.bf16.mxu0 %v1984
        %2583 = vmatpush1.bf16.msra.mxu0 %v1983
        %2584 = vmatprep.subr.bf16.mxu0 %v1988
        %2585 = vmatpush1.bf16.msra.mxu0 %v1987
        %2586 = vmatprep.subr.bf16.mxu0 %v1992
        %2587 = vmatpush1.bf16.msra.mxu0 %v1991
        %2588 = vmatprep.subr.bf16.mxu0 %v1996
        %2589 = vmatpush1.bf16.msra.mxu0 %v1995
        %2590 = vmatprep.subr.bf16.mxu0 %v2000
        %2591 = vmatpush1.bf16.msra.mxu0 %v1999
        %2592 = vmatprep.subr.bf16.mxu0 %v2004
        %2593 = vmatpush1.bf16.msra.mxu0 %v2003
        %2594 = vmatprep.subr.bf16.mxu0 %v2008
        %2595 = vmatpush1.bf16.msra.mxu0 %v2007
        %2596 = vmatprep.subr.bf16.mxu0 %v2012
        %2597 = vmatpush1.bf16.msra.mxu0 %v2011
        %2598 = vmatprep.subr.bf16.mxu0 %v2016
        %2599 = vmatpush1.bf16.msra.mxu0 %v2015
        %2600 = vmatprep.subr.bf16.mxu0 %v2020
        %2601 = vmatpush1.bf16.msra.mxu0 %v2019
        %2602 = vmatprep.subr.bf16.mxu0 %v2024
        %2603 = vmatpush1.bf16.msra.mxu0 %v2023
        %2604 = vmatprep.mubr.bf16.mxu0 %v1445
        %2605 = vmatmul.mubr.bf16.gmra.mrb[0].mxu0 %v1444
        %v2606 = vpop.f32.mrb[0].mxu0
        %v2607 = vadd.f32 %v1383, %v2606
        %v2608 = vpop.f32.mrb[0].mxu0
        %v2609 = vadd.f32 %v1383, %v2608
        %v2610 = vpop.f32.mrb[0].mxu0
        %v2611 = vadd.f32 %v1388, %v2610
        %v2612 = vpop.f32.mrb[0].mxu0
        %v2613 = vadd.f32 %v1388, %v2612
        %2614 = vmatprep.mubr.bf16.mxu0 %v1452
        %2615 = vmatmul.mubr.bf16.gmra.mrb[0].mxu0 %v1451
        %v2616 = vpop.f32.mrb[0].mxu0
        %v2617 = vadd.f32 %v1393, %v2616
        %v2618 = vpop.f32.mrb[0].mxu0
        %v2619 = vadd.f32 %v1393, %v2618
        %v2620 = vpop.f32.mrb[0].mxu0
        %v2621 = vadd.f32 %v1398, %v2620
        %v2622 = vpop.f32.mrb[0].mxu0
        %v2623 = vadd.f32 %v1398, %v2622
        %2624 = vdwg.mxu0
        %2625 = vmatprep.subr.bf16.mxu0 %v2028
        %2626 = vmatpush1.bf16.msra.mxu0 %v2027
        %2627 = vmatprep.subr.bf16.mxu0 %v2032
        %2628 = vmatpush1.bf16.msra.mxu0 %v2031
        %2629 = vmatprep.subr.bf16.mxu0 %v2036
        %2630 = vmatpush1.bf16.msra.mxu0 %v2035
        %2631 = vmatprep.subr.bf16.mxu0 %v2040
        %2632 = vmatpush1.bf16.msra.mxu0 %v2039
        %2633 = vmatprep.subr.bf16.mxu0 %v2044
        %2634 = vmatpush1.bf16.msra.mxu0 %v2043
        %2635 = vmatprep.subr.bf16.mxu0 %v2048
        %2636 = vmatpush1.bf16.msra.mxu0 %v2047
        %2637 = vmatprep.subr.bf16.mxu0 %v2052
        %2638 = vmatpush1.bf16.msra.mxu0 %v2051
        %2639 = vmatprep.subr.bf16.mxu0 %v2056
        %2640 = vmatpush1.bf16.msra.mxu0 %v2055
        %2641 = vmatprep.subr.bf16.mxu0 %v2060
        %2642 = vmatpush1.bf16.msra.mxu0 %v2059
        %2643 = vmatprep.subr.bf16.mxu0 %v2064
        %2644 = vmatpush1.bf16.msra.mxu0 %v2063
        %2645 = vmatprep.subr.bf16.mxu0 %v2068
        %2646 = vmatpush1.bf16.msra.mxu0 %v2067
        %2647 = vmatprep.subr.bf16.mxu0 %v2072
        %2648 = vmatpush1.bf16.msra.mxu0 %v2071
        %2649 = vmatprep.subr.bf16.mxu0 %v2076
        %2650 = vmatpush1.bf16.msra.mxu0 %v2075
        %2651 = vmatprep.subr.bf16.mxu0 %v2080
        %2652 = vmatpush1.bf16.msra.mxu0 %v2079
        %2653 = vmatprep.subr.bf16.mxu0 %v2084
        %2654 = vmatpush1.bf16.msra.mxu0 %v2083
        %2655 = vmatprep.subr.bf16.mxu0 %v2088
        %2656 = vmatpush1.bf16.msra.mxu0 %v2087
        %2657 = vmatprep.mubr.bf16.mxu0 %v1447
        %2658 = vmatmul.mubr.bf16.gmra.mrb[0].mxu0 %v1446
        %v2659 = vpop.f32.mrb[0].mxu0
        %v2660 = vadd.f32 %v2607, %v2659
        %v2661 = vpop.f32.mrb[0].mxu0
        %v2662 = vadd.f32 %v2609, %v2661
        %v2663 = vpop.f32.mrb[0].mxu0
        %v2664 = vadd.f32 %v2611, %v2663
        %v2665 = vpop.f32.mrb[0].mxu0
        %v2666 = vadd.f32 %v2613, %v2665
        %2667 = vmatprep.mubr.bf16.mxu0 %v1454
        %2668 = vmatmul.mubr.bf16.gmra.mrb[0].mxu0 %v1453
        %v2669 = vpop.f32.mrb[0].mxu0
        %v2670 = vadd.f32 %v2617, %v2669
        %v2671 = vpop.f32.mrb[0].mxu0
        %v2672 = vadd.f32 %v2619, %v2671
        %v2673 = vpop.f32.mrb[0].mxu0
        %v2674 = vadd.f32 %v2621, %v2673
        %v2675 = vpop.f32.mrb[0].mxu0
        %v2676 = vadd.f32 %v2623, %v2675
        %2677 = vdwg.mxu0
        %2678 = vmatprep.subr.bf16.mxu0 %v2092
        %2679 = vmatpush1.bf16.msra.mxu0 %v2091
        %2680 = vmatprep.subr.bf16.mxu0 %v2096
        %2681 = vmatpush1.bf16.msra.mxu0 %v2095
        %2682 = vmatprep.subr.bf16.mxu0 %v2100
        %2683 = vmatpush1.bf16.msra.mxu0 %v2099
        %2684 = vmatprep.subr.bf16.mxu0 %v2104
        %2685 = vmatpush1.bf16.msra.mxu0 %v2103
        %2686 = vmatprep.subr.bf16.mxu0 %v2108
        %2687 = vmatpush1.bf16.msra.mxu0 %v2107
        %2688 = vmatprep.subr.bf16.mxu0 %v2112
        %2689 = vmatpush1.bf16.msra.mxu0 %v2111
        %2690 = vmatprep.subr.bf16.mxu0 %v2116
        %2691 = vmatpush1.bf16.msra.mxu0 %v2115
        %2692 = vmatprep.subr.bf16.mxu0 %v2120
        %2693 = vmatpush1.bf16.msra.mxu0 %v2119
        %2694 = vmatprep.subr.bf16.mxu0 %v2124
        %2695 = vmatpush1.bf16.msra.mxu0 %v2123
        %2696 = vmatprep.subr.bf16.mxu0 %v2128
        %2697 = vmatpush1.bf16.msra.mxu0 %v2127
        %2698 = vmatprep.subr.bf16.mxu0 %v2132
        %2699 = vmatpush1.bf16.msra.mxu0 %v2131
        %2700 = vmatprep.subr.bf16.mxu0 %v2136
        %2701 = vmatpush1.bf16.msra.mxu0 %v2135
        %2702 = vmatprep.subr.bf16.mxu0 %v2140
        %2703 = vmatpush1.bf16.msra.mxu0 %v2139
        %2704 = vmatprep.subr.bf16.mxu0 %v2144
        %2705 = vmatpush1.bf16.msra.mxu0 %v2143
        %2706 = vmatprep.subr.bf16.mxu0 %v2148
        %2707 = vmatpush1.bf16.msra.mxu0 %v2147
        %2708 = vmatprep.subr.bf16.mxu0 %v2152
        %2709 = vmatpush1.bf16.msra.mxu0 %v2151
        %2710 = vmatprep.mubr.bf16.mxu0 %v1449
        %2711 = vmatmul.mubr.bf16.gmra.mrb[0].mxu0 %v1448
        %v2712 = vpop.f32.mrb[0].mxu0
        %v2713 = vadd.f32 %v2660, %v2712
        %v2714 = vpop.f32.mrb[0].mxu0
        %v2715 = vadd.f32 %v2662, %v2714
        %v2716 = vpop.f32.mrb[0].mxu0
        %v2717 = vadd.f32 %v2664, %v2716
        %v2718 = vpop.f32.mrb[0].mxu0
        %v2719 = vadd.f32 %v2666, %v2718
        %2720 = vmatprep.mubr.bf16.mxu0 %v1456
        %2721 = vmatmul.mubr.bf16.gmra.mrb[0].mxu0 %v1455
        %v2722 = vpop.f32.mrb[0].mxu0
        %v2723 = vadd.f32 %v2670, %v2722
        %v2724 = vpop.f32.mrb[0].mxu0
        %v2725 = vadd.f32 %v2672, %v2724
        %v2726 = vpop.f32.mrb[0].mxu0
        %v2727 = vadd.f32 %v2674, %v2726
        %v2728 = vpop.f32.mrb[0].mxu0
        %v2729 = vadd.f32 %v2676, %v2728
        %2730 = vdwg.mxu0
        %2731 = vmatprep.subr.bf16.mxu0 %v2156
        %2732 = vmatpush1.bf16.msra.mxu0 %v2155
        %2733 = vmatprep.subr.bf16.mxu0 0
        %2734 = vmatpush1.bf16.msra.mxu0 0
        %2735 = vmatprep.subr.bf16.mxu0 0
        %2736 = vmatpush1.bf16.msra.mxu0 0
        %2737 = vmatprep.subr.bf16.mxu0 0
        %2738 = vmatpush1.bf16.msra.mxu0 0
        %2739 = vmatprep.subr.bf16.mxu0 0
        %2740 = vmatpush1.bf16.msra.mxu0 0
        %2741 = vmatprep.subr.bf16.mxu0 0
        %2742 = vmatpush1.bf16.msra.mxu0 0
        %2743 = vmatprep.subr.bf16.mxu0 0
        %2744 = vmatpush1.bf16.msra.mxu0 0
        %2745 = vmatprep.subr.bf16.mxu0 0
        %2746 = vmatpush1.bf16.msra.mxu0 0
        %2747 = vmatprep.subr.bf16.mxu0 0
        %2748 = vmatpush1.bf16.msra.mxu0 0
        %2749 = vmatprep.subr.bf16.mxu0 0
        %2750 = vmatpush1.bf16.msra.mxu0 0
        %2751 = vmatprep.subr.bf16.mxu0 0
        %2752 = vmatpush1.bf16.msra.mxu0 0
        %2753 = vmatprep.subr.bf16.mxu0 0
        %2754 = vmatpush1.bf16.msra.mxu0 0
        %2755 = vmatprep.subr.bf16.mxu0 0
        %2756 = vmatpush1.bf16.msra.mxu0 0
        %2757 = vmatprep.subr.bf16.mxu0 0
        %2758 = vmatpush1.bf16.msra.mxu0 0
        %2759 = vmatprep.subr.bf16.mxu0 0
        %2760 = vmatpush1.bf16.msra.mxu0 0
        %2761 = vmatprep.subr.bf16.mxu0 0
        %2762 = vmatpush1.bf16.msra.mxu0 0
        %2763 = vmatprep.mubr.bf16.mxu0 0
        %2764 = vmatmul.mubr.bf16.gmra.mrb[0].mxu0 %v2355
        %v2765 = vpop.f32.mrb[0].mxu0
        %v2766 = vadd.f32 %v2713, %v2765
        %v2767 = vpop.f32.mrb[0].mxu0
        %v2768 = vadd.f32 %v2715, %v2767
        %v2769 = vpop.f32.mrb[0].mxu0
        %v2770 = vadd.f32 %v2717, %v2769
        %v2771 = vpop.f32.mrb[0].mxu0
        %v2772 = vadd.f32 %v2719, %v2771
        %2773 = vmatprep.mubr.bf16.mxu0 0
        %2774 = vmatmul.mubr.bf16.gmra.mrb[0].mxu0 %v2358
        %v2775 = vpop.f32.mrb[0].mxu0
        %v2776 = vadd.f32 %v2723, %v2775
        %v2777 = vpop.f32.mrb[0].mxu0
        %v2778 = vadd.f32 %v2725, %v2777
        %v2779 = vpop.f32.mrb[0].mxu0
        %v2780 = vadd.f32 %v2727, %v2779
        %v2781 = vpop.f32.mrb[0].mxu0
        %v2782 = vadd.f32 %v2729, %v2781
        %2783 = vdwg.mxu0
        %v2785 = vlaneseq
        %v2786 = vshrl.u32 %v2785, 7
        %v2787 = vsub.s32 0, %v2786
        %v2788 = vrot.slane %v329, %v2787
        %v2789 = vlaneseq
        %v2790 = vshrl.u32 %v2789, 7
        %v2791 = vsub.s32 1, %v2790
        %v2792 = vrot.slane %v329, %v2791
        %v2793 = vlaneseq
        %v2794 = vshrl.u32 %v2793, 7
        %v2795 = vsub.s32 2, %v2794
        %v2796 = vrot.slane %v329, %v2795
        %v2797 = vlaneseq
        %v2798 = vshrl.u32 %v2797, 7
        %v2799 = vsub.s32 3, %v2798
        %v2800 = vrot.slane %v329, %v2799
        %v2805 = vmul.f32 %v2554, %v2788
        %v2806 = vmul.f32 %v2556, %v2792
        %v2807 = vmul.f32 %v2766, %v2796
        %v2808 = vmul.f32 %v2768, %v2800
        %v2809 = vmul.f32 %v2558, %v2788
        %v2810 = vmul.f32 %v2560, %v2792
        %v2811 = vmul.f32 %v2770, %v2796
        %v2812 = vmul.f32 %v2772, %v2800
        %v2813 = vmul.f32 %v2564, %v2788
        %v2814 = vmul.f32 %v2566, %v2792
        %v2815 = vmul.f32 %v2776, %v2796
        %v2816 = vmul.f32 %v2778, %v2800
        %v2817 = vmul.f32 %v2568, %v2788
        %v2818 = vmul.f32 %v2570, %v2792
        %v2819 = vmul.f32 %v2780, %v2796
        %v2820 = vmul.f32 %v2782, %v2800
        %v2821 = vpack.c.bf16 %v2809, %v2805
        %v2822 = vpack.c.bf16 %v2810, %v2806
        %v2823 = vpack.c.bf16 %v2811, %v2807
        %v2824 = vpack.c.bf16 %v2812, %v2808
        %v2825 = vpack.c.bf16 %v2817, %v2813
        %v2826 = vpack.c.bf16 %v2818, %v2814
        %v2827 = vpack.c.bf16 %v2819, %v2815
        %v2828 = vpack.c.bf16 %v2820, %v2816
        %2829 = vst [vmem:[#allocation3 + $0x8] sm:$0xff] %v2821
        %2830 = vst [vmem:[#allocation3 + $0x10] sm:$0xff] %v2822
        %2831 = vst [vmem:[#allocation3 + $0x18] sm:$0xff] %v2823
        %2832 = vst [vmem:[#allocation3 + $0x20] sm:$0xff] %v2824
        %2833 = vst [vmem:[#allocation3 + $0x38] sm:$0xff] %v2825
        %2834 = vst [vmem:[#allocation3 + $0x40] sm:$0xff] %v2826
        %2835 = vst [vmem:[#allocation3 + $0x48] sm:$0xff] %v2827
        %2836 = vst [vmem:[#allocation3 + $0x50] sm:$0xff] %v2828
        %v2837 = vld [vmem:[#allocation3] sm:$0xff]
        %v2838 = vld [vmem:[#allocation3 + $0x8] sm:$0xff]
        %v2839 = vld [vmem:[#allocation3 + $0x10] sm:$0xff]
        %v2840 = vld [vmem:[#allocation3 + $0x18] sm:$0xff]
        %v2841 = vld [vmem:[#allocation3 + $0x20] sm:$0xff]
        %v2842 = vld [vmem:[#allocation3 + $0x30] sm:$0xff]
        %v2843 = vld [vmem:[#allocation3 + $0x38] sm:$0xff]
        %v2844 = vld [vmem:[#allocation3 + $0x40] sm:$0xff]
        %v2845 = vld [vmem:[#allocation3 + $0x48] sm:$0xff]
        %v2846 = vld [vmem:[#allocation3 + $0x50] sm:$0xff]
        %v2847 = vld [vmem:[#allocation3 + $0x8] sm:$0xff]
        %v2848 = vld [vmem:[#allocation3 + $0x10] sm:$0xff]
        %v2849 = vld [vmem:[#allocation3 + $0x18] sm:$0xff]
        %v2850 = vld [vmem:[#allocation3 + $0x20] sm:$0xff]
        %v2851 = vld [vmem:[#allocation3 + $0x28] sm:$0xff]
        %v2852 = vld [vmem:[#allocation3 + $0x38] sm:$0xff]
        %v2853 = vld [vmem:[#allocation3 + $0x40] sm:$0xff]
        %v2854 = vld [vmem:[#allocation3 + $0x48] sm:$0xff]
        %v2855 = vld [vmem:[#allocation3 + $0x50] sm:$0xff]
        %v2856 = vld [vmem:[#allocation3 + $0x58] sm:$0xff]
        %2867 = vrot.lane.b32.xlu0 %v2837, 127
        %v2868 = vpop.permute.xlu0 %2867
        %2869 = vrot.lane.b32.xlu0 %v2838, 127
        %v2870 = vpop.permute.xlu0 %2869
        %2871 = vrot.lane.b32.xlu0 %v2839, 127
        %v2872 = vpop.permute.xlu0 %2871
        %2873 = vrot.lane.b32.xlu0 %v2840, 127
        %v2874 = vpop.permute.xlu0 %2873
        %2875 = vrot.lane.b32.xlu0 %v2841, 127
        %v2876 = vpop.permute.xlu0 %2875
        %2877 = vrot.lane.b32.xlu0 %v2842, 127
        %v2878 = vpop.permute.xlu0 %2877
        %2879 = vrot.lane.b32.xlu0 %v2843, 127
        %v2880 = vpop.permute.xlu0 %2879
        %2881 = vrot.lane.b32.xlu0 %v2844, 127
        %v2882 = vpop.permute.xlu0 %2881
        %2883 = vrot.lane.b32.xlu0 %v2845, 127
        %v2884 = vpop.permute.xlu0 %2883
        %2885 = vrot.lane.b32.xlu0 %v2846, 127
        %v2886 = vpop.permute.xlu0 %2885
        %v2887 = vsel %vm401, %v2868, %v2870
        %v2888 = vsel %vm401, %v2870, %v2872
        %v2889 = vsel %vm401, %v2872, %v2874
        %v2890 = vsel %vm401, %v2874, %v2876
        %v2891 = vsel %vm401, %v2878, %v2880
        %v2892 = vsel %vm401, %v2880, %v2882
        %v2893 = vsel %vm401, %v2882, %v2884
        %v2894 = vsel %vm401, %v2884, %v2886
        %2895 = vrot.lane.b32.xlu0 %v2837, 126
        %v2896 = vpop.permute.xlu0 %2895
        %2897 = vrot.lane.b32.xlu0 %v2838, 126
        %v2898 = vpop.permute.xlu0 %2897
        %2899 = vrot.lane.b32.xlu0 %v2839, 126
        %v2900 = vpop.permute.xlu0 %2899
        %2901 = vrot.lane.b32.xlu0 %v2840, 126
        %v2902 = vpop.permute.xlu0 %2901
        %2903 = vrot.lane.b32.xlu0 %v2841, 126
        %v2904 = vpop.permute.xlu0 %2903
        %2905 = vrot.lane.b32.xlu0 %v2842, 126
        %v2906 = vpop.permute.xlu0 %2905
        %2907 = vrot.lane.b32.xlu0 %v2843, 126
        %v2908 = vpop.permute.xlu0 %2907
        %2909 = vrot.lane.b32.xlu0 %v2844, 126
        %v2910 = vpop.permute.xlu0 %2909
        %2911 = vrot.lane.b32.xlu0 %v2845, 126
        %v2912 = vpop.permute.xlu0 %2911
        %2913 = vrot.lane.b32.xlu0 %v2846, 126
        %v2914 = vpop.permute.xlu0 %2913
        %v2915 = vsel %vm416, %v2896, %v2898
        %v2916 = vsel %vm416, %v2898, %v2900
        %v2917 = vsel %vm416, %v2900, %v2902
        %v2918 = vsel %vm416, %v2902, %v2904
        %v2919 = vsel %vm416, %v2906, %v2908
        %v2920 = vsel %vm416, %v2908, %v2910
        %v2921 = vsel %vm416, %v2910, %v2912
        %v2922 = vsel %vm416, %v2912, %v2914
        %2923 = vrot.lane.b32.xlu0 %v2837, 106
        %v2924 = vpop.permute.xlu0 %2923
        %2925 = vrot.lane.b32.xlu0 %v2838, 106
        %v2926 = vpop.permute.xlu0 %2925
        %2927 = vrot.lane.b32.xlu0 %v2839, 106
        %v2928 = vpop.permute.xlu0 %2927
        %2929 = vrot.lane.b32.xlu0 %v2840, 106
        %v2930 = vpop.permute.xlu0 %2929
        %2931 = vrot.lane.b32.xlu0 %v2841, 106
        %v2932 = vpop.permute.xlu0 %2931
        %2933 = vrot.lane.b32.xlu0 %v2842, 106
        %v2934 = vpop.permute.xlu0 %2933
        %2935 = vrot.lane.b32.xlu0 %v2843, 106
        %v2936 = vpop.permute.xlu0 %2935
        %2937 = vrot.lane.b32.xlu0 %v2844, 106
        %v2938 = vpop.permute.xlu0 %2937
        %2939 = vrot.lane.b32.xlu0 %v2845, 106
        %v2940 = vpop.permute.xlu0 %2939
        %2941 = vrot.lane.b32.xlu0 %v2846, 106
        %v2942 = vpop.permute.xlu0 %2941
        %v2943 = vsel %vm491, %v2924, %v2926
        %v2944 = vsel %vm491, %v2926, %v2928
        %v2945 = vsel %vm491, %v2928, %v2930
        %v2946 = vsel %vm491, %v2930, %v2932
        %v2947 = vsel %vm491, %v2934, %v2936
        %v2948 = vsel %vm491, %v2936, %v2938
        %v2949 = vsel %vm491, %v2938, %v2940
        %v2950 = vsel %vm491, %v2940, %v2942
        %2951 = vrot.lane.b32.xlu0 %v2838, 105
        %v2952 = vpop.permute.xlu0 %2951
        %2953 = vrot.lane.b32.xlu0 %v2839, 105
        %v2954 = vpop.permute.xlu0 %2953
        %2955 = vrot.lane.b32.xlu0 %v2840, 105
        %v2956 = vpop.permute.xlu0 %2955
        %2957 = vrot.lane.b32.xlu0 %v2841, 105
        %v2958 = vpop.permute.xlu0 %2957
        %2959 = vrot.lane.b32.xlu0 %v2843, 105
        %v2960 = vpop.permute.xlu0 %2959
        %2961 = vrot.lane.b32.xlu0 %v2844, 105
        %v2962 = vpop.permute.xlu0 %2961
        %2963 = vrot.lane.b32.xlu0 %v2845, 105
        %v2964 = vpop.permute.xlu0 %2963
        %2965 = vrot.lane.b32.xlu0 %v2846, 105
        %v2966 = vpop.permute.xlu0 %2965
        %v2967 = vsel %vm506, %v2952, %v2954
        %v2968 = vsel %vm506, %v2954, %v2956
        %v2969 = vsel %vm506, %v2956, %v2958
        %v2970 = vsel %vm506, %v2960, %v2962
        %v2971 = vsel %vm506, %v2962, %v2964
        %v2972 = vsel %vm506, %v2964, %v2966
        %2983 = vrot.lane.b32.xlu0 %v2847, 104
        %v2984 = vpop.permute.xlu0 %2983
        %2985 = vrot.lane.b32.xlu0 %v2848, 104
        %v2986 = vpop.permute.xlu0 %2985
        %2987 = vrot.lane.b32.xlu0 %v2849, 104
        %v2988 = vpop.permute.xlu0 %2987
        %2989 = vrot.lane.b32.xlu0 %v2850, 104
        %v2990 = vpop.permute.xlu0 %2989
        %2991 = vrot.lane.b32.xlu0 %v2851, 104
        %v2992 = vpop.permute.xlu0 %2991
        %2993 = vrot.lane.b32.xlu0 %v2852, 104
        %v2994 = vpop.permute.xlu0 %2993
        %2995 = vrot.lane.b32.xlu0 %v2853, 104
        %v2996 = vpop.permute.xlu0 %2995
        %2997 = vrot.lane.b32.xlu0 %v2854, 104
        %v2998 = vpop.permute.xlu0 %2997
        %2999 = vrot.lane.b32.xlu0 %v2855, 104
        %v3000 = vpop.permute.xlu0 %2999
        %3001 = vrot.lane.b32.xlu0 %v2856, 104
        %v3002 = vpop.permute.xlu0 %3001
        %v3003 = vsel %vm521, %v2984, %v2986
        %v3004 = vsel %vm521, %v2986, %v2988
        %v3005 = vsel %vm521, %v2988, %v2990
        %v3006 = vsel %vm521, %v2990, %v2992
        %v3007 = vsel %vm521, %v2994, %v2996
        %v3008 = vsel %vm521, %v2996, %v2998
        %v3009 = vsel %vm521, %v2998, %v3000
        %v3010 = vsel %vm521, %v3000, %v3002
        %3011 = vrot.lane.b32.xlu0 %v2847, 84
        %v3012 = vpop.permute.xlu0 %3011
        %3013 = vrot.lane.b32.xlu0 %v2848, 84
        %v3014 = vpop.permute.xlu0 %3013
        %3015 = vrot.lane.b32.xlu0 %v2849, 84
        %v3016 = vpop.permute.xlu0 %3015
        %3017 = vrot.lane.b32.xlu0 %v2850, 84
        %v3018 = vpop.permute.xlu0 %3017
        %3019 = vrot.lane.b32.xlu0 %v2851, 84
        %v3020 = vpop.permute.xlu0 %3019
        %3021 = vrot.lane.b32.xlu0 %v2852, 84
        %v3022 = vpop.permute.xlu0 %3021
        %3023 = vrot.lane.b32.xlu0 %v2853, 84
        %v3024 = vpop.permute.xlu0 %3023
        %3025 = vrot.lane.b32.xlu0 %v2854, 84
        %v3026 = vpop.permute.xlu0 %3025
        %3027 = vrot.lane.b32.xlu0 %v2855, 84
        %v3028 = vpop.permute.xlu0 %3027
        %3029 = vrot.lane.b32.xlu0 %v2856, 84
        %v3030 = vpop.permute.xlu0 %3029
        %v3031 = vsel %vm596, %v3012, %v3014
        %v3032 = vsel %vm596, %v3014, %v3016
        %v3033 = vsel %vm596, %v3016, %v3018
        %v3034 = vsel %vm596, %v3018, %v3020
        %v3035 = vsel %vm596, %v3022, %v3024
        %v3036 = vsel %vm596, %v3024, %v3026
        %v3037 = vsel %vm596, %v3026, %v3028
        %v3038 = vsel %vm596, %v3028, %v3030
        %3039 = vrot.lane.b32.xlu0 %v2847, 83
        %v3040 = vpop.permute.xlu0 %3039
        %3041 = vrot.lane.b32.xlu0 %v2848, 83
        %v3042 = vpop.permute.xlu0 %3041
        %3043 = vrot.lane.b32.xlu0 %v2849, 83
        %v3044 = vpop.permute.xlu0 %3043
        %3045 = vrot.lane.b32.xlu0 %v2850, 83
        %v3046 = vpop.permute.xlu0 %3045
        %3047 = vrot.lane.b32.xlu0 %v2851, 83
        %v3048 = vpop.permute.xlu0 %3047
        %3049 = vrot.lane.b32.xlu0 %v2852, 83
        %v3050 = vpop.permute.xlu0 %3049
        %3051 = vrot.lane.b32.xlu0 %v2853, 83
        %v3052 = vpop.permute.xlu0 %3051
        %3053 = vrot.lane.b32.xlu0 %v2854, 83
        %v3054 = vpop.permute.xlu0 %3053
        %3055 = vrot.lane.b32.xlu0 %v2855, 83
        %v3056 = vpop.permute.xlu0 %3055
        %3057 = vrot.lane.b32.xlu0 %v2856, 83
        %v3058 = vpop.permute.xlu0 %3057
        %v3059 = vsel %vm611, %v3040, %v3042
        %v3060 = vsel %vm611, %v3042, %v3044
        %v3061 = vsel %vm611, %v3044, %v3046
        %v3062 = vsel %vm611, %v3046, %v3048
        %v3063 = vsel %vm611, %v3050, %v3052
        %v3064 = vsel %vm611, %v3052, %v3054
        %v3065 = vsel %vm611, %v3054, %v3056
        %v3066 = vsel %vm611, %v3056, %v3058
        %3067 = vrot.lane.b32.xlu0 %v2847, 82
        %v3068 = vpop.permute.xlu0 %3067
        %3069 = vrot.lane.b32.xlu0 %v2848, 82
        %v3070 = vpop.permute.xlu0 %3069
        %3071 = vrot.lane.b32.xlu0 %v2849, 82
        %v3072 = vpop.permute.xlu0 %3071
        %3073 = vrot.lane.b32.xlu0 %v2850, 82
        %v3074 = vpop.permute.xlu0 %3073
        %3075 = vrot.lane.b32.xlu0 %v2851, 82
        %v3076 = vpop.permute.xlu0 %3075
        %3077 = vrot.lane.b32.xlu0 %v2852, 82
        %v3078 = vpop.permute.xlu0 %3077
        %3079 = vrot.lane.b32.xlu0 %v2853, 82
        %v3080 = vpop.permute.xlu0 %3079
        %3081 = vrot.lane.b32.xlu0 %v2854, 82
        %v3082 = vpop.permute.xlu0 %3081
        %3083 = vrot.lane.b32.xlu0 %v2855, 82
        %v3084 = vpop.permute.xlu0 %3083
        %3085 = vrot.lane.b32.xlu0 %v2856, 82
        %v3086 = vpop.permute.xlu0 %3085
        %v3087 = vsel %vm1055, %v3068, %v3070
        %v3088 = vsel %vm1055, %v3070, %v3072
        %v3089 = vsel %vm1055, %v3072, %v3074
        %v3090 = vsel %vm1055, %v3074, %v3076
        %v3091 = vsel %vm1055, %v3078, %v3080
        %v3092 = vsel %vm1055, %v3080, %v3082
        %v3093 = vsel %vm1055, %v3082, %v3084
        %v3094 = vsel %vm1055, %v3084, %v3086
        %v3095 = vld [vmem:[%s4] sm:$0xff]
        %v3096 = vld [vmem:[%s4 + $0x8] sm:$0xf]
        %v3097 = vld [vmem:[%s4 + $0xc] sm:$0xff]
        %v3098 = vld [vmem:[%s4 + $0x14] sm:$0xf]
        %v3099 = vld [vmem:[%s4 + $0x18] sm:$0xff]
        %v3100 = vld [vmem:[%s4 + $0x20] sm:$0xf]
        %v3101 = vld [vmem:[%s4 + $0x24] sm:$0xff]
        %v3102 = vld [vmem:[%s4 + $0x2c] sm:$0xf]
        %v3103 = vld [vmem:[%s5] sm:$0xff]
        %v3104 = vld [vmem:[%s5 + $0x8] sm:$0xff]
        %v3105 = vld [vmem:[%s5 + $0x10] sm:$0xff]
        %v3106 = vld [vmem:[%s5 + $0x18] sm:$0xff]
        %3108 = vset.pattern.permute.xlu0 0
        %3109 = vperm.xlu0 %3108, %v3103
        %v3110 = vpop.permute.xlu0 %3109
        %3113 = vset.pattern.permute.xlu0 0
        %3114 = vperm.xlu0 %3113, %v3104
        %v3115 = vpop.permute.xlu0 %3114
        %3118 = vset.pattern.permute.xlu0 0
        %3119 = vperm.xlu0 %3118, %v3105
        %v3120 = vpop.permute.xlu0 %3119
        %3123 = vset.pattern.permute.xlu0 0
        %3124 = vperm.xlu0 %3123, %v3106
        %v3125 = vpop.permute.xlu0 %3124
        %v3135 = vunpack.c.l.b16 %v3095
        %v3136 = vunpack.c.h.b16 %v3095
        %v3137 = vunpack.c.l.b16 %v3096
        %v3138 = vunpack.c.l.b16 %v3097
        %v3139 = vunpack.c.h.b16 %v3097
        %v3140 = vunpack.c.l.b16 %v3098
        %v3141 = vunpack.c.l.b16 %v3099
        %v3142 = vunpack.c.h.b16 %v3099
        %v3143 = vunpack.c.l.b16 %v3100
        %v3144 = vunpack.c.l.b16 %v3101
        %v3145 = vunpack.c.h.b16 %v3101
        %v3146 = vunpack.c.l.b16 %v3102
        %v3147 = vpack.c.b16 %v3138, %v3135
        %v3148 = vpack.c.b16 %v3139, %v3136
        %v3149 = vpack.c.b16 %v3140, %v3137
        %v3150 = vpack.c.b16 %v3144, %v3141
        %v3151 = vpack.c.b16 %v3145, %v3142
        %v3152 = vpack.c.b16 %v3146, %v3143
        %3157 = vrot.lane.b32.xlu0 %v2837, 23
        %v3158 = vpop.permute.xlu0 %3157
        %3159 = vrot.lane.b32.xlu0 %v2838, 23
        %v3160 = vpop.permute.xlu0 %3159
        %3161 = vrot.lane.b32.xlu0 %v2839, 23
        %v3162 = vpop.permute.xlu0 %3161
        %3163 = vrot.lane.b32.xlu0 %v2840, 23
        %v3164 = vpop.permute.xlu0 %3163
        %3165 = vrot.lane.b32.xlu0 %v2841, 23
        %v3166 = vpop.permute.xlu0 %3165
        %3167 = vrot.lane.b32.xlu0 %v2842, 23
        %v3168 = vpop.permute.xlu0 %3167
        %3169 = vrot.lane.b32.xlu0 %v2843, 23
        %v3170 = vpop.permute.xlu0 %3169
        %3171 = vrot.lane.b32.xlu0 %v2844, 23
        %v3172 = vpop.permute.xlu0 %3171
        %3173 = vrot.lane.b32.xlu0 %v2845, 23
        %v3174 = vpop.permute.xlu0 %3173
        %3175 = vrot.lane.b32.xlu0 %v2846, 23
        %v3176 = vpop.permute.xlu0 %3175
        %3177 = vrot.lane.b32.xlu0 %v2887, 23
        %v3178 = vpop.permute.xlu0 %3177
        %3179 = vrot.lane.b32.xlu0 %v2888, 23
        %v3180 = vpop.permute.xlu0 %3179
        %3181 = vrot.lane.b32.xlu0 %v2889, 23
        %v3182 = vpop.permute.xlu0 %3181
        %3183 = vrot.lane.b32.xlu0 %v2890, 23
        %v3184 = vpop.permute.xlu0 %3183
        %3185 = vrot.lane.b32.xlu0 %v2876, 23
        %v3186 = vpop.permute.xlu0 %3185
        %3187 = vrot.lane.b32.xlu0 %v2891, 23
        %v3188 = vpop.permute.xlu0 %3187
        %3189 = vrot.lane.b32.xlu0 %v2892, 23
        %v3190 = vpop.permute.xlu0 %3189
        %3191 = vrot.lane.b32.xlu0 %v2893, 23
        %v3192 = vpop.permute.xlu0 %3191
        %3193 = vrot.lane.b32.xlu0 %v2894, 23
        %v3194 = vpop.permute.xlu0 %3193
        %3195 = vrot.lane.b32.xlu0 %v2886, 23
        %v3196 = vpop.permute.xlu0 %3195
        %3197 = vrot.lane.b32.xlu0 %v2915, 23
        %v3198 = vpop.permute.xlu0 %3197
        %3199 = vrot.lane.b32.xlu0 %v2916, 23
        %v3200 = vpop.permute.xlu0 %3199
        %3201 = vrot.lane.b32.xlu0 %v2917, 23
        %v3202 = vpop.permute.xlu0 %3201
        %3203 = vrot.lane.b32.xlu0 %v2918, 23
        %v3204 = vpop.permute.xlu0 %3203
        %3205 = vrot.lane.b32.xlu0 %v2904, 23
        %v3206 = vpop.permute.xlu0 %3205
        %3207 = vrot.lane.b32.xlu0 %v2919, 23
        %v3208 = vpop.permute.xlu0 %3207
        %3209 = vrot.lane.b32.xlu0 %v2920, 23
        %v3210 = vpop.permute.xlu0 %3209
        %3211 = vrot.lane.b32.xlu0 %v2921, 23
        %v3212 = vpop.permute.xlu0 %3211
        %3213 = vrot.lane.b32.xlu0 %v2922, 23
        %v3214 = vpop.permute.xlu0 %3213
        %3215 = vrot.lane.b32.xlu0 %v2914, 23
        %v3216 = vpop.permute.xlu0 %3215
        %3217 = vrot.lane.b32.xlu0 %v2943, 23
        %v3218 = vpop.permute.xlu0 %3217
        %3219 = vrot.lane.b32.xlu0 %v2944, 23
        %v3220 = vpop.permute.xlu0 %3219
        %3221 = vrot.lane.b32.xlu0 %v2945, 23
        %v3222 = vpop.permute.xlu0 %3221
        %3223 = vrot.lane.b32.xlu0 %v2946, 23
        %v3224 = vpop.permute.xlu0 %3223
        %3225 = vrot.lane.b32.xlu0 %v2932, 23
        %v3226 = vpop.permute.xlu0 %3225
        %3227 = vrot.lane.b32.xlu0 %v2947, 23
        %v3228 = vpop.permute.xlu0 %3227
        %3229 = vrot.lane.b32.xlu0 %v2948, 23
        %v3230 = vpop.permute.xlu0 %3229
        %3231 = vrot.lane.b32.xlu0 %v2949, 23
        %v3232 = vpop.permute.xlu0 %3231
        %3233 = vrot.lane.b32.xlu0 %v2950, 23
        %v3234 = vpop.permute.xlu0 %3233
        %3235 = vrot.lane.b32.xlu0 %v2942, 23
        %v3236 = vpop.permute.xlu0 %3235
        %3237 = vrot.lane.b32.xlu0 %v2952, 23
        %v3238 = vpop.permute.xlu0 %3237
        %3239 = vrot.lane.b32.xlu0 %v2967, 23
        %v3240 = vpop.permute.xlu0 %3239
        %3241 = vrot.lane.b32.xlu0 %v2968, 23
        %v3242 = vpop.permute.xlu0 %3241
        %3243 = vrot.lane.b32.xlu0 %v2969, 23
        %v3244 = vpop.permute.xlu0 %3243
        %3245 = vrot.lane.b32.xlu0 %v2958, 23
        %v3246 = vpop.permute.xlu0 %3245
        %3247 = vrot.lane.b32.xlu0 %v2960, 23
        %v3248 = vpop.permute.xlu0 %3247
        %3249 = vrot.lane.b32.xlu0 %v2970, 23
        %v3250 = vpop.permute.xlu0 %3249
        %3251 = vrot.lane.b32.xlu0 %v2971, 23
        %v3252 = vpop.permute.xlu0 %3251
        %3253 = vrot.lane.b32.xlu0 %v2972, 23
        %v3254 = vpop.permute.xlu0 %3253
        %3255 = vrot.lane.b32.xlu0 %v2966, 23
        %v3256 = vpop.permute.xlu0 %3255
        %3257 = vrot.lane.b32.xlu0 %v2984, 23
        %v3258 = vpop.permute.xlu0 %3257
        %3259 = vrot.lane.b32.xlu0 %v3003, 23
        %v3260 = vpop.permute.xlu0 %3259
        %3261 = vrot.lane.b32.xlu0 %v3004, 23
        %v3262 = vpop.permute.xlu0 %3261
        %3263 = vrot.lane.b32.xlu0 %v3005, 23
        %v3264 = vpop.permute.xlu0 %3263
        %3265 = vrot.lane.b32.xlu0 %v3006, 23
        %v3266 = vpop.permute.xlu0 %3265
        %3267 = vrot.lane.b32.xlu0 %v2994, 23
        %v3268 = vpop.permute.xlu0 %3267
        %3269 = vrot.lane.b32.xlu0 %v3007, 23
        %v3270 = vpop.permute.xlu0 %3269
        %3271 = vrot.lane.b32.xlu0 %v3008, 23
        %v3272 = vpop.permute.xlu0 %3271
        %3273 = vrot.lane.b32.xlu0 %v3009, 23
        %v3274 = vpop.permute.xlu0 %3273
        %3275 = vrot.lane.b32.xlu0 %v3010, 23
        %v3276 = vpop.permute.xlu0 %3275
        %3277 = vrot.lane.b32.xlu0 %v3012, 23
        %v3278 = vpop.permute.xlu0 %3277
        %3279 = vrot.lane.b32.xlu0 %v3031, 23
        %v3280 = vpop.permute.xlu0 %3279
        %3281 = vrot.lane.b32.xlu0 %v3032, 23
        %v3282 = vpop.permute.xlu0 %3281
        %3283 = vrot.lane.b32.xlu0 %v3033, 23
        %v3284 = vpop.permute.xlu0 %3283
        %3285 = vrot.lane.b32.xlu0 %v3034, 23
        %v3286 = vpop.permute.xlu0 %3285
        %3287 = vrot.lane.b32.xlu0 %v3022, 23
        %v3288 = vpop.permute.xlu0 %3287
        %3289 = vrot.lane.b32.xlu0 %v3035, 23
        %v3290 = vpop.permute.xlu0 %3289
        %3291 = vrot.lane.b32.xlu0 %v3036, 23
        %v3292 = vpop.permute.xlu0 %3291
        %3293 = vrot.lane.b32.xlu0 %v3037, 23
        %v3294 = vpop.permute.xlu0 %3293
        %3295 = vrot.lane.b32.xlu0 %v3038, 23
        %v3296 = vpop.permute.xlu0 %3295
        %3297 = vrot.lane.b32.xlu0 %v3040, 23
        %v3298 = vpop.permute.xlu0 %3297
        %3299 = vrot.lane.b32.xlu0 %v3059, 23
        %v3300 = vpop.permute.xlu0 %3299
        %3301 = vrot.lane.b32.xlu0 %v3060, 23
        %v3302 = vpop.permute.xlu0 %3301
        %3303 = vrot.lane.b32.xlu0 %v3061, 23
        %v3304 = vpop.permute.xlu0 %3303
        %3305 = vrot.lane.b32.xlu0 %v3062, 23
        %v3306 = vpop.permute.xlu0 %3305
        %3307 = vrot.lane.b32.xlu0 %v3050, 23
        %v3308 = vpop.permute.xlu0 %3307
        %3309 = vrot.lane.b32.xlu0 %v3063, 23
        %v3310 = vpop.permute.xlu0 %3309
        %3311 = vrot.lane.b32.xlu0 %v3064, 23
        %v3312 = vpop.permute.xlu0 %3311
        %3313 = vrot.lane.b32.xlu0 %v3065, 23
        %v3314 = vpop.permute.xlu0 %3313
        %3315 = vrot.lane.b32.xlu0 %v3066, 23
        %v3316 = vpop.permute.xlu0 %3315
        %3317 = vrot.lane.b32.xlu0 %v3068, 23
        %v3318 = vpop.permute.xlu0 %3317
        %3319 = vrot.lane.b32.xlu0 %v3087, 23
        %v3320 = vpop.permute.xlu0 %3319
        %3321 = vrot.lane.b32.xlu0 %v3088, 23
        %v3322 = vpop.permute.xlu0 %3321
        %3323 = vrot.lane.b32.xlu0 %v3089, 23
        %v3324 = vpop.permute.xlu0 %3323
        %3325 = vrot.lane.b32.xlu0 %v3090, 23
        %v3326 = vpop.permute.xlu0 %3325
        %3327 = vrot.lane.b32.xlu0 %v3078, 23
        %v3328 = vpop.permute.xlu0 %3327
        %3329 = vrot.lane.b32.xlu0 %v3091, 23
        %v3330 = vpop.permute.xlu0 %3329
        %3331 = vrot.lane.b32.xlu0 %v3092, 23
        %v3332 = vpop.permute.xlu0 %3331
        %3333 = vrot.lane.b32.xlu0 %v3093, 23
        %v3334 = vpop.permute.xlu0 %3333
        %3335 = vrot.lane.b32.xlu0 %v3094, 23
        %v3336 = vpop.permute.xlu0 %3335
        %vm3337 = vcmask 187392
        %v3338 = vsel %vm3337, %v3158, %v3160
        %v3339 = vsel %vm3337, %v3160, %v3162
        %v3340 = vsel %vm3337, %v3162, %v3164
        %v3341 = vsel %vm3337, %v3164, %v3166
        %v3342 = vsel %vm3337, %v3168, %v3170
        %v3343 = vsel %vm3337, %v3170, %v3172
        %v3344 = vsel %vm3337, %v3172, %v3174
        %v3345 = vsel %vm3337, %v3174, %v3176
        %v3346 = vsel %vm3337, %v3178, %v3180
        %v3347 = vsel %vm3337, %v3180, %v3182
        %v3348 = vsel %vm3337, %v3182, %v3184
        %v3349 = vsel %vm3337, %v3184, %v3186
        %v3350 = vsel %vm3337, %v3188, %v3190
        %v3351 = vsel %vm3337, %v3190, %v3192
        %v3352 = vsel %vm3337, %v3192, %v3194
        %v3353 = vsel %vm3337, %v3194, %v3196
        %v3354 = vsel %vm3337, %v3198, %v3200
        %v3355 = vsel %vm3337, %v3200, %v3202
        %v3356 = vsel %vm3337, %v3202, %v3204
        %v3357 = vsel %vm3337, %v3204, %v3206
        %v3358 = vsel %vm3337, %v3208, %v3210
        %v3359 = vsel %vm3337, %v3210, %v3212
        %v3360 = vsel %vm3337, %v3212, %v3214
        %v3361 = vsel %vm3337, %v3214, %v3216
        %v3362 = vsel %vm3337, %v3218, %v3220
        %v3363 = vsel %vm3337, %v3220, %v3222
        %v3364 = vsel %vm3337, %v3222, %v3224
        %v3365 = vsel %vm3337, %v3224, %v3226
        %v3366 = vsel %vm3337, %v3228, %v3230
        %v3367 = vsel %vm3337, %v3230, %v3232
        %v3368 = vsel %vm3337, %v3232, %v3234
        %v3369 = vsel %vm3337, %v3234, %v3236
        %v3370 = vsel %vm3337, %v3238, %v3240
        %v3371 = vsel %vm3337, %v3240, %v3242
        %v3372 = vsel %vm3337, %v3242, %v3244
        %v3373 = vsel %vm3337, %v3244, %v3246
        %v3374 = vsel %vm3337, %v3248, %v3250
        %v3375 = vsel %vm3337, %v3250, %v3252
        %v3376 = vsel %vm3337, %v3252, %v3254
        %v3377 = vsel %vm3337, %v3254, %v3256
        %v3378 = vsel %vm3337, %v3258, %v3260
        %v3379 = vsel %vm3337, %v3260, %v3262
        %v3380 = vsel %vm3337, %v3262, %v3264
        %v3381 = vsel %vm3337, %v3264, %v3266
        %v3382 = vsel %vm3337, %v3268, %v3270
        %v3383 = vsel %vm3337, %v3270, %v3272
        %v3384 = vsel %vm3337, %v3272, %v3274
        %v3385 = vsel %vm3337, %v3274, %v3276
        %v3386 = vsel %vm3337, %v3278, %v3280
        %v3387 = vsel %vm3337, %v3280, %v3282
        %v3388 = vsel %vm3337, %v3282, %v3284
        %v3389 = vsel %vm3337, %v3284, %v3286
        %v3390 = vsel %vm3337, %v3288, %v3290
        %v3391 = vsel %vm3337, %v3290, %v3292
        %v3392 = vsel %vm3337, %v3292, %v3294
        %v3393 = vsel %vm3337, %v3294, %v3296
        %v3394 = vsel %vm3337, %v3298, %v3300
        %v3395 = vsel %vm3337, %v3300, %v3302
        %v3396 = vsel %vm3337, %v3302, %v3304
        %v3397 = vsel %vm3337, %v3304, %v3306
        %v3398 = vsel %vm3337, %v3308, %v3310
        %v3399 = vsel %vm3337, %v3310, %v3312
        %v3400 = vsel %vm3337, %v3312, %v3314
        %v3401 = vsel %vm3337, %v3314, %v3316
        %v3402 = vsel %vm3337, %v3318, %v3320
        %v3403 = vsel %vm3337, %v3320, %v3322
        %v3404 = vsel %vm3337, %v3322, %v3324
        %v3405 = vsel %vm3337, %v3324, %v3326
        %v3406 = vsel %vm3337, %v3328, %v3330
        %v3407 = vsel %vm3337, %v3330, %v3332
        %v3408 = vsel %vm3337, %v3332, %v3334
        %v3409 = vsel %vm3337, %v3334, %v3336
        %vm3482 = vcmask 261120
        %v3484 = vsel %vm3482, %v3149, 0
        %v3487 = vsel %vm3482, %v3152, 0
        %3489 = vmatprep.subr.bf16.mxu0 %v3339
        %3490 = vmatpush1.bf16.msra.mxu0 %v3338
        %3491 = vmatprep.subr.bf16.mxu0 %v3343
        %3492 = vmatpush1.bf16.msra.mxu0 %v3342
        %3493 = vmatprep.subr.bf16.mxu0 %v3347
        %3494 = vmatpush1.bf16.msra.mxu0 %v3346
        %3495 = vmatprep.subr.bf16.mxu0 %v3351
        %3496 = vmatpush1.bf16.msra.mxu0 %v3350
        %3497 = vmatprep.subr.bf16.mxu0 %v3355
        %3498 = vmatpush1.bf16.msra.mxu0 %v3354
        %3499 = vmatprep.subr.bf16.mxu0 %v3359
        %3500 = vmatpush1.bf16.msra.mxu0 %v3358
        %3501 = vmatprep.subr.bf16.mxu0 %v3363
        %3502 = vmatpush1.bf16.msra.mxu0 %v3362
        %3503 = vmatprep.subr.bf16.mxu0 %v3367
        %3504 = vmatpush1.bf16.msra.mxu0 %v3366
        %3505 = vmatprep.subr.bf16.mxu0 %v3371
        %3506 = vmatpush1.bf16.msra.mxu0 %v3370
        %3507 = vmatprep.subr.bf16.mxu0 %v3375
        %3508 = vmatpush1.bf16.msra.mxu0 %v3374
        %3509 = vmatprep.subr.bf16.mxu0 %v3379
        %3510 = vmatpush1.bf16.msra.mxu0 %v3378
        %3511 = vmatprep.subr.bf16.mxu0 %v3383
        %3512 = vmatpush1.bf16.msra.mxu0 %v3382
        %3513 = vmatprep.subr.bf16.mxu0 %v3387
        %3514 = vmatpush1.bf16.msra.mxu0 %v3386
        %3515 = vmatprep.subr.bf16.mxu0 %v3391
        %3516 = vmatpush1.bf16.msra.mxu0 %v3390
        %3517 = vmatprep.subr.bf16.mxu0 %v3395
        %3518 = vmatpush1.bf16.msra.mxu0 %v3394
        %3519 = vmatprep.subr.bf16.mxu0 %v3399
        %3520 = vmatpush1.bf16.msra.mxu0 %v3398
        %3521 = vmatprep.mubr.bf16.mxu0 %v3148
        %3522 = vmatmul.mubr.bf16.gmra.mrb[0].mxu0 %v3147
        %v3523 = vpop.f32.mrb[0].mxu0
        %v3524 = vadd.f32 %v3110, %v3523
        %v3525 = vpop.f32.mrb[0].mxu0
        %v3526 = vadd.f32 %v3110, %v3525
        %v3527 = vpop.f32.mrb[0].mxu0
        %v3528 = vadd.f32 %v3115, %v3527
        %v3529 = vpop.f32.mrb[0].mxu0
        %v3530 = vadd.f32 %v3115, %v3529
        %3531 = vmatprep.mubr.bf16.mxu0 %v3151
        %3532 = vmatmul.mubr.bf16.gmra.mrb[0].mxu0 %v3150
        %v3533 = vpop.f32.mrb[0].mxu0
        %v3534 = vadd.f32 %v3120, %v3533
        %v3535 = vpop.f32.mrb[0].mxu0
        %v3536 = vadd.f32 %v3120, %v3535
        %v3537 = vpop.f32.mrb[0].mxu0
        %v3538 = vadd.f32 %v3125, %v3537
        %v3539 = vpop.f32.mrb[0].mxu0
        %v3540 = vadd.f32 %v3125, %v3539
        %3541 = vdwg.mxu0
        %3542 = vmatprep.subr.bf16.mxu0 %v3403
        %3543 = vmatpush1.bf16.msra.mxu0 %v3402
        %3544 = vmatprep.subr.bf16.mxu0 %v3407
        %3545 = vmatpush1.bf16.msra.mxu0 %v3406
        %3546 = vmatprep.subr.bf16.mxu0 0
        %3547 = vmatpush1.bf16.msra.mxu0 0
        %3548 = vmatprep.subr.bf16.mxu0 0
        %3549 = vmatpush1.bf16.msra.mxu0 0
        %3550 = vmatprep.subr.bf16.mxu0 0
        %3551 = vmatpush1.bf16.msra.mxu0 0
        %3552 = vmatprep.subr.bf16.mxu0 0
        %3553 = vmatpush1.bf16.msra.mxu0 0
        %3554 = vmatprep.subr.bf16.mxu0 0
        %3555 = vmatpush1.bf16.msra.mxu0 0
        %3556 = vmatprep.subr.bf16.mxu0 0
        %3557 = vmatpush1.bf16.msra.mxu0 0
        %3558 = vmatprep.subr.bf16.mxu0 0
        %3559 = vmatpush1.bf16.msra.mxu0 0
        %3560 = vmatprep.subr.bf16.mxu0 0
        %3561 = vmatpush1.bf16.msra.mxu0 0
        %3562 = vmatprep.subr.bf16.mxu0 0
        %3563 = vmatpush1.bf16.msra.mxu0 0
        %3564 = vmatprep.subr.bf16.mxu0 0
        %3565 = vmatpush1.bf16.msra.mxu0 0
        %3566 = vmatprep.subr.bf16.mxu0 0
        %3567 = vmatpush1.bf16.msra.mxu0 0
        %3568 = vmatprep.subr.bf16.mxu0 0
        %3569 = vmatpush1.bf16.msra.mxu0 0
        %3570 = vmatprep.subr.bf16.mxu0 0
        %3571 = vmatpush1.bf16.msra.mxu0 0
        %3572 = vmatprep.subr.bf16.mxu0 0
        %3573 = vmatpush1.bf16.msra.mxu0 0
        %3574 = vmatprep.mubr.bf16.mxu0 0
        %3575 = vmatmul.mubr.bf16.gmra.mrb[0].mxu0 %v3484
        %v3576 = vpop.f32.mrb[0].mxu0
        %v3577 = vadd.f32 %v3524, %v3576
        %v3578 = vpop.f32.mrb[0].mxu0
        %v3579 = vadd.f32 %v3526, %v3578
        %v3580 = vpop.f32.mrb[0].mxu0
        %v3581 = vadd.f32 %v3528, %v3580
        %v3582 = vpop.f32.mrb[0].mxu0
        %v3583 = vadd.f32 %v3530, %v3582
        %3584 = vmatprep.mubr.bf16.mxu0 0
        %3585 = vmatmul.mubr.bf16.gmra.mrb[0].mxu0 %v3487
        %v3586 = vpop.f32.mrb[0].mxu0
        %v3587 = vadd.f32 %v3534, %v3586
        %v3588 = vpop.f32.mrb[0].mxu0
        %v3589 = vadd.f32 %v3536, %v3588
        %v3590 = vpop.f32.mrb[0].mxu0
        %v3591 = vadd.f32 %v3538, %v3590
        %v3592 = vpop.f32.mrb[0].mxu0
        %v3593 = vadd.f32 %v3540, %v3592
        %3594 = vdwg.mxu0
        %3595 = vmatprep.subr.bf16.mxu0 %v3341
        %3596 = vmatpush1.bf16.msra.mxu0 %v3340
        %3597 = vmatprep.subr.bf16.mxu0 %v3345
        %3598 = vmatpush1.bf16.msra.mxu0 %v3344
        %3599 = vmatprep.subr.bf16.mxu0 %v3349
        %3600 = vmatpush1.bf16.msra.mxu0 %v3348
        %3601 = vmatprep.subr.bf16.mxu0 %v3353
        %3602 = vmatpush1.bf16.msra.mxu0 %v3352
        %3603 = vmatprep.subr.bf16.mxu0 %v3357
        %3604 = vmatpush1.bf16.msra.mxu0 %v3356
        %3605 = vmatprep.subr.bf16.mxu0 %v3361
        %3606 = vmatpush1.bf16.msra.mxu0 %v3360
        %3607 = vmatprep.subr.bf16.mxu0 %v3365
        %3608 = vmatpush1.bf16.msra.mxu0 %v3364
        %3609 = vmatprep.subr.bf16.mxu0 %v3369
        %3610 = vmatpush1.bf16.msra.mxu0 %v3368
        %3611 = vmatprep.subr.bf16.mxu0 %v3373
        %3612 = vmatpush1.bf16.msra.mxu0 %v3372
        %3613 = vmatprep.subr.bf16.mxu0 %v3377
        %3614 = vmatpush1.bf16.msra.mxu0 %v3376
        %3615 = vmatprep.subr.bf16.mxu0 %v3381
        %3616 = vmatpush1.bf16.msra.mxu0 %v3380
        %3617 = vmatprep.subr.bf16.mxu0 %v3385
        %3618 = vmatpush1.bf16.msra.mxu0 %v3384
        %3619 = vmatprep.subr.bf16.mxu0 %v3389
        %3620 = vmatpush1.bf16.msra.mxu0 %v3388
        %3621 = vmatprep.subr.bf16.mxu0 %v3393
        %3622 = vmatpush1.bf16.msra.mxu0 %v3392
        %3623 = vmatprep.subr.bf16.mxu0 %v3397
        %3624 = vmatpush1.bf16.msra.mxu0 %v3396
        %3625 = vmatprep.subr.bf16.mxu0 %v3401
        %3626 = vmatpush1.bf16.msra.mxu0 %v3400
        %3627 = vmatprep.mubr.bf16.mxu0 %v3148
        %3628 = vmatmul.mubr.bf16.gmra.mrb[0].mxu0 %v3147
        %v3629 = vpop.f32.mrb[0].mxu0
        %v3630 = vadd.f32 %v3110, %v3629
        %v3631 = vpop.f32.mrb[0].mxu0
        %v3632 = vadd.f32 %v3110, %v3631
        %v3633 = vpop.f32.mrb[0].mxu0
        %v3634 = vadd.f32 %v3115, %v3633
        %v3635 = vpop.f32.mrb[0].mxu0
        %v3636 = vadd.f32 %v3115, %v3635
        %3637 = vmatprep.mubr.bf16.mxu0 %v3151
        %3638 = vmatmul.mubr.bf16.gmra.mrb[0].mxu0 %v3150
        %v3639 = vpop.f32.mrb[0].mxu0
        %v3640 = vadd.f32 %v3120, %v3639
        %v3641 = vpop.f32.mrb[0].mxu0
        %v3642 = vadd.f32 %v3120, %v3641
        %v3643 = vpop.f32.mrb[0].mxu0
        %v3644 = vadd.f32 %v3125, %v3643
        %v3645 = vpop.f32.mrb[0].mxu0
        %v3646 = vadd.f32 %v3125, %v3645
        %3647 = vdwg.mxu0
        %3648 = vmatprep.subr.bf16.mxu0 %v3405
        %3649 = vmatpush1.bf16.msra.mxu0 %v3404
        %3650 = vmatprep.subr.bf16.mxu0 %v3409
        %3651 = vmatpush1.bf16.msra.mxu0 %v3408
        %3652 = vmatprep.subr.bf16.mxu0 0
        %3653 = vmatpush1.bf16.msra.mxu0 0
        %3654 = vmatprep.subr.bf16.mxu0 0
        %3655 = vmatpush1.bf16.msra.mxu0 0
        %3656 = vmatprep.subr.bf16.mxu0 0
        %3657 = vmatpush1.bf16.msra.mxu0 0
        %3658 = vmatprep.subr.bf16.mxu0 0
        %3659 = vmatpush1.bf16.msra.mxu0 0
        %3660 = vmatprep.subr.bf16.mxu0 0
        %3661 = vmatpush1.bf16.msra.mxu0 0
        %3662 = vmatprep.subr.bf16.mxu0 0
        %3663 = vmatpush1.bf16.msra.mxu0 0
        %3664 = vmatprep.subr.bf16.mxu0 0
        %3665 = vmatpush1.bf16.msra.mxu0 0
        %3666 = vmatprep.subr.bf16.mxu0 0
        %3667 = vmatpush1.bf16.msra.mxu0 0
        %3668 = vmatprep.subr.bf16.mxu0 0
        %3669 = vmatpush1.bf16.msra.mxu0 0
        %3670 = vmatprep.subr.bf16.mxu0 0
        %3671 = vmatpush1.bf16.msra.mxu0 0
        %3672 = vmatprep.subr.bf16.mxu0 0
        %3673 = vmatpush1.bf16.msra.mxu0 0
        %3674 = vmatprep.subr.bf16.mxu0 0
        %3675 = vmatpush1.bf16.msra.mxu0 0
        %3676 = vmatprep.subr.bf16.mxu0 0
        %3677 = vmatpush1.bf16.msra.mxu0 0
        %3678 = vmatprep.subr.bf16.mxu0 0
        %3679 = vmatpush1.bf16.msra.mxu0 0
        %3680 = vmatprep.mubr.bf16.mxu0 0
        %3681 = vmatmul.mubr.bf16.gmra.mrb[0].mxu0 %v3484
        %v3682 = vpop.f32.mrb[0].mxu0
        %v3683 = vadd.f32 %v3630, %v3682
        %v3684 = vpop.f32.mrb[0].mxu0
        %v3685 = vadd.f32 %v3632, %v3684
        %v3686 = vpop.f32.mrb[0].mxu0
        %v3687 = vadd.f32 %v3634, %v3686
        %v3688 = vpop.f32.mrb[0].mxu0
        %v3689 = vadd.f32 %v3636, %v3688
        %3690 = vmatprep.mubr.bf16.mxu0 0
        %3691 = vmatmul.mubr.bf16.gmra.mrb[0].mxu0 %v3487
        %v3692 = vpop.f32.mrb[0].mxu0
        %v3693 = vadd.f32 %v3640, %v3692
        %v3694 = vpop.f32.mrb[0].mxu0
        %v3695 = vadd.f32 %v3642, %v3694
        %v3696 = vpop.f32.mrb[0].mxu0
        %v3697 = vadd.f32 %v3644, %v3696
        %v3698 = vpop.f32.mrb[0].mxu0
        %v3699 = vadd.f32 %v3646, %v3698
        %3700 = vdwg.mxu0
        %v3701 = vmax.f32 %v3577, 0.0
        %v3702 = vmax.f32 %v3579, 0.0
        %v3703 = vmax.f32 %v3683, 0.0
        %v3704 = vmax.f32 %v3685, 0.0
        %v3705 = vmax.f32 %v3581, 0.0
        %v3706 = vmax.f32 %v3583, 0.0
        %v3707 = vmax.f32 %v3687, 0.0
        %v3708 = vmax.f32 %v3689, 0.0
        %v3709 = vmax.f32 %v3587, 0.0
        %v3710 = vmax.f32 %v3589, 0.0
        %v3711 = vmax.f32 %v3693, 0.0
        %v3712 = vmax.f32 %v3695, 0.0
        %v3713 = vmax.f32 %v3591, 0.0
        %v3714 = vmax.f32 %v3593, 0.0
        %v3715 = vmax.f32 %v3697, 0.0
        %v3716 = vmax.f32 %v3699, 0.0
        %v3717 = vmul.f32 %v3701, %v2788
        %v3718 = vmul.f32 %v3702, %v2792
        %v3719 = vmul.f32 %v3703, %v2796
        %v3720 = vmul.f32 %v3704, %v2800
        %v3721 = vmul.f32 %v3705, %v2788
        %v3722 = vmul.f32 %v3706, %v2792
        %v3723 = vmul.f32 %v3707, %v2796
        %v3724 = vmul.f32 %v3708, %v2800
        %v3725 = vmul.f32 %v3709, %v2788
        %v3726 = vmul.f32 %v3710, %v2792
        %v3727 = vmul.f32 %v3711, %v2796
        %v3728 = vmul.f32 %v3712, %v2800
        %v3729 = vmul.f32 %v3713, %v2788
        %v3730 = vmul.f32 %v3714, %v2792
        %v3731 = vmul.f32 %v3715, %v2796
        %v3732 = vmul.f32 %v3716, %v2800
        %v3733 = vpack.c.bf16 %v3721, %v3717
        %v3734 = vpack.c.bf16 %v3722, %v3718
        %v3735 = vpack.c.bf16 %v3723, %v3719
        %v3736 = vpack.c.bf16 %v3724, %v3720
        %v3737 = vpack.c.bf16 %v3729, %v3725
        %v3738 = vpack.c.bf16 %v3730, %v3726
        %v3739 = vpack.c.bf16 %v3731, %v3727
        %v3740 = vpack.c.bf16 %v3732, %v3728
        %3741 = vst [vmem:[#allocation3 + $0x8] sm:$0xff] %v3733
        %3742 = vst [vmem:[#allocation3 + $0x10] sm:$0xff] %v3734
        %3743 = vst [vmem:[#allocation3 + $0x18] sm:$0xff] %v3735
        %3744 = vst [vmem:[#allocation3 + $0x20] sm:$0xff] %v3736
        %3745 = vst [vmem:[#allocation3 + $0x38] sm:$0xff] %v3737
        %3746 = vst [vmem:[#allocation3 + $0x40] sm:$0xff] %v3738
        %3747 = vst [vmem:[#allocation3 + $0x48] sm:$0xff] %v3739
        %3748 = vst [vmem:[#allocation3 + $0x50] sm:$0xff] %v3740
        %v3749 = vld [vmem:[#allocation3] sm:$0xff]
        %v3750 = vld [vmem:[#allocation3 + $0x8] sm:$0xff]
        %v3751 = vld [vmem:[#allocation3 + $0x10] sm:$0xff]
        %v3752 = vld [vmem:[#allocation3 + $0x18] sm:$0xff]
        %v3753 = vld [vmem:[#allocation3 + $0x20] sm:$0xff]
        %v3754 = vld [vmem:[#allocation3 + $0x30] sm:$0xff]
        %v3755 = vld [vmem:[#allocation3 + $0x38] sm:$0xff]
        %v3756 = vld [vmem:[#allocation3 + $0x40] sm:$0xff]
        %v3757 = vld [vmem:[#allocation3 + $0x48] sm:$0xff]
        %v3758 = vld [vmem:[#allocation3 + $0x50] sm:$0xff]
        %v3759 = vld [vmem:[#allocation3 + $0x8] sm:$0xff]
        %v3760 = vld [vmem:[#allocation3 + $0x10] sm:$0xff]
        %v3761 = vld [vmem:[#allocation3 + $0x18] sm:$0xff]
        %v3762 = vld [vmem:[#allocation3 + $0x20] sm:$0xff]
        %v3763 = vld [vmem:[#allocation3 + $0x28] sm:$0xff]
        %v3764 = vld [vmem:[#allocation3 + $0x38] sm:$0xff]
        %v3765 = vld [vmem:[#allocation3 + $0x40] sm:$0xff]
        %v3766 = vld [vmem:[#allocation3 + $0x48] sm:$0xff]
        %v3767 = vld [vmem:[#allocation3 + $0x50] sm:$0xff]
        %v3768 = vld [vmem:[#allocation3 + $0x58] sm:$0xff]
        %3779 = vrot.lane.b32.xlu0 %v3749, 127
        %v3780 = vpop.permute.xlu0 %3779
        %3781 = vrot.lane.b32.xlu0 %v3750, 127
        %v3782 = vpop.permute.xlu0 %3781
        %3783 = vrot.lane.b32.xlu0 %v3751, 127
        %v3784 = vpop.permute.xlu0 %3783
        %3785 = vrot.lane.b32.xlu0 %v3752, 127
        %v3786 = vpop.permute.xlu0 %3785
        %3787 = vrot.lane.b32.xlu0 %v3753, 127
        %v3788 = vpop.permute.xlu0 %3787
        %3789 = vrot.lane.b32.xlu0 %v3754, 127
        %v3790 = vpop.permute.xlu0 %3789
        %3791 = vrot.lane.b32.xlu0 %v3755, 127
        %v3792 = vpop.permute.xlu0 %3791
        %3793 = vrot.lane.b32.xlu0 %v3756, 127
        %v3794 = vpop.permute.xlu0 %3793
        %3795 = vrot.lane.b32.xlu0 %v3757, 127
        %v3796 = vpop.permute.xlu0 %3795
        %3797 = vrot.lane.b32.xlu0 %v3758, 127
        %v3798 = vpop.permute.xlu0 %3797
        %v3799 = vsel %vm401, %v3780, %v3782
        %v3800 = vsel %vm401, %v3782, %v3784
        %v3801 = vsel %vm401, %v3784, %v3786
        %v3802 = vsel %vm401, %v3786, %v3788
        %v3803 = vsel %vm401, %v3790, %v3792
        %v3804 = vsel %vm401, %v3792, %v3794
        %v3805 = vsel %vm401, %v3794, %v3796
        %v3806 = vsel %vm401, %v3796, %v3798
        %3807 = vrot.lane.b32.xlu0 %v3749, 126
        %v3808 = vpop.permute.xlu0 %3807
        %3809 = vrot.lane.b32.xlu0 %v3750, 126
        %v3810 = vpop.permute.xlu0 %3809
        %3811 = vrot.lane.b32.xlu0 %v3751, 126
        %v3812 = vpop.permute.xlu0 %3811
        %3813 = vrot.lane.b32.xlu0 %v3752, 126
        %v3814 = vpop.permute.xlu0 %3813
        %3815 = vrot.lane.b32.xlu0 %v3753, 126
        %v3816 = vpop.permute.xlu0 %3815
        %3817 = vrot.lane.b32.xlu0 %v3754, 126
        %v3818 = vpop.permute.xlu0 %3817
        %3819 = vrot.lane.b32.xlu0 %v3755, 126
        %v3820 = vpop.permute.xlu0 %3819
        %3821 = vrot.lane.b32.xlu0 %v3756, 126
        %v3822 = vpop.permute.xlu0 %3821
        %3823 = vrot.lane.b32.xlu0 %v3757, 126
        %v3824 = vpop.permute.xlu0 %3823
        %3825 = vrot.lane.b32.xlu0 %v3758, 126
        %v3826 = vpop.permute.xlu0 %3825
        %v3827 = vsel %vm416, %v3808, %v3810
        %v3828 = vsel %vm416, %v3810, %v3812
        %v3829 = vsel %vm416, %v3812, %v3814
        %v3830 = vsel %vm416, %v3814, %v3816
        %v3831 = vsel %vm416, %v3818, %v3820
        %v3832 = vsel %vm416, %v3820, %v3822
        %v3833 = vsel %vm416, %v3822, %v3824
        %v3834 = vsel %vm416, %v3824, %v3826
        %3835 = vrot.lane.b32.xlu0 %v3749, 106
        %v3836 = vpop.permute.xlu0 %3835
        %3837 = vrot.lane.b32.xlu0 %v3750, 106
        %v3838 = vpop.permute.xlu0 %3837
        %3839 = vrot.lane.b32.xlu0 %v3751, 106
        %v3840 = vpop.permute.xlu0 %3839
        %3841 = vrot.lane.b32.xlu0 %v3752, 106
        %v3842 = vpop.permute.xlu0 %3841
        %3843 = vrot.lane.b32.xlu0 %v3753, 106
        %v3844 = vpop.permute.xlu0 %3843
        %3845 = vrot.lane.b32.xlu0 %v3754, 106
        %v3846 = vpop.permute.xlu0 %3845
        %3847 = vrot.lane.b32.xlu0 %v3755, 106
        %v3848 = vpop.permute.xlu0 %3847
        %3849 = vrot.lane.b32.xlu0 %v3756, 106
        %v3850 = vpop.permute.xlu0 %3849
        %3851 = vrot.lane.b32.xlu0 %v3757, 106
        %v3852 = vpop.permute.xlu0 %3851
        %3853 = vrot.lane.b32.xlu0 %v3758, 106
        %v3854 = vpop.permute.xlu0 %3853
        %v3855 = vsel %vm491, %v3836, %v3838
        %v3856 = vsel %vm491, %v3838, %v3840
        %v3857 = vsel %vm491, %v3840, %v3842
        %v3858 = vsel %vm491, %v3842, %v3844
        %v3859 = vsel %vm491, %v3846, %v3848
        %v3860 = vsel %vm491, %v3848, %v3850
        %v3861 = vsel %vm491, %v3850, %v3852
        %v3862 = vsel %vm491, %v3852, %v3854
        %3863 = vrot.lane.b32.xlu0 %v3750, 105
        %v3864 = vpop.permute.xlu0 %3863
        %3865 = vrot.lane.b32.xlu0 %v3751, 105
        %v3866 = vpop.permute.xlu0 %3865
        %3867 = vrot.lane.b32.xlu0 %v3752, 105
        %v3868 = vpop.permute.xlu0 %3867
        %3869 = vrot.lane.b32.xlu0 %v3753, 105
        %v3870 = vpop.permute.xlu0 %3869
        %3871 = vrot.lane.b32.xlu0 %v3755, 105
        %v3872 = vpop.permute.xlu0 %3871
        %3873 = vrot.lane.b32.xlu0 %v3756, 105
        %v3874 = vpop.permute.xlu0 %3873
        %3875 = vrot.lane.b32.xlu0 %v3757, 105
        %v3876 = vpop.permute.xlu0 %3875
        %3877 = vrot.lane.b32.xlu0 %v3758, 105
        %v3878 = vpop.permute.xlu0 %3877
        %v3879 = vsel %vm506, %v3864, %v3866
        %v3880 = vsel %vm506, %v3866, %v3868
        %v3881 = vsel %vm506, %v3868, %v3870
        %v3882 = vsel %vm506, %v3872, %v3874
        %v3883 = vsel %vm506, %v3874, %v3876
        %v3884 = vsel %vm506, %v3876, %v3878
        %3895 = vrot.lane.b32.xlu0 %v3759, 104
        %v3896 = vpop.permute.xlu0 %3895
        %3897 = vrot.lane.b32.xlu0 %v3760, 104
        %v3898 = vpop.permute.xlu0 %3897
        %3899 = vrot.lane.b32.xlu0 %v3761, 104
        %v3900 = vpop.permute.xlu0 %3899
        %3901 = vrot.lane.b32.xlu0 %v3762, 104
        %v3902 = vpop.permute.xlu0 %3901
        %3903 = vrot.lane.b32.xlu0 %v3763, 104
        %v3904 = vpop.permute.xlu0 %3903
        %3905 = vrot.lane.b32.xlu0 %v3764, 104
        %v3906 = vpop.permute.xlu0 %3905
        %3907 = vrot.lane.b32.xlu0 %v3765, 104
        %v3908 = vpop.permute.xlu0 %3907
        %3909 = vrot.lane.b32.xlu0 %v3766, 104
        %v3910 = vpop.permute.xlu0 %3909
        %3911 = vrot.lane.b32.xlu0 %v3767, 104
        %v3912 = vpop.permute.xlu0 %3911
        %3913 = vrot.lane.b32.xlu0 %v3768, 104
        %v3914 = vpop.permute.xlu0 %3913
        %v3915 = vsel %vm521, %v3896, %v3898
        %v3916 = vsel %vm521, %v3898, %v3900
        %v3917 = vsel %vm521, %v3900, %v3902
        %v3918 = vsel %vm521, %v3902, %v3904
        %v3919 = vsel %vm521, %v3906, %v3908
        %v3920 = vsel %vm521, %v3908, %v3910
        %v3921 = vsel %vm521, %v3910, %v3912
        %v3922 = vsel %vm521, %v3912, %v3914
        %3923 = vrot.lane.b32.xlu0 %v3759, 84
        %v3924 = vpop.permute.xlu0 %3923
        %3925 = vrot.lane.b32.xlu0 %v3760, 84
        %v3926 = vpop.permute.xlu0 %3925
        %3927 = vrot.lane.b32.xlu0 %v3761, 84
        %v3928 = vpop.permute.xlu0 %3927
        %3929 = vrot.lane.b32.xlu0 %v3762, 84
        %v3930 = vpop.permute.xlu0 %3929
        %3931 = vrot.lane.b32.xlu0 %v3763, 84
        %v3932 = vpop.permute.xlu0 %3931
        %3933 = vrot.lane.b32.xlu0 %v3764, 84
        %v3934 = vpop.permute.xlu0 %3933
        %3935 = vrot.lane.b32.xlu0 %v3765, 84
        %v3936 = vpop.permute.xlu0 %3935
        %3937 = vrot.lane.b32.xlu0 %v3766, 84
        %v3938 = vpop.permute.xlu0 %3937
        %3939 = vrot.lane.b32.xlu0 %v3767, 84
        %v3940 = vpop.permute.xlu0 %3939
        %3941 = vrot.lane.b32.xlu0 %v3768, 84
        %v3942 = vpop.permute.xlu0 %3941
        %v3943 = vsel %vm596, %v3924, %v3926
        %v3944 = vsel %vm596, %v3926, %v3928
        %v3945 = vsel %vm596, %v3928, %v3930
        %v3946 = vsel %vm596, %v3930, %v3932
        %v3947 = vsel %vm596, %v3934, %v3936
        %v3948 = vsel %vm596, %v3936, %v3938
        %v3949 = vsel %vm596, %v3938, %v3940
        %v3950 = vsel %vm596, %v3940, %v3942
        %3951 = vrot.lane.b32.xlu0 %v3759, 83
        %v3952 = vpop.permute.xlu0 %3951
        %3953 = vrot.lane.b32.xlu0 %v3760, 83
        %v3954 = vpop.permute.xlu0 %3953
        %3955 = vrot.lane.b32.xlu0 %v3761, 83
        %v3956 = vpop.permute.xlu0 %3955
        %3957 = vrot.lane.b32.xlu0 %v3762, 83
        %v3958 = vpop.permute.xlu0 %3957
        %3959 = vrot.lane.b32.xlu0 %v3763, 83
        %v3960 = vpop.permute.xlu0 %3959
        %3961 = vrot.lane.b32.xlu0 %v3764, 83
        %v3962 = vpop.permute.xlu0 %3961
        %3963 = vrot.lane.b32.xlu0 %v3765, 83
        %v3964 = vpop.permute.xlu0 %3963
        %3965 = vrot.lane.b32.xlu0 %v3766, 83
        %v3966 = vpop.permute.xlu0 %3965
        %3967 = vrot.lane.b32.xlu0 %v3767, 83
        %v3968 = vpop.permute.xlu0 %3967
        %3969 = vrot.lane.b32.xlu0 %v3768, 83
        %v3970 = vpop.permute.xlu0 %3969
        %v3971 = vsel %vm611, %v3952, %v3954
        %v3972 = vsel %vm611, %v3954, %v3956
        %v3973 = vsel %vm611, %v3956, %v3958
        %v3974 = vsel %vm611, %v3958, %v3960
        %v3975 = vsel %vm611, %v3962, %v3964
        %v3976 = vsel %vm611, %v3964, %v3966
        %v3977 = vsel %vm611, %v3966, %v3968
        %v3978 = vsel %vm611, %v3968, %v3970
        %3979 = vrot.lane.b32.xlu0 %v3759, 82
        %v3980 = vpop.permute.xlu0 %3979
        %3981 = vrot.lane.b32.xlu0 %v3760, 82
        %v3982 = vpop.permute.xlu0 %3981
        %3983 = vrot.lane.b32.xlu0 %v3761, 82
        %v3984 = vpop.permute.xlu0 %3983
        %3985 = vrot.lane.b32.xlu0 %v3762, 82
        %v3986 = vpop.permute.xlu0 %3985
        %3987 = vrot.lane.b32.xlu0 %v3763, 82
        %v3988 = vpop.permute.xlu0 %3987
        %3989 = vrot.lane.b32.xlu0 %v3764, 82
        %v3990 = vpop.permute.xlu0 %3989
        %3991 = vrot.lane.b32.xlu0 %v3765, 82
        %v3992 = vpop.permute.xlu0 %3991
        %3993 = vrot.lane.b32.xlu0 %v3766, 82
        %v3994 = vpop.permute.xlu0 %3993
        %3995 = vrot.lane.b32.xlu0 %v3767, 82
        %v3996 = vpop.permute.xlu0 %3995
        %3997 = vrot.lane.b32.xlu0 %v3768, 82
        %v3998 = vpop.permute.xlu0 %3997
        %v3999 = vsel %vm1055, %v3980, %v3982
        %v4000 = vsel %vm1055, %v3982, %v3984
        %v4001 = vsel %vm1055, %v3984, %v3986
        %v4002 = vsel %vm1055, %v3986, %v3988
        %v4003 = vsel %vm1055, %v3990, %v3992
        %v4004 = vsel %vm1055, %v3992, %v3994
        %v4005 = vsel %vm1055, %v3994, %v3996
        %v4006 = vsel %vm1055, %v3996, %v3998
        %s4007 = scalar_lea.vmem %s4, 48
        %v4008 = vld [vmem:[%s4007] sm:$0xff]
        %v4009 = vld [vmem:[%s4007 + $0x8] sm:$0xf]
        %v4010 = vld [vmem:[%s4007 + $0xc] sm:$0xff]
        %v4011 = vld [vmem:[%s4007 + $0x14] sm:$0xf]
        %v4012 = vld [vmem:[%s4007 + $0x18] sm:$0xff]
        %v4013 = vld [vmem:[%s4007 + $0x20] sm:$0xf]
        %v4014 = vld [vmem:[%s4007 + $0x24] sm:$0xff]
        %v4015 = vld [vmem:[%s4007 + $0x2c] sm:$0xf]
        %s4016 = scalar_lea.vmem %s5, 32
        %v4017 = vld [vmem:[%s4016] sm:$0xff]
        %v4018 = vld [vmem:[%s4016 + $0x8] sm:$0xff]
        %v4019 = vld [vmem:[%s4016 + $0x10] sm:$0xff]
        %v4020 = vld [vmem:[%s4016 + $0x18] sm:$0xff]
        %4022 = vset.pattern.permute.xlu0 0
        %4023 = vperm.xlu0 %4022, %v4017
        %v4024 = vpop.permute.xlu0 %4023
        %4027 = vset.pattern.permute.xlu0 0
        %4028 = vperm.xlu0 %4027, %v4018
        %v4029 = vpop.permute.xlu0 %4028
        %4032 = vset.pattern.permute.xlu0 0
        %4033 = vperm.xlu0 %4032, %v4019
        %v4034 = vpop.permute.xlu0 %4033
        %4037 = vset.pattern.permute.xlu0 0
        %4038 = vperm.xlu0 %4037, %v4020
        %v4039 = vpop.permute.xlu0 %4038
        %v4049 = vunpack.c.l.b16 %v4008
        %v4050 = vunpack.c.h.b16 %v4008
        %v4051 = vunpack.c.l.b16 %v4009
        %v4052 = vunpack.c.l.b16 %v4010
        %v4053 = vunpack.c.h.b16 %v4010
        %v4054 = vunpack.c.l.b16 %v4011
        %v4055 = vunpack.c.l.b16 %v4012
        %v4056 = vunpack.c.h.b16 %v4012
        %v4057 = vunpack.c.l.b16 %v4013
        %v4058 = vunpack.c.l.b16 %v4014
        %v4059 = vunpack.c.h.b16 %v4014
        %v4060 = vunpack.c.l.b16 %v4015
        %v4061 = vpack.c.b16 %v4052, %v4049
        %v4062 = vpack.c.b16 %v4053, %v4050
        %v4063 = vpack.c.b16 %v4054, %v4051
        %v4064 = vpack.c.b16 %v4058, %v4055
        %v4065 = vpack.c.b16 %v4059, %v4056
        %v4066 = vpack.c.b16 %v4060, %v4057
        %4071 = vrot.lane.b32.xlu0 %v3749, 23
        %v4072 = vpop.permute.xlu0 %4071
        %4073 = vrot.lane.b32.xlu0 %v3750, 23
        %v4074 = vpop.permute.xlu0 %4073
        %4075 = vrot.lane.b32.xlu0 %v3751, 23
        %v4076 = vpop.permute.xlu0 %4075
        %4077 = vrot.lane.b32.xlu0 %v3752, 23
        %v4078 = vpop.permute.xlu0 %4077
        %4079 = vrot.lane.b32.xlu0 %v3753, 23
        %v4080 = vpop.permute.xlu0 %4079
        %4081 = vrot.lane.b32.xlu0 %v3754, 23
        %v4082 = vpop.permute.xlu0 %4081
        %4083 = vrot.lane.b32.xlu0 %v3755, 23
        %v4084 = vpop.permute.xlu0 %4083
        %4085 = vrot.lane.b32.xlu0 %v3756, 23
        %v4086 = vpop.permute.xlu0 %4085
        %4087 = vrot.lane.b32.xlu0 %v3757, 23
        %v4088 = vpop.permute.xlu0 %4087
        %4089 = vrot.lane.b32.xlu0 %v3758, 23
        %v4090 = vpop.permute.xlu0 %4089
        %4091 = vrot.lane.b32.xlu0 %v3799, 23
        %v4092 = vpop.permute.xlu0 %4091
        %4093 = vrot.lane.b32.xlu0 %v3800, 23
        %v4094 = vpop.permute.xlu0 %4093
        %4095 = vrot.lane.b32.xlu0 %v3801, 23
        %v4096 = vpop.permute.xlu0 %4095
        %4097 = vrot.lane.b32.xlu0 %v3802, 23
        %v4098 = vpop.permute.xlu0 %4097
        %4099 = vrot.lane.b32.xlu0 %v3788, 23
        %v4100 = vpop.permute.xlu0 %4099
        %4101 = vrot.lane.b32.xlu0 %v3803, 23
        %v4102 = vpop.permute.xlu0 %4101
        %4103 = vrot.lane.b32.xlu0 %v3804, 23
        %v4104 = vpop.permute.xlu0 %4103
        %4105 = vrot.lane.b32.xlu0 %v3805, 23
        %v4106 = vpop.permute.xlu0 %4105
        %4107 = vrot.lane.b32.xlu0 %v3806, 23
        %v4108 = vpop.permute.xlu0 %4107
        %4109 = vrot.lane.b32.xlu0 %v3798, 23
        %v4110 = vpop.permute.xlu0 %4109
        %4111 = vrot.lane.b32.xlu0 %v3827, 23
        %v4112 = vpop.permute.xlu0 %4111
        %4113 = vrot.lane.b32.xlu0 %v3828, 23
        %v4114 = vpop.permute.xlu0 %4113
        %4115 = vrot.lane.b32.xlu0 %v3829, 23
        %v4116 = vpop.permute.xlu0 %4115
        %4117 = vrot.lane.b32.xlu0 %v3830, 23
        %v4118 = vpop.permute.xlu0 %4117
        %4119 = vrot.lane.b32.xlu0 %v3816, 23
        %v4120 = vpop.permute.xlu0 %4119
        %4121 = vrot.lane.b32.xlu0 %v3831, 23
        %v4122 = vpop.permute.xlu0 %4121
        %4123 = vrot.lane.b32.xlu0 %v3832, 23
        %v4124 = vpop.permute.xlu0 %4123
        %4125 = vrot.lane.b32.xlu0 %v3833, 23
        %v4126 = vpop.permute.xlu0 %4125
        %4127 = vrot.lane.b32.xlu0 %v3834, 23
        %v4128 = vpop.permute.xlu0 %4127
        %4129 = vrot.lane.b32.xlu0 %v3826, 23
        %v4130 = vpop.permute.xlu0 %4129
        %4131 = vrot.lane.b32.xlu0 %v3855, 23
        %v4132 = vpop.permute.xlu0 %4131
        %4133 = vrot.lane.b32.xlu0 %v3856, 23
        %v4134 = vpop.permute.xlu0 %4133
        %4135 = vrot.lane.b32.xlu0 %v3857, 23
        %v4136 = vpop.permute.xlu0 %4135
        %4137 = vrot.lane.b32.xlu0 %v3858, 23
        %v4138 = vpop.permute.xlu0 %4137
        %4139 = vrot.lane.b32.xlu0 %v3844, 23
        %v4140 = vpop.permute.xlu0 %4139
        %4141 = vrot.lane.b32.xlu0 %v3859, 23
        %v4142 = vpop.permute.xlu0 %4141
        %4143 = vrot.lane.b32.xlu0 %v3860, 23
        %v4144 = vpop.permute.xlu0 %4143
        %4145 = vrot.lane.b32.xlu0 %v3861, 23
        %v4146 = vpop.permute.xlu0 %4145
        %4147 = vrot.lane.b32.xlu0 %v3862, 23
        %v4148 = vpop.permute.xlu0 %4147
        %4149 = vrot.lane.b32.xlu0 %v3854, 23
        %v4150 = vpop.permute.xlu0 %4149
        %4151 = vrot.lane.b32.xlu0 %v3864, 23
        %v4152 = vpop.permute.xlu0 %4151
        %4153 = vrot.lane.b32.xlu0 %v3879, 23
        %v4154 = vpop.permute.xlu0 %4153
        %4155 = vrot.lane.b32.xlu0 %v3880, 23
        %v4156 = vpop.permute.xlu0 %4155
        %4157 = vrot.lane.b32.xlu0 %v3881, 23
        %v4158 = vpop.permute.xlu0 %4157
        %4159 = vrot.lane.b32.xlu0 %v3870, 23
        %v4160 = vpop.permute.xlu0 %4159
        %4161 = vrot.lane.b32.xlu0 %v3872, 23
        %v4162 = vpop.permute.xlu0 %4161
        %4163 = vrot.lane.b32.xlu0 %v3882, 23
        %v4164 = vpop.permute.xlu0 %4163
        %4165 = vrot.lane.b32.xlu0 %v3883, 23
        %v4166 = vpop.permute.xlu0 %4165
        %4167 = vrot.lane.b32.xlu0 %v3884, 23
        %v4168 = vpop.permute.xlu0 %4167
        %4169 = vrot.lane.b32.xlu0 %v3878, 23
        %v4170 = vpop.permute.xlu0 %4169
        %4171 = vrot.lane.b32.xlu0 %v3896, 23
        %v4172 = vpop.permute.xlu0 %4171
        %4173 = vrot.lane.b32.xlu0 %v3915, 23
        %v4174 = vpop.permute.xlu0 %4173
        %4175 = vrot.lane.b32.xlu0 %v3916, 23
        %v4176 = vpop.permute.xlu0 %4175
        %4177 = vrot.lane.b32.xlu0 %v3917, 23
        %v4178 = vpop.permute.xlu0 %4177
        %4179 = vrot.lane.b32.xlu0 %v3918, 23
        %v4180 = vpop.permute.xlu0 %4179
        %4181 = vrot.lane.b32.xlu0 %v3906, 23
        %v4182 = vpop.permute.xlu0 %4181
        %4183 = vrot.lane.b32.xlu0 %v3919, 23
        %v4184 = vpop.permute.xlu0 %4183
        %4185 = vrot.lane.b32.xlu0 %v3920, 23
        %v4186 = vpop.permute.xlu0 %4185
        %4187 = vrot.lane.b32.xlu0 %v3921, 23
        %v4188 = vpop.permute.xlu0 %4187
        %4189 = vrot.lane.b32.xlu0 %v3922, 23
        %v4190 = vpop.permute.xlu0 %4189
        %4191 = vrot.lane.b32.xlu0 %v3924, 23
        %v4192 = vpop.permute.xlu0 %4191
        %4193 = vrot.lane.b32.xlu0 %v3943, 23
        %v4194 = vpop.permute.xlu0 %4193
        %4195 = vrot.lane.b32.xlu0 %v3944, 23
        %v4196 = vpop.permute.xlu0 %4195
        %4197 = vrot.lane.b32.xlu0 %v3945, 23
        %v4198 = vpop.permute.xlu0 %4197
        %4199 = vrot.lane.b32.xlu0 %v3946, 23
        %v4200 = vpop.permute.xlu0 %4199
        %4201 = vrot.lane.b32.xlu0 %v3934, 23
        %v4202 = vpop.permute.xlu0 %4201
        %4203 = vrot.lane.b32.xlu0 %v3947, 23
        %v4204 = vpop.permute.xlu0 %4203
        %4205 = vrot.lane.b32.xlu0 %v3948, 23
        %v4206 = vpop.permute.xlu0 %4205
        %4207 = vrot.lane.b32.xlu0 %v3949, 23
        %v4208 = vpop.permute.xlu0 %4207
        %4209 = vrot.lane.b32.xlu0 %v3950, 23
        %v4210 = vpop.permute.xlu0 %4209
        %4211 = vrot.lane.b32.xlu0 %v3952, 23
        %v4212 = vpop.permute.xlu0 %4211
        %4213 = vrot.lane.b32.xlu0 %v3971, 23
        %v4214 = vpop.permute.xlu0 %4213
        %4215 = vrot.lane.b32.xlu0 %v3972, 23
        %v4216 = vpop.permute.xlu0 %4215
        %4217 = vrot.lane.b32.xlu0 %v3973, 23
        %v4218 = vpop.permute.xlu0 %4217
        %4219 = vrot.lane.b32.xlu0 %v3974, 23
        %v4220 = vpop.permute.xlu0 %4219
        %4221 = vrot.lane.b32.xlu0 %v3962, 23
        %v4222 = vpop.permute.xlu0 %4221
        %4223 = vrot.lane.b32.xlu0 %v3975, 23
        %v4224 = vpop.permute.xlu0 %4223
        %4225 = vrot.lane.b32.xlu0 %v3976, 23
        %v4226 = vpop.permute.xlu0 %4225
        %4227 = vrot.lane.b32.xlu0 %v3977, 23
        %v4228 = vpop.permute.xlu0 %4227
        %4229 = vrot.lane.b32.xlu0 %v3978, 23
        %v4230 = vpop.permute.xlu0 %4229
        %4231 = vrot.lane.b32.xlu0 %v3980, 23
        %v4232 = vpop.permute.xlu0 %4231
        %4233 = vrot.lane.b32.xlu0 %v3999, 23
        %v4234 = vpop.permute.xlu0 %4233
        %4235 = vrot.lane.b32.xlu0 %v4000, 23
        %v4236 = vpop.permute.xlu0 %4235
        %4237 = vrot.lane.b32.xlu0 %v4001, 23
        %v4238 = vpop.permute.xlu0 %4237
        %4239 = vrot.lane.b32.xlu0 %v4002, 23
        %v4240 = vpop.permute.xlu0 %4239
        %4241 = vrot.lane.b32.xlu0 %v3990, 23
        %v4242 = vpop.permute.xlu0 %4241
        %4243 = vrot.lane.b32.xlu0 %v4003, 23
        %v4244 = vpop.permute.xlu0 %4243
        %4245 = vrot.lane.b32.xlu0 %v4004, 23
        %v4246 = vpop.permute.xlu0 %4245
        %4247 = vrot.lane.b32.xlu0 %v4005, 23
        %v4248 = vpop.permute.xlu0 %4247
        %4249 = vrot.lane.b32.xlu0 %v4006, 23
        %v4250 = vpop.permute.xlu0 %4249
        %v4251 = vsel %vm3337, %v4072, %v4074
        %v4252 = vsel %vm3337, %v4074, %v4076
        %v4253 = vsel %vm3337, %v4076, %v4078
        %v4254 = vsel %vm3337, %v4078, %v4080
        %v4255 = vsel %vm3337, %v4082, %v4084
        %v4256 = vsel %vm3337, %v4084, %v4086
        %v4257 = vsel %vm3337, %v4086, %v4088
        %v4258 = vsel %vm3337, %v4088, %v4090
        %v4259 = vsel %vm3337, %v4092, %v4094
        %v4260 = vsel %vm3337, %v4094, %v4096
        %v4261 = vsel %vm3337, %v4096, %v4098
        %v4262 = vsel %vm3337, %v4098, %v4100
        %v4263 = vsel %vm3337, %v4102, %v4104
        %v4264 = vsel %vm3337, %v4104, %v4106
        %v4265 = vsel %vm3337, %v4106, %v4108
        %v4266 = vsel %vm3337, %v4108, %v4110
        %v4267 = vsel %vm3337, %v4112, %v4114
        %v4268 = vsel %vm3337, %v4114, %v4116
        %v4269 = vsel %vm3337, %v4116, %v4118
        %v4270 = vsel %vm3337, %v4118, %v4120
        %v4271 = vsel %vm3337, %v4122, %v4124
        %v4272 = vsel %vm3337, %v4124, %v4126
        %v4273 = vsel %vm3337, %v4126, %v4128
        %v4274 = vsel %vm3337, %v4128, %v4130
        %v4275 = vsel %vm3337, %v4132, %v4134
        %v4276 = vsel %vm3337, %v4134, %v4136
        %v4277 = vsel %vm3337, %v4136, %v4138
        %v4278 = vsel %vm3337, %v4138, %v4140
        %v4279 = vsel %vm3337, %v4142, %v4144
        %v4280 = vsel %vm3337, %v4144, %v4146
        %v4281 = vsel %vm3337, %v4146, %v4148
        %v4282 = vsel %vm3337, %v4148, %v4150
        %v4283 = vsel %vm3337, %v4152, %v4154
        %v4284 = vsel %vm3337, %v4154, %v4156
        %v4285 = vsel %vm3337, %v4156, %v4158
        %v4286 = vsel %vm3337, %v4158, %v4160
        %v4287 = vsel %vm3337, %v4162, %v4164
        %v4288 = vsel %vm3337, %v4164, %v4166
        %v4289 = vsel %vm3337, %v4166, %v4168
        %v4290 = vsel %vm3337, %v4168, %v4170
        %v4291 = vsel %vm3337, %v4172, %v4174
        %v4292 = vsel %vm3337, %v4174, %v4176
        %v4293 = vsel %vm3337, %v4176, %v4178
        %v4294 = vsel %vm3337, %v4178, %v4180
        %v4295 = vsel %vm3337, %v4182, %v4184
        %v4296 = vsel %vm3337, %v4184, %v4186
        %v4297 = vsel %vm3337, %v4186, %v4188
        %v4298 = vsel %vm3337, %v4188, %v4190
        %v4299 = vsel %vm3337, %v4192, %v4194
        %v4300 = vsel %vm3337, %v4194, %v4196
        %v4301 = vsel %vm3337, %v4196, %v4198
        %v4302 = vsel %vm3337, %v4198, %v4200
        %v4303 = vsel %vm3337, %v4202, %v4204
        %v4304 = vsel %vm3337, %v4204, %v4206
        %v4305 = vsel %vm3337, %v4206, %v4208
        %v4306 = vsel %vm3337, %v4208, %v4210
        %v4307 = vsel %vm3337, %v4212, %v4214
        %v4308 = vsel %vm3337, %v4214, %v4216
        %v4309 = vsel %vm3337, %v4216, %v4218
        %v4310 = vsel %vm3337, %v4218, %v4220
        %v4311 = vsel %vm3337, %v4222, %v4224
        %v4312 = vsel %vm3337, %v4224, %v4226
        %v4313 = vsel %vm3337, %v4226, %v4228
        %v4314 = vsel %vm3337, %v4228, %v4230
        %v4315 = vsel %vm3337, %v4232, %v4234
        %v4316 = vsel %vm3337, %v4234, %v4236
        %v4317 = vsel %vm3337, %v4236, %v4238
        %v4318 = vsel %vm3337, %v4238, %v4240
        %v4319 = vsel %vm3337, %v4242, %v4244
        %v4320 = vsel %vm3337, %v4244, %v4246
        %v4321 = vsel %vm3337, %v4246, %v4248
        %v4322 = vsel %vm3337, %v4248, %v4250
        %v4396 = vsel %vm3482, %v4063, 0
        %v4399 = vsel %vm3482, %v4066, 0
        %4401 = vmatprep.subr.bf16.mxu0 %v4252
        %4402 = vmatpush1.bf16.msra.mxu0 %v4251
        %4403 = vmatprep.subr.bf16.mxu0 %v4256
        %4404 = vmatpush1.bf16.msra.mxu0 %v4255
        %4405 = vmatprep.subr.bf16.mxu0 %v4260
        %4406 = vmatpush1.bf16.msra.mxu0 %v4259
        %4407 = vmatprep.subr.bf16.mxu0 %v4264
        %4408 = vmatpush1.bf16.msra.mxu0 %v4263
        %4409 = vmatprep.subr.bf16.mxu0 %v4268
        %4410 = vmatpush1.bf16.msra.mxu0 %v4267
        %4411 = vmatprep.subr.bf16.mxu0 %v4272
        %4412 = vmatpush1.bf16.msra.mxu0 %v4271
        %4413 = vmatprep.subr.bf16.mxu0 %v4276
        %4414 = vmatpush1.bf16.msra.mxu0 %v4275
        %4415 = vmatprep.subr.bf16.mxu0 %v4280
        %4416 = vmatpush1.bf16.msra.mxu0 %v4279
        %4417 = vmatprep.subr.bf16.mxu0 %v4284
        %4418 = vmatpush1.bf16.msra.mxu0 %v4283
        %4419 = vmatprep.subr.bf16.mxu0 %v4288
        %4420 = vmatpush1.bf16.msra.mxu0 %v4287
        %4421 = vmatprep.subr.bf16.mxu0 %v4292
        %4422 = vmatpush1.bf16.msra.mxu0 %v4291
        %4423 = vmatprep.subr.bf16.mxu0 %v4296
        %4424 = vmatpush1.bf16.msra.mxu0 %v4295
        %4425 = vmatprep.subr.bf16.mxu0 %v4300
        %4426 = vmatpush1.bf16.msra.mxu0 %v4299
        %4427 = vmatprep.subr.bf16.mxu0 %v4304
        %4428 = vmatpush1.bf16.msra.mxu0 %v4303
        %4429 = vmatprep.subr.bf16.mxu0 %v4308
        %4430 = vmatpush1.bf16.msra.mxu0 %v4307
        %4431 = vmatprep.subr.bf16.mxu0 %v4312
        %4432 = vmatpush1.bf16.msra.mxu0 %v4311
        %4433 = vmatprep.mubr.bf16.mxu0 %v4062
        %4434 = vmatmul.mubr.bf16.gmra.mrb[0].mxu0 %v4061
        %v4435 = vpop.f32.mrb[0].mxu0
        %v4436 = vadd.f32 %v4024, %v4435
        %v4437 = vpop.f32.mrb[0].mxu0
        %v4438 = vadd.f32 %v4024, %v4437
        %v4439 = vpop.f32.mrb[0].mxu0
        %v4440 = vadd.f32 %v4029, %v4439
        %v4441 = vpop.f32.mrb[0].mxu0
        %v4442 = vadd.f32 %v4029, %v4441
        %4443 = vmatprep.mubr.bf16.mxu0 %v4065
        %4444 = vmatmul.mubr.bf16.gmra.mrb[0].mxu0 %v4064
        %v4445 = vpop.f32.mrb[0].mxu0
        %v4446 = vadd.f32 %v4034, %v4445
        %v4447 = vpop.f32.mrb[0].mxu0
        %v4448 = vadd.f32 %v4034, %v4447
        %v4449 = vpop.f32.mrb[0].mxu0
        %v4450 = vadd.f32 %v4039, %v4449
        %v4451 = vpop.f32.mrb[0].mxu0
        %v4452 = vadd.f32 %v4039, %v4451
        %4453 = vdwg.mxu0
        %4454 = vmatprep.subr.bf16.mxu0 %v4316
        %4455 = vmatpush1.bf16.msra.mxu0 %v4315
        %4456 = vmatprep.subr.bf16.mxu0 %v4320
        %4457 = vmatpush1.bf16.msra.mxu0 %v4319
        %4458 = vmatprep.subr.bf16.mxu0 0
        %4459 = vmatpush1.bf16.msra.mxu0 0
        %4460 = vmatprep.subr.bf16.mxu0 0
        %4461 = vmatpush1.bf16.msra.mxu0 0
        %4462 = vmatprep.subr.bf16.mxu0 0
        %4463 = vmatpush1.bf16.msra.mxu0 0
        %4464 = vmatprep.subr.bf16.mxu0 0
        %4465 = vmatpush1.bf16.msra.mxu0 0
        %4466 = vmatprep.subr.bf16.mxu0 0
        %4467 = vmatpush1.bf16.msra.mxu0 0
        %4468 = vmatprep.subr.bf16.mxu0 0
        %4469 = vmatpush1.bf16.msra.mxu0 0
        %4470 = vmatprep.subr.bf16.mxu0 0
        %4471 = vmatpush1.bf16.msra.mxu0 0
        %4472 = vmatprep.subr.bf16.mxu0 0
        %4473 = vmatpush1.bf16.msra.mxu0 0
        %4474 = vmatprep.subr.bf16.mxu0 0
        %4475 = vmatpush1.bf16.msra.mxu0 0
        %4476 = vmatprep.subr.bf16.mxu0 0
        %4477 = vmatpush1.bf16.msra.mxu0 0
        %4478 = vmatprep.subr.bf16.mxu0 0
        %4479 = vmatpush1.bf16.msra.mxu0 0
        %4480 = vmatprep.subr.bf16.mxu0 0
        %4481 = vmatpush1.bf16.msra.mxu0 0
        %4482 = vmatprep.subr.bf16.mxu0 0
        %4483 = vmatpush1.bf16.msra.mxu0 0
        %4484 = vmatprep.subr.bf16.mxu0 0
        %4485 = vmatpush1.bf16.msra.mxu0 0
        %4486 = vmatprep.mubr.bf16.mxu0 0
        %4487 = vmatmul.mubr.bf16.gmra.mrb[0].mxu0 %v4396
        %v4488 = vpop.f32.mrb[0].mxu0
        %v4489 = vadd.f32 %v4436, %v4488
        %v4490 = vpop.f32.mrb[0].mxu0
        %v4491 = vadd.f32 %v4438, %v4490
        %v4492 = vpop.f32.mrb[0].mxu0
        %v4493 = vadd.f32 %v4440, %v4492
        %v4494 = vpop.f32.mrb[0].mxu0
        %v4495 = vadd.f32 %v4442, %v4494
        %4496 = vmatprep.mubr.bf16.mxu0 0
        %4497 = vmatmul.mubr.bf16.gmra.mrb[0].mxu0 %v4399
        %v4498 = vpop.f32.mrb[0].mxu0
        %v4499 = vadd.f32 %v4446, %v4498
        %v4500 = vpop.f32.mrb[0].mxu0
        %v4501 = vadd.f32 %v4448, %v4500
        %v4502 = vpop.f32.mrb[0].mxu0
        %v4503 = vadd.f32 %v4450, %v4502
        %v4504 = vpop.f32.mrb[0].mxu0
        %v4505 = vadd.f32 %v4452, %v4504
        %4506 = vdwg.mxu0
        %4507 = vmatprep.subr.bf16.mxu0 %v4254
        %4508 = vmatpush1.bf16.msra.mxu0 %v4253
        %4509 = vmatprep.subr.bf16.mxu0 %v4258
        %4510 = vmatpush1.bf16.msra.mxu0 %v4257
        %4511 = vmatprep.subr.bf16.mxu0 %v4262
        %4512 = vmatpush1.bf16.msra.mxu0 %v4261
        %4513 = vmatprep.subr.bf16.mxu0 %v4266
        %4514 = vmatpush1.bf16.msra.mxu0 %v4265
        %4515 = vmatprep.subr.bf16.mxu0 %v4270
        %4516 = vmatpush1.bf16.msra.mxu0 %v4269
        %4517 = vmatprep.subr.bf16.mxu0 %v4274
        %4518 = vmatpush1.bf16.msra.mxu0 %v4273
        %4519 = vmatprep.subr.bf16.mxu0 %v4278
        %4520 = vmatpush1.bf16.msra.mxu0 %v4277
        %4521 = vmatprep.subr.bf16.mxu0 %v4282
        %4522 = vmatpush1.bf16.msra.mxu0 %v4281
        %4523 = vmatprep.subr.bf16.mxu0 %v4286
        %4524 = vmatpush1.bf16.msra.mxu0 %v4285
        %4525 = vmatprep.subr.bf16.mxu0 %v4290
        %4526 = vmatpush1.bf16.msra.mxu0 %v4289
        %4527 = vmatprep.subr.bf16.mxu0 %v4294
        %4528 = vmatpush1.bf16.msra.mxu0 %v4293
        %4529 = vmatprep.subr.bf16.mxu0 %v4298
        %4530 = vmatpush1.bf16.msra.mxu0 %v4297
        %4531 = vmatprep.subr.bf16.mxu0 %v4302
        %4532 = vmatpush1.bf16.msra.mxu0 %v4301
        %4533 = vmatprep.subr.bf16.mxu0 %v4306
        %4534 = vmatpush1.bf16.msra.mxu0 %v4305
        %4535 = vmatprep.subr.bf16.mxu0 %v4310
        %4536 = vmatpush1.bf16.msra.mxu0 %v4309
        %4537 = vmatprep.subr.bf16.mxu0 %v4314
        %4538 = vmatpush1.bf16.msra.mxu0 %v4313
        %4539 = vmatprep.mubr.bf16.mxu0 %v4062
        %4540 = vmatmul.mubr.bf16.gmra.mrb[0].mxu0 %v4061
        %v4541 = vpop.f32.mrb[0].mxu0
        %v4542 = vadd.f32 %v4024, %v4541
        %v4543 = vpop.f32.mrb[0].mxu0
        %v4544 = vadd.f32 %v4024, %v4543
        %v4545 = vpop.f32.mrb[0].mxu0
        %v4546 = vadd.f32 %v4029, %v4545
        %v4547 = vpop.f32.mrb[0].mxu0
        %v4548 = vadd.f32 %v4029, %v4547
        %4549 = vmatprep.mubr.bf16.mxu0 %v4065
        %4550 = vmatmul.mubr.bf16.gmra.mrb[0].mxu0 %v4064
        %v4551 = vpop.f32.mrb[0].mxu0
        %v4552 = vadd.f32 %v4034, %v4551
        %v4553 = vpop.f32.mrb[0].mxu0
        %v4554 = vadd.f32 %v4034, %v4553
        %v4555 = vpop.f32.mrb[0].mxu0
        %v4556 = vadd.f32 %v4039, %v4555
        %v4557 = vpop.f32.mrb[0].mxu0
        %v4558 = vadd.f32 %v4039, %v4557
        %4559 = vdwg.mxu0
        %4560 = vmatprep.subr.bf16.mxu0 %v4318
        %4561 = vmatpush1.bf16.msra.mxu0 %v4317
        %4562 = vmatprep.subr.bf16.mxu0 %v4322
        %4563 = vmatpush1.bf16.msra.mxu0 %v4321
        %4564 = vmatprep.subr.bf16.mxu0 0
        %4565 = vmatpush1.bf16.msra.mxu0 0
        %4566 = vmatprep.subr.bf16.mxu0 0
        %4567 = vmatpush1.bf16.msra.mxu0 0
        %4568 = vmatprep.subr.bf16.mxu0 0
        %4569 = vmatpush1.bf16.msra.mxu0 0
        %4570 = vmatprep.subr.bf16.mxu0 0
        %4571 = vmatpush1.bf16.msra.mxu0 0
        %4572 = vmatprep.subr.bf16.mxu0 0
        %4573 = vmatpush1.bf16.msra.mxu0 0
        %4574 = vmatprep.subr.bf16.mxu0 0
        %4575 = vmatpush1.bf16.msra.mxu0 0
        %4576 = vmatprep.subr.bf16.mxu0 0
        %4577 = vmatpush1.bf16.msra.mxu0 0
        %4578 = vmatprep.subr.bf16.mxu0 0
        %4579 = vmatpush1.bf16.msra.mxu0 0
        %4580 = vmatprep.subr.bf16.mxu0 0
        %4581 = vmatpush1.bf16.msra.mxu0 0
        %4582 = vmatprep.subr.bf16.mxu0 0
        %4583 = vmatpush1.bf16.msra.mxu0 0
        %4584 = vmatprep.subr.bf16.mxu0 0
        %4585 = vmatpush1.bf16.msra.mxu0 0
        %4586 = vmatprep.subr.bf16.mxu0 0
        %4587 = vmatpush1.bf16.msra.mxu0 0
        %4588 = vmatprep.subr.bf16.mxu0 0
        %4589 = vmatpush1.bf16.msra.mxu0 0
        %4590 = vmatprep.subr.bf16.mxu0 0
        %4591 = vmatpush1.bf16.msra.mxu0 0
        %4592 = vmatprep.mubr.bf16.mxu0 0
        %4593 = vmatmul.mubr.bf16.gmra.mrb[0].mxu0 %v4396
        %v4594 = vpop.f32.mrb[0].mxu0
        %v4595 = vadd.f32 %v4542, %v4594
        %v4596 = vpop.f32.mrb[0].mxu0
        %v4597 = vadd.f32 %v4544, %v4596
        %v4598 = vpop.f32.mrb[0].mxu0
        %v4599 = vadd.f32 %v4546, %v4598
        %v4600 = vpop.f32.mrb[0].mxu0
        %v4601 = vadd.f32 %v4548, %v4600
        %4602 = vmatprep.mubr.bf16.mxu0 0
        %4603 = vmatmul.mubr.bf16.gmra.mrb[0].mxu0 %v4399
        %v4604 = vpop.f32.mrb[0].mxu0
        %v4605 = vadd.f32 %v4552, %v4604
        %v4606 = vpop.f32.mrb[0].mxu0
        %v4607 = vadd.f32 %v4554, %v4606
        %v4608 = vpop.f32.mrb[0].mxu0
        %v4609 = vadd.f32 %v4556, %v4608
        %v4610 = vpop.f32.mrb[0].mxu0
        %v4611 = vadd.f32 %v4558, %v4610
        %4612 = vdwg.mxu0
        %v4613 = vmul.f32 %v4489, %v2788
        %v4614 = vmul.f32 %v4491, %v2792
        %v4615 = vmul.f32 %v4595, %v2796
        %v4616 = vmul.f32 %v4597, %v2800
        %v4617 = vmul.f32 %v4493, %v2788
        %v4618 = vmul.f32 %v4495, %v2792
        %v4619 = vmul.f32 %v4599, %v2796
        %v4620 = vmul.f32 %v4601, %v2800
        %v4621 = vmul.f32 %v4499, %v2788
        %v4622 = vmul.f32 %v4501, %v2792
        %v4623 = vmul.f32 %v4605, %v2796
        %v4624 = vmul.f32 %v4607, %v2800
        %v4625 = vmul.f32 %v4503, %v2788
        %v4626 = vmul.f32 %v4505, %v2792
        %v4627 = vmul.f32 %v4609, %v2796
        %v4628 = vmul.f32 %v4611, %v2800
        %v4629 = vadd.f32 %v2805, %v4613
        %v4630 = vadd.f32 %v2806, %v4614
        %v4631 = vadd.f32 %v2807, %v4615
        %v4632 = vadd.f32 %v2808, %v4616
        %v4633 = vadd.f32 %v2809, %v4617
        %v4634 = vadd.f32 %v2810, %v4618
        %v4635 = vadd.f32 %v2811, %v4619
        %v4636 = vadd.f32 %v2812, %v4620
        %v4637 = vadd.f32 %v2813, %v4621
        %v4638 = vadd.f32 %v2814, %v4622
        %v4639 = vadd.f32 %v2815, %v4623
        %v4640 = vadd.f32 %v2816, %v4624
        %v4641 = vadd.f32 %v2817, %v4625
        %v4642 = vadd.f32 %v2818, %v4626
        %v4643 = vadd.f32 %v2819, %v4627
        %v4644 = vadd.f32 %v2820, %v4628
        %v4645 = vpack.c.bf16 %v4633, %v4629
        %v4646 = vpack.c.bf16 %v4634, %v4630
        %v4647 = vpack.c.bf16 %v4635, %v4631
        %v4648 = vpack.c.bf16 %v4636, %v4632
        %v4649 = vpack.c.bf16 %v4641, %v4637
        %v4650 = vpack.c.bf16 %v4642, %v4638
        %v4651 = vpack.c.bf16 %v4643, %v4639
        %v4652 = vpack.c.bf16 %v4644, %v4640
        %4653 = vst [vmem:[#allocation3 + $0x8] sm:$0xff] %v4645
        %4654 = vst [vmem:[#allocation3 + $0x10] sm:$0xff] %v4646
        %4655 = vst [vmem:[#allocation3 + $0x18] sm:$0xff] %v4647
        %4656 = vst [vmem:[#allocation3 + $0x20] sm:$0xff] %v4648
        %4657 = vst [vmem:[#allocation3 + $0x38] sm:$0xff] %v4649
        %4658 = vst [vmem:[#allocation3 + $0x40] sm:$0xff] %v4650
        %4659 = vst [vmem:[#allocation3 + $0x48] sm:$0xff] %v4651
        %4660 = vst [vmem:[#allocation3 + $0x50] sm:$0xff] %v4652
        %v4661 = vld [vmem:[#allocation3] sm:$0xff]
        %v4662 = vld [vmem:[#allocation3 + $0x8] sm:$0xff]
        %v4663 = vld [vmem:[#allocation3 + $0x10] sm:$0xff]
        %v4664 = vld [vmem:[#allocation3 + $0x18] sm:$0xff]
        %v4665 = vld [vmem:[#allocation3 + $0x20] sm:$0xff]
        %v4666 = vld [vmem:[#allocation3 + $0x30] sm:$0xff]
        %v4667 = vld [vmem:[#allocation3 + $0x38] sm:$0xff]
        %v4668 = vld [vmem:[#allocation3 + $0x40] sm:$0xff]
        %v4669 = vld [vmem:[#allocation3 + $0x48] sm:$0xff]
        %v4670 = vld [vmem:[#allocation3 + $0x50] sm:$0xff]
        %v4671 = vld [vmem:[#allocation3 + $0x8] sm:$0xff]
        %v4672 = vld [vmem:[#allocation3 + $0x10] sm:$0xff]
        %v4673 = vld [vmem:[#allocation3 + $0x18] sm:$0xff]
        %v4674 = vld [vmem:[#allocation3 + $0x20] sm:$0xff]
        %v4675 = vld [vmem:[#allocation3 + $0x28] sm:$0xff]
        %v4676 = vld [vmem:[#allocation3 + $0x38] sm:$0xff]
        %v4677 = vld [vmem:[#allocation3 + $0x40] sm:$0xff]
        %v4678 = vld [vmem:[#allocation3 + $0x48] sm:$0xff]
        %v4679 = vld [vmem:[#allocation3 + $0x50] sm:$0xff]
        %v4680 = vld [vmem:[#allocation3 + $0x58] sm:$0xff]
        %4691 = vrot.lane.b32.xlu0 %v4661, 127
        %v4692 = vpop.permute.xlu0 %4691
        %4693 = vrot.lane.b32.xlu0 %v4662, 127
        %v4694 = vpop.permute.xlu0 %4693
        %4695 = vrot.lane.b32.xlu0 %v4663, 127
        %v4696 = vpop.permute.xlu0 %4695
        %4697 = vrot.lane.b32.xlu0 %v4664, 127
        %v4698 = vpop.permute.xlu0 %4697
        %4699 = vrot.lane.b32.xlu0 %v4665, 127
        %v4700 = vpop.permute.xlu0 %4699
        %4701 = vrot.lane.b32.xlu0 %v4666, 127
        %v4702 = vpop.permute.xlu0 %4701
        %4703 = vrot.lane.b32.xlu0 %v4667, 127
        %v4704 = vpop.permute.xlu0 %4703
        %4705 = vrot.lane.b32.xlu0 %v4668, 127
        %v4706 = vpop.permute.xlu0 %4705
        %4707 = vrot.lane.b32.xlu0 %v4669, 127
        %v4708 = vpop.permute.xlu0 %4707
        %4709 = vrot.lane.b32.xlu0 %v4670, 127
        %v4710 = vpop.permute.xlu0 %4709
        %v4711 = vsel %vm401, %v4692, %v4694
        %v4712 = vsel %vm401, %v4694, %v4696
        %v4713 = vsel %vm401, %v4696, %v4698
        %v4714 = vsel %vm401, %v4698, %v4700
        %v4715 = vsel %vm401, %v4702, %v4704
        %v4716 = vsel %vm401, %v4704, %v4706
        %v4717 = vsel %vm401, %v4706, %v4708
        %v4718 = vsel %vm401, %v4708, %v4710
        %4719 = vrot.lane.b32.xlu0 %v4661, 126
        %v4720 = vpop.permute.xlu0 %4719
        %4721 = vrot.lane.b32.xlu0 %v4662, 126
        %v4722 = vpop.permute.xlu0 %4721
        %4723 = vrot.lane.b32.xlu0 %v4663, 126
        %v4724 = vpop.permute.xlu0 %4723
        %4725 = vrot.lane.b32.xlu0 %v4664, 126
        %v4726 = vpop.permute.xlu0 %4725
        %4727 = vrot.lane.b32.xlu0 %v4665, 126
        %v4728 = vpop.permute.xlu0 %4727
        %4729 = vrot.lane.b32.xlu0 %v4666, 126
        %v4730 = vpop.permute.xlu0 %4729
        %4731 = vrot.lane.b32.xlu0 %v4667, 126
        %v4732 = vpop.permute.xlu0 %4731
        %4733 = vrot.lane.b32.xlu0 %v4668, 126
        %v4734 = vpop.permute.xlu0 %4733
        %4735 = vrot.lane.b32.xlu0 %v4669, 126
        %v4736 = vpop.permute.xlu0 %4735
        %4737 = vrot.lane.b32.xlu0 %v4670, 126
        %v4738 = vpop.permute.xlu0 %4737
        %v4739 = vsel %vm416, %v4720, %v4722
        %v4740 = vsel %vm416, %v4722, %v4724
        %v4741 = vsel %vm416, %v4724, %v4726
        %v4742 = vsel %vm416, %v4726, %v4728
        %v4743 = vsel %vm416, %v4730, %v4732
        %v4744 = vsel %vm416, %v4732, %v4734
        %v4745 = vsel %vm416, %v4734, %v4736
        %v4746 = vsel %vm416, %v4736, %v4738
        %4747 = vrot.lane.b32.xlu0 %v4661, 106
        %v4748 = vpop.permute.xlu0 %4747
        %4749 = vrot.lane.b32.xlu0 %v4662, 106
        %v4750 = vpop.permute.xlu0 %4749
        %4751 = vrot.lane.b32.xlu0 %v4663, 106
        %v4752 = vpop.permute.xlu0 %4751
        %4753 = vrot.lane.b32.xlu0 %v4664, 106
        %v4754 = vpop.permute.xlu0 %4753
        %4755 = vrot.lane.b32.xlu0 %v4665, 106
        %v4756 = vpop.permute.xlu0 %4755
        %4757 = vrot.lane.b32.xlu0 %v4666, 106
        %v4758 = vpop.permute.xlu0 %4757
        %4759 = vrot.lane.b32.xlu0 %v4667, 106
        %v4760 = vpop.permute.xlu0 %4759
        %4761 = vrot.lane.b32.xlu0 %v4668, 106
        %v4762 = vpop.permute.xlu0 %4761
        %4763 = vrot.lane.b32.xlu0 %v4669, 106
        %v4764 = vpop.permute.xlu0 %4763
        %4765 = vrot.lane.b32.xlu0 %v4670, 106
        %v4766 = vpop.permute.xlu0 %4765
        %v4767 = vsel %vm491, %v4748, %v4750
        %v4768 = vsel %vm491, %v4750, %v4752
        %v4769 = vsel %vm491, %v4752, %v4754
        %v4770 = vsel %vm491, %v4754, %v4756
        %v4771 = vsel %vm491, %v4758, %v4760
        %v4772 = vsel %vm491, %v4760, %v4762
        %v4773 = vsel %vm491, %v4762, %v4764
        %v4774 = vsel %vm491, %v4764, %v4766
        %4775 = vrot.lane.b32.xlu0 %v4662, 105
        %v4776 = vpop.permute.xlu0 %4775
        %4777 = vrot.lane.b32.xlu0 %v4663, 105
        %v4778 = vpop.permute.xlu0 %4777
        %4779 = vrot.lane.b32.xlu0 %v4664, 105
        %v4780 = vpop.permute.xlu0 %4779
        %4781 = vrot.lane.b32.xlu0 %v4665, 105
        %v4782 = vpop.permute.xlu0 %4781
        %4783 = vrot.lane.b32.xlu0 %v4667, 105
        %v4784 = vpop.permute.xlu0 %4783
        %4785 = vrot.lane.b32.xlu0 %v4668, 105
        %v4786 = vpop.permute.xlu0 %4785
        %4787 = vrot.lane.b32.xlu0 %v4669, 105
        %v4788 = vpop.permute.xlu0 %4787
        %4789 = vrot.lane.b32.xlu0 %v4670, 105
        %v4790 = vpop.permute.xlu0 %4789
        %v4791 = vsel %vm506, %v4776, %v4778
        %v4792 = vsel %vm506, %v4778, %v4780
        %v4793 = vsel %vm506, %v4780, %v4782
        %v4794 = vsel %vm506, %v4784, %v4786
        %v4795 = vsel %vm506, %v4786, %v4788
        %v4796 = vsel %vm506, %v4788, %v4790
        %4807 = vrot.lane.b32.xlu0 %v4671, 104
        %v4808 = vpop.permute.xlu0 %4807
        %4809 = vrot.lane.b32.xlu0 %v4672, 104
        %v4810 = vpop.permute.xlu0 %4809
        %4811 = vrot.lane.b32.xlu0 %v4673, 104
        %v4812 = vpop.permute.xlu0 %4811
        %4813 = vrot.lane.b32.xlu0 %v4674, 104
        %v4814 = vpop.permute.xlu0 %4813
        %4815 = vrot.lane.b32.xlu0 %v4675, 104
        %v4816 = vpop.permute.xlu0 %4815
        %4817 = vrot.lane.b32.xlu0 %v4676, 104
        %v4818 = vpop.permute.xlu0 %4817
        %4819 = vrot.lane.b32.xlu0 %v4677, 104
        %v4820 = vpop.permute.xlu0 %4819
        %4821 = vrot.lane.b32.xlu0 %v4678, 104
        %v4822 = vpop.permute.xlu0 %4821
        %4823 = vrot.lane.b32.xlu0 %v4679, 104
        %v4824 = vpop.permute.xlu0 %4823
        %4825 = vrot.lane.b32.xlu0 %v4680, 104
        %v4826 = vpop.permute.xlu0 %4825
        %v4827 = vsel %vm521, %v4808, %v4810
        %v4828 = vsel %vm521, %v4810, %v4812
        %v4829 = vsel %vm521, %v4812, %v4814
        %v4830 = vsel %vm521, %v4814, %v4816
        %v4831 = vsel %vm521, %v4818, %v4820
        %v4832 = vsel %vm521, %v4820, %v4822
        %v4833 = vsel %vm521, %v4822, %v4824
        %v4834 = vsel %vm521, %v4824, %v4826
        %4835 = vrot.lane.b32.xlu0 %v4671, 84
        %v4836 = vpop.permute.xlu0 %4835
        %4837 = vrot.lane.b32.xlu0 %v4672, 84
        %v4838 = vpop.permute.xlu0 %4837
        %4839 = vrot.lane.b32.xlu0 %v4673, 84
        %v4840 = vpop.permute.xlu0 %4839
        %4841 = vrot.lane.b32.xlu0 %v4674, 84
        %v4842 = vpop.permute.xlu0 %4841
        %4843 = vrot.lane.b32.xlu0 %v4675, 84
        %v4844 = vpop.permute.xlu0 %4843
        %4845 = vrot.lane.b32.xlu0 %v4676, 84
        %v4846 = vpop.permute.xlu0 %4845
        %4847 = vrot.lane.b32.xlu0 %v4677, 84
        %v4848 = vpop.permute.xlu0 %4847
        %4849 = vrot.lane.b32.xlu0 %v4678, 84
        %v4850 = vpop.permute.xlu0 %4849
        %4851 = vrot.lane.b32.xlu0 %v4679, 84
        %v4852 = vpop.permute.xlu0 %4851
        %4853 = vrot.lane.b32.xlu0 %v4680, 84
        %v4854 = vpop.permute.xlu0 %4853
        %v4855 = vsel %vm596, %v4836, %v4838
        %v4856 = vsel %vm596, %v4838, %v4840
        %v4857 = vsel %vm596, %v4840, %v4842
        %v4858 = vsel %vm596, %v4842, %v4844
        %v4859 = vsel %vm596, %v4846, %v4848
        %v4860 = vsel %vm596, %v4848, %v4850
        %v4861 = vsel %vm596, %v4850, %v4852
        %v4862 = vsel %vm596, %v4852, %v4854
        %4863 = vrot.lane.b32.xlu0 %v4671, 83
        %v4864 = vpop.permute.xlu0 %4863
        %4865 = vrot.lane.b32.xlu0 %v4672, 83
        %v4866 = vpop.permute.xlu0 %4865
        %4867 = vrot.lane.b32.xlu0 %v4673, 83
        %v4868 = vpop.permute.xlu0 %4867
        %4869 = vrot.lane.b32.xlu0 %v4674, 83
        %v4870 = vpop.permute.xlu0 %4869
        %4871 = vrot.lane.b32.xlu0 %v4675, 83
        %v4872 = vpop.permute.xlu0 %4871
        %4873 = vrot.lane.b32.xlu0 %v4676, 83
        %v4874 = vpop.permute.xlu0 %4873
        %4875 = vrot.lane.b32.xlu0 %v4677, 83
        %v4876 = vpop.permute.xlu0 %4875
        %4877 = vrot.lane.b32.xlu0 %v4678, 83
        %v4878 = vpop.permute.xlu0 %4877
        %4879 = vrot.lane.b32.xlu0 %v4679, 83
        %v4880 = vpop.permute.xlu0 %4879
        %4881 = vrot.lane.b32.xlu0 %v4680, 83
        %v4882 = vpop.permute.xlu0 %4881
        %v4883 = vsel %vm611, %v4864, %v4866
        %v4884 = vsel %vm611, %v4866, %v4868
        %v4885 = vsel %vm611, %v4868, %v4870
        %v4886 = vsel %vm611, %v4870, %v4872
        %v4887 = vsel %vm611, %v4874, %v4876
        %v4888 = vsel %vm611, %v4876, %v4878
        %v4889 = vsel %vm611, %v4878, %v4880
        %v4890 = vsel %vm611, %v4880, %v4882
        %4891 = vrot.lane.b32.xlu0 %v4671, 82
        %v4892 = vpop.permute.xlu0 %4891
        %4893 = vrot.lane.b32.xlu0 %v4672, 82
        %v4894 = vpop.permute.xlu0 %4893
        %4895 = vrot.lane.b32.xlu0 %v4673, 82
        %v4896 = vpop.permute.xlu0 %4895
        %4897 = vrot.lane.b32.xlu0 %v4674, 82
        %v4898 = vpop.permute.xlu0 %4897
        %4899 = vrot.lane.b32.xlu0 %v4675, 82
        %v4900 = vpop.permute.xlu0 %4899
        %4901 = vrot.lane.b32.xlu0 %v4676, 82
        %v4902 = vpop.permute.xlu0 %4901
        %4903 = vrot.lane.b32.xlu0 %v4677, 82
        %v4904 = vpop.permute.xlu0 %4903
        %4905 = vrot.lane.b32.xlu0 %v4678, 82
        %v4906 = vpop.permute.xlu0 %4905
        %4907 = vrot.lane.b32.xlu0 %v4679, 82
        %v4908 = vpop.permute.xlu0 %4907
        %4909 = vrot.lane.b32.xlu0 %v4680, 82
        %v4910 = vpop.permute.xlu0 %4909
        %v4911 = vsel %vm1055, %v4892, %v4894
        %v4912 = vsel %vm1055, %v4894, %v4896
        %v4913 = vsel %vm1055, %v4896, %v4898
        %v4914 = vsel %vm1055, %v4898, %v4900
        %v4915 = vsel %vm1055, %v4902, %v4904
        %v4916 = vsel %vm1055, %v4904, %v4906
        %v4917 = vsel %vm1055, %v4906, %v4908
        %v4918 = vsel %vm1055, %v4908, %v4910
        %s4919 = scalar_lea.vmem %s4, 96
        %v4920 = vld [vmem:[%s4919] sm:$0xff]
        %v4921 = vld [vmem:[%s4919 + $0x8] sm:$0xf]
        %v4922 = vld [vmem:[%s4919 + $0xc] sm:$0xff]
        %v4923 = vld [vmem:[%s4919 + $0x14] sm:$0xf]
        %v4924 = vld [vmem:[%s4919 + $0x18] sm:$0xff]
        %v4925 = vld [vmem:[%s4919 + $0x20] sm:$0xf]
        %v4926 = vld [vmem:[%s4919 + $0x24] sm:$0xff]
        %v4927 = vld [vmem:[%s4919 + $0x2c] sm:$0xf]
        %s4928 = scalar_lea.vmem %s5, 64
        %v4929 = vld [vmem:[%s4928] sm:$0xff]
        %v4930 = vld [vmem:[%s4928 + $0x8] sm:$0xff]
        %v4931 = vld [vmem:[%s4928 + $0x10] sm:$0xff]
        %v4932 = vld [vmem:[%s4928 + $0x18] sm:$0xff]
        %4934 = vset.pattern.permute.xlu0 0
        %4935 = vperm.xlu0 %4934, %v4929
        %v4936 = vpop.permute.xlu0 %4935
        %4939 = vset.pattern.permute.xlu0 0
        %4940 = vperm.xlu0 %4939, %v4930
        %v4941 = vpop.permute.xlu0 %4940
        %4944 = vset.pattern.permute.xlu0 0
        %4945 = vperm.xlu0 %4944, %v4931
        %v4946 = vpop.permute.xlu0 %4945
        %4949 = vset.pattern.permute.xlu0 0
        %4950 = vperm.xlu0 %4949, %v4932
        %v4951 = vpop.permute.xlu0 %4950
        %v4961 = vunpack.c.l.b16 %v4920
        %v4962 = vunpack.c.h.b16 %v4920
        %v4963 = vunpack.c.l.b16 %v4921
        %v4964 = vunpack.c.l.b16 %v4922
        %v4965 = vunpack.c.h.b16 %v4922
        %v4966 = vunpack.c.l.b16 %v4923
        %v4967 = vunpack.c.l.b16 %v4924
        %v4968 = vunpack.c.h.b16 %v4924
        %v4969 = vunpack.c.l.b16 %v4925
        %v4970 = vunpack.c.l.b16 %v4926
        %v4971 = vunpack.c.h.b16 %v4926
        %v4972 = vunpack.c.l.b16 %v4927
        %v4973 = vpack.c.b16 %v4964, %v4961
        %v4974 = vpack.c.b16 %v4965, %v4962
        %v4975 = vpack.c.b16 %v4966, %v4963
        %v4976 = vpack.c.b16 %v4970, %v4967
        %v4977 = vpack.c.b16 %v4971, %v4968
        %v4978 = vpack.c.b16 %v4972, %v4969
        %4983 = vrot.lane.b32.xlu0 %v4661, 23
        %v4984 = vpop.permute.xlu0 %4983
        %4985 = vrot.lane.b32.xlu0 %v4662, 23
        %v4986 = vpop.permute.xlu0 %4985
        %4987 = vrot.lane.b32.xlu0 %v4663, 23
        %v4988 = vpop.permute.xlu0 %4987
        %4989 = vrot.lane.b32.xlu0 %v4664, 23
        %v4990 = vpop.permute.xlu0 %4989
        %4991 = vrot.lane.b32.xlu0 %v4665, 23
        %v4992 = vpop.permute.xlu0 %4991
        %4993 = vrot.lane.b32.xlu0 %v4666, 23
        %v4994 = vpop.permute.xlu0 %4993
        %4995 = vrot.lane.b32.xlu0 %v4667, 23
        %v4996 = vpop.permute.xlu0 %4995
        %4997 = vrot.lane.b32.xlu0 %v4668, 23
        %v4998 = vpop.permute.xlu0 %4997
        %4999 = vrot.lane.b32.xlu0 %v4669, 23
        %v5000 = vpop.permute.xlu0 %4999
        %5001 = vrot.lane.b32.xlu0 %v4670, 23
        %v5002 = vpop.permute.xlu0 %5001
        %5003 = vrot.lane.b32.xlu0 %v4711, 23
        %v5004 = vpop.permute.xlu0 %5003
        %5005 = vrot.lane.b32.xlu0 %v4712, 23
        %v5006 = vpop.permute.xlu0 %5005
        %5007 = vrot.lane.b32.xlu0 %v4713, 23
        %v5008 = vpop.permute.xlu0 %5007
        %5009 = vrot.lane.b32.xlu0 %v4714, 23
        %v5010 = vpop.permute.xlu0 %5009
        %5011 = vrot.lane.b32.xlu0 %v4700, 23
        %v5012 = vpop.permute.xlu0 %5011
        %5013 = vrot.lane.b32.xlu0 %v4715, 23
        %v5014 = vpop.permute.xlu0 %5013
        %5015 = vrot.lane.b32.xlu0 %v4716, 23
        %v5016 = vpop.permute.xlu0 %5015
        %5017 = vrot.lane.b32.xlu0 %v4717, 23
        %v5018 = vpop.permute.xlu0 %5017
        %5019 = vrot.lane.b32.xlu0 %v4718, 23
        %v5020 = vpop.permute.xlu0 %5019
        %5021 = vrot.lane.b32.xlu0 %v4710, 23
        %v5022 = vpop.permute.xlu0 %5021
        %5023 = vrot.lane.b32.xlu0 %v4739, 23
        %v5024 = vpop.permute.xlu0 %5023
        %5025 = vrot.lane.b32.xlu0 %v4740, 23
        %v5026 = vpop.permute.xlu0 %5025
        %5027 = vrot.lane.b32.xlu0 %v4741, 23
        %v5028 = vpop.permute.xlu0 %5027
        %5029 = vrot.lane.b32.xlu0 %v4742, 23
        %v5030 = vpop.permute.xlu0 %5029
        %5031 = vrot.lane.b32.xlu0 %v4728, 23
        %v5032 = vpop.permute.xlu0 %5031
        %5033 = vrot.lane.b32.xlu0 %v4743, 23
        %v5034 = vpop.permute.xlu0 %5033
        %5035 = vrot.lane.b32.xlu0 %v4744, 23
        %v5036 = vpop.permute.xlu0 %5035
        %5037 = vrot.lane.b32.xlu0 %v4745, 23
        %v5038 = vpop.permute.xlu0 %5037
        %5039 = vrot.lane.b32.xlu0 %v4746, 23
        %v5040 = vpop.permute.xlu0 %5039
        %5041 = vrot.lane.b32.xlu0 %v4738, 23
        %v5042 = vpop.permute.xlu0 %5041
        %5043 = vrot.lane.b32.xlu0 %v4767, 23
        %v5044 = vpop.permute.xlu0 %5043
        %5045 = vrot.lane.b32.xlu0 %v4768, 23
        %v5046 = vpop.permute.xlu0 %5045
        %5047 = vrot.lane.b32.xlu0 %v4769, 23
        %v5048 = vpop.permute.xlu0 %5047
        %5049 = vrot.lane.b32.xlu0 %v4770, 23
        %v5050 = vpop.permute.xlu0 %5049
        %5051 = vrot.lane.b32.xlu0 %v4756, 23
        %v5052 = vpop.permute.xlu0 %5051
        %5053 = vrot.lane.b32.xlu0 %v4771, 23
        %v5054 = vpop.permute.xlu0 %5053
        %5055 = vrot.lane.b32.xlu0 %v4772, 23
        %v5056 = vpop.permute.xlu0 %5055
        %5057 = vrot.lane.b32.xlu0 %v4773, 23
        %v5058 = vpop.permute.xlu0 %5057
        %5059 = vrot.lane.b32.xlu0 %v4774, 23
        %v5060 = vpop.permute.xlu0 %5059
        %5061 = vrot.lane.b32.xlu0 %v4766, 23
        %v5062 = vpop.permute.xlu0 %5061
        %5063 = vrot.lane.b32.xlu0 %v4776, 23
        %v5064 = vpop.permute.xlu0 %5063
        %5065 = vrot.lane.b32.xlu0 %v4791, 23
        %v5066 = vpop.permute.xlu0 %5065
        %5067 = vrot.lane.b32.xlu0 %v4792, 23
        %v5068 = vpop.permute.xlu0 %5067
        %5069 = vrot.lane.b32.xlu0 %v4793, 23
        %v5070 = vpop.permute.xlu0 %5069
        %5071 = vrot.lane.b32.xlu0 %v4782, 23
        %v5072 = vpop.permute.xlu0 %5071
        %5073 = vrot.lane.b32.xlu0 %v4784, 23
        %v5074 = vpop.permute.xlu0 %5073
        %5075 = vrot.lane.b32.xlu0 %v4794, 23
        %v5076 = vpop.permute.xlu0 %5075
        %5077 = vrot.lane.b32.xlu0 %v4795, 23
        %v5078 = vpop.permute.xlu0 %5077
        %5079 = vrot.lane.b32.xlu0 %v4796, 23
        %v5080 = vpop.permute.xlu0 %5079
        %5081 = vrot.lane.b32.xlu0 %v4790, 23
        %v5082 = vpop.permute.xlu0 %5081
        %5083 = vrot.lane.b32.xlu0 %v4808, 23
        %v5084 = vpop.permute.xlu0 %5083
        %5085 = vrot.lane.b32.xlu0 %v4827, 23
        %v5086 = vpop.permute.xlu0 %5085
        %5087 = vrot.lane.b32.xlu0 %v4828, 23
        %v5088 = vpop.permute.xlu0 %5087
        %5089 = vrot.lane.b32.xlu0 %v4829, 23
        %v5090 = vpop.permute.xlu0 %5089
        %5091 = vrot.lane.b32.xlu0 %v4830, 23
        %v5092 = vpop.permute.xlu0 %5091
        %5093 = vrot.lane.b32.xlu0 %v4818, 23
        %v5094 = vpop.permute.xlu0 %5093
        %5095 = vrot.lane.b32.xlu0 %v4831, 23
        %v5096 = vpop.permute.xlu0 %5095
        %5097 = vrot.lane.b32.xlu0 %v4832, 23
        %v5098 = vpop.permute.xlu0 %5097
        %5099 = vrot.lane.b32.xlu0 %v4833, 23
        %v5100 = vpop.permute.xlu0 %5099
        %5101 = vrot.lane.b32.xlu0 %v4834, 23
        %v5102 = vpop.permute.xlu0 %5101
        %5103 = vrot.lane.b32.xlu0 %v4836, 23
        %v5104 = vpop.permute.xlu0 %5103
        %5105 = vrot.lane.b32.xlu0 %v4855, 23
        %v5106 = vpop.permute.xlu0 %5105
        %5107 = vrot.lane.b32.xlu0 %v4856, 23
        %v5108 = vpop.permute.xlu0 %5107
        %5109 = vrot.lane.b32.xlu0 %v4857, 23
        %v5110 = vpop.permute.xlu0 %5109
        %5111 = vrot.lane.b32.xlu0 %v4858, 23
        %v5112 = vpop.permute.xlu0 %5111
        %5113 = vrot.lane.b32.xlu0 %v4846, 23
        %v5114 = vpop.permute.xlu0 %5113
        %5115 = vrot.lane.b32.xlu0 %v4859, 23
        %v5116 = vpop.permute.xlu0 %5115
        %5117 = vrot.lane.b32.xlu0 %v4860, 23
        %v5118 = vpop.permute.xlu0 %5117
        %5119 = vrot.lane.b32.xlu0 %v4861, 23
        %v5120 = vpop.permute.xlu0 %5119
        %5121 = vrot.lane.b32.xlu0 %v4862, 23
        %v5122 = vpop.permute.xlu0 %5121
        %5123 = vrot.lane.b32.xlu0 %v4864, 23
        %v5124 = vpop.permute.xlu0 %5123
        %5125 = vrot.lane.b32.xlu0 %v4883, 23
        %v5126 = vpop.permute.xlu0 %5125
        %5127 = vrot.lane.b32.xlu0 %v4884, 23
        %v5128 = vpop.permute.xlu0 %5127
        %5129 = vrot.lane.b32.xlu0 %v4885, 23
        %v5130 = vpop.permute.xlu0 %5129
        %5131 = vrot.lane.b32.xlu0 %v4886, 23
        %v5132 = vpop.permute.xlu0 %5131
        %5133 = vrot.lane.b32.xlu0 %v4874, 23
        %v5134 = vpop.permute.xlu0 %5133
        %5135 = vrot.lane.b32.xlu0 %v4887, 23
        %v5136 = vpop.permute.xlu0 %5135
        %5137 = vrot.lane.b32.xlu0 %v4888, 23
        %v5138 = vpop.permute.xlu0 %5137
        %5139 = vrot.lane.b32.xlu0 %v4889, 23
        %v5140 = vpop.permute.xlu0 %5139
        %5141 = vrot.lane.b32.xlu0 %v4890, 23
        %v5142 = vpop.permute.xlu0 %5141
        %5143 = vrot.lane.b32.xlu0 %v4892, 23
        %v5144 = vpop.permute.xlu0 %5143
        %5145 = vrot.lane.b32.xlu0 %v4911, 23
        %v5146 = vpop.permute.xlu0 %5145
        %5147 = vrot.lane.b32.xlu0 %v4912, 23
        %v5148 = vpop.permute.xlu0 %5147
        %5149 = vrot.lane.b32.xlu0 %v4913, 23
        %v5150 = vpop.permute.xlu0 %5149
        %5151 = vrot.lane.b32.xlu0 %v4914, 23
        %v5152 = vpop.permute.xlu0 %5151
        %5153 = vrot.lane.b32.xlu0 %v4902, 23
        %v5154 = vpop.permute.xlu0 %5153
        %5155 = vrot.lane.b32.xlu0 %v4915, 23
        %v5156 = vpop.permute.xlu0 %5155
        %5157 = vrot.lane.b32.xlu0 %v4916, 23
        %v5158 = vpop.permute.xlu0 %5157
        %5159 = vrot.lane.b32.xlu0 %v4917, 23
        %v5160 = vpop.permute.xlu0 %5159
        %5161 = vrot.lane.b32.xlu0 %v4918, 23
        %v5162 = vpop.permute.xlu0 %5161
        %v5163 = vsel %vm3337, %v4984, %v4986
        %v5164 = vsel %vm3337, %v4986, %v4988
        %v5165 = vsel %vm3337, %v4988, %v4990
        %v5166 = vsel %vm3337, %v4990, %v4992
        %v5167 = vsel %vm3337, %v4994, %v4996
        %v5168 = vsel %vm3337, %v4996, %v4998
        %v5169 = vsel %vm3337, %v4998, %v5000
        %v5170 = vsel %vm3337, %v5000, %v5002
        %v5171 = vsel %vm3337, %v5004, %v5006
        %v5172 = vsel %vm3337, %v5006, %v5008
        %v5173 = vsel %vm3337, %v5008, %v5010
        %v5174 = vsel %vm3337, %v5010, %v5012
        %v5175 = vsel %vm3337, %v5014, %v5016
        %v5176 = vsel %vm3337, %v5016, %v5018
        %v5177 = vsel %vm3337, %v5018, %v5020
        %v5178 = vsel %vm3337, %v5020, %v5022
        %v5179 = vsel %vm3337, %v5024, %v5026
        %v5180 = vsel %vm3337, %v5026, %v5028
        %v5181 = vsel %vm3337, %v5028, %v5030
        %v5182 = vsel %vm3337, %v5030, %v5032
        %v5183 = vsel %vm3337, %v5034, %v5036
        %v5184 = vsel %vm3337, %v5036, %v5038
        %v5185 = vsel %vm3337, %v5038, %v5040
        %v5186 = vsel %vm3337, %v5040, %v5042
        %v5187 = vsel %vm3337, %v5044, %v5046
        %v5188 = vsel %vm3337, %v5046, %v5048
        %v5189 = vsel %vm3337, %v5048, %v5050
        %v5190 = vsel %vm3337, %v5050, %v5052
        %v5191 = vsel %vm3337, %v5054, %v5056
        %v5192 = vsel %vm3337, %v5056, %v5058
        %v5193 = vsel %vm3337, %v5058, %v5060
        %v5194 = vsel %vm3337, %v5060, %v5062
        %v5195 = vsel %vm3337, %v5064, %v5066
        %v5196 = vsel %vm3337, %v5066, %v5068
        %v5197 = vsel %vm3337, %v5068, %v5070
        %v5198 = vsel %vm3337, %v5070, %v5072
        %v5199 = vsel %vm3337, %v5074, %v5076
        %v5200 = vsel %vm3337, %v5076, %v5078
        %v5201 = vsel %vm3337, %v5078, %v5080
        %v5202 = vsel %vm3337, %v5080, %v5082
        %v5203 = vsel %vm3337, %v5084, %v5086
        %v5204 = vsel %vm3337, %v5086, %v5088
        %v5205 = vsel %vm3337, %v5088, %v5090
        %v5206 = vsel %vm3337, %v5090, %v5092
        %v5207 = vsel %vm3337, %v5094, %v5096
        %v5208 = vsel %vm3337, %v5096, %v5098
        %v5209 = vsel %vm3337, %v5098, %v5100
        %v5210 = vsel %vm3337, %v5100, %v5102
        %v5211 = vsel %vm3337, %v5104, %v5106
        %v5212 = vsel %vm3337, %v5106, %v5108
        %v5213 = vsel %vm3337, %v5108, %v5110
        %v5214 = vsel %vm3337, %v5110, %v5112
        %v5215 = vsel %vm3337, %v5114, %v5116
        %v5216 = vsel %vm3337, %v5116, %v5118
        %v5217 = vsel %vm3337, %v5118, %v5120
        %v5218 = vsel %vm3337, %v5120, %v5122
        %v5219 = vsel %vm3337, %v5124, %v5126
        %v5220 = vsel %vm3337, %v5126, %v5128
        %v5221 = vsel %vm3337, %v5128, %v5130
        %v5222 = vsel %vm3337, %v5130, %v5132
        %v5223 = vsel %vm3337, %v5134, %v5136
        %v5224 = vsel %vm3337, %v5136, %v5138
        %v5225 = vsel %vm3337, %v5138, %v5140
        %v5226 = vsel %vm3337, %v5140, %v5142
        %v5227 = vsel %vm3337, %v5144, %v5146
        %v5228 = vsel %vm3337, %v5146, %v5148
        %v5229 = vsel %vm3337, %v5148, %v5150
        %v5230 = vsel %vm3337, %v5150, %v5152
        %v5231 = vsel %vm3337, %v5154, %v5156
        %v5232 = vsel %vm3337, %v5156, %v5158
        %v5233 = vsel %vm3337, %v5158, %v5160
        %v5234 = vsel %vm3337, %v5160, %v5162
        %v5308 = vsel %vm3482, %v4975, 0
        %v5311 = vsel %vm3482, %v4978, 0
        %5313 = vmatprep.subr.bf16.mxu0 %v5164
        %5314 = vmatpush1.bf16.msra.mxu0 %v5163
        %5315 = vmatprep.subr.bf16.mxu0 %v5168
        %5316 = vmatpush1.bf16.msra.mxu0 %v5167
        %5317 = vmatprep.subr.bf16.mxu0 %v5172
        %5318 = vmatpush1.bf16.msra.mxu0 %v5171
        %5319 = vmatprep.subr.bf16.mxu0 %v5176
        %5320 = vmatpush1.bf16.msra.mxu0 %v5175
        %5321 = vmatprep.subr.bf16.mxu0 %v5180
        %5322 = vmatpush1.bf16.msra.mxu0 %v5179
        %5323 = vmatprep.subr.bf16.mxu0 %v5184
        %5324 = vmatpush1.bf16.msra.mxu0 %v5183
        %5325 = vmatprep.subr.bf16.mxu0 %v5188
        %5326 = vmatpush1.bf16.msra.mxu0 %v5187
        %5327 = vmatprep.subr.bf16.mxu0 %v5192
        %5328 = vmatpush1.bf16.msra.mxu0 %v5191
        %5329 = vmatprep.subr.bf16.mxu0 %v5196
        %5330 = vmatpush1.bf16.msra.mxu0 %v5195
        %5331 = vmatprep.subr.bf16.mxu0 %v5200
        %5332 = vmatpush1.bf16.msra.mxu0 %v5199
        %5333 = vmatprep.subr.bf16.mxu0 %v5204
        %5334 = vmatpush1.bf16.msra.mxu0 %v5203
        %5335 = vmatprep.subr.bf16.mxu0 %v5208
        %5336 = vmatpush1.bf16.msra.mxu0 %v5207
        %5337 = vmatprep.subr.bf16.mxu0 %v5212
        %5338 = vmatpush1.bf16.msra.mxu0 %v5211
        %5339 = vmatprep.subr.bf16.mxu0 %v5216
        %5340 = vmatpush1.bf16.msra.mxu0 %v5215
        %5341 = vmatprep.subr.bf16.mxu0 %v5220
        %5342 = vmatpush1.bf16.msra.mxu0 %v5219
        %5343 = vmatprep.subr.bf16.mxu0 %v5224
        %5344 = vmatpush1.bf16.msra.mxu0 %v5223
        %5345 = vmatprep.mubr.bf16.mxu0 %v4974
        %5346 = vmatmul.mubr.bf16.gmra.mrb[0].mxu0 %v4973
        %v5347 = vpop.f32.mrb[0].mxu0
        %v5348 = vadd.f32 %v4936, %v5347
        %v5349 = vpop.f32.mrb[0].mxu0
        %v5350 = vadd.f32 %v4936, %v5349
        %v5351 = vpop.f32.mrb[0].mxu0
        %v5352 = vadd.f32 %v4941, %v5351
        %v5353 = vpop.f32.mrb[0].mxu0
        %v5354 = vadd.f32 %v4941, %v5353
        %5355 = vmatprep.mubr.bf16.mxu0 %v4977
        %5356 = vmatmul.mubr.bf16.gmra.mrb[0].mxu0 %v4976
        %v5357 = vpop.f32.mrb[0].mxu0
        %v5358 = vadd.f32 %v4946, %v5357
        %v5359 = vpop.f32.mrb[0].mxu0
        %v5360 = vadd.f32 %v4946, %v5359
        %v5361 = vpop.f32.mrb[0].mxu0
        %v5362 = vadd.f32 %v4951, %v5361
        %v5363 = vpop.f32.mrb[0].mxu0
        %v5364 = vadd.f32 %v4951, %v5363
        %5365 = vdwg.mxu0
        %5366 = vmatprep.subr.bf16.mxu0 %v5228
        %5367 = vmatpush1.bf16.msra.mxu0 %v5227
        %5368 = vmatprep.subr.bf16.mxu0 %v5232
        %5369 = vmatpush1.bf16.msra.mxu0 %v5231
        %5370 = vmatprep.subr.bf16.mxu0 0
        %5371 = vmatpush1.bf16.msra.mxu0 0
        %5372 = vmatprep.subr.bf16.mxu0 0
        %5373 = vmatpush1.bf16.msra.mxu0 0
        %5374 = vmatprep.subr.bf16.mxu0 0
        %5375 = vmatpush1.bf16.msra.mxu0 0
        %5376 = vmatprep.subr.bf16.mxu0 0
        %5377 = vmatpush1.bf16.msra.mxu0 0
        %5378 = vmatprep.subr.bf16.mxu0 0
        %5379 = vmatpush1.bf16.msra.mxu0 0
        %5380 = vmatprep.subr.bf16.mxu0 0
        %5381 = vmatpush1.bf16.msra.mxu0 0
        %5382 = vmatprep.subr.bf16.mxu0 0
        %5383 = vmatpush1.bf16.msra.mxu0 0
        %5384 = vmatprep.subr.bf16.mxu0 0
        %5385 = vmatpush1.bf16.msra.mxu0 0
        %5386 = vmatprep.subr.bf16.mxu0 0
        %5387 = vmatpush1.bf16.msra.mxu0 0
        %5388 = vmatprep.subr.bf16.mxu0 0
        %5389 = vmatpush1.bf16.msra.mxu0 0
        %5390 = vmatprep.subr.bf16.mxu0 0
        %5391 = vmatpush1.bf16.msra.mxu0 0
        %5392 = vmatprep.subr.bf16.mxu0 0
        %5393 = vmatpush1.bf16.msra.mxu0 0
        %5394 = vmatprep.subr.bf16.mxu0 0
        %5395 = vmatpush1.bf16.msra.mxu0 0
        %5396 = vmatprep.subr.bf16.mxu0 0
        %5397 = vmatpush1.bf16.msra.mxu0 0
        %5398 = vmatprep.mubr.bf16.mxu0 0
        %5399 = vmatmul.mubr.bf16.gmra.mrb[0].mxu0 %v5308
        %v5400 = vpop.f32.mrb[0].mxu0
        %v5401 = vadd.f32 %v5348, %v5400
        %v5402 = vpop.f32.mrb[0].mxu0
        %v5403 = vadd.f32 %v5350, %v5402
        %v5404 = vpop.f32.mrb[0].mxu0
        %v5405 = vadd.f32 %v5352, %v5404
        %v5406 = vpop.f32.mrb[0].mxu0
        %v5407 = vadd.f32 %v5354, %v5406
        %5408 = vmatprep.mubr.bf16.mxu0 0
        %5409 = vmatmul.mubr.bf16.gmra.mrb[0].mxu0 %v5311
        %v5410 = vpop.f32.mrb[0].mxu0
        %v5411 = vadd.f32 %v5358, %v5410
        %v5412 = vpop.f32.mrb[0].mxu0
        %v5413 = vadd.f32 %v5360, %v5412
        %v5414 = vpop.f32.mrb[0].mxu0
        %v5415 = vadd.f32 %v5362, %v5414
        %v5416 = vpop.f32.mrb[0].mxu0
        %v5417 = vadd.f32 %v5364, %v5416
        %5418 = vdwg.mxu0
        %5419 = vmatprep.subr.bf16.mxu0 %v5166
        %5420 = vmatpush1.bf16.msra.mxu0 %v5165
        %5421 = vmatprep.subr.bf16.mxu0 %v5170
        %5422 = vmatpush1.bf16.msra.mxu0 %v5169
        %5423 = vmatprep.subr.bf16.mxu0 %v5174
        %5424 = vmatpush1.bf16.msra.mxu0 %v5173
        %5425 = vmatprep.subr.bf16.mxu0 %v5178
        %5426 = vmatpush1.bf16.msra.mxu0 %v5177
        %5427 = vmatprep.subr.bf16.mxu0 %v5182
        %5428 = vmatpush1.bf16.msra.mxu0 %v5181
        %5429 = vmatprep.subr.bf16.mxu0 %v5186
        %5430 = vmatpush1.bf16.msra.mxu0 %v5185
        %5431 = vmatprep.subr.bf16.mxu0 %v5190
        %5432 = vmatpush1.bf16.msra.mxu0 %v5189
        %5433 = vmatprep.subr.bf16.mxu0 %v5194
        %5434 = vmatpush1.bf16.msra.mxu0 %v5193
        %5435 = vmatprep.subr.bf16.mxu0 %v5198
        %5436 = vmatpush1.bf16.msra.mxu0 %v5197
        %5437 = vmatprep.subr.bf16.mxu0 %v5202
        %5438 = vmatpush1.bf16.msra.mxu0 %v5201
        %5439 = vmatprep.subr.bf16.mxu0 %v5206
        %5440 = vmatpush1.bf16.msra.mxu0 %v5205
        %5441 = vmatprep.subr.bf16.mxu0 %v5210
        %5442 = vmatpush1.bf16.msra.mxu0 %v5209
        %5443 = vmatprep.subr.bf16.mxu0 %v5214
        %5444 = vmatpush1.bf16.msra.mxu0 %v5213
        %5445 = vmatprep.subr.bf16.mxu0 %v5218
        %5446 = vmatpush1.bf16.msra.mxu0 %v5217
        %5447 = vmatprep.subr.bf16.mxu0 %v5222
        %5448 = vmatpush1.bf16.msra.mxu0 %v5221
        %5449 = vmatprep.subr.bf16.mxu0 %v5226
        %5450 = vmatpush1.bf16.msra.mxu0 %v5225
        %5451 = vmatprep.mubr.bf16.mxu0 %v4974
        %5452 = vmatmul.mubr.bf16.gmra.mrb[0].mxu0 %v4973
        %v5453 = vpop.f32.mrb[0].mxu0
        %v5454 = vadd.f32 %v4936, %v5453
        %v5455 = vpop.f32.mrb[0].mxu0
        %v5456 = vadd.f32 %v4936, %v5455
        %v5457 = vpop.f32.mrb[0].mxu0
        %v5458 = vadd.f32 %v4941, %v5457
        %v5459 = vpop.f32.mrb[0].mxu0
        %v5460 = vadd.f32 %v4941, %v5459
        %5461 = vmatprep.mubr.bf16.mxu0 %v4977
        %5462 = vmatmul.mubr.bf16.gmra.mrb[0].mxu0 %v4976
        %v5463 = vpop.f32.mrb[0].mxu0
        %v5464 = vadd.f32 %v4946, %v5463
        %v5465 = vpop.f32.mrb[0].mxu0
        %v5466 = vadd.f32 %v4946, %v5465
        %v5467 = vpop.f32.mrb[0].mxu0
        %v5468 = vadd.f32 %v4951, %v5467
        %v5469 = vpop.f32.mrb[0].mxu0
        %v5470 = vadd.f32 %v4951, %v5469
        %5471 = vdwg.mxu0
        %5472 = vmatprep.subr.bf16.mxu0 %v5230
        %5473 = vmatpush1.bf16.msra.mxu0 %v5229
        %5474 = vmatprep.subr.bf16.mxu0 %v5234
        %5475 = vmatpush1.bf16.msra.mxu0 %v5233
        %5476 = vmatprep.subr.bf16.mxu0 0
        %5477 = vmatpush1.bf16.msra.mxu0 0
        %5478 = vmatprep.subr.bf16.mxu0 0
        %5479 = vmatpush1.bf16.msra.mxu0 0
        %5480 = vmatprep.subr.bf16.mxu0 0
        %5481 = vmatpush1.bf16.msra.mxu0 0
        %5482 = vmatprep.subr.bf16.mxu0 0
        %5483 = vmatpush1.bf16.msra.mxu0 0
        %5484 = vmatprep.subr.bf16.mxu0 0
        %5485 = vmatpush1.bf16.msra.mxu0 0
        %5486 = vmatprep.subr.bf16.mxu0 0
        %5487 = vmatpush1.bf16.msra.mxu0 0
        %5488 = vmatprep.subr.bf16.mxu0 0
        %5489 = vmatpush1.bf16.msra.mxu0 0
        %5490 = vmatprep.subr.bf16.mxu0 0
        %5491 = vmatpush1.bf16.msra.mxu0 0
        %5492 = vmatprep.subr.bf16.mxu0 0
        %5493 = vmatpush1.bf16.msra.mxu0 0
        %5494 = vmatprep.subr.bf16.mxu0 0
        %5495 = vmatpush1.bf16.msra.mxu0 0
        %5496 = vmatprep.subr.bf16.mxu0 0
        %5497 = vmatpush1.bf16.msra.mxu0 0
        %5498 = vmatprep.subr.bf16.mxu0 0
        %5499 = vmatpush1.bf16.msra.mxu0 0
        %5500 = vmatprep.subr.bf16.mxu0 0
        %5501 = vmatpush1.bf16.msra.mxu0 0
        %5502 = vmatprep.subr.bf16.mxu0 0
        %5503 = vmatpush1.bf16.msra.mxu0 0
        %5504 = vmatprep.mubr.bf16.mxu0 0
        %5505 = vmatmul.mubr.bf16.gmra.mrb[0].mxu0 %v5308
        %v5506 = vpop.f32.mrb[0].mxu0
        %v5507 = vadd.f32 %v5454, %v5506
        %v5508 = vpop.f32.mrb[0].mxu0
        %v5509 = vadd.f32 %v5456, %v5508
        %v5510 = vpop.f32.mrb[0].mxu0
        %v5511 = vadd.f32 %v5458, %v5510
        %v5512 = vpop.f32.mrb[0].mxu0
        %v5513 = vadd.f32 %v5460, %v5512
        %5514 = vmatprep.mubr.bf16.mxu0 0
        %5515 = vmatmul.mubr.bf16.gmra.mrb[0].mxu0 %v5311
        %v5516 = vpop.f32.mrb[0].mxu0
        %v5517 = vadd.f32 %v5464, %v5516
        %v5518 = vpop.f32.mrb[0].mxu0
        %v5519 = vadd.f32 %v5466, %v5518
        %v5520 = vpop.f32.mrb[0].mxu0
        %v5521 = vadd.f32 %v5468, %v5520
        %v5522 = vpop.f32.mrb[0].mxu0
        %v5523 = vadd.f32 %v5470, %v5522
        %5524 = vdwg.mxu0
        %v5525 = vmax.f32 %v5401, 0.0
        %v5526 = vmax.f32 %v5403, 0.0
        %v5527 = vmax.f32 %v5507, 0.0
        %v5528 = vmax.f32 %v5509, 0.0
        %v5529 = vmax.f32 %v5405, 0.0
        %v5530 = vmax.f32 %v5407, 0.0
        %v5531 = vmax.f32 %v5511, 0.0
        %v5532 = vmax.f32 %v5513, 0.0
        %v5533 = vmax.f32 %v5411, 0.0
        %v5534 = vmax.f32 %v5413, 0.0
        %v5535 = vmax.f32 %v5517, 0.0
        %v5536 = vmax.f32 %v5519, 0.0
        %v5537 = vmax.f32 %v5415, 0.0
        %v5538 = vmax.f32 %v5417, 0.0
        %v5539 = vmax.f32 %v5521, 0.0
        %v5540 = vmax.f32 %v5523, 0.0
        %v5541 = vmul.f32 %v5525, %v2788
        %v5542 = vmul.f32 %v5526, %v2792
        %v5543 = vmul.f32 %v5527, %v2796
        %v5544 = vmul.f32 %v5528, %v2800
        %v5545 = vmul.f32 %v5529, %v2788
        %v5546 = vmul.f32 %v5530, %v2792
        %v5547 = vmul.f32 %v5531, %v2796
        %v5548 = vmul.f32 %v5532, %v2800
        %v5549 = vmul.f32 %v5533, %v2788
        %v5550 = vmul.f32 %v5534, %v2792
        %v5551 = vmul.f32 %v5535, %v2796
        %v5552 = vmul.f32 %v5536, %v2800
        %v5553 = vmul.f32 %v5537, %v2788
        %v5554 = vmul.f32 %v5538, %v2792
        %v5555 = vmul.f32 %v5539, %v2796
        %v5556 = vmul.f32 %v5540, %v2800
        %v5557 = vpack.c.bf16 %v5545, %v5541
        %v5558 = vpack.c.bf16 %v5546, %v5542
        %v5559 = vpack.c.bf16 %v5547, %v5543
        %v5560 = vpack.c.bf16 %v5548, %v5544
        %v5561 = vpack.c.bf16 %v5553, %v5549
        %v5562 = vpack.c.bf16 %v5554, %v5550
        %v5563 = vpack.c.bf16 %v5555, %v5551
        %v5564 = vpack.c.bf16 %v5556, %v5552
        %5565 = vst [vmem:[#allocation3 + $0x8] sm:$0xff] %v5557
        %5566 = vst [vmem:[#allocation3 + $0x10] sm:$0xff] %v5558
        %5567 = vst [vmem:[#allocation3 + $0x18] sm:$0xff] %v5559
        %5568 = vst [vmem:[#allocation3 + $0x20] sm:$0xff] %v5560
        %5569 = vst [vmem:[#allocation3 + $0x38] sm:$0xff] %v5561
        %5570 = vst [vmem:[#allocation3 + $0x40] sm:$0xff] %v5562
        %5571 = vst [vmem:[#allocation3 + $0x48] sm:$0xff] %v5563
        %5572 = vst [vmem:[#allocation3 + $0x50] sm:$0xff] %v5564
        %v5573 = vld [vmem:[#allocation3] sm:$0xff]
        %v5574 = vld [vmem:[#allocation3 + $0x8] sm:$0xff]
        %v5575 = vld [vmem:[#allocation3 + $0x10] sm:$0xff]
        %v5576 = vld [vmem:[#allocation3 + $0x18] sm:$0xff]
        %v5577 = vld [vmem:[#allocation3 + $0x20] sm:$0xff]
        %v5578 = vld [vmem:[#allocation3 + $0x30] sm:$0xff]
        %v5579 = vld [vmem:[#allocation3 + $0x38] sm:$0xff]
        %v5580 = vld [vmem:[#allocation3 + $0x40] sm:$0xff]
        %v5581 = vld [vmem:[#allocation3 + $0x48] sm:$0xff]
        %v5582 = vld [vmem:[#allocation3 + $0x50] sm:$0xff]
        %v5583 = vld [vmem:[#allocation3 + $0x8] sm:$0xff]
        %v5584 = vld [vmem:[#allocation3 + $0x10] sm:$0xff]
        %v5585 = vld [vmem:[#allocation3 + $0x18] sm:$0xff]
        %v5586 = vld [vmem:[#allocation3 + $0x20] sm:$0xff]
        %v5587 = vld [vmem:[#allocation3 + $0x28] sm:$0xff]
        %v5588 = vld [vmem:[#allocation3 + $0x38] sm:$0xff]
        %v5589 = vld [vmem:[#allocation3 + $0x40] sm:$0xff]
        %v5590 = vld [vmem:[#allocation3 + $0x48] sm:$0xff]
        %v5591 = vld [vmem:[#allocation3 + $0x50] sm:$0xff]
        %v5592 = vld [vmem:[#allocation3 + $0x58] sm:$0xff]
        %5603 = vrot.lane.b32.xlu0 %v5573, 127
        %v5604 = vpop.permute.xlu0 %5603
        %5605 = vrot.lane.b32.xlu0 %v5574, 127
        %v5606 = vpop.permute.xlu0 %5605
        %5607 = vrot.lane.b32.xlu0 %v5575, 127
        %v5608 = vpop.permute.xlu0 %5607
        %5609 = vrot.lane.b32.xlu0 %v5576, 127
        %v5610 = vpop.permute.xlu0 %5609
        %5611 = vrot.lane.b32.xlu0 %v5577, 127
        %v5612 = vpop.permute.xlu0 %5611
        %5613 = vrot.lane.b32.xlu0 %v5578, 127
        %v5614 = vpop.permute.xlu0 %5613
        %5615 = vrot.lane.b32.xlu0 %v5579, 127
        %v5616 = vpop.permute.xlu0 %5615
        %5617 = vrot.lane.b32.xlu0 %v5580, 127
        %v5618 = vpop.permute.xlu0 %5617
        %5619 = vrot.lane.b32.xlu0 %v5581, 127
        %v5620 = vpop.permute.xlu0 %5619
        %5621 = vrot.lane.b32.xlu0 %v5582, 127
        %v5622 = vpop.permute.xlu0 %5621
        %v5623 = vsel %vm401, %v5604, %v5606
        %v5624 = vsel %vm401, %v5606, %v5608
        %v5625 = vsel %vm401, %v5608, %v5610
        %v5626 = vsel %vm401, %v5610, %v5612
        %v5627 = vsel %vm401, %v5614, %v5616
        %v5628 = vsel %vm401, %v5616, %v5618
        %v5629 = vsel %vm401, %v5618, %v5620
        %v5630 = vsel %vm401, %v5620, %v5622
        %5631 = vrot.lane.b32.xlu0 %v5573, 126
        %v5632 = vpop.permute.xlu0 %5631
        %5633 = vrot.lane.b32.xlu0 %v5574, 126
        %v5634 = vpop.permute.xlu0 %5633
        %5635 = vrot.lane.b32.xlu0 %v5575, 126
        %v5636 = vpop.permute.xlu0 %5635
        %5637 = vrot.lane.b32.xlu0 %v5576, 126
        %v5638 = vpop.permute.xlu0 %5637
        %5639 = vrot.lane.b32.xlu0 %v5577, 126
        %v5640 = vpop.permute.xlu0 %5639
        %5641 = vrot.lane.b32.xlu0 %v5578, 126
        %v5642 = vpop.permute.xlu0 %5641
        %5643 = vrot.lane.b32.xlu0 %v5579, 126
        %v5644 = vpop.permute.xlu0 %5643
        %5645 = vrot.lane.b32.xlu0 %v5580, 126
        %v5646 = vpop.permute.xlu0 %5645
        %5647 = vrot.lane.b32.xlu0 %v5581, 126
        %v5648 = vpop.permute.xlu0 %5647
        %5649 = vrot.lane.b32.xlu0 %v5582, 126
        %v5650 = vpop.permute.xlu0 %5649
        %v5651 = vsel %vm416, %v5632, %v5634
        %v5652 = vsel %vm416, %v5634, %v5636
        %v5653 = vsel %vm416, %v5636, %v5638
        %v5654 = vsel %vm416, %v5638, %v5640
        %v5655 = vsel %vm416, %v5642, %v5644
        %v5656 = vsel %vm416, %v5644, %v5646
        %v5657 = vsel %vm416, %v5646, %v5648
        %v5658 = vsel %vm416, %v5648, %v5650
        %5659 = vrot.lane.b32.xlu0 %v5573, 106
        %v5660 = vpop.permute.xlu0 %5659
        %5661 = vrot.lane.b32.xlu0 %v5574, 106
        %v5662 = vpop.permute.xlu0 %5661
        %5663 = vrot.lane.b32.xlu0 %v5575, 106
        %v5664 = vpop.permute.xlu0 %5663
        %5665 = vrot.lane.b32.xlu0 %v5576, 106
        %v5666 = vpop.permute.xlu0 %5665
        %5667 = vrot.lane.b32.xlu0 %v5577, 106
        %v5668 = vpop.permute.xlu0 %5667
        %5669 = vrot.lane.b32.xlu0 %v5578, 106
        %v5670 = vpop.permute.xlu0 %5669
        %5671 = vrot.lane.b32.xlu0 %v5579, 106
        %v5672 = vpop.permute.xlu0 %5671
        %5673 = vrot.lane.b32.xlu0 %v5580, 106
        %v5674 = vpop.permute.xlu0 %5673
        %5675 = vrot.lane.b32.xlu0 %v5581, 106
        %v5676 = vpop.permute.xlu0 %5675
        %5677 = vrot.lane.b32.xlu0 %v5582, 106
        %v5678 = vpop.permute.xlu0 %5677
        %v5679 = vsel %vm491, %v5660, %v5662
        %v5680 = vsel %vm491, %v5662, %v5664
        %v5681 = vsel %vm491, %v5664, %v5666
        %v5682 = vsel %vm491, %v5666, %v5668
        %v5683 = vsel %vm491, %v5670, %v5672
        %v5684 = vsel %vm491, %v5672, %v5674
        %v5685 = vsel %vm491, %v5674, %v5676
        %v5686 = vsel %vm491, %v5676, %v5678
        %5687 = vrot.lane.b32.xlu0 %v5574, 105
        %v5688 = vpop.permute.xlu0 %5687
        %5689 = vrot.lane.b32.xlu0 %v5575, 105
        %v5690 = vpop.permute.xlu0 %5689
        %5691 = vrot.lane.b32.xlu0 %v5576, 105
        %v5692 = vpop.permute.xlu0 %5691
        %5693 = vrot.lane.b32.xlu0 %v5577, 105
        %v5694 = vpop.permute.xlu0 %5693
        %5695 = vrot.lane.b32.xlu0 %v5579, 105
        %v5696 = vpop.permute.xlu0 %5695
        %5697 = vrot.lane.b32.xlu0 %v5580, 105
        %v5698 = vpop.permute.xlu0 %5697
        %5699 = vrot.lane.b32.xlu0 %v5581, 105
        %v5700 = vpop.permute.xlu0 %5699
        %5701 = vrot.lane.b32.xlu0 %v5582, 105
        %v5702 = vpop.permute.xlu0 %5701
        %v5703 = vsel %vm506, %v5688, %v5690
        %v5704 = vsel %vm506, %v5690, %v5692
        %v5705 = vsel %vm506, %v5692, %v5694
        %v5706 = vsel %vm506, %v5696, %v5698
        %v5707 = vsel %vm506, %v5698, %v5700
        %v5708 = vsel %vm506, %v5700, %v5702
        %5719 = vrot.lane.b32.xlu0 %v5583, 104
        %v5720 = vpop.permute.xlu0 %5719
        %5721 = vrot.lane.b32.xlu0 %v5584, 104
        %v5722 = vpop.permute.xlu0 %5721
        %5723 = vrot.lane.b32.xlu0 %v5585, 104
        %v5724 = vpop.permute.xlu0 %5723
        %5725 = vrot.lane.b32.xlu0 %v5586, 104
        %v5726 = vpop.permute.xlu0 %5725
        %5727 = vrot.lane.b32.xlu0 %v5587, 104
        %v5728 = vpop.permute.xlu0 %5727
        %5729 = vrot.lane.b32.xlu0 %v5588, 104
        %v5730 = vpop.permute.xlu0 %5729
        %5731 = vrot.lane.b32.xlu0 %v5589, 104
        %v5732 = vpop.permute.xlu0 %5731
        %5733 = vrot.lane.b32.xlu0 %v5590, 104
        %v5734 = vpop.permute.xlu0 %5733
        %5735 = vrot.lane.b32.xlu0 %v5591, 104
        %v5736 = vpop.permute.xlu0 %5735
        %5737 = vrot.lane.b32.xlu0 %v5592, 104
        %v5738 = vpop.permute.xlu0 %5737
        %v5739 = vsel %vm521, %v5720, %v5722
        %v5740 = vsel %vm521, %v5722, %v5724
        %v5741 = vsel %vm521, %v5724, %v5726
        %v5742 = vsel %vm521, %v5726, %v5728
        %v5743 = vsel %vm521, %v5730, %v5732
        %v5744 = vsel %vm521, %v5732, %v5734
        %v5745 = vsel %vm521, %v5734, %v5736
        %v5746 = vsel %vm521, %v5736, %v5738
        %5747 = vrot.lane.b32.xlu0 %v5583, 84
        %v5748 = vpop.permute.xlu0 %5747
        %5749 = vrot.lane.b32.xlu0 %v5584, 84
        %v5750 = vpop.permute.xlu0 %5749
        %5751 = vrot.lane.b32.xlu0 %v5585, 84
        %v5752 = vpop.permute.xlu0 %5751
        %5753 = vrot.lane.b32.xlu0 %v5586, 84
        %v5754 = vpop.permute.xlu0 %5753
        %5755 = vrot.lane.b32.xlu0 %v5587, 84
        %v5756 = vpop.permute.xlu0 %5755
        %5757 = vrot.lane.b32.xlu0 %v5588, 84
        %v5758 = vpop.permute.xlu0 %5757
        %5759 = vrot.lane.b32.xlu0 %v5589, 84
        %v5760 = vpop.permute.xlu0 %5759
        %5761 = vrot.lane.b32.xlu0 %v5590, 84
        %v5762 = vpop.permute.xlu0 %5761
        %5763 = vrot.lane.b32.xlu0 %v5591, 84
        %v5764 = vpop.permute.xlu0 %5763
        %5765 = vrot.lane.b32.xlu0 %v5592, 84
        %v5766 = vpop.permute.xlu0 %5765
        %v5767 = vsel %vm596, %v5748, %v5750
        %v5768 = vsel %vm596, %v5750, %v5752
        %v5769 = vsel %vm596, %v5752, %v5754
        %v5770 = vsel %vm596, %v5754, %v5756
        %v5771 = vsel %vm596, %v5758, %v5760
        %v5772 = vsel %vm596, %v5760, %v5762
        %v5773 = vsel %vm596, %v5762, %v5764
        %v5774 = vsel %vm596, %v5764, %v5766
        %5775 = vrot.lane.b32.xlu0 %v5583, 83
        %v5776 = vpop.permute.xlu0 %5775
        %5777 = vrot.lane.b32.xlu0 %v5584, 83
        %v5778 = vpop.permute.xlu0 %5777
        %5779 = vrot.lane.b32.xlu0 %v5585, 83
        %v5780 = vpop.permute.xlu0 %5779
        %5781 = vrot.lane.b32.xlu0 %v5586, 83
        %v5782 = vpop.permute.xlu0 %5781
        %5783 = vrot.lane.b32.xlu0 %v5587, 83
        %v5784 = vpop.permute.xlu0 %5783
        %5785 = vrot.lane.b32.xlu0 %v5588, 83
        %v5786 = vpop.permute.xlu0 %5785
        %5787 = vrot.lane.b32.xlu0 %v5589, 83
        %v5788 = vpop.permute.xlu0 %5787
        %5789 = vrot.lane.b32.xlu0 %v5590, 83
        %v5790 = vpop.permute.xlu0 %5789
        %5791 = vrot.lane.b32.xlu0 %v5591, 83
        %v5792 = vpop.permute.xlu0 %5791
        %5793 = vrot.lane.b32.xlu0 %v5592, 83
        %v5794 = vpop.permute.xlu0 %5793
        %v5795 = vsel %vm611, %v5776, %v5778
        %v5796 = vsel %vm611, %v5778, %v5780
        %v5797 = vsel %vm611, %v5780, %v5782
        %v5798 = vsel %vm611, %v5782, %v5784
        %v5799 = vsel %vm611, %v5786, %v5788
        %v5800 = vsel %vm611, %v5788, %v5790
        %v5801 = vsel %vm611, %v5790, %v5792
        %v5802 = vsel %vm611, %v5792, %v5794
        %5803 = vrot.lane.b32.xlu0 %v5583, 82
        %v5804 = vpop.permute.xlu0 %5803
        %5805 = vrot.lane.b32.xlu0 %v5584, 82
        %v5806 = vpop.permute.xlu0 %5805
        %5807 = vrot.lane.b32.xlu0 %v5585, 82
        %v5808 = vpop.permute.xlu0 %5807
        %5809 = vrot.lane.b32.xlu0 %v5586, 82
        %v5810 = vpop.permute.xlu0 %5809
        %5811 = vrot.lane.b32.xlu0 %v5587, 82
        %v5812 = vpop.permute.xlu0 %5811
        %5813 = vrot.lane.b32.xlu0 %v5588, 82
        %v5814 = vpop.permute.xlu0 %5813
        %5815 = vrot.lane.b32.xlu0 %v5589, 82
        %v5816 = vpop.permute.xlu0 %5815
        %5817 = vrot.lane.b32.xlu0 %v5590, 82
        %v5818 = vpop.permute.xlu0 %5817
        %5819 = vrot.lane.b32.xlu0 %v5591, 82
        %v5820 = vpop.permute.xlu0 %5819
        %5821 = vrot.lane.b32.xlu0 %v5592, 82
        %v5822 = vpop.permute.xlu0 %5821
        %v5823 = vsel %vm1055, %v5804, %v5806
        %v5824 = vsel %vm1055, %v5806, %v5808
        %v5825 = vsel %vm1055, %v5808, %v5810
        %v5826 = vsel %vm1055, %v5810, %v5812
        %v5827 = vsel %vm1055, %v5814, %v5816
        %v5828 = vsel %vm1055, %v5816, %v5818
        %v5829 = vsel %vm1055, %v5818, %v5820
        %v5830 = vsel %vm1055, %v5820, %v5822
        %s5831 = scalar_lea.vmem %s4, 144
        %v5832 = vld [vmem:[%s5831] sm:$0xff]
        %v5833 = vld [vmem:[%s5831 + $0x8] sm:$0xf]
        %v5834 = vld [vmem:[%s5831 + $0xc] sm:$0xff]
        %v5835 = vld [vmem:[%s5831 + $0x14] sm:$0xf]
        %v5836 = vld [vmem:[%s5831 + $0x18] sm:$0xff]
        %v5837 = vld [vmem:[%s5831 + $0x20] sm:$0xf]
        %v5838 = vld [vmem:[%s5831 + $0x24] sm:$0xff]
        %v5839 = vld [vmem:[%s5831 + $0x2c] sm:$0xf]
        %s5840 = scalar_lea.vmem %s5, 96
        %v5841 = vld [vmem:[%s5840] sm:$0xff]
        %v5842 = vld [vmem:[%s5840 + $0x8] sm:$0xff]
        %v5843 = vld [vmem:[%s5840 + $0x10] sm:$0xff]
        %v5844 = vld [vmem:[%s5840 + $0x18] sm:$0xff]
        %5846 = vset.pattern.permute.xlu0 0
        %5847 = vperm.xlu0 %5846, %v5841
        %v5848 = vpop.permute.xlu0 %5847
        %5851 = vset.pattern.permute.xlu0 0
        %5852 = vperm.xlu0 %5851, %v5842
        %v5853 = vpop.permute.xlu0 %5852
        %5856 = vset.pattern.permute.xlu0 0
        %5857 = vperm.xlu0 %5856, %v5843
        %v5858 = vpop.permute.xlu0 %5857
        %5861 = vset.pattern.permute.xlu0 0
        %5862 = vperm.xlu0 %5861, %v5844
        %v5863 = vpop.permute.xlu0 %5862
        %v5873 = vunpack.c.l.b16 %v5832
        %v5874 = vunpack.c.h.b16 %v5832
        %v5875 = vunpack.c.l.b16 %v5833
        %v5876 = vunpack.c.l.b16 %v5834
        %v5877 = vunpack.c.h.b16 %v5834
        %v5878 = vunpack.c.l.b16 %v5835
        %v5879 = vunpack.c.l.b16 %v5836
        %v5880 = vunpack.c.h.b16 %v5836
        %v5881 = vunpack.c.l.b16 %v5837
        %v5882 = vunpack.c.l.b16 %v5838
        %v5883 = vunpack.c.h.b16 %v5838
        %v5884 = vunpack.c.l.b16 %v5839
        %v5885 = vpack.c.b16 %v5876, %v5873
        %v5886 = vpack.c.b16 %v5877, %v5874
        %v5887 = vpack.c.b16 %v5878, %v5875
        %v5888 = vpack.c.b16 %v5882, %v5879
        %v5889 = vpack.c.b16 %v5883, %v5880
        %v5890 = vpack.c.b16 %v5884, %v5881
        %5895 = vrot.lane.b32.xlu0 %v5573, 23
        %v5896 = vpop.permute.xlu0 %5895
        %5897 = vrot.lane.b32.xlu0 %v5574, 23
        %v5898 = vpop.permute.xlu0 %5897
        %5899 = vrot.lane.b32.xlu0 %v5575, 23
        %v5900 = vpop.permute.xlu0 %5899
        %5901 = vrot.lane.b32.xlu0 %v5576, 23
        %v5902 = vpop.permute.xlu0 %5901
        %5903 = vrot.lane.b32.xlu0 %v5577, 23
        %v5904 = vpop.permute.xlu0 %5903
        %5905 = vrot.lane.b32.xlu0 %v5578, 23
        %v5906 = vpop.permute.xlu0 %5905
        %5907 = vrot.lane.b32.xlu0 %v5579, 23
        %v5908 = vpop.permute.xlu0 %5907
        %5909 = vrot.lane.b32.xlu0 %v5580, 23
        %v5910 = vpop.permute.xlu0 %5909
        %5911 = vrot.lane.b32.xlu0 %v5581, 23
        %v5912 = vpop.permute.xlu0 %5911
        %5913 = vrot.lane.b32.xlu0 %v5582, 23
        %v5914 = vpop.permute.xlu0 %5913
        %5915 = vrot.lane.b32.xlu0 %v5623, 23
        %v5916 = vpop.permute.xlu0 %5915
        %5917 = vrot.lane.b32.xlu0 %v5624, 23
        %v5918 = vpop.permute.xlu0 %5917
        %5919 = vrot.lane.b32.xlu0 %v5625, 23
        %v5920 = vpop.permute.xlu0 %5919
        %5921 = vrot.lane.b32.xlu0 %v5626, 23
        %v5922 = vpop.permute.xlu0 %5921
        %5923 = vrot.lane.b32.xlu0 %v5612, 23
        %v5924 = vpop.permute.xlu0 %5923
        %5925 = vrot.lane.b32.xlu0 %v5627, 23
        %v5926 = vpop.permute.xlu0 %5925
        %5927 = vrot.lane.b32.xlu0 %v5628, 23
        %v5928 = vpop.permute.xlu0 %5927
        %5929 = vrot.lane.b32.xlu0 %v5629, 23
        %v5930 = vpop.permute.xlu0 %5929
        %5931 = vrot.lane.b32.xlu0 %v5630, 23
        %v5932 = vpop.permute.xlu0 %5931
        %5933 = vrot.lane.b32.xlu0 %v5622, 23
        %v5934 = vpop.permute.xlu0 %5933
        %5935 = vrot.lane.b32.xlu0 %v5651, 23
        %v5936 = vpop.permute.xlu0 %5935
        %5937 = vrot.lane.b32.xlu0 %v5652, 23
        %v5938 = vpop.permute.xlu0 %5937
        %5939 = vrot.lane.b32.xlu0 %v5653, 23
        %v5940 = vpop.permute.xlu0 %5939
        %5941 = vrot.lane.b32.xlu0 %v5654, 23
        %v5942 = vpop.permute.xlu0 %5941
        %5943 = vrot.lane.b32.xlu0 %v5640, 23
        %v5944 = vpop.permute.xlu0 %5943
        %5945 = vrot.lane.b32.xlu0 %v5655, 23
        %v5946 = vpop.permute.xlu0 %5945
        %5947 = vrot.lane.b32.xlu0 %v5656, 23
        %v5948 = vpop.permute.xlu0 %5947
        %5949 = vrot.lane.b32.xlu0 %v5657, 23
        %v5950 = vpop.permute.xlu0 %5949
        %5951 = vrot.lane.b32.xlu0 %v5658, 23
        %v5952 = vpop.permute.xlu0 %5951
        %5953 = vrot.lane.b32.xlu0 %v5650, 23
        %v5954 = vpop.permute.xlu0 %5953
        %5955 = vrot.lane.b32.xlu0 %v5679, 23
        %v5956 = vpop.permute.xlu0 %5955
        %5957 = vrot.lane.b32.xlu0 %v5680, 23
        %v5958 = vpop.permute.xlu0 %5957
        %5959 = vrot.lane.b32.xlu0 %v5681, 23
        %v5960 = vpop.permute.xlu0 %5959
        %5961 = vrot.lane.b32.xlu0 %v5682, 23
        %v5962 = vpop.permute.xlu0 %5961
        %5963 = vrot.lane.b32.xlu0 %v5668, 23
        %v5964 = vpop.permute.xlu0 %5963
        %5965 = vrot.lane.b32.xlu0 %v5683, 23
        %v5966 = vpop.permute.xlu0 %5965
        %5967 = vrot.lane.b32.xlu0 %v5684, 23
        %v5968 = vpop.permute.xlu0 %5967
        %5969 = vrot.lane.b32.xlu0 %v5685, 23
        %v5970 = vpop.permute.xlu0 %5969
        %5971 = vrot.lane.b32.xlu0 %v5686, 23
        %v5972 = vpop.permute.xlu0 %5971
        %5973 = vrot.lane.b32.xlu0 %v5678, 23
        %v5974 = vpop.permute.xlu0 %5973
        %5975 = vrot.lane.b32.xlu0 %v5688, 23
        %v5976 = vpop.permute.xlu0 %5975
        %5977 = vrot.lane.b32.xlu0 %v5703, 23
        %v5978 = vpop.permute.xlu0 %5977
        %5979 = vrot.lane.b32.xlu0 %v5704, 23
        %v5980 = vpop.permute.xlu0 %5979
        %5981 = vrot.lane.b32.xlu0 %v5705, 23
        %v5982 = vpop.permute.xlu0 %5981
        %5983 = vrot.lane.b32.xlu0 %v5694, 23
        %v5984 = vpop.permute.xlu0 %5983
        %5985 = vrot.lane.b32.xlu0 %v5696, 23
        %v5986 = vpop.permute.xlu0 %5985
        %5987 = vrot.lane.b32.xlu0 %v5706, 23
        %v5988 = vpop.permute.xlu0 %5987
        %5989 = vrot.lane.b32.xlu0 %v5707, 23
        %v5990 = vpop.permute.xlu0 %5989
        %5991 = vrot.lane.b32.xlu0 %v5708, 23
        %v5992 = vpop.permute.xlu0 %5991
        %5993 = vrot.lane.b32.xlu0 %v5702, 23
        %v5994 = vpop.permute.xlu0 %5993
        %5995 = vrot.lane.b32.xlu0 %v5720, 23
        %v5996 = vpop.permute.xlu0 %5995
        %5997 = vrot.lane.b32.xlu0 %v5739, 23
        %v5998 = vpop.permute.xlu0 %5997
        %5999 = vrot.lane.b32.xlu0 %v5740, 23
        %v6000 = vpop.permute.xlu0 %5999
        %6001 = vrot.lane.b32.xlu0 %v5741, 23
        %v6002 = vpop.permute.xlu0 %6001
        %6003 = vrot.lane.b32.xlu0 %v5742, 23
        %v6004 = vpop.permute.xlu0 %6003
        %6005 = vrot.lane.b32.xlu0 %v5730, 23
        %v6006 = vpop.permute.xlu0 %6005
        %6007 = vrot.lane.b32.xlu0 %v5743, 23
        %v6008 = vpop.permute.xlu0 %6007
        %6009 = vrot.lane.b32.xlu0 %v5744, 23
        %v6010 = vpop.permute.xlu0 %6009
        %6011 = vrot.lane.b32.xlu0 %v5745, 23
        %v6012 = vpop.permute.xlu0 %6011
        %6013 = vrot.lane.b32.xlu0 %v5746, 23
        %v6014 = vpop.permute.xlu0 %6013
        %6015 = vrot.lane.b32.xlu0 %v5748, 23
        %v6016 = vpop.permute.xlu0 %6015
        %6017 = vrot.lane.b32.xlu0 %v5767, 23
        %v6018 = vpop.permute.xlu0 %6017
        %6019 = vrot.lane.b32.xlu0 %v5768, 23
        %v6020 = vpop.permute.xlu0 %6019
        %6021 = vrot.lane.b32.xlu0 %v5769, 23
        %v6022 = vpop.permute.xlu0 %6021
        %6023 = vrot.lane.b32.xlu0 %v5770, 23
        %v6024 = vpop.permute.xlu0 %6023
        %6025 = vrot.lane.b32.xlu0 %v5758, 23
        %v6026 = vpop.permute.xlu0 %6025
        %6027 = vrot.lane.b32.xlu0 %v5771, 23
        %v6028 = vpop.permute.xlu0 %6027
        %6029 = vrot.lane.b32.xlu0 %v5772, 23
        %v6030 = vpop.permute.xlu0 %6029
        %6031 = vrot.lane.b32.xlu0 %v5773, 23
        %v6032 = vpop.permute.xlu0 %6031
        %6033 = vrot.lane.b32.xlu0 %v5774, 23
        %v6034 = vpop.permute.xlu0 %6033
        %6035 = vrot.lane.b32.xlu0 %v5776, 23
        %v6036 = vpop.permute.xlu0 %6035
        %6037 = vrot.lane.b32.xlu0 %v5795, 23
        %v6038 = vpop.permute.xlu0 %6037
        %6039 = vrot.lane.b32.xlu0 %v5796, 23
        %v6040 = vpop.permute.xlu0 %6039
        %6041 = vrot.lane.b32.xlu0 %v5797, 23
        %v6042 = vpop.permute.xlu0 %6041
        %6043 = vrot.lane.b32.xlu0 %v5798, 23
        %v6044 = vpop.permute.xlu0 %6043
        %6045 = vrot.lane.b32.xlu0 %v5786, 23
        %v6046 = vpop.permute.xlu0 %6045
        %6047 = vrot.lane.b32.xlu0 %v5799, 23
        %v6048 = vpop.permute.xlu0 %6047
        %6049 = vrot.lane.b32.xlu0 %v5800, 23
        %v6050 = vpop.permute.xlu0 %6049
        %6051 = vrot.lane.b32.xlu0 %v5801, 23
        %v6052 = vpop.permute.xlu0 %6051
        %6053 = vrot.lane.b32.xlu0 %v5802, 23
        %v6054 = vpop.permute.xlu0 %6053
        %6055 = vrot.lane.b32.xlu0 %v5804, 23
        %v6056 = vpop.permute.xlu0 %6055
        %6057 = vrot.lane.b32.xlu0 %v5823, 23
        %v6058 = vpop.permute.xlu0 %6057
        %6059 = vrot.lane.b32.xlu0 %v5824, 23
        %v6060 = vpop.permute.xlu0 %6059
        %6061 = vrot.lane.b32.xlu0 %v5825, 23
        %v6062 = vpop.permute.xlu0 %6061
        %6063 = vrot.lane.b32.xlu0 %v5826, 23
        %v6064 = vpop.permute.xlu0 %6063
        %6065 = vrot.lane.b32.xlu0 %v5814, 23
        %v6066 = vpop.permute.xlu0 %6065
        %6067 = vrot.lane.b32.xlu0 %v5827, 23
        %v6068 = vpop.permute.xlu0 %6067
        %6069 = vrot.lane.b32.xlu0 %v5828, 23
        %v6070 = vpop.permute.xlu0 %6069
        %6071 = vrot.lane.b32.xlu0 %v5829, 23
        %v6072 = vpop.permute.xlu0 %6071
        %6073 = vrot.lane.b32.xlu0 %v5830, 23
        %v6074 = vpop.permute.xlu0 %6073
        %v6075 = vsel %vm3337, %v5896, %v5898
        %v6076 = vsel %vm3337, %v5898, %v5900
        %v6077 = vsel %vm3337, %v5900, %v5902
        %v6078 = vsel %vm3337, %v5902, %v5904
        %v6079 = vsel %vm3337, %v5906, %v5908
        %v6080 = vsel %vm3337, %v5908, %v5910
        %v6081 = vsel %vm3337, %v5910, %v5912
        %v6082 = vsel %vm3337, %v5912, %v5914
        %v6083 = vsel %vm3337, %v5916, %v5918
        %v6084 = vsel %vm3337, %v5918, %v5920
        %v6085 = vsel %vm3337, %v5920, %v5922
        %v6086 = vsel %vm3337, %v5922, %v5924
        %v6087 = vsel %vm3337, %v5926, %v5928
        %v6088 = vsel %vm3337, %v5928, %v5930
        %v6089 = vsel %vm3337, %v5930, %v5932
        %v6090 = vsel %vm3337, %v5932, %v5934
        %v6091 = vsel %vm3337, %v5936, %v5938
        %v6092 = vsel %vm3337, %v5938, %v5940
        %v6093 = vsel %vm3337, %v5940, %v5942
        %v6094 = vsel %vm3337, %v5942, %v5944
        %v6095 = vsel %vm3337, %v5946, %v5948
        %v6096 = vsel %vm3337, %v5948, %v5950
        %v6097 = vsel %vm3337, %v5950, %v5952
        %v6098 = vsel %vm3337, %v5952, %v5954
        %v6099 = vsel %vm3337, %v5956, %v5958
        %v6100 = vsel %vm3337, %v5958, %v5960
        %v6101 = vsel %vm3337, %v5960, %v5962
        %v6102 = vsel %vm3337, %v5962, %v5964
        %v6103 = vsel %vm3337, %v5966, %v5968
        %v6104 = vsel %vm3337, %v5968, %v5970
        %v6105 = vsel %vm3337, %v5970, %v5972
        %v6106 = vsel %vm3337, %v5972, %v5974
        %v6107 = vsel %vm3337, %v5976, %v5978
        %v6108 = vsel %vm3337, %v5978, %v5980
        %v6109 = vsel %vm3337, %v5980, %v5982
        %v6110 = vsel %vm3337, %v5982, %v5984
        %v6111 = vsel %vm3337, %v5986, %v5988
        %v6112 = vsel %vm3337, %v5988, %v5990
        %v6113 = vsel %vm3337, %v5990, %v5992
        %v6114 = vsel %vm3337, %v5992, %v5994
        %v6115 = vsel %vm3337, %v5996, %v5998
        %v6116 = vsel %vm3337, %v5998, %v6000
        %v6117 = vsel %vm3337, %v6000, %v6002
        %v6118 = vsel %vm3337, %v6002, %v6004
        %v6119 = vsel %vm3337, %v6006, %v6008
        %v6120 = vsel %vm3337, %v6008, %v6010
        %v6121 = vsel %vm3337, %v6010, %v6012
        %v6122 = vsel %vm3337, %v6012, %v6014
        %v6123 = vsel %vm3337, %v6016, %v6018
        %v6124 = vsel %vm3337, %v6018, %v6020
        %v6125 = vsel %vm3337, %v6020, %v6022
        %v6126 = vsel %vm3337, %v6022, %v6024
        %v6127 = vsel %vm3337, %v6026, %v6028
        %v6128 = vsel %vm3337, %v6028, %v6030
        %v6129 = vsel %vm3337, %v6030, %v6032
        %v6130 = vsel %vm3337, %v6032, %v6034
        %v6131 = vsel %vm3337, %v6036, %v6038
        %v6132 = vsel %vm3337, %v6038, %v6040
        %v6133 = vsel %vm3337, %v6040, %v6042
        %v6134 = vsel %vm3337, %v6042, %v6044
        %v6135 = vsel %vm3337, %v6046, %v6048
        %v6136 = vsel %vm3337, %v6048, %v6050
        %v6137 = vsel %vm3337, %v6050, %v6052
        %v6138 = vsel %vm3337, %v6052, %v6054
        %v6139 = vsel %vm3337, %v6056, %v6058
        %v6140 = vsel %vm3337, %v6058, %v6060
        %v6141 = vsel %vm3337, %v6060, %v6062
        %v6142 = vsel %vm3337, %v6062, %v6064
        %v6143 = vsel %vm3337, %v6066, %v6068
        %v6144 = vsel %vm3337, %v6068, %v6070
        %v6145 = vsel %vm3337, %v6070, %v6072
        %v6146 = vsel %vm3337, %v6072, %v6074
        %v6220 = vsel %vm3482, %v5887, 0
        %v6223 = vsel %vm3482, %v5890, 0
        %6225 = vmatprep.subr.bf16.mxu0 %v6076
        %6226 = vmatpush1.bf16.msra.mxu0 %v6075
        %6227 = vmatprep.subr.bf16.mxu0 %v6080
        %6228 = vmatpush1.bf16.msra.mxu0 %v6079
        %6229 = vmatprep.subr.bf16.mxu0 %v6084
        %6230 = vmatpush1.bf16.msra.mxu0 %v6083
        %6231 = vmatprep.subr.bf16.mxu0 %v6088
        %6232 = vmatpush1.bf16.msra.mxu0 %v6087
        %6233 = vmatprep.subr.bf16.mxu0 %v6092
        %6234 = vmatpush1.bf16.msra.mxu0 %v6091
        %6235 = vmatprep.subr.bf16.mxu0 %v6096
        %6236 = vmatpush1.bf16.msra.mxu0 %v6095
        %6237 = vmatprep.subr.bf16.mxu0 %v6100
        %6238 = vmatpush1.bf16.msra.mxu0 %v6099
        %6239 = vmatprep.subr.bf16.mxu0 %v6104
        %6240 = vmatpush1.bf16.msra.mxu0 %v6103
        %6241 = vmatprep.subr.bf16.mxu0 %v6108
        %6242 = vmatpush1.bf16.msra.mxu0 %v6107
        %6243 = vmatprep.subr.bf16.mxu0 %v6112
        %6244 = vmatpush1.bf16.msra.mxu0 %v6111
        %6245 = vmatprep.subr.bf16.mxu0 %v6116
        %6246 = vmatpush1.bf16.msra.mxu0 %v6115
        %6247 = vmatprep.subr.bf16.mxu0 %v6120
        %6248 = vmatpush1.bf16.msra.mxu0 %v6119
        %6249 = vmatprep.subr.bf16.mxu0 %v6124
        %6250 = vmatpush1.bf16.msra.mxu0 %v6123
        %6251 = vmatprep.subr.bf16.mxu0 %v6128
        %6252 = vmatpush1.bf16.msra.mxu0 %v6127
        %6253 = vmatprep.subr.bf16.mxu0 %v6132
        %6254 = vmatpush1.bf16.msra.mxu0 %v6131
        %6255 = vmatprep.subr.bf16.mxu0 %v6136
        %6256 = vmatpush1.bf16.msra.mxu0 %v6135
        %6257 = vmatprep.mubr.bf16.mxu0 %v5886
        %6258 = vmatmul.mubr.bf16.gmra.mrb[0].mxu0 %v5885
        %v6259 = vpop.f32.mrb[0].mxu0
        %v6260 = vadd.f32 %v5848, %v6259
        %v6261 = vpop.f32.mrb[0].mxu0
        %v6262 = vadd.f32 %v5848, %v6261
        %v6263 = vpop.f32.mrb[0].mxu0
        %v6264 = vadd.f32 %v5853, %v6263
        %v6265 = vpop.f32.mrb[0].mxu0
        %v6266 = vadd.f32 %v5853, %v6265
        %6267 = vmatprep.mubr.bf16.mxu0 %v5889
        %6268 = vmatmul.mubr.bf16.gmra.mrb[0].mxu0 %v5888
        %v6269 = vpop.f32.mrb[0].mxu0
        %v6270 = vadd.f32 %v5858, %v6269
        %v6271 = vpop.f32.mrb[0].mxu0
        %v6272 = vadd.f32 %v5858, %v6271
        %v6273 = vpop.f32.mrb[0].mxu0
        %v6274 = vadd.f32 %v5863, %v6273
        %v6275 = vpop.f32.mrb[0].mxu0
        %v6276 = vadd.f32 %v5863, %v6275
        %6277 = vdwg.mxu0
        %6278 = vmatprep.subr.bf16.mxu0 %v6140
        %6279 = vmatpush1.bf16.msra.mxu0 %v6139
        %6280 = vmatprep.subr.bf16.mxu0 %v6144
        %6281 = vmatpush1.bf16.msra.mxu0 %v6143
        %6282 = vmatprep.subr.bf16.mxu0 0
        %6283 = vmatpush1.bf16.msra.mxu0 0
        %6284 = vmatprep.subr.bf16.mxu0 0
        %6285 = vmatpush1.bf16.msra.mxu0 0
        %6286 = vmatprep.subr.bf16.mxu0 0
        %6287 = vmatpush1.bf16.msra.mxu0 0
        %6288 = vmatprep.subr.bf16.mxu0 0
        %6289 = vmatpush1.bf16.msra.mxu0 0
        %6290 = vmatprep.subr.bf16.mxu0 0
        %6291 = vmatpush1.bf16.msra.mxu0 0
        %6292 = vmatprep.subr.bf16.mxu0 0
        %6293 = vmatpush1.bf16.msra.mxu0 0
        %6294 = vmatprep.subr.bf16.mxu0 0
        %6295 = vmatpush1.bf16.msra.mxu0 0
        %6296 = vmatprep.subr.bf16.mxu0 0
        %6297 = vmatpush1.bf16.msra.mxu0 0
        %6298 = vmatprep.subr.bf16.mxu0 0
        %6299 = vmatpush1.bf16.msra.mxu0 0
        %6300 = vmatprep.subr.bf16.mxu0 0
        %6301 = vmatpush1.bf16.msra.mxu0 0
        %6302 = vmatprep.subr.bf16.mxu0 0
        %6303 = vmatpush1.bf16.msra.mxu0 0
        %6304 = vmatprep.subr.bf16.mxu0 0
        %6305 = vmatpush1.bf16.msra.mxu0 0
        %6306 = vmatprep.subr.bf16.mxu0 0
        %6307 = vmatpush1.bf16.msra.mxu0 0
        %6308 = vmatprep.subr.bf16.mxu0 0
        %6309 = vmatpush1.bf16.msra.mxu0 0
        %6310 = vmatprep.mubr.bf16.mxu0 0
        %6311 = vmatmul.mubr.bf16.gmra.mrb[0].mxu0 %v6220
        %v6312 = vpop.f32.mrb[0].mxu0
        %v6313 = vadd.f32 %v6260, %v6312
        %v6314 = vpop.f32.mrb[0].mxu0
        %v6315 = vadd.f32 %v6262, %v6314
        %v6316 = vpop.f32.mrb[0].mxu0
        %v6317 = vadd.f32 %v6264, %v6316
        %v6318 = vpop.f32.mrb[0].mxu0
        %v6319 = vadd.f32 %v6266, %v6318
        %6320 = vmatprep.mubr.bf16.mxu0 0
        %6321 = vmatmul.mubr.bf16.gmra.mrb[0].mxu0 %v6223
        %v6322 = vpop.f32.mrb[0].mxu0
        %v6323 = vadd.f32 %v6270, %v6322
        %v6324 = vpop.f32.mrb[0].mxu0
        %v6325 = vadd.f32 %v6272, %v6324
        %v6326 = vpop.f32.mrb[0].mxu0
        %v6327 = vadd.f32 %v6274, %v6326
        %v6328 = vpop.f32.mrb[0].mxu0
        %v6329 = vadd.f32 %v6276, %v6328
        %6330 = vdwg.mxu0
        %6331 = vmatprep.subr.bf16.mxu0 %v6078
        %6332 = vmatpush1.bf16.msra.mxu0 %v6077
        %6333 = vmatprep.subr.bf16.mxu0 %v6082
        %6334 = vmatpush1.bf16.msra.mxu0 %v6081
        %6335 = vmatprep.subr.bf16.mxu0 %v6086
        %6336 = vmatpush1.bf16.msra.mxu0 %v6085
        %6337 = vmatprep.subr.bf16.mxu0 %v6090
        %6338 = vmatpush1.bf16.msra.mxu0 %v6089
        %6339 = vmatprep.subr.bf16.mxu0 %v6094
        %6340 = vmatpush1.bf16.msra.mxu0 %v6093
        %6341 = vmatprep.subr.bf16.mxu0 %v6098
        %6342 = vmatpush1.bf16.msra.mxu0 %v6097
        %6343 = vmatprep.subr.bf16.mxu0 %v6102
        %6344 = vmatpush1.bf16.msra.mxu0 %v6101
        %6345 = vmatprep.subr.bf16.mxu0 %v6106
        %6346 = vmatpush1.bf16.msra.mxu0 %v6105
        %6347 = vmatprep.subr.bf16.mxu0 %v6110
        %6348 = vmatpush1.bf16.msra.mxu0 %v6109
        %6349 = vmatprep.subr.bf16.mxu0 %v6114
        %6350 = vmatpush1.bf16.msra.mxu0 %v6113
        %6351 = vmatprep.subr.bf16.mxu0 %v6118
        %6352 = vmatpush1.bf16.msra.mxu0 %v6117
        %6353 = vmatprep.subr.bf16.mxu0 %v6122
        %6354 = vmatpush1.bf16.msra.mxu0 %v6121
        %6355 = vmatprep.subr.bf16.mxu0 %v6126
        %6356 = vmatpush1.bf16.msra.mxu0 %v6125
        %6357 = vmatprep.subr.bf16.mxu0 %v6130
        %6358 = vmatpush1.bf16.msra.mxu0 %v6129
        %6359 = vmatprep.subr.bf16.mxu0 %v6134
        %6360 = vmatpush1.bf16.msra.mxu0 %v6133
        %6361 = vmatprep.subr.bf16.mxu0 %v6138
        %6362 = vmatpush1.bf16.msra.mxu0 %v6137
        %6363 = vmatprep.mubr.bf16.mxu0 %v5886
        %6364 = vmatmul.mubr.bf16.gmra.mrb[0].mxu0 %v5885
        %v6365 = vpop.f32.mrb[0].mxu0
        %v6366 = vadd.f32 %v5848, %v6365
        %v6367 = vpop.f32.mrb[0].mxu0
        %v6368 = vadd.f32 %v5848, %v6367
        %v6369 = vpop.f32.mrb[0].mxu0
        %v6370 = vadd.f32 %v5853, %v6369
        %v6371 = vpop.f32.mrb[0].mxu0
        %v6372 = vadd.f32 %v5853, %v6371
        %6373 = vmatprep.mubr.bf16.mxu0 %v5889
        %6374 = vmatmul.mubr.bf16.gmra.mrb[0].mxu0 %v5888
        %v6375 = vpop.f32.mrb[0].mxu0
        %v6376 = vadd.f32 %v5858, %v6375
        %v6377 = vpop.f32.mrb[0].mxu0
        %v6378 = vadd.f32 %v5858, %v6377
        %v6379 = vpop.f32.mrb[0].mxu0
        %v6380 = vadd.f32 %v5863, %v6379
        %v6381 = vpop.f32.mrb[0].mxu0
        %v6382 = vadd.f32 %v5863, %v6381
        %6383 = vdwg.mxu0
        %6384 = vmatprep.subr.bf16.mxu0 %v6142
        %6385 = vmatpush1.bf16.msra.mxu0 %v6141
        %6386 = vmatprep.subr.bf16.mxu0 %v6146
        %6387 = vmatpush1.bf16.msra.mxu0 %v6145
        %6388 = vmatprep.subr.bf16.mxu0 0
        %6389 = vmatpush1.bf16.msra.mxu0 0
        %6390 = vmatprep.subr.bf16.mxu0 0
        %6391 = vmatpush1.bf16.msra.mxu0 0
        %6392 = vmatprep.subr.bf16.mxu0 0
        %6393 = vmatpush1.bf16.msra.mxu0 0
        %6394 = vmatprep.subr.bf16.mxu0 0
        %6395 = vmatpush1.bf16.msra.mxu0 0
        %6396 = vmatprep.subr.bf16.mxu0 0
        %6397 = vmatpush1.bf16.msra.mxu0 0
        %6398 = vmatprep.subr.bf16.mxu0 0
        %6399 = vmatpush1.bf16.msra.mxu0 0
        %6400 = vmatprep.subr.bf16.mxu0 0
        %6401 = vmatpush1.bf16.msra.mxu0 0
        %6402 = vmatprep.subr.bf16.mxu0 0
        %6403 = vmatpush1.bf16.msra.mxu0 0
        %6404 = vmatprep.subr.bf16.mxu0 0
        %6405 = vmatpush1.bf16.msra.mxu0 0
        %6406 = vmatprep.subr.bf16.mxu0 0
        %6407 = vmatpush1.bf16.msra.mxu0 0
        %6408 = vmatprep.subr.bf16.mxu0 0
        %6409 = vmatpush1.bf16.msra.mxu0 0
        %6410 = vmatprep.subr.bf16.mxu0 0
        %6411 = vmatpush1.bf16.msra.mxu0 0
        %6412 = vmatprep.subr.bf16.mxu0 0
        %6413 = vmatpush1.bf16.msra.mxu0 0
        %6414 = vmatprep.subr.bf16.mxu0 0
        %6415 = vmatpush1.bf16.msra.mxu0 0
        %6416 = vmatprep.mubr.bf16.mxu0 0
        %6417 = vmatmul.mubr.bf16.gmra.mrb[0].mxu0 %v6220
        %v6418 = vpop.f32.mrb[0].mxu0
        %v6419 = vadd.f32 %v6366, %v6418
        %v6420 = vpop.f32.mrb[0].mxu0
        %v6421 = vadd.f32 %v6368, %v6420
        %v6422 = vpop.f32.mrb[0].mxu0
        %v6423 = vadd.f32 %v6370, %v6422
        %v6424 = vpop.f32.mrb[0].mxu0
        %v6425 = vadd.f32 %v6372, %v6424
        %6426 = vmatprep.mubr.bf16.mxu0 0
        %6427 = vmatmul.mubr.bf16.gmra.mrb[0].mxu0 %v6223
        %v6428 = vpop.f32.mrb[0].mxu0
        %v6429 = vadd.f32 %v6376, %v6428
        %v6430 = vpop.f32.mrb[0].mxu0
        %v6431 = vadd.f32 %v6378, %v6430
        %v6432 = vpop.f32.mrb[0].mxu0
        %v6433 = vadd.f32 %v6380, %v6432
        %v6434 = vpop.f32.mrb[0].mxu0
        %v6435 = vadd.f32 %v6382, %v6434
        %6436 = vdwg.mxu0
        %v6437 = vmul.f32 %v6313, %v2788
        %v6438 = vmul.f32 %v6315, %v2792
        %v6439 = vmul.f32 %v6419, %v2796
        %v6440 = vmul.f32 %v6421, %v2800
        %v6441 = vmul.f32 %v6317, %v2788
        %v6442 = vmul.f32 %v6319, %v2792
        %v6443 = vmul.f32 %v6423, %v2796
        %v6444 = vmul.f32 %v6425, %v2800
        %v6445 = vmul.f32 %v6323, %v2788
        %v6446 = vmul.f32 %v6325, %v2792
        %v6447 = vmul.f32 %v6429, %v2796
        %v6448 = vmul.f32 %v6431, %v2800
        %v6449 = vmul.f32 %v6327, %v2788
        %v6450 = vmul.f32 %v6329, %v2792
        %v6451 = vmul.f32 %v6433, %v2796
        %v6452 = vmul.f32 %v6435, %v2800
        %v6453 = vadd.f32 %v4629, %v6437
        %v6454 = vadd.f32 %v4630, %v6438
        %v6455 = vadd.f32 %v4631, %v6439
        %v6456 = vadd.f32 %v4632, %v6440
        %v6457 = vadd.f32 %v4633, %v6441
        %v6458 = vadd.f32 %v4634, %v6442
        %v6459 = vadd.f32 %v4635, %v6443
        %v6460 = vadd.f32 %v4636, %v6444
        %v6461 = vadd.f32 %v4637, %v6445
        %v6462 = vadd.f32 %v4638, %v6446
        %v6463 = vadd.f32 %v4639, %v6447
        %v6464 = vadd.f32 %v4640, %v6448
        %v6465 = vadd.f32 %v4641, %v6449
        %v6466 = vadd.f32 %v4642, %v6450
        %v6467 = vadd.f32 %v4643, %v6451
        %v6468 = vadd.f32 %v4644, %v6452
        %v6469 = vpack.c.bf16 %v6457, %v6453
        %v6470 = vpack.c.bf16 %v6458, %v6454
        %v6471 = vpack.c.bf16 %v6459, %v6455
        %v6472 = vpack.c.bf16 %v6460, %v6456
        %v6473 = vpack.c.bf16 %v6465, %v6461
        %v6474 = vpack.c.bf16 %v6466, %v6462
        %v6475 = vpack.c.bf16 %v6467, %v6463
        %v6476 = vpack.c.bf16 %v6468, %v6464
        %6477 = vst [vmem:[#allocation3 + $0x8] sm:$0xff] %v6469
        %6478 = vst [vmem:[#allocation3 + $0x10] sm:$0xff] %v6470
        %6479 = vst [vmem:[#allocation3 + $0x18] sm:$0xff] %v6471
        %6480 = vst [vmem:[#allocation3 + $0x20] sm:$0xff] %v6472
        %6481 = vst [vmem:[#allocation3 + $0x38] sm:$0xff] %v6473
        %6482 = vst [vmem:[#allocation3 + $0x40] sm:$0xff] %v6474
        %6483 = vst [vmem:[#allocation3 + $0x48] sm:$0xff] %v6475
        %6484 = vst [vmem:[#allocation3 + $0x50] sm:$0xff] %v6476
        %v6485 = vld [vmem:[%s6] sm:$0xf]
        %v6486 = vld [vmem:[%s6 + $0x4] sm:$0xf]
        %v6487 = vld [vmem:[%s6 + $0x8] sm:$0xf]
        %v6488 = vld [vmem:[%s6 + $0xc] sm:$0xf]
        %v6489 = vld [vmem:[%s7] sm:$0xff]
        %v6490 = vld [vmem:[%s7 + $0x8] sm:$0xff]
        %v6491 = vld [vmem:[%s7 + $0x10] sm:$0xff]
        %v6492 = vld [vmem:[%s7 + $0x18] sm:$0xff]
        %6494 = vset.pattern.permute.xlu0 0
        %6495 = vperm.xlu0 %6494, %v6489
        %v6496 = vpop.permute.xlu0 %6495
        %6499 = vset.pattern.permute.xlu0 0
        %6500 = vperm.xlu0 %6499, %v6490
        %v6501 = vpop.permute.xlu0 %6500
        %6504 = vset.pattern.permute.xlu0 0
        %6505 = vperm.xlu0 %6504, %v6491
        %v6506 = vpop.permute.xlu0 %6505
        %6509 = vset.pattern.permute.xlu0 0
        %6510 = vperm.xlu0 %6509, %v6492
        %v6511 = vpop.permute.xlu0 %6510
        %v6517 = vunpack.c.l.b16 %v6485
        %v6518 = vunpack.c.l.b16 %v6486
        %v6519 = vunpack.c.l.b16 %v6487
        %v6520 = vunpack.c.l.b16 %v6488
        %v6521 = vpack.c.b16 %v6518, %v6517
        %v6522 = vpack.c.b16 %v6520, %v6519
        %v6524 = vsel %vm3482, %v6521, 0
        %v6527 = vsel %vm3482, %v6522, 0
        %6529 = vmatprep.subr.bf16.mxu0 %v6470
        %6530 = vmatpush1.bf16.msra.mxu0 %v6469
        %6531 = vmatprep.subr.bf16.mxu0 %v6474
        %6532 = vmatpush1.bf16.msra.mxu0 %v6473
        %6533 = vmatprep.subr.bf16.mxu0 0
        %6534 = vmatpush1.bf16.msra.mxu0 0
        %6535 = vmatprep.subr.bf16.mxu0 0
        %6536 = vmatpush1.bf16.msra.mxu0 0
        %6537 = vmatprep.subr.bf16.mxu0 0
        %6538 = vmatpush1.bf16.msra.mxu0 0
        %6539 = vmatprep.subr.bf16.mxu0 0
        %6540 = vmatpush1.bf16.msra.mxu0 0
        %6541 = vmatprep.subr.bf16.mxu0 0
        %6542 = vmatpush1.bf16.msra.mxu0 0
        %6543 = vmatprep.subr.bf16.mxu0 0
        %6544 = vmatpush1.bf16.msra.mxu0 0
        %6545 = vmatprep.subr.bf16.mxu0 0
        %6546 = vmatpush1.bf16.msra.mxu0 0
        %6547 = vmatprep.subr.bf16.mxu0 0
        %6548 = vmatpush1.bf16.msra.mxu0 0
        %6549 = vmatprep.subr.bf16.mxu0 0
        %6550 = vmatpush1.bf16.msra.mxu0 0
        %6551 = vmatprep.subr.bf16.mxu0 0
        %6552 = vmatpush1.bf16.msra.mxu0 0
        %6553 = vmatprep.subr.bf16.mxu0 0
        %6554 = vmatpush1.bf16.msra.mxu0 0
        %6555 = vmatprep.subr.bf16.mxu0 0
        %6556 = vmatpush1.bf16.msra.mxu0 0
        %6557 = vmatprep.subr.bf16.mxu0 0
        %6558 = vmatpush1.bf16.msra.mxu0 0
        %6559 = vmatprep.subr.bf16.mxu0 0
        %6560 = vmatpush1.bf16.msra.mxu0 0
        %6561 = vmatprep.mubr.bf16.mxu0 0
        %6562 = vmatmul.mubr.bf16.gmra.mrb[0].mxu0 %v6524
        %v6563 = vpop.f32.mrb[0].mxu0
        %v6564 = vadd.f32 %v6496, %v6563
        %v6565 = vpop.f32.mrb[0].mxu0
        %v6566 = vadd.f32 %v6496, %v6565
        %v6567 = vpop.f32.mrb[0].mxu0
        %v6568 = vadd.f32 %v6501, %v6567
        %v6569 = vpop.f32.mrb[0].mxu0
        %v6570 = vadd.f32 %v6501, %v6569
        %6571 = vmatprep.mubr.bf16.mxu0 0
        %6572 = vmatmul.mubr.bf16.gmra.mrb[0].mxu0 %v6527
        %v6573 = vpop.f32.mrb[0].mxu0
        %v6574 = vadd.f32 %v6506, %v6573
        %v6575 = vpop.f32.mrb[0].mxu0
        %v6576 = vadd.f32 %v6506, %v6575
        %v6577 = vpop.f32.mrb[0].mxu0
        %v6578 = vadd.f32 %v6511, %v6577
        %v6579 = vpop.f32.mrb[0].mxu0
        %v6580 = vadd.f32 %v6511, %v6579
        %6581 = vdwg.mxu0
        %6582 = vmatprep.subr.bf16.mxu0 %v6472
        %6583 = vmatpush1.bf16.msra.mxu0 %v6471
        %6584 = vmatprep.subr.bf16.mxu0 %v6476
        %6585 = vmatpush1.bf16.msra.mxu0 %v6475
        %6586 = vmatprep.subr.bf16.mxu0 0
        %6587 = vmatpush1.bf16.msra.mxu0 0
        %6588 = vmatprep.subr.bf16.mxu0 0
        %6589 = vmatpush1.bf16.msra.mxu0 0
        %6590 = vmatprep.subr.bf16.mxu0 0
        %6591 = vmatpush1.bf16.msra.mxu0 0
        %6592 = vmatprep.subr.bf16.mxu0 0
        %6593 = vmatpush1.bf16.msra.mxu0 0
        %6594 = vmatprep.subr.bf16.mxu0 0
        %6595 = vmatpush1.bf16.msra.mxu0 0
        %6596 = vmatprep.subr.bf16.mxu0 0
        %6597 = vmatpush1.bf16.msra.mxu0 0
        %6598 = vmatprep.subr.bf16.mxu0 0
        %6599 = vmatpush1.bf16.msra.mxu0 0
        %6600 = vmatprep.subr.bf16.mxu0 0
        %6601 = vmatpush1.bf16.msra.mxu0 0
        %6602 = vmatprep.subr.bf16.mxu0 0
        %6603 = vmatpush1.bf16.msra.mxu0 0
        %6604 = vmatprep.subr.bf16.mxu0 0
        %6605 = vmatpush1.bf16.msra.mxu0 0
        %6606 = vmatprep.subr.bf16.mxu0 0
        %6607 = vmatpush1.bf16.msra.mxu0 0
        %6608 = vmatprep.subr.bf16.mxu0 0
        %6609 = vmatpush1.bf16.msra.mxu0 0
        %6610 = vmatprep.subr.bf16.mxu0 0
        %6611 = vmatpush1.bf16.msra.mxu0 0
        %6612 = vmatprep.subr.bf16.mxu0 0
        %6613 = vmatpush1.bf16.msra.mxu0 0
        %6614 = vmatprep.mubr.bf16.mxu0 0
        %6615 = vmatmul.mubr.bf16.gmra.mrb[0].mxu0 %v6524
        %v6616 = vpop.f32.mrb[0].mxu0
        %v6617 = vadd.f32 %v6496, %v6616
        %v6618 = vpop.f32.mrb[0].mxu0
        %v6619 = vadd.f32 %v6496, %v6618
        %v6620 = vpop.f32.mrb[0].mxu0
        %v6621 = vadd.f32 %v6501, %v6620
        %v6622 = vpop.f32.mrb[0].mxu0
        %v6623 = vadd.f32 %v6501, %v6622
        %6624 = vmatprep.mubr.bf16.mxu0 0
        %6625 = vmatmul.mubr.bf16.gmra.mrb[0].mxu0 %v6527
        %v6626 = vpop.f32.mrb[0].mxu0
        %v6627 = vadd.f32 %v6506, %v6626
        %v6628 = vpop.f32.mrb[0].mxu0
        %v6629 = vadd.f32 %v6506, %v6628
        %v6630 = vpop.f32.mrb[0].mxu0
        %v6631 = vadd.f32 %v6511, %v6630
        %v6632 = vpop.f32.mrb[0].mxu0
        %v6633 = vadd.f32 %v6511, %v6632
        %6634 = vdwg.mxu0
        %6635 = vst [vmem:[%s325] sm:$0xff] %v6564
        %6636 = vst [vmem:[%s325 + $0x8] sm:$0xff] %v6566
        %6637 = vst [vmem:[%s325 + $0x10] sm:$0xff] %v6617
        %6638 = vst [vmem:[%s325 + $0x18] sm:$0xff] %v6619
        %6639 = vst [vmem:[%s325 + $0x20] sm:$0xff] %v6568
        %6640 = vst [vmem:[%s325 + $0x28] sm:$0xff] %v6570
        %6641 = vst [vmem:[%s325 + $0x30] sm:$0xff] %v6621
        %6642 = vst [vmem:[%s325 + $0x38] sm:$0xff] %v6623
        %6643 = vst [vmem:[%s325 + $0x40] sm:$0xff] %v6574
        %6644 = vst [vmem:[%s325 + $0x48] sm:$0xff] %v6576
        %6645 = vst [vmem:[%s325 + $0x50] sm:$0xff] %v6627
        %6646 = vst [vmem:[%s325 + $0x58] sm:$0xff] %v6629
        %6647 = vst [vmem:[%s325 + $0x60] sm:$0xff] %v6578
        %6648 = vst [vmem:[%s325 + $0x68] sm:$0xff] %v6580
        %6649 = vst [vmem:[%s325 + $0x70] sm:$0xff] %v6631
        %6650 = vst [vmem:[%s325 + $0x78] sm:$0xff] %v6633
        %s6651 = sand.u32 %s200, 1
        %s6652 = sand.u32 %s200, 1
        %s6653 = smul.addr %s6652, 128
        %s6654 = scalar_lea.vmem [#allocation5], %s6653
        // Predicated region
        $region76: #{pixelcnnpp_forward.1} parent=70 // pred_check
          %p6655 = pneg %p210
        $region77: #{pixelcnnpp_forward.1} parent=70 // pred_check_branch
          %6657 = sbr.rel (%p6655) target = $region79
        $region78: #{pixelcnnpp_forward.1} parent=70 // pred_region
          %s6658 = smul.u32 4, %s19
          %s6659 = smul.addr %s6658, 8
          %s6660 = scalar_lea.vmem %s8, %s6659
          // Predicated region
          $region80: #{pixelcnnpp_forward.1} parent=78 // pred_check
            _
          $region81: #{pixelcnnpp_forward.1} parent=78 // pred_check_branch
            %6662 = sbr.rel (0) target = $region83
          $region82: #{pixelcnnpp_forward.1} parent=78 // pred_region
            // Predicated region
            $region84: #{pixelcnnpp_forward.1} parent=82 // pred_check
              _
            $region85: #{pixelcnnpp_forward.1} parent=82 // pred_check_branch
              %6664 = sbr.rel (0) target = $region87
            $region86: #{pixelcnnpp_forward.1} parent=82 // pred_region
              loop: start=0, step=1, limit=1
              $region88: #{pixelcnnpp_forward.1} parent=86 // loop_pre_header
                _
              $region89: #{pixelcnnpp_forward.1} parent=86 // loop_header
                %s6666 = sphi 0, %s6670
                %p6667 = scmp.ge.s32.totalorder %s6666, 1
                %s6671 = sphi %s6654, %s6654
                %s6672 = sphi %s6660, %s6660
              $region90: #{pixelcnnpp_forward.1} parent=86 // loop_header_branch
                %6669 = sbr.rel (%p6667) target = $region94
              $region91: #{pixelcnnpp_forward.1} parent=86 // loop_body
                %v6673 = vld [vmem:[%s6671] sm:$0xff]
                %6674 = vst [vmem:[%s6672] sm:$0xff] %v6673
                %v6675 = vld [vmem:[%s6671 + $0x8] sm:$0xff]
                %6676 = vst [vmem:[%s6672 + $0x8] sm:$0xff] %v6675
                %v6677 = vld [vmem:[%s6671 + $0x10] sm:$0xff]
                %6678 = vst [vmem:[%s6672 + $0x10] sm:$0xff] %v6677
                %v6679 = vld [vmem:[%s6671 + $0x18] sm:$0xff]
                %6680 = vst [vmem:[%s6672 + $0x18] sm:$0xff] %v6679
                %v6681 = vld [vmem:[%s6671 + $0x20] sm:$0xff]
                %6682 = vst [vmem:[%s6672 + $0x40] sm:$0xff] %v6681
                %v6683 = vld [vmem:[%s6671 + $0x28] sm:$0xff]
                %6684 = vst [vmem:[%s6672 + $0x48] sm:$0xff] %v6683
                %v6685 = vld [vmem:[%s6671 + $0x30] sm:$0xff]
                %6686 = vst [vmem:[%s6672 + $0x50] sm:$0xff] %v6685
                %v6687 = vld [vmem:[%s6671 + $0x38] sm:$0xff]
                %6688 = vst [vmem:[%s6672 + $0x58] sm:$0xff] %v6687
                %v6689 = vld [vmem:[%s6671 + $0x40] sm:$0xff]
                %6690 = vst [vmem:[%s6672 + $0x80] sm:$0xff] %v6689
                %v6691 = vld [vmem:[%s6671 + $0x48] sm:$0xff]
                %6692 = vst [vmem:[%s6672 + $0x88] sm:$0xff] %v6691
                %v6693 = vld [vmem:[%s6671 + $0x50] sm:$0xff]
                %6694 = vst [vmem:[%s6672 + $0x90] sm:$0xff] %v6693
                %v6695 = vld [vmem:[%s6671 + $0x58] sm:$0xff]
                %6696 = vst [vmem:[%s6672 + $0x98] sm:$0xff] %v6695
                %v6697 = vld [vmem:[%s6671 + $0x60] sm:$0xff]
                %6698 = vst [vmem:[%s6672 + $0xc0] sm:$0xff] %v6697
                %v6699 = vld [vmem:[%s6671 + $0x68] sm:$0xff]
                %6700 = vst [vmem:[%s6672 + $0xc8] sm:$0xff] %v6699
                %v6701 = vld [vmem:[%s6671 + $0x70] sm:$0xff]
                %6702 = vst [vmem:[%s6672 + $0xd0] sm:$0xff] %v6701
                %v6703 = vld [vmem:[%s6671 + $0x78] sm:$0xff]
                %6704 = vst [vmem:[%s6672 + $0xd8] sm:$0xff] %v6703
              $region92: #{pixelcnnpp_forward.1} parent=86 // loop_footer
                %s6670 = sadd.s32 1, %s6666
              $region93: #{pixelcnnpp_forward.1} parent=86 // loop_footer_branch
                %6665 = sbr.rel target = $region89
              $region94: #{pixelcnnpp_forward.1} parent=86 // loop_exit
                _
            $region87: #{pixelcnnpp_forward.1} parent=82 // pred_fallthru
              _
            // Predicated region
            $region95: #{pixelcnnpp_forward.1} parent=82 // pred_check
              _
            $region96: #{pixelcnnpp_forward.1} parent=82 // pred_check_branch
              %6706 = sbr.rel target = $region98
            $region97: #{pixelcnnpp_forward.1} parent=82 // pred_region
              _
            $region98: #{pixelcnnpp_forward.1} parent=82 // pred_fallthru
              _
          $region83: #{pixelcnnpp_forward.1} parent=78 // pred_fallthru
            _
          %6707 = vnop
        $region79: #{pixelcnnpp_forward.1} parent=70 // pred_fallthru
          _
      $region71: #{pixelcnnpp_forward.1} parent=5 // pred_fallthru
        _
      %p6708 = scmp.le.s32.totalorder 2, %s14
      // Predicated region
      $region99: #{pixelcnnpp_forward.1} parent=5 // pred_check
        %p6709 = pneg %p6708
      $region100: #{pixelcnnpp_forward.1} parent=5 // pred_check_branch
        %6711 = sbr.rel (%p6709) target = $region102
      $region101: #{pixelcnnpp_forward.1} parent=5 // pred_region
        %s6712 = ssub.s32 %s14, 2
        // Predicated region
        $region103: #{pixelcnnpp_forward.1} parent=101 // pred_check
          %p6713 = pneg %p216
        $region104: #{pixelcnnpp_forward.1} parent=101 // pred_check_branch
          %6715 = sbr.rel (%p6713) target = $region106
        $region105: #{pixelcnnpp_forward.1} parent=101 // pred_region
          %s6716 = sand.u32 %s201, 1
          %s6717 = sand.u32 %s201, 1
          %s6718 = smul.addr %s6717, 128
          %s6719 = scalar_lea.vmem [#allocation5], %s6718
        $region106: #{pixelcnnpp_forward.1} parent=101 // pred_fallthru
          _
      $region102: #{pixelcnnpp_forward.1} parent=5 // pred_fallthru
        _
    $region6: #{pixelcnnpp_forward.1} parent=1 // loop_footer
      %s18 = sadd.s32 1, %s14
    $region7: #{pixelcnnpp_forward.1} parent=1 // loop_footer_branch
      %13 = sbr.rel target = $region3
    $region8: #{pixelcnnpp_forward.1} parent=1 // loop_exit
      _

</llo_original>
